<compile_context>
chip_gen: v7x
topology: tpu7x:2x2x1
jax: 0.10.0
libtpu: 0.0.40
codegen_flags: <defaults>
</compile_context>

<pallas_src>
import jax
import jax.numpy as jnp
from jax import lax
from jax.experimental import pallas as pl
from jax.experimental.pallas import tpu as pltpu


# ---------------------------------------------------------------------------
# Pallas kernel: full MHSA forward for a block of S samples
# ---------------------------------------------------------------------------

def _mhsa_kernel(x_ref, w_ref, b_ref, rel_ref, g_ref, beta_ref, o_ref):
    """x_ref:(C, S*L) f32   w_ref:(3C, C) bf16   b_ref:(3C, 1) f32
    rel_ref:(heads, d, L) bf16   g_ref/beta_ref:(C, L) f32   o_ref:(C, S*L) f32."""
    heads, d, L = rel_ref.shape
    C = heads * d
    S = x_ref.shape[1] // L

    x = x_ref[...]                                              # (C, S*L) f32

    # Fused Q/K/V projection for the whole block: one (3C,C)@(C,S*L) matmul.
    qkv = (jnp.dot(w_ref[...], x.astype(jnp.bfloat16),
                   preferred_element_type=jnp.float32)
           + b_ref[...]).astype(jnp.bfloat16)                   # (3C, S*L)

    rel = rel_ref[...]                                          # (heads, d, L) bf16
    gamma = g_ref[...]                                          # (C, L) f32
    beta = beta_ref[...]                                        # (C, L) f32
    inv_n = 1.0 / (C * L)

    # Per-sample attention + LayerNorm; S is tiny and static, unrolled at trace
    # time.  Head-batched einsums lower to per-head vmatmuls (verified to
    # compile cleanly in the previous revision).
    for s in range(S):
        lo, hi = s * L, (s + 1) * L                             # 256-lane aligned
        q = qkv[:C, lo:hi].reshape(heads, d, L)                 # bf16
        k = qkv[C:2 * C, lo:hi].reshape(heads, d, L)
        v = qkv[2 * C:, lo:hi].reshape(heads, d, L)

        # Fused score matmul: energy = q^T k + rel^T q via a d-axis concat
        # (16+16 = 32 sublanes, bf16-tile aligned).
        lhs = jnp.concatenate([q, rel], axis=1)                 # (heads, 2d, L)
        rhs = jnp.concatenate([k, q], axis=1)                   # (heads, 2d, L)
        energy = jnp.einsum('hdl,hdm->hlm', lhs, rhs,
                            preferred_element_type=jnp.float32)  # (heads, L, L) f32

        # Softmax(dim=-1) with deferred normalisation.
        m = jnp.max(energy, axis=-1, keepdims=True)
        e = jnp.exp(energy - m)                                 # f32
        rowsum = jnp.sum(e, axis=-1)                            # (heads, L) f32

        # out[h,d,l1] = sum_l2 v[h,d,l2] * e[h,l1,l2], normalised afterwards.
        out = jnp.einsum('hdm,hlm->hdl', v, e.astype(jnp.bfloat16),
                         preferred_element_type=jnp.float32)    # (heads, d, L) f32
        out = out * pl.reciprocal(rowsum, approx=True)[:, None, :]
        out = out.reshape(C, L)                                 # == view(C, H, W)

        # Fused LayerNorm([C,H,W]) (biased var, eps=1e-5), single reduction
        # sweep, plus residual.
        s1 = jnp.sum(out)
        s2 = jnp.sum(out * out)
        mu = s1 * inv_n
        var = s2 * inv_n - mu * mu
        a = gamma * lax.rsqrt(var + 1e-5)
        o_ref[:, lo:hi] = (out - mu) * a + beta + x[:, lo:hi]


# ---------------------------------------------------------------------------
# Wrapper
# ---------------------------------------------------------------------------

def mhsa_forward(params, x, heads=4):
    """x: (B, C, H, W) -> (B, C, H, W).  Matches torch MHSA.forward."""
    B, C, H, W = x.shape
    d, L = C // heads, H * W

    # 2 fat grid steps when possible (one per v7x TensorCore; near-free extra
    # step on v5e/v6e), otherwise a single step.
    nblk = 2 if (B % 2 == 0 and B >= 2) else 1
    S = B // nblk
    SL, BL = S * L, B * L

    # Lane-dense (C, B*L) activation layout (one cheap XLA transpose outside
    # the kernel); invariants pre-cast: W_qkv / rel in bf16, rest f32.
    x_cl = (x.reshape(B, C, L).transpose(1, 0, 2).reshape(C, BL)
            .astype(jnp.float32))
    w_qkv = jnp.concatenate([params['q_w'], params['k_w'], params['v_w']],
                            axis=0).astype(jnp.bfloat16)        # (3C, C)
    b_qkv = jnp.concatenate([params['q_b'], params['k_b'], params['v_b']],
                            axis=0).reshape(3 * C, 1).astype(jnp.float32)
    rel = (params['rel_h'] + params['rel_w']).reshape(heads, d, L) \
        .astype(jnp.bfloat16)                                   # (heads, d, L)
    gamma = params['ln_gamma'].reshape(C, L).astype(jnp.float32)
    beta = params['ln_beta'].reshape(C, L).astype(jnp.float32)

    out = pl.pallas_call(
        _mhsa_kernel,
        grid=(nblk,),
        in_specs=[
            pl.BlockSpec((C, SL), lambda b: (0, b)),            # x block (S samples)
            pl.BlockSpec((3 * C, C), lambda b: (0, 0)),         # W_qkv (invariant)
            pl.BlockSpec((3 * C, 1), lambda b: (0, 0)),         # b_qkv (invariant)
            pl.BlockSpec((heads, d, L), lambda b: (0, 0, 0)),   # rel   (invariant)
            pl.BlockSpec((C, L), lambda b: (0, 0)),             # LN weight
            pl.BlockSpec((C, L), lambda b: (0, 0)),             # LN bias
        ],
        out_specs=pl.BlockSpec((C, SL), lambda b: (0, b)),
        out_shape=jax.ShapeDtypeStruct((C, BL), jnp.float32),
        compiler_params=pltpu.CompilerParams(
            dimension_semantics=("parallel",),
            vmem_limit_bytes=32 * 1024 * 1024),
    )(x_cl, w_qkv, b_qkv, rel, gamma, beta)

    return out.reshape(C, B, L).transpose(1, 0, 2).reshape(B, C, H, W)


# ---------------------------------------------------------------------------
# Plain-JAX reference (same bf16-MXU / f32-accumulate numerics) for self-check
# ---------------------------------------------------------------------------

def mhsa_reference(params, x, heads=4, mxu_dtype=jnp.bfloat16):
    B, C, H, W = x.shape
    d, L = C // heads, H * W

    def conv1x1(w, b):
        y = jnp.einsum('oc,bchw->bohw', w.astype(mxu_dtype), x.astype(mxu_dtype),
                       preferred_element_type=jnp.float32)
        return y + b[None, :, None, None]

    q = conv1x1(params['q_w'], params['q_b']).reshape(B, heads, d, L)
    k = conv1x1(params['k_w'], params['k_b']).reshape(B, heads, d, L)
    v = conv1x1(params['v_w'], params['v_b']).reshape(B, heads, d, L)
    rel = (params['rel_h'] + params['rel_w']).reshape(heads, d, L)

    cc = jnp.einsum('bhdl,bhdm->bhlm', q.astype(mxu_dtype), k.astype(mxu_dtype),
                    preferred_element_type=jnp.float32)
    cp = jnp.einsum('hdl,bhdm->bhlm', rel.astype(mxu_dtype), q.astype(mxu_dtype),
                    preferred_element_type=jnp.float32)
    attn = jax.nn.softmax(cc + cp, axis=-1)
    out = jnp.einsum('bhdm,bhlm->bhdl', v.astype(mxu_dtype), attn.astype(mxu_dtype),
                     preferred_element_type=jnp.float32)
    out = out.reshape(B, C, H, W)

    mu = jnp.mean(out, axis=(1, 2, 3), keepdims=True)
    var = jnp.mean((out - mu) ** 2, axis=(1, 2, 3), keepdims=True)
    out = (out - mu) / jnp.sqrt(var + 1e-5)
    out = out * params['ln_gamma'][None] + params['ln_beta'][None]
    return out + x


# ---------------------------------------------------------------------------
# Deterministic parameter init (shapes follow the PyTorch module __init__)
# ---------------------------------------------------------------------------

def init_params(key, n_dims=64, width=16, height=16, heads=4):
    ks = jax.random.split(key, 8)
    d = n_dims // heads

    def nrm(k, shape, scale):
        return scale * jax.random.normal(k, shape, jnp.float32)

    return dict(
        q_w=nrm(ks[0], (n_dims, n_dims), 0.05), q_b=nrm(ks[1], (n_dims,), 0.02),
        k_w=nrm(ks[2], (n_dims, n_dims), 0.05), k_b=nrm(ks[3], (n_dims,), 0.02),
        v_w=nrm(ks[4], (n_dims, n_dims), 0.05), v_b=nrm(ks[5], (n_dims,), 0.02),
        rel_h=jax.random.normal(ks[6], (1, heads, d, 1, height), jnp.float32),
        rel_w=jax.random.normal(ks[7], (1, heads, d, width, 1), jnp.float32),
        ln_gamma=jnp.ones((n_dims, width, height), jnp.float32),
        ln_beta=jnp.zeros((n_dims, width, height), jnp.float32),
    )


if __name__ == "__main__":
    key = jax.random.PRNGKey(0)
    kp, kx = jax.random.split(key)
    params = init_params(kp)
    # MHSA(n_dims=64, width=16, height=16, heads=4): input is (B, 64, 16, 16).
    x = jax.random.normal(kx, (4, 64, 16, 16), jnp.float32)

    fwd = jax.jit(mhsa_forward)
    out = fwd(params, x)
    jax.block_until_ready(out)

    ref = mhsa_reference(params, x)
    assert out.shape == x.shape
    assert bool(jnp.all(jnp.isfinite(out)))
    assert bool(jnp.allclose(out, ref, rtol=5e-2, atol=5e-2)), \
        float(jnp.max(jnp.abs(out - ref)))
    print("KERNEL_OK")
</pallas_src>

<mosaic_0001>
module attributes {stable_mosaic.version = 11 : i64} {
  func.func @_mhsa_kernel(%arg0: i32, %arg1: memref<64x512xf32, #tpu.memory_space<vmem>>, %arg2: memref<192x64xbf16, #tpu.memory_space<vmem>>, %arg3: memref<192x1xf32, #tpu.memory_space<vmem>>, %arg4: memref<4x16x256xbf16, #tpu.memory_space<vmem>>, %arg5: memref<64x256xf32, #tpu.memory_space<vmem>>, %arg6: memref<64x256xf32, #tpu.memory_space<vmem>>, %arg7: memref<64x512xf32, #tpu.memory_space<vmem>>) attributes {dimension_semantics = [#tpu.dimension_semantics<parallel>], iteration_bounds = array<i64: 2>, scalar_prefetch = 0 : i64, scratch_operands = 0 : i64, tpu.core_type = #tpu.core_type<tc>, window_params = [{transform_indices = @transform_0, window_bounds = array<i64: 64, 512>}, {pipeline_mode = #tpu.pipeline_mode<synchronous>, transform_indices = @transform_1, window_bounds = array<i64: 192, 64>}, {pipeline_mode = #tpu.pipeline_mode<synchronous>, transform_indices = @transform_2, window_bounds = array<i64: 192, 1>}, {pipeline_mode = #tpu.pipeline_mode<synchronous>, transform_indices = @transform_3, window_bounds = array<i64: 4, 16, 256>}, {pipeline_mode = #tpu.pipeline_mode<synchronous>, transform_indices = @transform_4, window_bounds = array<i64: 64, 256>}, {pipeline_mode = #tpu.pipeline_mode<synchronous>, transform_indices = @transform_5, window_bounds = array<i64: 64, 256>}, {transform_indices = @transform_6, window_bounds = array<i64: 64, 512>}]} {
    %c0 = arith.constant 0 : index
    %c0_0 = arith.constant 0 : index
    %0 = vector.load %arg1[%c0, %c0_0] : memref<64x512xf32, #tpu.memory_space<vmem>>, vector<64x512xf32>
    %c0_1 = arith.constant 0 : index
    %c0_2 = arith.constant 0 : index
    %1 = vector.load %arg2[%c0_1, %c0_2] : memref<192x64xbf16, #tpu.memory_space<vmem>>, vector<192x64xbf16>
    %2 = arith.truncf %0 : vector<64x512xf32> to vector<64x512xbf16>
    %cst = arith.constant dense<0.000000e+00> : vector<192x512xf32>
    %3 = tpu.matmul %1, %2, %cst {dimension_numbers = #tpu.dot_dimension_numbers<[1], [0], [0], [1], [0, 0, 1, 1], [], []>} : vector<192x64xbf16>, vector<64x512xbf16>, vector<192x512xf32> -> vector<192x512xf32>
    %c0_3 = arith.constant 0 : index
    %c0_4 = arith.constant 0 : index
    %4 = vector.load %arg3[%c0_3, %c0_4] : memref<192x1xf32, #tpu.memory_space<vmem>>, vector<192x1xf32>
    %5 = vector.broadcast %4 : vector<192x1xf32> to vector<192x512xf32>
    %6 = arith.addf %3, %5 : vector<192x512xf32>
    %7 = arith.truncf %6 : vector<192x512xf32> to vector<192x512xbf16>
    %c0_5 = arith.constant 0 : index
    %c0_6 = arith.constant 0 : index
    %c0_7 = arith.constant 0 : index
    %8 = vector.load %arg4[%c0_5, %c0_6, %c0_7] : memref<4x16x256xbf16, #tpu.memory_space<vmem>>, vector<4x16x256xbf16>
    %c0_8 = arith.constant 0 : index
    %c0_9 = arith.constant 0 : index
    %9 = vector.load %arg5[%c0_8, %c0_9] : memref<64x256xf32, #tpu.memory_space<vmem>>, vector<64x256xf32>
    %c0_10 = arith.constant 0 : index
    %c0_11 = arith.constant 0 : index
    %10 = vector.load %arg6[%c0_10, %c0_11] : memref<64x256xf32, #tpu.memory_space<vmem>>, vector<64x256xf32>
    %11 = vector.extract_strided_slice %7 {offsets = [0, 0], sizes = [64, 256], strides = [1, 1]} : vector<192x512xbf16> to vector<64x256xbf16>
    %12 = vector.shape_cast %11 : vector<64x256xbf16> to vector<4x16x256xbf16>
    %13 = vector.extract_strided_slice %7 {offsets = [64, 0], sizes = [64, 256], strides = [1, 1]} : vector<192x512xbf16> to vector<64x256xbf16>
    %14 = vector.shape_cast %13 : vector<64x256xbf16> to vector<4x16x256xbf16>
    %15 = vector.extract_strided_slice %7 {offsets = [128, 0], sizes = [64, 256], strides = [1, 1]} : vector<192x512xbf16> to vector<64x256xbf16>
    %16 = vector.shape_cast %15 : vector<64x256xbf16> to vector<4x16x256xbf16>
    %17 = tpu.concatenate %12, %8 in 1 : vector<4x16x256xbf16>, vector<4x16x256xbf16> -> vector<4x32x256xbf16>
    %18 = tpu.concatenate %14, %12 in 1 : vector<4x16x256xbf16>, vector<4x16x256xbf16> -> vector<4x32x256xbf16>
    "tpu.trace_start"() <{level = 10 : i32, message = "hdl,hdm->hlm"}> : () -> ()
    %cst_12 = arith.constant dense<0.000000e+00> : vector<4x256x256xf32>
    %19 = tpu.matmul %17, %18, %cst_12 {dimension_numbers = #tpu.dot_dimension_numbers<[1], [1], [2], [2], [0, 0, 0, 2, 1, 2], [0], [0]>} : vector<4x32x256xbf16>, vector<4x32x256xbf16>, vector<4x256x256xf32> -> vector<4x256x256xf32>
    "tpu.trace_stop"() : () -> ()
    %cst_13 = arith.constant dense<0xFF800000> : vector<4x256xf32>
    %20 = vector.multi_reduction <maximumf>, %19, %cst_13 [2] : vector<4x256x256xf32> to vector<4x256xf32>
    %21 = vector.shape_cast %20 : vector<4x256xf32> to vector<4x256x1xf32>
    %22 = vector.broadcast %21 : vector<4x256x1xf32> to vector<4x256x256xf32>
    %23 = arith.subf %19, %22 : vector<4x256x256xf32>
    %24 = math.exp %23 : vector<4x256x256xf32>
    %cst_14 = arith.constant dense<0.000000e+00> : vector<4x256xf32>
    %25 = vector.multi_reduction <add>, %24, %cst_14 [2] : vector<4x256x256xf32> to vector<4x256xf32>
    %26 = arith.truncf %24 : vector<4x256x256xf32> to vector<4x256x256xbf16>
    "tpu.trace_start"() <{level = 10 : i32, message = "hdm,hlm->hdl"}> : () -> ()
    %cst_15 = arith.constant dense<0.000000e+00> : vector<4x16x256xf32>
    %27 = tpu.matmul %16, %26, %cst_15 {dimension_numbers = #tpu.dot_dimension_numbers<[2], [2], [1], [1], [0, 0, 0, 1, 1, 1], [0], [0]>} : vector<4x16x256xbf16>, vector<4x256x256xbf16>, vector<4x16x256xf32> -> vector<4x16x256xf32>
    "tpu.trace_stop"() : () -> ()
    %28 = tpu.reciprocal %25 {approx = true} : vector<4x256xf32> -> vector<4x256xf32>
    %29 = vector.shape_cast %28 : vector<4x256xf32> to vector<4x1x256xf32>
    %30 = vector.broadcast %29 : vector<4x1x256xf32> to vector<4x16x256xf32>
    %31 = arith.mulf %27, %30 : vector<4x16x256xf32>
    %32 = vector.shape_cast %31 : vector<4x16x256xf32> to vector<64x256xf32>
    %33 = vector.shape_cast %32 : vector<64x256xf32> to vector<1x64x256xf32>
    %cst_16 = arith.constant dense<0.000000e+00> : vector<1xf32>
    %34 = vector.multi_reduction <add>, %33, %cst_16 [1, 2] : vector<1x64x256xf32> to vector<1xf32>
    %35 = vector.shape_cast %34 : vector<1xf32> to vector<1x1x1xf32>
    %36 = vector.extract %35[0, 0, 0] : f32 from vector<1x1x1xf32>
    %37 = arith.mulf %32, %32 : vector<64x256xf32>
    %38 = vector.shape_cast %37 : vector<64x256xf32> to vector<1x64x256xf32>
    %cst_17 = arith.constant dense<0.000000e+00> : vector<1xf32>
    %39 = vector.multi_reduction <add>, %38, %cst_17 [1, 2] : vector<1x64x256xf32> to vector<1xf32>
    %40 = vector.shape_cast %39 : vector<1xf32> to vector<1x1x1xf32>
    %41 = vector.extract %40[0, 0, 0] : f32 from vector<1x1x1xf32>
    %cst_18 = arith.constant 6.10351563E-5 : f32
    %42 = arith.mulf %36, %cst_18 : f32
    %cst_19 = arith.constant 6.10351563E-5 : f32
    %43 = arith.mulf %41, %cst_19 : f32
    %44 = arith.mulf %42, %42 : f32
    %45 = arith.subf %43, %44 : f32
    %cst_20 = arith.constant 9.99999974E-6 : f32
    %46 = arith.addf %45, %cst_20 : f32
    %47 = math.rsqrt %46 : f32
    %48 = vector.broadcast %47 : f32 to vector<64x256xf32>
    %49 = arith.mulf %9, %48 : vector<64x256xf32>
    %50 = vector.broadcast %42 : f32 to vector<64x256xf32>
    %51 = arith.subf %32, %50 : vector<64x256xf32>
    %52 = arith.mulf %51, %49 : vector<64x256xf32>
    %53 = arith.addf %52, %10 : vector<64x256xf32>
    %54 = vector.extract_strided_slice %0 {offsets = [0, 0], sizes = [64, 256], strides = [1, 1]} : vector<64x512xf32> to vector<64x256xf32>
    %55 = arith.addf %53, %54 : vector<64x256xf32>
    %c0_21 = arith.constant 0 : index
    %c0_22 = arith.constant 0 : index
    %56 = vector.load %arg7[%c0_21, %c0_22] : memref<64x512xf32, #tpu.memory_space<vmem>>, vector<64x256xf32>
    tpu.vector_store %arg7[%c0_21, %c0_22], %55 {strides = array<i32>} : memref<64x512xf32, #tpu.memory_space<vmem>>, vector<64x256xf32>,
    %57 = vector.extract_strided_slice %7 {offsets = [0, 256], sizes = [64, 256], strides = [1, 1]} : vector<192x512xbf16> to vector<64x256xbf16>
    %58 = vector.shape_cast %57 : vector<64x256xbf16> to vector<4x16x256xbf16>
    %59 = vector.extract_strided_slice %7 {offsets = [64, 256], sizes = [64, 256], strides = [1, 1]} : vector<192x512xbf16> to vector<64x256xbf16>
    %60 = vector.shape_cast %59 : vector<64x256xbf16> to vector<4x16x256xbf16>
    %61 = vector.extract_strided_slice %7 {offsets = [128, 256], sizes = [64, 256], strides = [1, 1]} : vector<192x512xbf16> to vector<64x256xbf16>
    %62 = vector.shape_cast %61 : vector<64x256xbf16> to vector<4x16x256xbf16>
    %63 = tpu.concatenate %58, %8 in 1 : vector<4x16x256xbf16>, vector<4x16x256xbf16> -> vector<4x32x256xbf16>
    %64 = tpu.concatenate %60, %58 in 1 : vector<4x16x256xbf16>, vector<4x16x256xbf16> -> vector<4x32x256xbf16>
    "tpu.trace_start"() <{level = 10 : i32, message = "hdl,hdm->hlm"}> : () -> ()
    %cst_23 = arith.constant dense<0.000000e+00> : vector<4x256x256xf32>
    %65 = tpu.matmul %63, %64, %cst_23 {dimension_numbers = #tpu.dot_dimension_numbers<[1], [1], [2], [2], [0, 0, 0, 2, 1, 2], [0], [0]>} : vector<4x32x256xbf16>, vector<4x32x256xbf16>, vector<4x256x256xf32> -> vector<4x256x256xf32>
    "tpu.trace_stop"() : () -> ()
    %cst_24 = arith.constant dense<0xFF800000> : vector<4x256xf32>
    %66 = vector.multi_reduction <maximumf>, %65, %cst_24 [2] : vector<4x256x256xf32> to vector<4x256xf32>
    %67 = vector.shape_cast %66 : vector<4x256xf32> to vector<4x256x1xf32>
    %68 = vector.broadcast %67 : vector<4x256x1xf32> to vector<4x256x256xf32>
    %69 = arith.subf %65, %68 : vector<4x256x256xf32>
    %70 = math.exp %69 : vector<4x256x256xf32>
    %cst_25 = arith.constant dense<0.000000e+00> : vector<4x256xf32>
    %71 = vector.multi_reduction <add>, %70, %cst_25 [2] : vector<4x256x256xf32> to vector<4x256xf32>
    %72 = arith.truncf %70 : vector<4x256x256xf32> to vector<4x256x256xbf16>
    "tpu.trace_start"() <{level = 10 : i32, message = "hdm,hlm->hdl"}> : () -> ()
    %cst_26 = arith.constant dense<0.000000e+00> : vector<4x16x256xf32>
    %73 = tpu.matmul %62, %72, %cst_26 {dimension_numbers = #tpu.dot_dimension_numbers<[2], [2], [1], [1], [0, 0, 0, 1, 1, 1], [0], [0]>} : vector<4x16x256xbf16>, vector<4x256x256xbf16>, vector<4x16x256xf32> -> vector<4x16x256xf32>
    "tpu.trace_stop"() : () -> ()
    %74 = tpu.reciprocal %71 {approx = true} : vector<4x256xf32> -> vector<4x256xf32>
    %75 = vector.shape_cast %74 : vector<4x256xf32> to vector<4x1x256xf32>
    %76 = vector.broadcast %75 : vector<4x1x256xf32> to vector<4x16x256xf32>
    %77 = arith.mulf %73, %76 : vector<4x16x256xf32>
    %78 = vector.shape_cast %77 : vector<4x16x256xf32> to vector<64x256xf32>
    %79 = vector.shape_cast %78 : vector<64x256xf32> to vector<1x64x256xf32>
    %cst_27 = arith.constant dense<0.000000e+00> : vector<1xf32>
    %80 = vector.multi_reduction <add>, %79, %cst_27 [1, 2] : vector<1x64x256xf32> to vector<1xf32>
    %81 = vector.shape_cast %80 : vector<1xf32> to vector<1x1x1xf32>
    %82 = vector.extract %81[0, 0, 0] : f32 from vector<1x1x1xf32>
    %83 = arith.mulf %78, %78 : vector<64x256xf32>
    %84 = vector.shape_cast %83 : vector<64x256xf32> to vector<1x64x256xf32>
    %cst_28 = arith.constant dense<0.000000e+00> : vector<1xf32>
    %85 = vector.multi_reduction <add>, %84, %cst_28 [1, 2] : vector<1x64x256xf32> to vector<1xf32>
    %86 = vector.shape_cast %85 : vector<1xf32> to vector<1x1x1xf32>
    %87 = vector.extract %86[0, 0, 0] : f32 from vector<1x1x1xf32>
    %cst_29 = arith.constant 6.10351563E-5 : f32
    %88 = arith.mulf %82, %cst_29 : f32
    %cst_30 = arith.constant 6.10351563E-5 : f32
    %89 = arith.mulf %87, %cst_30 : f32
    %90 = arith.mulf %88, %88 : f32
    %91 = arith.subf %89, %90 : f32
    %cst_31 = arith.constant 9.99999974E-6 : f32
    %92 = arith.addf %91, %cst_31 : f32
    %93 = math.rsqrt %92 : f32
    %94 = vector.broadcast %93 : f32 to vector<64x256xf32>
    %95 = arith.mulf %9, %94 : vector<64x256xf32>
    %96 = vector.broadcast %88 : f32 to vector<64x256xf32>
    %97 = arith.subf %78, %96 : vector<64x256xf32>
    %98 = arith.mulf %97, %95 : vector<64x256xf32>
    %99 = arith.addf %98, %10 : vector<64x256xf32>
    %100 = vector.extract_strided_slice %0 {offsets = [0, 256], sizes = [64, 256], strides = [1, 1]} : vector<64x512xf32> to vector<64x256xf32>
    %101 = arith.addf %99, %100 : vector<64x256xf32>
    %c0_32 = arith.constant 0 : index
    %c256 = arith.constant 256 : index
    %102 = vector.load %arg7[%c0_32, %c256] : memref<64x512xf32, #tpu.memory_space<vmem>>, vector<64x256xf32>
    tpu.vector_store %arg7[%c0_32, %c256], %101 {strides = array<i32>} : memref<64x512xf32, #tpu.memory_space<vmem>>, vector<64x256xf32>,
    return
  }
  func.func @transform_0(%arg0: i32) -> (i32, i32) {
    %c0_i32 = arith.constant 0 : i32
    %c0_i32_0 = arith.constant 0 : i32
    return %c0_i32, %arg0 : i32, i32
  }
  func.func @transform_1(%arg0: i32) -> (i32, i32) {
    %c0_i32 = arith.constant 0 : i32
    %c0_i32_0 = arith.constant 0 : i32
    %c0_i32_1 = arith.constant 0 : i32
    return %c0_i32, %c0_i32_0 : i32, i32
  }
  func.func @transform_2(%arg0: i32) -> (i32, i32) {
    %c0_i32 = arith.constant 0 : i32
    %c0_i32_0 = arith.constant 0 : i32
    %c0_i32_1 = arith.constant 0 : i32
    return %c0_i32, %c0_i32_0 : i32, i32
  }
  func.func @transform_3(%arg0: i32) -> (i32, i32, i32) {
    %c0_i32 = arith.constant 0 : i32
    %c0_i32_0 = arith.constant 0 : i32
    %c0_i32_1 = arith.constant 0 : i32
    %c0_i32_2 = arith.constant 0 : i32
    return %c0_i32, %c0_i32_0, %c0_i32_1 : i32, i32, i32
  }
  func.func @transform_4(%arg0: i32) -> (i32, i32) {
    %c0_i32 = arith.constant 0 : i32
    %c0_i32_0 = arith.constant 0 : i32
    %c0_i32_1 = arith.constant 0 : i32
    return %c0_i32, %c0_i32_0 : i32, i32
  }
  func.func @transform_5(%arg0: i32) -> (i32, i32) {
    %c0_i32 = arith.constant 0 : i32
    %c0_i32_0 = arith.constant 0 : i32
    %c0_i32_1 = arith.constant 0 : i32
    return %c0_i32, %c0_i32_0 : i32, i32
  }
  func.func @transform_6(%arg0: i32) -> (i32, i32) {
    %c0_i32 = arith.constant 0 : i32
    %c0_i32_0 = arith.constant 0 : i32
    return %c0_i32, %arg0 : i32, i32
  }
}

</mosaic_0001>

<llo_original>
// kernel: mhsa_forward.1
$region0: #{mhsa_forward.1}
  #allocation0 [shape = 'u32[]', space=smem, size = 0x4, offset = 0x4, fixed_abs, tag = 'smem constant byte address 0x4 - core index']
  #allocation1 [shape = 'u32[144,128]{1,0:T(1,128)}', space=vmem, size = 0x12000, scoped, tag = 'internal scratch']
  %s0 = inlined_call_operand.vmem [shape: f32[64,1024], index: 0, kind: input, shape index: {}]
  %s1 = inlined_call_operand.vmem [shape: bf16[192,64], index: 1, kind: input, shape index: {}]
  %s2 = inlined_call_operand.vmem [shape: f32[192,1], index: 2, kind: input, shape index: {}]
  %s3 = inlined_call_operand.vmem [shape: bf16[4,16,256], index: 3, kind: input, shape index: {}]
  %s4 = inlined_call_operand.vmem [shape: f32[64,256], index: 4, kind: input, shape index: {}]
  %s5 = inlined_call_operand.vmem [shape: f32[64,256], index: 5, kind: input, shape index: {}]
  %s6 = inlined_call_operand.vmem [shape: f32[64,1024], index: 6, kind: output, shape index: {}]
  %s7 = sld [smem:[#allocation0]]
  $region99: #{mhsa_forward.1} parent=0
    _
  %s9 = ssub.s32 1, %s7
  %s10 = scalar_select 0, %s9, %s7
  $region1: #{mhsa_forward.1} parent=0
    #allocation2 [shape = 'u8[262144]{0}', space=vmem, size = 0x40000, scoped, tag = 'input window, operand 0']
    #allocation3 [shape = 'u8[262144]{0}', space=vmem, size = 0x40000, scoped, tag = 'output window, operand 0']
    loop: start=0, step=1, limit=4
    $region2: #{mhsa_forward.1} parent=1 // loop_pre_header
      _
    $region3: #{mhsa_forward.1} parent=1 // loop_header
      %s12 = sphi 0, %s16
      %p13 = scmp.ge.s32.totalorder %s12, 4
      %s22 = sphi 0, %s24
      %s25 = sphi 0, %s22
      %s26 = sphi 0, %s25
      %s42 = sphi 0, %s26
      %s46 = sphi 0, %s46
      %s48 = sphi 0, %s46
      %s49 = sphi 0, %s48
      %s63 = sphi 0, %s49
      %s67 = sphi 0, %s67
      %s69 = sphi 0, %s67
      %s70 = sphi 0, %s69
      %s84 = sphi 0, %s70
      %s88 = sphi 0, %s88
      %s90 = sphi 0, %s88
      %s91 = sphi 0, %s90
      %s105 = sphi 0, %s91
      %s109 = sphi 0, %s109
      %s111 = sphi 0, %s109
      %s112 = sphi 0, %s111
      %s126 = sphi 0, %s112
      %s130 = sphi 0, %s130
      %s132 = sphi 0, %s130
      %s133 = sphi 0, %s132
      %s147 = sphi 0, %s133
      %s153 = sphi 0, %s155
      %s156 = sphi 0, %s153
      %s157 = sphi 0, %s156
      %s173 = sphi 0, %s157
    $region4: #{mhsa_forward.1} parent=1 // loop_header_branch
      %15 = sbr.rel (%p13) target = $region8
    $region5: #{mhsa_forward.1} parent=1 // loop_body
      %s17 = ssub.s32 %s12, 1
      %s18 = ssub.s32 %s12, 2
      %s19 = sadd.s32 %s12, 1
      %s20 = ssub.s32 %s12, %s19
      %p21 = scmp.eq.s32.totalorder %s20, 0
      %s23 = sadd.s32 %s22, 1
      %s24 = scalar_select %p21, %s22, %s23
      %p27 = pneg %p21
      %p28 = scmp.eq.s32.totalorder %s12, 1
      %p29 = por %p27, %p28
      %p30 = scmp.ne.s32.totalorder %s22, %s25
      %p31 = scmp.eq.s32.totalorder %s12, 0
      %p32 = por %p30, %p31
      %p33 = scmp.ne.s32.totalorder %s22, %s25
      %p34 = scmp.eq.s32.totalorder %s17, 1
      %p35 = por %p33, %p34
      %p36 = scmp.ne.s32.totalorder %s25, %s26
      %p37 = scmp.eq.s32.totalorder %s17, 0
      %p38 = por %p36, %p37
      %p39 = scmp.ne.s32.totalorder %s25, %s26
      %p40 = scmp.eq.s32.totalorder %s18, 1
      %p41 = por %p39, %p40
      %p43 = scmp.ne.s32.totalorder %s26, %s42
      %p44 = scmp.eq.s32.totalorder %s18, 0
      %p45 = por %p43, %p44
      %s47 = sadd.s32 %s46, 1
      %p50 = scmp.eq.s32.totalorder %s12, 1
      %p51 = scmp.ne.s32.totalorder %s46, %s48
      %p52 = scmp.eq.s32.totalorder %s12, 0
      %p53 = por %p51, %p52
      %p54 = scmp.ne.s32.totalorder %s46, %s48
      %p55 = scmp.eq.s32.totalorder %s17, 1
      %p56 = por %p54, %p55
      %p57 = scmp.ne.s32.totalorder %s48, %s49
      %p58 = scmp.eq.s32.totalorder %s17, 0
      %p59 = por %p57, %p58
      %p60 = scmp.ne.s32.totalorder %s48, %s49
      %p61 = scmp.eq.s32.totalorder %s18, 1
      %p62 = por %p60, %p61
      %p64 = scmp.ne.s32.totalorder %s49, %s63
      %p65 = scmp.eq.s32.totalorder %s18, 0
      %p66 = por %p64, %p65
      %s68 = sadd.s32 %s67, 1
      %p71 = scmp.eq.s32.totalorder %s12, 1
      %p72 = scmp.ne.s32.totalorder %s67, %s69
      %p73 = scmp.eq.s32.totalorder %s12, 0
      %p74 = por %p72, %p73
      %p75 = scmp.ne.s32.totalorder %s67, %s69
      %p76 = scmp.eq.s32.totalorder %s17, 1
      %p77 = por %p75, %p76
      %p78 = scmp.ne.s32.totalorder %s69, %s70
      %p79 = scmp.eq.s32.totalorder %s17, 0
      %p80 = por %p78, %p79
      %p81 = scmp.ne.s32.totalorder %s69, %s70
      %p82 = scmp.eq.s32.totalorder %s18, 1
      %p83 = por %p81, %p82
      %p85 = scmp.ne.s32.totalorder %s70, %s84
      %p86 = scmp.eq.s32.totalorder %s18, 0
      %p87 = por %p85, %p86
      %s89 = sadd.s32 %s88, 1
      %p92 = scmp.eq.s32.totalorder %s12, 1
      %p93 = scmp.ne.s32.totalorder %s88, %s90
      %p94 = scmp.eq.s32.totalorder %s12, 0
      %p95 = por %p93, %p94
      %p96 = scmp.ne.s32.totalorder %s88, %s90
      %p97 = scmp.eq.s32.totalorder %s17, 1
      %p98 = por %p96, %p97
      %p99 = scmp.ne.s32.totalorder %s90, %s91
      %p100 = scmp.eq.s32.totalorder %s17, 0
      %p101 = por %p99, %p100
      %p102 = scmp.ne.s32.totalorder %s90, %s91
      %p103 = scmp.eq.s32.totalorder %s18, 1
      %p104 = por %p102, %p103
      %p106 = scmp.ne.s32.totalorder %s91, %s105
      %p107 = scmp.eq.s32.totalorder %s18, 0
      %p108 = por %p106, %p107
      %s110 = sadd.s32 %s109, 1
      %p113 = scmp.eq.s32.totalorder %s12, 1
      %p114 = scmp.ne.s32.totalorder %s109, %s111
      %p115 = scmp.eq.s32.totalorder %s12, 0
      %p116 = por %p114, %p115
      %p117 = scmp.ne.s32.totalorder %s109, %s111
      %p118 = scmp.eq.s32.totalorder %s17, 1
      %p119 = por %p117, %p118
      %p120 = scmp.ne.s32.totalorder %s111, %s112
      %p121 = scmp.eq.s32.totalorder %s17, 0
      %p122 = por %p120, %p121
      %p123 = scmp.ne.s32.totalorder %s111, %s112
      %p124 = scmp.eq.s32.totalorder %s18, 1
      %p125 = por %p123, %p124
      %p127 = scmp.ne.s32.totalorder %s112, %s126
      %p128 = scmp.eq.s32.totalorder %s18, 0
      %p129 = por %p127, %p128
      %s131 = sadd.s32 %s130, 1
      %p134 = scmp.eq.s32.totalorder %s12, 1
      %p135 = scmp.ne.s32.totalorder %s130, %s132
      %p136 = scmp.eq.s32.totalorder %s12, 0
      %p137 = por %p135, %p136
      %p138 = scmp.ne.s32.totalorder %s130, %s132
      %p139 = scmp.eq.s32.totalorder %s17, 1
      %p140 = por %p138, %p139
      %p141 = scmp.ne.s32.totalorder %s132, %s133
      %p142 = scmp.eq.s32.totalorder %s17, 0
      %p143 = por %p141, %p142
      %p144 = scmp.ne.s32.totalorder %s132, %s133
      %p145 = scmp.eq.s32.totalorder %s18, 1
      %p146 = por %p144, %p145
      %p148 = scmp.ne.s32.totalorder %s133, %s147
      %p149 = scmp.eq.s32.totalorder %s18, 0
      %p150 = por %p148, %p149
      %s151 = ssub.s32 %s12, %s19
      %p152 = scmp.eq.s32.totalorder %s151, 0
      %s154 = sadd.s32 %s153, 1
      %s155 = scalar_select %p152, %s153, %s154
      %p158 = pneg %p152
      %p159 = scmp.eq.s32.totalorder %s12, 1
      %p160 = por %p158, %p159
      %p161 = scmp.ne.s32.totalorder %s153, %s156
      %p162 = scmp.eq.s32.totalorder %s12, 0
      %p163 = por %p161, %p162
      %p164 = scmp.ne.s32.totalorder %s153, %s156
      %p165 = scmp.eq.s32.totalorder %s17, 1
      %p166 = por %p164, %p165
      %p167 = scmp.ne.s32.totalorder %s156, %s157
      %p168 = scmp.eq.s32.totalorder %s17, 0
      %p169 = por %p167, %p168
      %p170 = scmp.ne.s32.totalorder %s156, %s157
      %p171 = scmp.eq.s32.totalorder %s18, 1
      %p172 = por %p170, %p171
      %p174 = scmp.ne.s32.totalorder %s157, %s173
      %p175 = scmp.eq.s32.totalorder %s18, 0
      %p176 = por %p174, %p175
      %p177 = scmp.le.s32.totalorder 1, %s12
      %p178 = scmp.lt.s32.totalorder %s12, 3
      %p179 = pnand %p177, %p178
      %p180 = pneg %p179
      // Predicated region
      $region9: #{mhsa_forward.1} parent=5 // pred_check
        _
      $region10: #{mhsa_forward.1} parent=5 // pred_check_branch
        %182 = sbr.rel (%p179) target = $region12
      $region11: #{mhsa_forward.1} parent=5 // pred_region
        %s183 = ssub.s32 %s12, 1
        // Predicated region
        $region13: #{mhsa_forward.1} parent=11 // pred_check
          %p184 = pneg %p59
        $region14: #{mhsa_forward.1} parent=11 // pred_check_branch
          %186 = sbr.rel (%p184) target = $region16
        $region15: #{mhsa_forward.1} parent=11 // pred_region
          _
        $region16: #{mhsa_forward.1} parent=11 // pred_fallthru
          _
        // Predicated region
        $region17: #{mhsa_forward.1} parent=11 // pred_check
          %p187 = pneg %p80
        $region18: #{mhsa_forward.1} parent=11 // pred_check_branch
          %189 = sbr.rel (%p187) target = $region20
        $region19: #{mhsa_forward.1} parent=11 // pred_region
          _
        $region20: #{mhsa_forward.1} parent=11 // pred_fallthru
          _
        // Predicated region
        $region21: #{mhsa_forward.1} parent=11 // pred_check
          %p190 = pneg %p101
        $region22: #{mhsa_forward.1} parent=11 // pred_check_branch
          %192 = sbr.rel (%p190) target = $region24
        $region23: #{mhsa_forward.1} parent=11 // pred_region
          _
        $region24: #{mhsa_forward.1} parent=11 // pred_fallthru
          _
        // Predicated region
        $region25: #{mhsa_forward.1} parent=11 // pred_check
          %p193 = pneg %p122
        $region26: #{mhsa_forward.1} parent=11 // pred_check_branch
          %195 = sbr.rel (%p193) target = $region28
        $region27: #{mhsa_forward.1} parent=11 // pred_region
          _
        $region28: #{mhsa_forward.1} parent=11 // pred_fallthru
          _
        // Predicated region
        $region29: #{mhsa_forward.1} parent=11 // pred_check
          %p196 = pneg %p143
        $region30: #{mhsa_forward.1} parent=11 // pred_check_branch
          %198 = sbr.rel (%p196) target = $region32
        $region31: #{mhsa_forward.1} parent=11 // pred_region
          _
        $region32: #{mhsa_forward.1} parent=11 // pred_fallthru
          _
      $region12: #{mhsa_forward.1} parent=5 // pred_fallthru
        _
      %p199 = scmp.lt.s32.totalorder %s12, 2
      // Predicated region
      $region33: #{mhsa_forward.1} parent=5 // pred_check
        %p200 = pneg %p199
      $region34: #{mhsa_forward.1} parent=5 // pred_check_branch
        %202 = sbr.rel (%p200) target = $region36
      $region35: #{mhsa_forward.1} parent=5 // pred_region
        // Predicated region
        $region37: #{mhsa_forward.1} parent=35 // pred_check
          %p203 = pneg %p32
        $region38: #{mhsa_forward.1} parent=35 // pred_check_branch
          %205 = sbr.rel (%p203) target = $region40
        $region39: #{mhsa_forward.1} parent=35 // pred_region
          %s206 = sand.u32 %s22, 1
          %s207 = sand.u32 %s22, 1
          %s208 = smul.addr %s207, 256
          %s209 = scalar_lea.vmem [#allocation2], %s208
          %s210 = smul.u32 4, %s12
          %s211 = smul.addr %s210, 8
          %s212 = scalar_lea.vmem %s0, %s211
          // Predicated region
          $region41: #{mhsa_forward.1} parent=39 // pred_check
            _
          $region42: #{mhsa_forward.1} parent=39 // pred_check_branch
            %214 = sbr.rel (0) target = $region44
          $region43: #{mhsa_forward.1} parent=39 // pred_region
            // Predicated region
            $region45: #{mhsa_forward.1} parent=43 // pred_check
              _
            $region46: #{mhsa_forward.1} parent=43 // pred_check_branch
              %216 = sbr.rel (0) target = $region48
            $region47: #{mhsa_forward.1} parent=43 // pred_region
              loop: start=0, step=1, limit=1
              $region49: #{mhsa_forward.1} parent=47 // loop_pre_header
                _
              $region50: #{mhsa_forward.1} parent=47 // loop_header
                %s218 = sphi 0, %s222
                %p219 = scmp.ge.s32.totalorder %s218, 1
                %s223 = sphi %s212, %s212
                %s224 = sphi %s209, %s209
              $region51: #{mhsa_forward.1} parent=47 // loop_header_branch
                %221 = sbr.rel (%p219) target = $region55
              $region52: #{mhsa_forward.1} parent=47 // loop_body
                %v225 = vld [vmem:[%s223] sm:$0xff]
                %226 = vst [vmem:[%s224] sm:$0xff] %v225
                %v227 = vld [vmem:[%s223 + $0x8] sm:$0xff]
                %228 = vst [vmem:[%s224 + $0x8] sm:$0xff] %v227
                %v229 = vld [vmem:[%s223 + $0x10] sm:$0xff]
                %230 = vst [vmem:[%s224 + $0x10] sm:$0xff] %v229
                %v231 = vld [vmem:[%s223 + $0x18] sm:$0xff]
                %232 = vst [vmem:[%s224 + $0x18] sm:$0xff] %v231
                %v233 = vld [vmem:[%s223 + $0x40] sm:$0xff]
                %234 = vst [vmem:[%s224 + $0x20] sm:$0xff] %v233
                %v235 = vld [vmem:[%s223 + $0x48] sm:$0xff]
                %236 = vst [vmem:[%s224 + $0x28] sm:$0xff] %v235
                %v237 = vld [vmem:[%s223 + $0x50] sm:$0xff]
                %238 = vst [vmem:[%s224 + $0x30] sm:$0xff] %v237
                %v239 = vld [vmem:[%s223 + $0x58] sm:$0xff]
                %240 = vst [vmem:[%s224 + $0x38] sm:$0xff] %v239
                %v241 = vld [vmem:[%s223 + $0x80] sm:$0xff]
                %242 = vst [vmem:[%s224 + $0x40] sm:$0xff] %v241
                %v243 = vld [vmem:[%s223 + $0x88] sm:$0xff]
                %244 = vst [vmem:[%s224 + $0x48] sm:$0xff] %v243
                %v245 = vld [vmem:[%s223 + $0x90] sm:$0xff]
                %246 = vst [vmem:[%s224 + $0x50] sm:$0xff] %v245
                %v247 = vld [vmem:[%s223 + $0x98] sm:$0xff]
                %248 = vst [vmem:[%s224 + $0x58] sm:$0xff] %v247
                %v249 = vld [vmem:[%s223 + $0xc0] sm:$0xff]
                %250 = vst [vmem:[%s224 + $0x60] sm:$0xff] %v249
                %v251 = vld [vmem:[%s223 + $0xc8] sm:$0xff]
                %252 = vst [vmem:[%s224 + $0x68] sm:$0xff] %v251
                %v253 = vld [vmem:[%s223 + $0xd0] sm:$0xff]
                %254 = vst [vmem:[%s224 + $0x70] sm:$0xff] %v253
                %v255 = vld [vmem:[%s223 + $0xd8] sm:$0xff]
                %256 = vst [vmem:[%s224 + $0x78] sm:$0xff] %v255
                %v257 = vld [vmem:[%s223 + $0x100] sm:$0xff]
                %258 = vst [vmem:[%s224 + $0x80] sm:$0xff] %v257
                %v259 = vld [vmem:[%s223 + $0x108] sm:$0xff]
                %260 = vst [vmem:[%s224 + $0x88] sm:$0xff] %v259
                %v261 = vld [vmem:[%s223 + $0x110] sm:$0xff]
                %262 = vst [vmem:[%s224 + $0x90] sm:$0xff] %v261
                %v263 = vld [vmem:[%s223 + $0x118] sm:$0xff]
                %264 = vst [vmem:[%s224 + $0x98] sm:$0xff] %v263
                %v265 = vld [vmem:[%s223 + $0x140] sm:$0xff]
                %266 = vst [vmem:[%s224 + $0xa0] sm:$0xff] %v265
                %v267 = vld [vmem:[%s223 + $0x148] sm:$0xff]
                %268 = vst [vmem:[%s224 + $0xa8] sm:$0xff] %v267
                %v269 = vld [vmem:[%s223 + $0x150] sm:$0xff]
                %270 = vst [vmem:[%s224 + $0xb0] sm:$0xff] %v269
                %v271 = vld [vmem:[%s223 + $0x158] sm:$0xff]
                %272 = vst [vmem:[%s224 + $0xb8] sm:$0xff] %v271
                %v273 = vld [vmem:[%s223 + $0x180] sm:$0xff]
                %274 = vst [vmem:[%s224 + $0xc0] sm:$0xff] %v273
                %v275 = vld [vmem:[%s223 + $0x188] sm:$0xff]
                %276 = vst [vmem:[%s224 + $0xc8] sm:$0xff] %v275
                %v277 = vld [vmem:[%s223 + $0x190] sm:$0xff]
                %278 = vst [vmem:[%s224 + $0xd0] sm:$0xff] %v277
                %v279 = vld [vmem:[%s223 + $0x198] sm:$0xff]
                %280 = vst [vmem:[%s224 + $0xd8] sm:$0xff] %v279
                %v281 = vld [vmem:[%s223 + $0x1c0] sm:$0xff]
                %282 = vst [vmem:[%s224 + $0xe0] sm:$0xff] %v281
                %v283 = vld [vmem:[%s223 + $0x1c8] sm:$0xff]
                %284 = vst [vmem:[%s224 + $0xe8] sm:$0xff] %v283
                %v285 = vld [vmem:[%s223 + $0x1d0] sm:$0xff]
                %286 = vst [vmem:[%s224 + $0xf0] sm:$0xff] %v285
                %v287 = vld [vmem:[%s223 + $0x1d8] sm:$0xff]
                %288 = vst [vmem:[%s224 + $0xf8] sm:$0xff] %v287
              $region53: #{mhsa_forward.1} parent=47 // loop_footer
                %s222 = sadd.s32 1, %s218
              $region54: #{mhsa_forward.1} parent=47 // loop_footer_branch
                %217 = sbr.rel target = $region50
              $region55: #{mhsa_forward.1} parent=47 // loop_exit
                _
            $region48: #{mhsa_forward.1} parent=43 // pred_fallthru
              _
            // Predicated region
            $region56: #{mhsa_forward.1} parent=43 // pred_check
              _
            $region57: #{mhsa_forward.1} parent=43 // pred_check_branch
              %290 = sbr.rel target = $region59
            $region58: #{mhsa_forward.1} parent=43 // pred_region
              _
            $region59: #{mhsa_forward.1} parent=43 // pred_fallthru
              _
          $region44: #{mhsa_forward.1} parent=39 // pred_fallthru
            _
          %291 = vnop
        $region40: #{mhsa_forward.1} parent=35 // pred_fallthru
          _
      $region36: #{mhsa_forward.1} parent=5 // pred_fallthru
        _
      %p292 = scmp.le.s32.totalorder 1, %s12
      %p293 = scmp.lt.s32.totalorder %s12, 3
      %p294 = pnand %p292, %p293
      %p295 = pneg %p294
      // Predicated region
      $region60: #{mhsa_forward.1} parent=5 // pred_check
        _
      $region61: #{mhsa_forward.1} parent=5 // pred_check_branch
        %297 = sbr.rel (%p294) target = $region63
      $region62: #{mhsa_forward.1} parent=5 // pred_region
        %s298 = ssub.s32 %s12, 1
        %s299 = sand.u32 %s25, 1
        %s300 = sand.u32 %s25, 1
        %s301 = smul.addr %s300, 256
        %s302 = scalar_lea.vmem [#allocation2], %s301
        // Predicated region
        $region64: #{mhsa_forward.1} parent=62 // pred_check
          %p303 = pneg %p38
        $region65: #{mhsa_forward.1} parent=62 // pred_check_branch
          %305 = sbr.rel (%p303) target = $region67
        $region66: #{mhsa_forward.1} parent=62 // pred_region
          _
        $region67: #{mhsa_forward.1} parent=62 // pred_fallthru
          _
        %s306 = sand.u32 %s25, 1
        %s307 = sand.u32 %s25, 1
        %s308 = smul.addr %s307, 256
        %s309 = scalar_lea.vmem [#allocation2], %s308
        %p310 = pneg %p38
        %p311 = pneg %p35
        %p312 = pneg %p59
        %p313 = pneg %p56
        %p314 = pneg %p80
        %p315 = pneg %p77
        %p316 = pneg %p101
        %p317 = pneg %p98
        %p318 = pneg %p122
        %p319 = pneg %p119
        %p320 = pneg %p143
        %p321 = pneg %p140
        %p322 = pneg %p169
        %p323 = pneg %p166
        %s324 = sand.u32 %s156, 1
        %s325 = sand.u32 %s156, 1
        %s326 = smul.addr %s325, 256
        %s327 = scalar_lea.vmem [#allocation3], %s326
        %s328 = smul.u32 4, %s17
        %s329 = smul.u32 4, %s17
        %v331 = vld [vmem:[%s302] sm:$0xff]
        %v332 = vld [vmem:[%s302 + $0x8] sm:$0xff]
        %v333 = vld [vmem:[%s302 + $0x10] sm:$0xff]
        %v334 = vld [vmem:[%s302 + $0x18] sm:$0xff]
        %v335 = vld [vmem:[%s302 + $0x20] sm:$0xff]
        %v336 = vld [vmem:[%s302 + $0x28] sm:$0xff]
        %v337 = vld [vmem:[%s302 + $0x30] sm:$0xff]
        %v338 = vld [vmem:[%s302 + $0x38] sm:$0xff]
        %v339 = vld [vmem:[%s302 + $0x40] sm:$0xff]
        %v340 = vld [vmem:[%s302 + $0x48] sm:$0xff]
        %v341 = vld [vmem:[%s302 + $0x50] sm:$0xff]
        %v342 = vld [vmem:[%s302 + $0x58] sm:$0xff]
        %v343 = vld [vmem:[%s302 + $0x60] sm:$0xff]
        %v344 = vld [vmem:[%s302 + $0x68] sm:$0xff]
        %v345 = vld [vmem:[%s302 + $0x70] sm:$0xff]
        %v346 = vld [vmem:[%s302 + $0x78] sm:$0xff]
        %v347 = vld [vmem:[%s302 + $0x80] sm:$0xff]
        %v348 = vld [vmem:[%s302 + $0x88] sm:$0xff]
        %v349 = vld [vmem:[%s302 + $0x90] sm:$0xff]
        %v350 = vld [vmem:[%s302 + $0x98] sm:$0xff]
        %v351 = vld [vmem:[%s302 + $0xa0] sm:$0xff]
        %v352 = vld [vmem:[%s302 + $0xa8] sm:$0xff]
        %v353 = vld [vmem:[%s302 + $0xb0] sm:$0xff]
        %v354 = vld [vmem:[%s302 + $0xb8] sm:$0xff]
        %v355 = vld [vmem:[%s302 + $0xc0] sm:$0xff]
        %v356 = vld [vmem:[%s302 + $0xc8] sm:$0xff]
        %v357 = vld [vmem:[%s302 + $0xd0] sm:$0xff]
        %v358 = vld [vmem:[%s302 + $0xd8] sm:$0xff]
        %v359 = vld [vmem:[%s302 + $0xe0] sm:$0xff]
        %v360 = vld [vmem:[%s302 + $0xe8] sm:$0xff]
        %v361 = vld [vmem:[%s302 + $0xf0] sm:$0xff]
        %v362 = vld [vmem:[%s302 + $0xf8] sm:$0xff]
        %v363 = vld [vmem:[%s1] sm:$0xf]
        %v364 = vld [vmem:[%s1 + $0x4] sm:$0xf]
        %v365 = vld [vmem:[%s1 + $0x8] sm:$0xf]
        %v366 = vld [vmem:[%s1 + $0xc] sm:$0xf]
        %v367 = vld [vmem:[%s1 + $0x10] sm:$0xf]
        %v368 = vld [vmem:[%s1 + $0x14] sm:$0xf]
        %v369 = vld [vmem:[%s1 + $0x18] sm:$0xf]
        %v370 = vld [vmem:[%s1 + $0x1c] sm:$0xf]
        %v371 = vld [vmem:[%s1 + $0x20] sm:$0xf]
        %v372 = vld [vmem:[%s1 + $0x24] sm:$0xf]
        %v373 = vld [vmem:[%s1 + $0x28] sm:$0xf]
        %v374 = vld [vmem:[%s1 + $0x2c] sm:$0xf]
        %v375 = vld [vmem:[%s1 + $0x30] sm:$0xf]
        %v376 = vld [vmem:[%s1 + $0x34] sm:$0xf]
        %v377 = vld [vmem:[%s1 + $0x38] sm:$0xf]
        %v378 = vld [vmem:[%s1 + $0x3c] sm:$0xf]
        %v379 = vld [vmem:[%s1 + $0x40] sm:$0xf]
        %v380 = vld [vmem:[%s1 + $0x44] sm:$0xf]
        %v381 = vld [vmem:[%s1 + $0x48] sm:$0xf]
        %v382 = vld [vmem:[%s1 + $0x4c] sm:$0xf]
        %v383 = vld [vmem:[%s1 + $0x50] sm:$0xf]
        %v384 = vld [vmem:[%s1 + $0x54] sm:$0xf]
        %v385 = vld [vmem:[%s1 + $0x58] sm:$0xf]
        %v386 = vld [vmem:[%s1 + $0x5c] sm:$0xf]
        %v387 = vpack.c.bf16 %v335, %v331
        %v388 = vpack.c.bf16 %v336, %v332
        %v389 = vpack.c.bf16 %v337, %v333
        %v390 = vpack.c.bf16 %v338, %v334
        %v391 = vpack.c.bf16 %v343, %v339
        %v392 = vpack.c.bf16 %v344, %v340
        %v393 = vpack.c.bf16 %v345, %v341
        %v394 = vpack.c.bf16 %v346, %v342
        %v395 = vpack.c.bf16 %v351, %v347
        %v396 = vpack.c.bf16 %v352, %v348
        %v397 = vpack.c.bf16 %v353, %v349
        %v398 = vpack.c.bf16 %v354, %v350
        %v399 = vpack.c.bf16 %v359, %v355
        %v400 = vpack.c.bf16 %v360, %v356
        %v401 = vpack.c.bf16 %v361, %v357
        %v402 = vpack.c.bf16 %v362, %v358
        %v403 = vld [vmem:[%s2] sm:$0xff]
        %v404 = vld [vmem:[%s2 + $0x8] sm:$0xff]
        %v405 = vld [vmem:[%s2 + $0x10] sm:$0xff]
        %v406 = vld [vmem:[%s2 + $0x18] sm:$0xff]
        %v407 = vld [vmem:[%s2 + $0x20] sm:$0xff]
        %v408 = vld [vmem:[%s2 + $0x28] sm:$0xff]
        %v409 = vld [vmem:[%s2 + $0x30] sm:$0xff]
        %v410 = vld [vmem:[%s2 + $0x38] sm:$0xff]
        %v411 = vld [vmem:[%s2 + $0x40] sm:$0xff]
        %v412 = vld [vmem:[%s2 + $0x48] sm:$0xff]
        %v413 = vld [vmem:[%s2 + $0x50] sm:$0xff]
        %v414 = vld [vmem:[%s2 + $0x58] sm:$0xff]
        %v415 = vld [vmem:[%s2 + $0x60] sm:$0xff]
        %v416 = vld [vmem:[%s2 + $0x68] sm:$0xff]
        %v417 = vld [vmem:[%s2 + $0x70] sm:$0xff]
        %v418 = vld [vmem:[%s2 + $0x78] sm:$0xff]
        %v419 = vld [vmem:[%s2 + $0x80] sm:$0xff]
        %v420 = vld [vmem:[%s2 + $0x88] sm:$0xff]
        %v421 = vld [vmem:[%s2 + $0x90] sm:$0xff]
        %v422 = vld [vmem:[%s2 + $0x98] sm:$0xff]
        %v423 = vld [vmem:[%s2 + $0xa0] sm:$0xff]
        %v424 = vld [vmem:[%s2 + $0xa8] sm:$0xff]
        %v425 = vld [vmem:[%s2 + $0xb0] sm:$0xff]
        %v426 = vld [vmem:[%s2 + $0xb8] sm:$0xff]
        %428 = vset.pattern.permute.xlu0 0
        %429 = vperm.xlu0 %428, %v403
        %v430 = vpop.permute.xlu0 %429
        %433 = vset.pattern.permute.xlu0 0
        %434 = vperm.xlu0 %433, %v404
        %v435 = vpop.permute.xlu0 %434
        %438 = vset.pattern.permute.xlu0 0
        %439 = vperm.xlu0 %438, %v405
        %v440 = vpop.permute.xlu0 %439
        %443 = vset.pattern.permute.xlu0 0
        %444 = vperm.xlu0 %443, %v406
        %v445 = vpop.permute.xlu0 %444
        %448 = vset.pattern.permute.xlu0 0
        %449 = vperm.xlu0 %448, %v407
        %v450 = vpop.permute.xlu0 %449
        %453 = vset.pattern.permute.xlu0 0
        %454 = vperm.xlu0 %453, %v408
        %v455 = vpop.permute.xlu0 %454
        %458 = vset.pattern.permute.xlu0 0
        %459 = vperm.xlu0 %458, %v409
        %v460 = vpop.permute.xlu0 %459
        %463 = vset.pattern.permute.xlu0 0
        %464 = vperm.xlu0 %463, %v410
        %v465 = vpop.permute.xlu0 %464
        %468 = vset.pattern.permute.xlu0 0
        %469 = vperm.xlu0 %468, %v411
        %v470 = vpop.permute.xlu0 %469
        %473 = vset.pattern.permute.xlu0 0
        %474 = vperm.xlu0 %473, %v412
        %v475 = vpop.permute.xlu0 %474
        %478 = vset.pattern.permute.xlu0 0
        %479 = vperm.xlu0 %478, %v413
        %v480 = vpop.permute.xlu0 %479
        %483 = vset.pattern.permute.xlu0 0
        %484 = vperm.xlu0 %483, %v414
        %v485 = vpop.permute.xlu0 %484
        %488 = vset.pattern.permute.xlu0 0
        %489 = vperm.xlu0 %488, %v415
        %v490 = vpop.permute.xlu0 %489
        %493 = vset.pattern.permute.xlu0 0
        %494 = vperm.xlu0 %493, %v416
        %v495 = vpop.permute.xlu0 %494
        %498 = vset.pattern.permute.xlu0 0
        %499 = vperm.xlu0 %498, %v417
        %v500 = vpop.permute.xlu0 %499
        %503 = vset.pattern.permute.xlu0 0
        %504 = vperm.xlu0 %503, %v418
        %v505 = vpop.permute.xlu0 %504
        %508 = vset.pattern.permute.xlu0 0
        %509 = vperm.xlu0 %508, %v419
        %v510 = vpop.permute.xlu0 %509
        %513 = vset.pattern.permute.xlu0 0
        %514 = vperm.xlu0 %513, %v420
        %v515 = vpop.permute.xlu0 %514
        %518 = vset.pattern.permute.xlu0 0
        %519 = vperm.xlu0 %518, %v421
        %v520 = vpop.permute.xlu0 %519
        %523 = vset.pattern.permute.xlu0 0
        %524 = vperm.xlu0 %523, %v422
        %v525 = vpop.permute.xlu0 %524
        %528 = vset.pattern.permute.xlu0 0
        %529 = vperm.xlu0 %528, %v423
        %v530 = vpop.permute.xlu0 %529
        %533 = vset.pattern.permute.xlu0 0
        %534 = vperm.xlu0 %533, %v424
        %v535 = vpop.permute.xlu0 %534
        %538 = vset.pattern.permute.xlu0 0
        %539 = vperm.xlu0 %538, %v425
        %v540 = vpop.permute.xlu0 %539
        %543 = vset.pattern.permute.xlu0 0
        %544 = vperm.xlu0 %543, %v426
        %v545 = vpop.permute.xlu0 %544
        %v571 = vunpack.c.l.b16 %v363
        %v572 = vunpack.c.l.b16 %v364
        %v573 = vunpack.c.l.b16 %v365
        %v574 = vunpack.c.l.b16 %v366
        %v575 = vunpack.c.l.b16 %v367
        %v576 = vunpack.c.l.b16 %v368
        %v577 = vunpack.c.l.b16 %v369
        %v578 = vunpack.c.l.b16 %v370
        %v579 = vunpack.c.l.b16 %v371
        %v580 = vunpack.c.l.b16 %v372
        %v581 = vunpack.c.l.b16 %v373
        %v582 = vunpack.c.l.b16 %v374
        %v583 = vunpack.c.l.b16 %v375
        %v584 = vunpack.c.l.b16 %v376
        %v585 = vunpack.c.l.b16 %v377
        %v586 = vunpack.c.l.b16 %v378
        %v587 = vunpack.c.l.b16 %v379
        %v588 = vunpack.c.l.b16 %v380
        %v589 = vunpack.c.l.b16 %v381
        %v590 = vunpack.c.l.b16 %v382
        %v591 = vunpack.c.l.b16 %v383
        %v592 = vunpack.c.l.b16 %v384
        %v593 = vunpack.c.l.b16 %v385
        %v594 = vunpack.c.l.b16 %v386
        %v595 = vpack.c.b16 %v572, %v571
        %v596 = vpack.c.b16 %v574, %v573
        %v597 = vpack.c.b16 %v576, %v575
        %v598 = vpack.c.b16 %v578, %v577
        %v599 = vpack.c.b16 %v580, %v579
        %v600 = vpack.c.b16 %v582, %v581
        %v601 = vpack.c.b16 %v584, %v583
        %v602 = vpack.c.b16 %v586, %v585
        %v603 = vpack.c.b16 %v588, %v587
        %v604 = vpack.c.b16 %v590, %v589
        %v605 = vpack.c.b16 %v592, %v591
        %v606 = vpack.c.b16 %v594, %v593
        %vm607 = vcmask 523264
        %v609 = vsel %vm607, %v595, 0
        %v612 = vsel %vm607, %v596, 0
        %v615 = vsel %vm607, %v597, 0
        %v618 = vsel %vm607, %v598, 0
        %v621 = vsel %vm607, %v599, 0
        %v624 = vsel %vm607, %v600, 0
        %v627 = vsel %vm607, %v601, 0
        %v630 = vsel %vm607, %v602, 0
        %v633 = vsel %vm607, %v603, 0
        %v636 = vsel %vm607, %v604, 0
        %v639 = vsel %vm607, %v605, 0
        %v642 = vsel %vm607, %v606, 0
        %644 = vmatprep.subr.bf16.mxu0 %v388
        %645 = vmatpush1.bf16.msra.mxu0 %v387
        %646 = vmatprep.subr.bf16.mxu0 %v392
        %647 = vmatpush1.bf16.msra.mxu0 %v391
        %648 = vmatprep.subr.bf16.mxu0 %v396
        %649 = vmatpush1.bf16.msra.mxu0 %v395
        %650 = vmatprep.subr.bf16.mxu0 %v400
        %651 = vmatpush1.bf16.msra.mxu0 %v399
        %652 = vmatprep.subr.bf16.mxu0 0
        %653 = vmatpush1.bf16.msra.mxu0 0
        %654 = vmatprep.subr.bf16.mxu0 0
        %655 = vmatpush1.bf16.msra.mxu0 0
        %656 = vmatprep.subr.bf16.mxu0 0
        %657 = vmatpush1.bf16.msra.mxu0 0
        %658 = vmatprep.subr.bf16.mxu0 0
        %659 = vmatpush1.bf16.msra.mxu0 0
        %660 = vmatprep.subr.bf16.mxu0 0
        %661 = vmatpush1.bf16.msra.mxu0 0
        %662 = vmatprep.subr.bf16.mxu0 0
        %663 = vmatpush1.bf16.msra.mxu0 0
        %664 = vmatprep.subr.bf16.mxu0 0
        %665 = vmatpush1.bf16.msra.mxu0 0
        %666 = vmatprep.subr.bf16.mxu0 0
        %667 = vmatpush1.bf16.msra.mxu0 0
        %668 = vmatprep.subr.bf16.mxu0 0
        %669 = vmatpush1.bf16.msra.mxu0 0
        %670 = vmatprep.subr.bf16.mxu0 0
        %671 = vmatpush1.bf16.msra.mxu0 0
        %672 = vmatprep.subr.bf16.mxu0 0
        %673 = vmatpush1.bf16.msra.mxu0 0
        %674 = vmatprep.subr.bf16.mxu0 0
        %675 = vmatpush1.bf16.msra.mxu0 0
        %676 = vmatprep.mubr.bf16.mxu0 0
        %677 = vmatmul.mubr.bf16.gmra.mrb[0].mxu0 %v609
        %v678 = vpop.f32.mrb[0].mxu0
        %v679 = vadd.f32 %v430, %v678
        %v680 = vpop.f32.mrb[0].mxu0
        %v681 = vadd.f32 %v430, %v680
        %v682 = vpop.f32.mrb[0].mxu0
        %v683 = vadd.f32 %v435, %v682
        %v684 = vpop.f32.mrb[0].mxu0
        %v685 = vadd.f32 %v435, %v684
        %686 = vmatprep.mubr.bf16.mxu0 0
        %687 = vmatmul.mubr.bf16.gmra.mrb[0].mxu0 %v612
        %v688 = vpop.f32.mrb[0].mxu0
        %v689 = vadd.f32 %v440, %v688
        %v690 = vpop.f32.mrb[0].mxu0
        %v691 = vadd.f32 %v440, %v690
        %v692 = vpop.f32.mrb[0].mxu0
        %v693 = vadd.f32 %v445, %v692
        %v694 = vpop.f32.mrb[0].mxu0
        %v695 = vadd.f32 %v445, %v694
        %696 = vmatprep.mubr.bf16.mxu0 0
        %697 = vmatmul.mubr.bf16.gmra.mrb[0].mxu0 %v615
        %v698 = vpop.f32.mrb[0].mxu0
        %v699 = vadd.f32 %v450, %v698
        %v700 = vpop.f32.mrb[0].mxu0
        %v701 = vadd.f32 %v450, %v700
        %v702 = vpop.f32.mrb[0].mxu0
        %v703 = vadd.f32 %v455, %v702
        %v704 = vpop.f32.mrb[0].mxu0
        %v705 = vadd.f32 %v455, %v704
        %706 = vmatprep.mubr.bf16.mxu0 0
        %707 = vmatmul.mubr.bf16.gmra.mrb[0].mxu0 %v618
        %v708 = vpop.f32.mrb[0].mxu0
        %v709 = vadd.f32 %v460, %v708
        %v710 = vpop.f32.mrb[0].mxu0
        %v711 = vadd.f32 %v460, %v710
        %v712 = vpop.f32.mrb[0].mxu0
        %v713 = vadd.f32 %v465, %v712
        %v714 = vpop.f32.mrb[0].mxu0
        %v715 = vadd.f32 %v465, %v714
        %716 = vmatprep.mubr.bf16.mxu0 0
        %717 = vmatmul.mubr.bf16.gmra.mrb[0].mxu0 %v621
        %v718 = vpop.f32.mrb[0].mxu0
        %v719 = vadd.f32 %v470, %v718
        %v720 = vpop.f32.mrb[0].mxu0
        %v721 = vadd.f32 %v470, %v720
        %v722 = vpop.f32.mrb[0].mxu0
        %v723 = vadd.f32 %v475, %v722
        %v724 = vpop.f32.mrb[0].mxu0
        %v725 = vadd.f32 %v475, %v724
        %726 = vmatprep.mubr.bf16.mxu0 0
        %727 = vmatmul.mubr.bf16.gmra.mrb[0].mxu0 %v624
        %v728 = vpop.f32.mrb[0].mxu0
        %v729 = vadd.f32 %v480, %v728
        %v730 = vpop.f32.mrb[0].mxu0
        %v731 = vadd.f32 %v480, %v730
        %v732 = vpop.f32.mrb[0].mxu0
        %v733 = vadd.f32 %v485, %v732
        %v734 = vpop.f32.mrb[0].mxu0
        %v735 = vadd.f32 %v485, %v734
        %736 = vmatprep.mubr.bf16.mxu0 0
        %737 = vmatmul.mubr.bf16.gmra.mrb[0].mxu0 %v627
        %v738 = vpop.f32.mrb[0].mxu0
        %v739 = vadd.f32 %v490, %v738
        %v740 = vpop.f32.mrb[0].mxu0
        %v741 = vadd.f32 %v490, %v740
        %v742 = vpop.f32.mrb[0].mxu0
        %v743 = vadd.f32 %v495, %v742
        %v744 = vpop.f32.mrb[0].mxu0
        %v745 = vadd.f32 %v495, %v744
        %746 = vmatprep.mubr.bf16.mxu0 0
        %747 = vmatmul.mubr.bf16.gmra.mrb[0].mxu0 %v630
        %v748 = vpop.f32.mrb[0].mxu0
        %v749 = vadd.f32 %v500, %v748
        %v750 = vpop.f32.mrb[0].mxu0
        %v751 = vadd.f32 %v500, %v750
        %v752 = vpop.f32.mrb[0].mxu0
        %v753 = vadd.f32 %v505, %v752
        %v754 = vpop.f32.mrb[0].mxu0
        %v755 = vadd.f32 %v505, %v754
        %756 = vmatprep.mubr.bf16.mxu0 0
        %757 = vmatmul.mubr.bf16.gmra.mrb[0].mxu0 %v633
        %v758 = vpop.f32.mrb[0].mxu0
        %v759 = vadd.f32 %v510, %v758
        %v760 = vpop.f32.mrb[0].mxu0
        %v761 = vadd.f32 %v510, %v760
        %v762 = vpop.f32.mrb[0].mxu0
        %v763 = vadd.f32 %v515, %v762
        %v764 = vpop.f32.mrb[0].mxu0
        %v765 = vadd.f32 %v515, %v764
        %766 = vmatprep.mubr.bf16.mxu0 0
        %767 = vmatmul.mubr.bf16.gmra.mrb[0].mxu0 %v636
        %v768 = vpop.f32.mrb[0].mxu0
        %v769 = vadd.f32 %v520, %v768
        %v770 = vpop.f32.mrb[0].mxu0
        %v771 = vadd.f32 %v520, %v770
        %v772 = vpop.f32.mrb[0].mxu0
        %v773 = vadd.f32 %v525, %v772
        %v774 = vpop.f32.mrb[0].mxu0
        %v775 = vadd.f32 %v525, %v774
        %776 = vmatprep.mubr.bf16.mxu0 0
        %777 = vmatmul.mubr.bf16.gmra.mrb[0].mxu0 %v639
        %v778 = vpop.f32.mrb[0].mxu0
        %v779 = vadd.f32 %v530, %v778
        %v780 = vpop.f32.mrb[0].mxu0
        %v781 = vadd.f32 %v530, %v780
        %v782 = vpop.f32.mrb[0].mxu0
        %v783 = vadd.f32 %v535, %v782
        %v784 = vpop.f32.mrb[0].mxu0
        %v785 = vadd.f32 %v535, %v784
        %786 = vmatprep.mubr.bf16.mxu0 0
        %787 = vmatmul.mubr.bf16.gmra.mrb[0].mxu0 %v642
        %v788 = vpop.f32.mrb[0].mxu0
        %v789 = vadd.f32 %v540, %v788
        %v790 = vpop.f32.mrb[0].mxu0
        %v791 = vadd.f32 %v540, %v790
        %v792 = vpop.f32.mrb[0].mxu0
        %v793 = vadd.f32 %v545, %v792
        %v794 = vpop.f32.mrb[0].mxu0
        %v795 = vadd.f32 %v545, %v794
        %796 = vdwg.mxu0
        %797 = vmatprep.subr.bf16.mxu0 %v390
        %798 = vmatpush1.bf16.msra.mxu0 %v389
        %799 = vmatprep.subr.bf16.mxu0 %v394
        %800 = vmatpush1.bf16.msra.mxu0 %v393
        %801 = vmatprep.subr.bf16.mxu0 %v398
        %802 = vmatpush1.bf16.msra.mxu0 %v397
        %803 = vmatprep.subr.bf16.mxu0 %v402
        %804 = vmatpush1.bf16.msra.mxu0 %v401
        %805 = vmatprep.subr.bf16.mxu0 0
        %806 = vmatpush1.bf16.msra.mxu0 0
        %807 = vmatprep.subr.bf16.mxu0 0
        %808 = vmatpush1.bf16.msra.mxu0 0
        %809 = vmatprep.subr.bf16.mxu0 0
        %810 = vmatpush1.bf16.msra.mxu0 0
        %811 = vmatprep.subr.bf16.mxu0 0
        %812 = vmatpush1.bf16.msra.mxu0 0
        %813 = vmatprep.subr.bf16.mxu0 0
        %814 = vmatpush1.bf16.msra.mxu0 0
        %815 = vmatprep.subr.bf16.mxu0 0
        %816 = vmatpush1.bf16.msra.mxu0 0
        %817 = vmatprep.subr.bf16.mxu0 0
        %818 = vmatpush1.bf16.msra.mxu0 0
        %819 = vmatprep.subr.bf16.mxu0 0
        %820 = vmatpush1.bf16.msra.mxu0 0
        %821 = vmatprep.subr.bf16.mxu0 0
        %822 = vmatpush1.bf16.msra.mxu0 0
        %823 = vmatprep.subr.bf16.mxu0 0
        %824 = vmatpush1.bf16.msra.mxu0 0
        %825 = vmatprep.subr.bf16.mxu0 0
        %826 = vmatpush1.bf16.msra.mxu0 0
        %827 = vmatprep.subr.bf16.mxu0 0
        %828 = vmatpush1.bf16.msra.mxu0 0
        %829 = vmatprep.mubr.bf16.mxu0 0
        %830 = vmatmul.mubr.bf16.gmra.mrb[0].mxu0 %v609
        %v831 = vpop.f32.mrb[0].mxu0
        %v832 = vadd.f32 %v430, %v831
        %v833 = vpop.f32.mrb[0].mxu0
        %v834 = vadd.f32 %v430, %v833
        %v835 = vpop.f32.mrb[0].mxu0
        %v836 = vadd.f32 %v435, %v835
        %v837 = vpop.f32.mrb[0].mxu0
        %v838 = vadd.f32 %v435, %v837
        %839 = vmatprep.mubr.bf16.mxu0 0
        %840 = vmatmul.mubr.bf16.gmra.mrb[0].mxu0 %v612
        %v841 = vpop.f32.mrb[0].mxu0
        %v842 = vadd.f32 %v440, %v841
        %v843 = vpop.f32.mrb[0].mxu0
        %v844 = vadd.f32 %v440, %v843
        %v845 = vpop.f32.mrb[0].mxu0
        %v846 = vadd.f32 %v445, %v845
        %v847 = vpop.f32.mrb[0].mxu0
        %v848 = vadd.f32 %v445, %v847
        %849 = vmatprep.mubr.bf16.mxu0 0
        %850 = vmatmul.mubr.bf16.gmra.mrb[0].mxu0 %v615
        %v851 = vpop.f32.mrb[0].mxu0
        %v852 = vadd.f32 %v450, %v851
        %v853 = vpop.f32.mrb[0].mxu0
        %v854 = vadd.f32 %v450, %v853
        %v855 = vpop.f32.mrb[0].mxu0
        %v856 = vadd.f32 %v455, %v855
        %v857 = vpop.f32.mrb[0].mxu0
        %v858 = vadd.f32 %v455, %v857
        %859 = vmatprep.mubr.bf16.mxu0 0
        %860 = vmatmul.mubr.bf16.gmra.mrb[0].mxu0 %v618
        %v861 = vpop.f32.mrb[0].mxu0
        %v862 = vadd.f32 %v460, %v861
        %v863 = vpop.f32.mrb[0].mxu0
        %v864 = vadd.f32 %v460, %v863
        %v865 = vpop.f32.mrb[0].mxu0
        %v866 = vadd.f32 %v465, %v865
        %v867 = vpop.f32.mrb[0].mxu0
        %v868 = vadd.f32 %v465, %v867
        %869 = vmatprep.mubr.bf16.mxu0 0
        %870 = vmatmul.mubr.bf16.gmra.mrb[0].mxu0 %v621
        %v871 = vpop.f32.mrb[0].mxu0
        %v872 = vadd.f32 %v470, %v871
        %v873 = vpop.f32.mrb[0].mxu0
        %v874 = vadd.f32 %v470, %v873
        %v875 = vpop.f32.mrb[0].mxu0
        %v876 = vadd.f32 %v475, %v875
        %v877 = vpop.f32.mrb[0].mxu0
        %v878 = vadd.f32 %v475, %v877
        %879 = vmatprep.mubr.bf16.mxu0 0
        %880 = vmatmul.mubr.bf16.gmra.mrb[0].mxu0 %v624
        %v881 = vpop.f32.mrb[0].mxu0
        %v882 = vadd.f32 %v480, %v881
        %v883 = vpop.f32.mrb[0].mxu0
        %v884 = vadd.f32 %v480, %v883
        %v885 = vpop.f32.mrb[0].mxu0
        %v886 = vadd.f32 %v485, %v885
        %v887 = vpop.f32.mrb[0].mxu0
        %v888 = vadd.f32 %v485, %v887
        %889 = vmatprep.mubr.bf16.mxu0 0
        %890 = vmatmul.mubr.bf16.gmra.mrb[0].mxu0 %v627
        %v891 = vpop.f32.mrb[0].mxu0
        %v892 = vadd.f32 %v490, %v891
        %v893 = vpop.f32.mrb[0].mxu0
        %v894 = vadd.f32 %v490, %v893
        %v895 = vpop.f32.mrb[0].mxu0
        %v896 = vadd.f32 %v495, %v895
        %v897 = vpop.f32.mrb[0].mxu0
        %v898 = vadd.f32 %v495, %v897
        %899 = vmatprep.mubr.bf16.mxu0 0
        %900 = vmatmul.mubr.bf16.gmra.mrb[0].mxu0 %v630
        %v901 = vpop.f32.mrb[0].mxu0
        %v902 = vadd.f32 %v500, %v901
        %v903 = vpop.f32.mrb[0].mxu0
        %v904 = vadd.f32 %v500, %v903
        %v905 = vpop.f32.mrb[0].mxu0
        %v906 = vadd.f32 %v505, %v905
        %v907 = vpop.f32.mrb[0].mxu0
        %v908 = vadd.f32 %v505, %v907
        %909 = vmatprep.mubr.bf16.mxu0 0
        %910 = vmatmul.mubr.bf16.gmra.mrb[0].mxu0 %v633
        %v911 = vpop.f32.mrb[0].mxu0
        %v912 = vadd.f32 %v510, %v911
        %v913 = vpop.f32.mrb[0].mxu0
        %v914 = vadd.f32 %v510, %v913
        %v915 = vpop.f32.mrb[0].mxu0
        %v916 = vadd.f32 %v515, %v915
        %v917 = vpop.f32.mrb[0].mxu0
        %v918 = vadd.f32 %v515, %v917
        %919 = vmatprep.mubr.bf16.mxu0 0
        %920 = vmatmul.mubr.bf16.gmra.mrb[0].mxu0 %v636
        %v921 = vpop.f32.mrb[0].mxu0
        %v922 = vadd.f32 %v520, %v921
        %v923 = vpop.f32.mrb[0].mxu0
        %v924 = vadd.f32 %v520, %v923
        %v925 = vpop.f32.mrb[0].mxu0
        %v926 = vadd.f32 %v525, %v925
        %v927 = vpop.f32.mrb[0].mxu0
        %v928 = vadd.f32 %v525, %v927
        %929 = vmatprep.mubr.bf16.mxu0 0
        %930 = vmatmul.mubr.bf16.gmra.mrb[0].mxu0 %v639
        %v931 = vpop.f32.mrb[0].mxu0
        %v932 = vadd.f32 %v530, %v931
        %v933 = vpop.f32.mrb[0].mxu0
        %v934 = vadd.f32 %v530, %v933
        %v935 = vpop.f32.mrb[0].mxu0
        %v936 = vadd.f32 %v535, %v935
        %v937 = vpop.f32.mrb[0].mxu0
        %v938 = vadd.f32 %v535, %v937
        %939 = vmatprep.mubr.bf16.mxu0 0
        %940 = vmatmul.mubr.bf16.gmra.mrb[0].mxu0 %v642
        %v941 = vpop.f32.mrb[0].mxu0
        %v942 = vadd.f32 %v540, %v941
        %v943 = vpop.f32.mrb[0].mxu0
        %v944 = vadd.f32 %v540, %v943
        %v945 = vpop.f32.mrb[0].mxu0
        %v946 = vadd.f32 %v545, %v945
        %v947 = vpop.f32.mrb[0].mxu0
        %v948 = vadd.f32 %v545, %v947
        %949 = vdwg.mxu0
        %v950 = vpack.c.bf16 %v683, %v679
        %v951 = vpack.c.bf16 %v685, %v681
        %v952 = vpack.c.bf16 %v836, %v832
        %v953 = vpack.c.bf16 %v838, %v834
        %v954 = vpack.c.bf16 %v693, %v689
        %v955 = vpack.c.bf16 %v695, %v691
        %v956 = vpack.c.bf16 %v846, %v842
        %v957 = vpack.c.bf16 %v848, %v844
        %v958 = vpack.c.bf16 %v703, %v699
        %v959 = vpack.c.bf16 %v705, %v701
        %v960 = vpack.c.bf16 %v856, %v852
        %v961 = vpack.c.bf16 %v858, %v854
        %v962 = vpack.c.bf16 %v713, %v709
        %v963 = vpack.c.bf16 %v715, %v711
        %v964 = vpack.c.bf16 %v866, %v862
        %v965 = vpack.c.bf16 %v868, %v864
        %v966 = vpack.c.bf16 %v723, %v719
        %v967 = vpack.c.bf16 %v725, %v721
        %v968 = vpack.c.bf16 %v876, %v872
        %v969 = vpack.c.bf16 %v878, %v874
        %v970 = vpack.c.bf16 %v733, %v729
        %v971 = vpack.c.bf16 %v735, %v731
        %v972 = vpack.c.bf16 %v886, %v882
        %v973 = vpack.c.bf16 %v888, %v884
        %v974 = vpack.c.bf16 %v743, %v739
        %v975 = vpack.c.bf16 %v745, %v741
        %v976 = vpack.c.bf16 %v896, %v892
        %v977 = vpack.c.bf16 %v898, %v894
        %v978 = vpack.c.bf16 %v753, %v749
        %v979 = vpack.c.bf16 %v755, %v751
        %v980 = vpack.c.bf16 %v906, %v902
        %v981 = vpack.c.bf16 %v908, %v904
        %v982 = vpack.c.bf16 %v763, %v759
        %v983 = vpack.c.bf16 %v765, %v761
        %v984 = vpack.c.bf16 %v916, %v912
        %v985 = vpack.c.bf16 %v918, %v914
        %v986 = vpack.c.bf16 %v773, %v769
        %v987 = vpack.c.bf16 %v775, %v771
        %v988 = vpack.c.bf16 %v926, %v922
        %v989 = vpack.c.bf16 %v928, %v924
        %v990 = vpack.c.bf16 %v783, %v779
        %v991 = vpack.c.bf16 %v785, %v781
        %v992 = vpack.c.bf16 %v936, %v932
        %v993 = vpack.c.bf16 %v938, %v934
        %v994 = vpack.c.bf16 %v793, %v789
        %v995 = vpack.c.bf16 %v795, %v791
        %v996 = vpack.c.bf16 %v946, %v942
        %v997 = vpack.c.bf16 %v948, %v944
        %v998 = vld [vmem:[%s3] sm:$0xff]
        %v999 = vld [vmem:[%s3 + $0x8] sm:$0xff]
        %v1000 = vld [vmem:[%s3 + $0x10] sm:$0xff]
        %v1001 = vld [vmem:[%s3 + $0x18] sm:$0xff]
        %v1002 = vld [vmem:[%s3 + $0x20] sm:$0xff]
        %v1003 = vld [vmem:[%s3 + $0x28] sm:$0xff]
        %v1004 = vld [vmem:[%s3 + $0x30] sm:$0xff]
        %v1005 = vld [vmem:[%s3 + $0x38] sm:$0xff]
        %v1006 = vld [vmem:[%s4] sm:$0xff]
        %v1007 = vld [vmem:[%s4 + $0x8] sm:$0xff]
        %v1008 = vld [vmem:[%s4 + $0x10] sm:$0xff]
        %v1009 = vld [vmem:[%s4 + $0x18] sm:$0xff]
        %v1010 = vld [vmem:[%s4 + $0x20] sm:$0xff]
        %v1011 = vld [vmem:[%s4 + $0x28] sm:$0xff]
        %v1012 = vld [vmem:[%s4 + $0x30] sm:$0xff]
        %v1013 = vld [vmem:[%s4 + $0x38] sm:$0xff]
        %v1014 = vld [vmem:[%s4 + $0x40] sm:$0xff]
        %v1015 = vld [vmem:[%s4 + $0x48] sm:$0xff]
        %v1016 = vld [vmem:[%s4 + $0x50] sm:$0xff]
        %v1017 = vld [vmem:[%s4 + $0x58] sm:$0xff]
        %v1018 = vld [vmem:[%s4 + $0x60] sm:$0xff]
        %v1019 = vld [vmem:[%s4 + $0x68] sm:$0xff]
        %v1020 = vld [vmem:[%s4 + $0x70] sm:$0xff]
        %v1021 = vld [vmem:[%s4 + $0x78] sm:$0xff]
        %v1022 = vld [vmem:[%s5] sm:$0xff]
        %v1023 = vld [vmem:[%s5 + $0x8] sm:$0xff]
        %v1024 = vld [vmem:[%s5 + $0x10] sm:$0xff]
        %v1025 = vld [vmem:[%s5 + $0x18] sm:$0xff]
        %v1026 = vld [vmem:[%s5 + $0x20] sm:$0xff]
        %v1027 = vld [vmem:[%s5 + $0x28] sm:$0xff]
        %v1028 = vld [vmem:[%s5 + $0x30] sm:$0xff]
        %v1029 = vld [vmem:[%s5 + $0x38] sm:$0xff]
        %v1030 = vld [vmem:[%s5 + $0x40] sm:$0xff]
        %v1031 = vld [vmem:[%s5 + $0x48] sm:$0xff]
        %v1032 = vld [vmem:[%s5 + $0x50] sm:$0xff]
        %v1033 = vld [vmem:[%s5 + $0x58] sm:$0xff]
        %v1034 = vld [vmem:[%s5 + $0x60] sm:$0xff]
        %v1035 = vld [vmem:[%s5 + $0x68] sm:$0xff]
        %v1036 = vld [vmem:[%s5 + $0x70] sm:$0xff]
        %v1037 = vld [vmem:[%s5 + $0x78] sm:$0xff]
        %v1046 = vunpack.c.l.b16 %v998
        %v1047 = vunpack.c.h.b16 %v998
        %v1048 = vunpack.c.l.b16 %v999
        %v1049 = vunpack.c.h.b16 %v999
        %v1050 = vunpack.c.l.b16 %v1000
        %v1051 = vunpack.c.h.b16 %v1000
        %v1052 = vunpack.c.l.b16 %v1001
        %v1053 = vunpack.c.h.b16 %v1001
        %v1054 = vunpack.c.l.b16 %v1002
        %v1055 = vunpack.c.h.b16 %v1002
        %v1056 = vunpack.c.l.b16 %v1003
        %v1057 = vunpack.c.h.b16 %v1003
        %v1058 = vunpack.c.l.b16 %v1004
        %v1059 = vunpack.c.h.b16 %v1004
        %v1060 = vunpack.c.l.b16 %v1005
        %v1061 = vunpack.c.h.b16 %v1005
        %v1062 = vpack.c.b16 %v1048, %v1046
        %v1063 = vpack.c.b16 %v1049, %v1047
        %v1064 = vpack.c.b16 %v1052, %v1050
        %v1065 = vpack.c.b16 %v1053, %v1051
        %v1066 = vpack.c.b16 %v1056, %v1054
        %v1067 = vpack.c.b16 %v1057, %v1055
        %v1068 = vpack.c.b16 %v1060, %v1058
        %v1069 = vpack.c.b16 %v1061, %v1059
        %1078 = vxpose.xlu0.c.b16.start [1/8] %v950, 128
        %1079 = vxpose.xlu0.c.b16.cont [2/8] %v1062, 128
        %1080 = vxpose.xlu0.c.b16.cont [3/8] 0, 128
        %1081 = vxpose.xlu0.c.b16.cont [4/8] 0, 128
        %1082 = vxpose.xlu0.c.b16.cont [5/8] 0, 128
        %1083 = vxpose.xlu0.c.b16.cont [6/8] 0, 128
        %1084 = vxpose.xlu0.c.b16.cont [7/8] 0, 128
        %1085 = vxpose.xlu0.c.b16.end [8/8] 0, 128
        %v1086 = vpop.trf.xlu0
        %v1087 = vpop.trf.xlu0
        %v1088 = vpop.trf.xlu0
        %v1089 = vpop.trf.xlu0
        %v1090 = vpop.trf.xlu0
        %v1091 = vpop.trf.xlu0
        %v1092 = vpop.trf.xlu0
        %v1093 = vpop.trf.xlu0
        %1094 = vxpose.xlu0.c.b16.start [1/8] %v951, 128
        %1095 = vxpose.xlu0.c.b16.cont [2/8] %v1063, 128
        %1096 = vxpose.xlu0.c.b16.cont [3/8] 0, 128
        %1097 = vxpose.xlu0.c.b16.cont [4/8] 0, 128
        %1098 = vxpose.xlu0.c.b16.cont [5/8] 0, 128
        %1099 = vxpose.xlu0.c.b16.cont [6/8] 0, 128
        %1100 = vxpose.xlu0.c.b16.cont [7/8] 0, 128
        %1101 = vxpose.xlu0.c.b16.end [8/8] 0, 128
        %v1102 = vpop.trf.xlu0
        %v1103 = vpop.trf.xlu0
        %v1104 = vpop.trf.xlu0
        %v1105 = vpop.trf.xlu0
        %v1106 = vpop.trf.xlu0
        %v1107 = vpop.trf.xlu0
        %v1108 = vpop.trf.xlu0
        %v1109 = vpop.trf.xlu0
        %vm1110 = vcmask 261120
        %v1112 = vsel %vm1110, %v1086, 0
        %v1115 = vsel %vm1110, %v1087, 0
        %v1118 = vsel %vm1110, %v1088, 0
        %v1121 = vsel %vm1110, %v1089, 0
        %v1124 = vsel %vm1110, %v1090, 0
        %v1127 = vsel %vm1110, %v1091, 0
        %v1130 = vsel %vm1110, %v1092, 0
        %v1133 = vsel %vm1110, %v1093, 0
        %v1136 = vsel %vm1110, %v1102, 0
        %v1139 = vsel %vm1110, %v1103, 0
        %v1142 = vsel %vm1110, %v1104, 0
        %v1145 = vsel %vm1110, %v1105, 0
        %v1148 = vsel %vm1110, %v1106, 0
        %v1151 = vsel %vm1110, %v1107, 0
        %v1154 = vsel %vm1110, %v1108, 0
        %v1157 = vsel %vm1110, %v1109, 0
        %1159 = vmatprep.subr.bf16.mxu0 %v967
        %1160 = vmatpush1.bf16.msra.mxu0 %v966
        %1161 = vmatprep.subr.bf16.mxu0 %v951
        %1162 = vmatpush1.bf16.msra.mxu0 %v950
        %1163 = vmatprep.subr.bf16.mxu0 0
        %1164 = vmatpush1.bf16.msra.mxu0 0
        %1165 = vmatprep.subr.bf16.mxu0 0
        %1166 = vmatpush1.bf16.msra.mxu0 0
        %1167 = vmatprep.subr.bf16.mxu0 0
        %1168 = vmatpush1.bf16.msra.mxu0 0
        %1169 = vmatprep.subr.bf16.mxu0 0
        %1170 = vmatpush1.bf16.msra.mxu0 0
        %1171 = vmatprep.subr.bf16.mxu0 0
        %1172 = vmatpush1.bf16.msra.mxu0 0
        %1173 = vmatprep.subr.bf16.mxu0 0
        %1174 = vmatpush1.bf16.msra.mxu0 0
        %1175 = vmatprep.subr.bf16.mxu0 0
        %1176 = vmatpush1.bf16.msra.mxu0 0
        %1177 = vmatprep.subr.bf16.mxu0 0
        %1178 = vmatpush1.bf16.msra.mxu0 0
        %1179 = vmatprep.subr.bf16.mxu0 0
        %1180 = vmatpush1.bf16.msra.mxu0 0
        %1181 = vmatprep.subr.bf16.mxu0 0
        %1182 = vmatpush1.bf16.msra.mxu0 0
        %1183 = vmatprep.subr.bf16.mxu0 0
        %1184 = vmatpush1.bf16.msra.mxu0 0
        %1185 = vmatprep.subr.bf16.mxu0 0
        %1186 = vmatpush1.bf16.msra.mxu0 0
        %1187 = vmatprep.subr.bf16.mxu0 0
        %1188 = vmatpush1.bf16.msra.mxu0 0
        %1189 = vmatprep.subr.bf16.mxu0 0
        %1190 = vmatpush1.bf16.msra.mxu0 0
        %1191 = vmatprep.mubr.bf16.mxu0 0
        %1192 = vmatmul.mubr.bf16.gmra.mrb[0].mxu0 %v1112
        %v1193 = vpop.f32.mrb[0].mxu0
        %v1194 = vadd.f32 0.0, %v1193
        %v1195 = vpop.f32.mrb[0].mxu0
        %v1196 = vadd.f32 0.0, %v1195
        %v1197 = vpop.f32.mrb[0].mxu0
        %v1198 = vadd.f32 0.0, %v1197
        %v1199 = vpop.f32.mrb[0].mxu0
        %v1200 = vadd.f32 0.0, %v1199
        %1201 = vmatprep.mubr.bf16.mxu0 0
        %1202 = vmatmul.mubr.bf16.gmra.mrb[0].mxu0 %v1115
        %v1203 = vpop.f32.mrb[0].mxu0
        %v1204 = vadd.f32 0.0, %v1203
        %v1205 = vpop.f32.mrb[0].mxu0
        %v1206 = vadd.f32 0.0, %v1205
        %v1207 = vpop.f32.mrb[0].mxu0
        %v1208 = vadd.f32 0.0, %v1207
        %v1209 = vpop.f32.mrb[0].mxu0
        %v1210 = vadd.f32 0.0, %v1209
        %1211 = vmatprep.mubr.bf16.mxu0 0
        %1212 = vmatmul.mubr.bf16.gmra.mrb[0].mxu0 %v1118
        %v1213 = vpop.f32.mrb[0].mxu0
        %v1214 = vadd.f32 0.0, %v1213
        %v1215 = vpop.f32.mrb[0].mxu0
        %v1216 = vadd.f32 0.0, %v1215
        %v1217 = vpop.f32.mrb[0].mxu0
        %v1218 = vadd.f32 0.0, %v1217
        %v1219 = vpop.f32.mrb[0].mxu0
        %v1220 = vadd.f32 0.0, %v1219
        %1221 = vmatprep.mubr.bf16.mxu0 0
        %1222 = vmatmul.mubr.bf16.gmra.mrb[0].mxu0 %v1121
        %v1223 = vpop.f32.mrb[0].mxu0
        %v1224 = vadd.f32 0.0, %v1223
        %v1225 = vpop.f32.mrb[0].mxu0
        %v1226 = vadd.f32 0.0, %v1225
        %v1227 = vpop.f32.mrb[0].mxu0
        %v1228 = vadd.f32 0.0, %v1227
        %v1229 = vpop.f32.mrb[0].mxu0
        %v1230 = vadd.f32 0.0, %v1229
        %1231 = vmatprep.mubr.bf16.mxu0 0
        %1232 = vmatmul.mubr.bf16.gmra.mrb[0].mxu0 %v1124
        %v1233 = vpop.f32.mrb[0].mxu0
        %v1234 = vadd.f32 0.0, %v1233
        %v1235 = vpop.f32.mrb[0].mxu0
        %v1236 = vadd.f32 0.0, %v1235
        %v1237 = vpop.f32.mrb[0].mxu0
        %v1238 = vadd.f32 0.0, %v1237
        %v1239 = vpop.f32.mrb[0].mxu0
        %v1240 = vadd.f32 0.0, %v1239
        %1241 = vmatprep.mubr.bf16.mxu0 0
        %1242 = vmatmul.mubr.bf16.gmra.mrb[0].mxu0 %v1127
        %v1243 = vpop.f32.mrb[0].mxu0
        %v1244 = vadd.f32 0.0, %v1243
        %v1245 = vpop.f32.mrb[0].mxu0
        %v1246 = vadd.f32 0.0, %v1245
        %v1247 = vpop.f32.mrb[0].mxu0
        %v1248 = vadd.f32 0.0, %v1247
        %v1249 = vpop.f32.mrb[0].mxu0
        %v1250 = vadd.f32 0.0, %v1249
        %1251 = vmatprep.mubr.bf16.mxu0 0
        %1252 = vmatmul.mubr.bf16.gmra.mrb[0].mxu0 %v1130
        %v1253 = vpop.f32.mrb[0].mxu0
        %v1254 = vadd.f32 0.0, %v1253
        %v1255 = vpop.f32.mrb[0].mxu0
        %v1256 = vadd.f32 0.0, %v1255
        %v1257 = vpop.f32.mrb[0].mxu0
        %v1258 = vadd.f32 0.0, %v1257
        %v1259 = vpop.f32.mrb[0].mxu0
        %v1260 = vadd.f32 0.0, %v1259
        %1261 = vmatprep.mubr.bf16.mxu0 0
        %1262 = vmatmul.mubr.bf16.gmra.mrb[0].mxu0 %v1133
        %v1263 = vpop.f32.mrb[0].mxu0
        %v1264 = vadd.f32 0.0, %v1263
        %v1265 = vpop.f32.mrb[0].mxu0
        %v1266 = vadd.f32 0.0, %v1265
        %v1267 = vpop.f32.mrb[0].mxu0
        %v1268 = vadd.f32 0.0, %v1267
        %v1269 = vpop.f32.mrb[0].mxu0
        %v1270 = vadd.f32 0.0, %v1269
        %1271 = vmatprep.mubr.bf16.mxu0 0
        %1272 = vmatmul.mubr.bf16.gmra.mrb[0].mxu0 %v1136
        %v1273 = vpop.f32.mrb[0].mxu0
        %v1274 = vadd.f32 0.0, %v1273
        %v1275 = vpop.f32.mrb[0].mxu0
        %v1276 = vadd.f32 0.0, %v1275
        %v1277 = vpop.f32.mrb[0].mxu0
        %v1278 = vadd.f32 0.0, %v1277
        %v1279 = vpop.f32.mrb[0].mxu0
        %v1280 = vadd.f32 0.0, %v1279
        %1281 = vmatprep.mubr.bf16.mxu0 0
        %1282 = vmatmul.mubr.bf16.gmra.mrb[0].mxu0 %v1139
        %v1283 = vpop.f32.mrb[0].mxu0
        %v1284 = vadd.f32 0.0, %v1283
        %v1285 = vpop.f32.mrb[0].mxu0
        %v1286 = vadd.f32 0.0, %v1285
        %v1287 = vpop.f32.mrb[0].mxu0
        %v1288 = vadd.f32 0.0, %v1287
        %v1289 = vpop.f32.mrb[0].mxu0
        %v1290 = vadd.f32 0.0, %v1289
        %1291 = vmatprep.mubr.bf16.mxu0 0
        %1292 = vmatmul.mubr.bf16.gmra.mrb[0].mxu0 %v1142
        %v1293 = vpop.f32.mrb[0].mxu0
        %v1294 = vadd.f32 0.0, %v1293
        %v1295 = vpop.f32.mrb[0].mxu0
        %v1296 = vadd.f32 0.0, %v1295
        %v1297 = vpop.f32.mrb[0].mxu0
        %v1298 = vadd.f32 0.0, %v1297
        %v1299 = vpop.f32.mrb[0].mxu0
        %v1300 = vadd.f32 0.0, %v1299
        %1301 = vmatprep.mubr.bf16.mxu0 0
        %1302 = vmatmul.mubr.bf16.gmra.mrb[0].mxu0 %v1145
        %v1303 = vpop.f32.mrb[0].mxu0
        %v1304 = vadd.f32 0.0, %v1303
        %v1305 = vpop.f32.mrb[0].mxu0
        %v1306 = vadd.f32 0.0, %v1305
        %v1307 = vpop.f32.mrb[0].mxu0
        %v1308 = vadd.f32 0.0, %v1307
        %v1309 = vpop.f32.mrb[0].mxu0
        %v1310 = vadd.f32 0.0, %v1309
        %1311 = vmatprep.mubr.bf16.mxu0 0
        %1312 = vmatmul.mubr.bf16.gmra.mrb[0].mxu0 %v1148
        %v1313 = vpop.f32.mrb[0].mxu0
        %v1314 = vadd.f32 0.0, %v1313
        %v1315 = vpop.f32.mrb[0].mxu0
        %v1316 = vadd.f32 0.0, %v1315
        %v1317 = vpop.f32.mrb[0].mxu0
        %v1318 = vadd.f32 0.0, %v1317
        %v1319 = vpop.f32.mrb[0].mxu0
        %v1320 = vadd.f32 0.0, %v1319
        %1321 = vmatprep.mubr.bf16.mxu0 0
        %1322 = vmatmul.mubr.bf16.gmra.mrb[0].mxu0 %v1151
        %v1323 = vpop.f32.mrb[0].mxu0
        %v1324 = vadd.f32 0.0, %v1323
        %v1325 = vpop.f32.mrb[0].mxu0
        %v1326 = vadd.f32 0.0, %v1325
        %v1327 = vpop.f32.mrb[0].mxu0
        %v1328 = vadd.f32 0.0, %v1327
        %v1329 = vpop.f32.mrb[0].mxu0
        %v1330 = vadd.f32 0.0, %v1329
        %1331 = vmatprep.mubr.bf16.mxu0 0
        %1332 = vmatmul.mubr.bf16.gmra.mrb[0].mxu0 %v1154
        %v1333 = vpop.f32.mrb[0].mxu0
        %v1334 = vadd.f32 0.0, %v1333
        %v1335 = vpop.f32.mrb[0].mxu0
        %v1336 = vadd.f32 0.0, %v1335
        %v1337 = vpop.f32.mrb[0].mxu0
        %v1338 = vadd.f32 0.0, %v1337
        %v1339 = vpop.f32.mrb[0].mxu0
        %v1340 = vadd.f32 0.0, %v1339
        %1341 = vmatprep.mubr.bf16.mxu0 0
        %1342 = vmatmul.mubr.bf16.gmra.mrb[0].mxu0 %v1157
        %v1343 = vpop.f32.mrb[0].mxu0
        %v1344 = vadd.f32 0.0, %v1343
        %v1345 = vpop.f32.mrb[0].mxu0
        %v1346 = vadd.f32 0.0, %v1345
        %v1347 = vpop.f32.mrb[0].mxu0
        %v1348 = vadd.f32 0.0, %v1347
        %v1349 = vpop.f32.mrb[0].mxu0
        %v1350 = vadd.f32 0.0, %v1349
        %1351 = vdwg.mxu0
        %1352 = vxpose.xlu0.c.b16.start [1/8] %v954, 128
        %1353 = vxpose.xlu0.c.b16.cont [2/8] %v1064, 128
        %1354 = vxpose.xlu0.c.b16.cont [3/8] 0, 128
        %1355 = vxpose.xlu0.c.b16.cont [4/8] 0, 128
        %1356 = vxpose.xlu0.c.b16.cont [5/8] 0, 128
        %1357 = vxpose.xlu0.c.b16.cont [6/8] 0, 128
        %1358 = vxpose.xlu0.c.b16.cont [7/8] 0, 128
        %1359 = vxpose.xlu0.c.b16.end [8/8] 0, 128
        %v1360 = vpop.trf.xlu0
        %v1361 = vpop.trf.xlu0
        %v1362 = vpop.trf.xlu0
        %v1363 = vpop.trf.xlu0
        %v1364 = vpop.trf.xlu0
        %v1365 = vpop.trf.xlu0
        %v1366 = vpop.trf.xlu0
        %v1367 = vpop.trf.xlu0
        %1368 = vxpose.xlu0.c.b16.start [1/8] %v955, 128
        %1369 = vxpose.xlu0.c.b16.cont [2/8] %v1065, 128
        %1370 = vxpose.xlu0.c.b16.cont [3/8] 0, 128
        %1371 = vxpose.xlu0.c.b16.cont [4/8] 0, 128
        %1372 = vxpose.xlu0.c.b16.cont [5/8] 0, 128
        %1373 = vxpose.xlu0.c.b16.cont [6/8] 0, 128
        %1374 = vxpose.xlu0.c.b16.cont [7/8] 0, 128
        %1375 = vxpose.xlu0.c.b16.end [8/8] 0, 128
        %v1376 = vpop.trf.xlu0
        %v1377 = vpop.trf.xlu0
        %v1378 = vpop.trf.xlu0
        %v1379 = vpop.trf.xlu0
        %v1380 = vpop.trf.xlu0
        %v1381 = vpop.trf.xlu0
        %v1382 = vpop.trf.xlu0
        %v1383 = vpop.trf.xlu0
        %v1385 = vsel %vm1110, %v1360, 0
        %v1388 = vsel %vm1110, %v1361, 0
        %v1391 = vsel %vm1110, %v1362, 0
        %v1394 = vsel %vm1110, %v1363, 0
        %v1397 = vsel %vm1110, %v1364, 0
        %v1400 = vsel %vm1110, %v1365, 0
        %v1403 = vsel %vm1110, %v1366, 0
        %v1406 = vsel %vm1110, %v1367, 0
        %v1409 = vsel %vm1110, %v1376, 0
        %v1412 = vsel %vm1110, %v1377, 0
        %v1415 = vsel %vm1110, %v1378, 0
        %v1418 = vsel %vm1110, %v1379, 0
        %v1421 = vsel %vm1110, %v1380, 0
        %v1424 = vsel %vm1110, %v1381, 0
        %v1427 = vsel %vm1110, %v1382, 0
        %v1430 = vsel %vm1110, %v1383, 0
        %1432 = vmatprep.subr.bf16.mxu0 %v971
        %1433 = vmatpush1.bf16.msra.mxu0 %v970
        %1434 = vmatprep.subr.bf16.mxu0 %v955
        %1435 = vmatpush1.bf16.msra.mxu0 %v954
        %1436 = vmatprep.subr.bf16.mxu0 0
        %1437 = vmatpush1.bf16.msra.mxu0 0
        %1438 = vmatprep.subr.bf16.mxu0 0
        %1439 = vmatpush1.bf16.msra.mxu0 0
        %1440 = vmatprep.subr.bf16.mxu0 0
        %1441 = vmatpush1.bf16.msra.mxu0 0
        %1442 = vmatprep.subr.bf16.mxu0 0
        %1443 = vmatpush1.bf16.msra.mxu0 0
        %1444 = vmatprep.subr.bf16.mxu0 0
        %1445 = vmatpush1.bf16.msra.mxu0 0
        %1446 = vmatprep.subr.bf16.mxu0 0
        %1447 = vmatpush1.bf16.msra.mxu0 0
        %1448 = vmatprep.subr.bf16.mxu0 0
        %1449 = vmatpush1.bf16.msra.mxu0 0
        %1450 = vmatprep.subr.bf16.mxu0 0
        %1451 = vmatpush1.bf16.msra.mxu0 0
        %1452 = vmatprep.subr.bf16.mxu0 0
        %1453 = vmatpush1.bf16.msra.mxu0 0
        %1454 = vmatprep.subr.bf16.mxu0 0
        %1455 = vmatpush1.bf16.msra.mxu0 0
        %1456 = vmatprep.subr.bf16.mxu0 0
        %1457 = vmatpush1.bf16.msra.mxu0 0
        %1458 = vmatprep.subr.bf16.mxu0 0
        %1459 = vmatpush1.bf16.msra.mxu0 0
        %1460 = vmatprep.subr.bf16.mxu0 0
        %1461 = vmatpush1.bf16.msra.mxu0 0
        %1462 = vmatprep.subr.bf16.mxu0 0
        %1463 = vmatpush1.bf16.msra.mxu0 0
        %1464 = vmatprep.mubr.bf16.mxu0 0
        %1465 = vmatmul.mubr.bf16.gmra.mrb[0].mxu0 %v1385
        %v1466 = vpop.f32.mrb[0].mxu0
        %v1467 = vadd.f32 0.0, %v1466
        %v1468 = vpop.f32.mrb[0].mxu0
        %v1469 = vadd.f32 0.0, %v1468
        %v1470 = vpop.f32.mrb[0].mxu0
        %v1471 = vadd.f32 0.0, %v1470
        %v1472 = vpop.f32.mrb[0].mxu0
        %v1473 = vadd.f32 0.0, %v1472
        %1474 = vmatprep.mubr.bf16.mxu0 0
        %1475 = vmatmul.mubr.bf16.gmra.mrb[0].mxu0 %v1388
        %v1476 = vpop.f32.mrb[0].mxu0
        %v1477 = vadd.f32 0.0, %v1476
        %v1478 = vpop.f32.mrb[0].mxu0
        %v1479 = vadd.f32 0.0, %v1478
        %v1480 = vpop.f32.mrb[0].mxu0
        %v1481 = vadd.f32 0.0, %v1480
        %v1482 = vpop.f32.mrb[0].mxu0
        %v1483 = vadd.f32 0.0, %v1482
        %1484 = vmatprep.mubr.bf16.mxu0 0
        %1485 = vmatmul.mubr.bf16.gmra.mrb[0].mxu0 %v1391
        %v1486 = vpop.f32.mrb[0].mxu0
        %v1487 = vadd.f32 0.0, %v1486
        %v1488 = vpop.f32.mrb[0].mxu0
        %v1489 = vadd.f32 0.0, %v1488
        %v1490 = vpop.f32.mrb[0].mxu0
        %v1491 = vadd.f32 0.0, %v1490
        %v1492 = vpop.f32.mrb[0].mxu0
        %v1493 = vadd.f32 0.0, %v1492
        %1494 = vmatprep.mubr.bf16.mxu0 0
        %1495 = vmatmul.mubr.bf16.gmra.mrb[0].mxu0 %v1394
        %v1496 = vpop.f32.mrb[0].mxu0
        %v1497 = vadd.f32 0.0, %v1496
        %v1498 = vpop.f32.mrb[0].mxu0
        %v1499 = vadd.f32 0.0, %v1498
        %v1500 = vpop.f32.mrb[0].mxu0
        %v1501 = vadd.f32 0.0, %v1500
        %v1502 = vpop.f32.mrb[0].mxu0
        %v1503 = vadd.f32 0.0, %v1502
        %1504 = vmatprep.mubr.bf16.mxu0 0
        %1505 = vmatmul.mubr.bf16.gmra.mrb[0].mxu0 %v1397
        %v1506 = vpop.f32.mrb[0].mxu0
        %v1507 = vadd.f32 0.0, %v1506
        %v1508 = vpop.f32.mrb[0].mxu0
        %v1509 = vadd.f32 0.0, %v1508
        %v1510 = vpop.f32.mrb[0].mxu0
        %v1511 = vadd.f32 0.0, %v1510
        %v1512 = vpop.f32.mrb[0].mxu0
        %v1513 = vadd.f32 0.0, %v1512
        %1514 = vmatprep.mubr.bf16.mxu0 0
        %1515 = vmatmul.mubr.bf16.gmra.mrb[0].mxu0 %v1400
        %v1516 = vpop.f32.mrb[0].mxu0
        %v1517 = vadd.f32 0.0, %v1516
        %v1518 = vpop.f32.mrb[0].mxu0
        %v1519 = vadd.f32 0.0, %v1518
        %v1520 = vpop.f32.mrb[0].mxu0
        %v1521 = vadd.f32 0.0, %v1520
        %v1522 = vpop.f32.mrb[0].mxu0
        %v1523 = vadd.f32 0.0, %v1522
        %1524 = vmatprep.mubr.bf16.mxu0 0
        %1525 = vmatmul.mubr.bf16.gmra.mrb[0].mxu0 %v1403
        %v1526 = vpop.f32.mrb[0].mxu0
        %v1527 = vadd.f32 0.0, %v1526
        %v1528 = vpop.f32.mrb[0].mxu0
        %v1529 = vadd.f32 0.0, %v1528
        %v1530 = vpop.f32.mrb[0].mxu0
        %v1531 = vadd.f32 0.0, %v1530
        %v1532 = vpop.f32.mrb[0].mxu0
        %v1533 = vadd.f32 0.0, %v1532
        %1534 = vmatprep.mubr.bf16.mxu0 0
        %1535 = vmatmul.mubr.bf16.gmra.mrb[0].mxu0 %v1406
        %v1536 = vpop.f32.mrb[0].mxu0
        %v1537 = vadd.f32 0.0, %v1536
        %v1538 = vpop.f32.mrb[0].mxu0
        %v1539 = vadd.f32 0.0, %v1538
        %v1540 = vpop.f32.mrb[0].mxu0
        %v1541 = vadd.f32 0.0, %v1540
        %v1542 = vpop.f32.mrb[0].mxu0
        %v1543 = vadd.f32 0.0, %v1542
        %1544 = vmatprep.mubr.bf16.mxu0 0
        %1545 = vmatmul.mubr.bf16.gmra.mrb[0].mxu0 %v1409
        %v1546 = vpop.f32.mrb[0].mxu0
        %v1547 = vadd.f32 0.0, %v1546
        %v1548 = vpop.f32.mrb[0].mxu0
        %v1549 = vadd.f32 0.0, %v1548
        %v1550 = vpop.f32.mrb[0].mxu0
        %v1551 = vadd.f32 0.0, %v1550
        %v1552 = vpop.f32.mrb[0].mxu0
        %v1553 = vadd.f32 0.0, %v1552
        %1554 = vmatprep.mubr.bf16.mxu0 0
        %1555 = vmatmul.mubr.bf16.gmra.mrb[0].mxu0 %v1412
        %v1556 = vpop.f32.mrb[0].mxu0
        %v1557 = vadd.f32 0.0, %v1556
        %v1558 = vpop.f32.mrb[0].mxu0
        %v1559 = vadd.f32 0.0, %v1558
        %v1560 = vpop.f32.mrb[0].mxu0
        %v1561 = vadd.f32 0.0, %v1560
        %v1562 = vpop.f32.mrb[0].mxu0
        %v1563 = vadd.f32 0.0, %v1562
        %1564 = vmatprep.mubr.bf16.mxu0 0
        %1565 = vmatmul.mubr.bf16.gmra.mrb[0].mxu0 %v1415
        %v1566 = vpop.f32.mrb[0].mxu0
        %v1567 = vadd.f32 0.0, %v1566
        %v1568 = vpop.f32.mrb[0].mxu0
        %v1569 = vadd.f32 0.0, %v1568
        %v1570 = vpop.f32.mrb[0].mxu0
        %v1571 = vadd.f32 0.0, %v1570
        %v1572 = vpop.f32.mrb[0].mxu0
        %v1573 = vadd.f32 0.0, %v1572
        %1574 = vmatprep.mubr.bf16.mxu0 0
        %1575 = vmatmul.mubr.bf16.gmra.mrb[0].mxu0 %v1418
        %v1576 = vpop.f32.mrb[0].mxu0
        %v1577 = vadd.f32 0.0, %v1576
        %v1578 = vpop.f32.mrb[0].mxu0
        %v1579 = vadd.f32 0.0, %v1578
        %v1580 = vpop.f32.mrb[0].mxu0
        %v1581 = vadd.f32 0.0, %v1580
        %v1582 = vpop.f32.mrb[0].mxu0
        %v1583 = vadd.f32 0.0, %v1582
        %1584 = vmatprep.mubr.bf16.mxu0 0
        %1585 = vmatmul.mubr.bf16.gmra.mrb[0].mxu0 %v1421
        %v1586 = vpop.f32.mrb[0].mxu0
        %v1587 = vadd.f32 0.0, %v1586
        %v1588 = vpop.f32.mrb[0].mxu0
        %v1589 = vadd.f32 0.0, %v1588
        %v1590 = vpop.f32.mrb[0].mxu0
        %v1591 = vadd.f32 0.0, %v1590
        %v1592 = vpop.f32.mrb[0].mxu0
        %v1593 = vadd.f32 0.0, %v1592
        %1594 = vmatprep.mubr.bf16.mxu0 0
        %1595 = vmatmul.mubr.bf16.gmra.mrb[0].mxu0 %v1424
        %v1596 = vpop.f32.mrb[0].mxu0
        %v1597 = vadd.f32 0.0, %v1596
        %v1598 = vpop.f32.mrb[0].mxu0
        %v1599 = vadd.f32 0.0, %v1598
        %v1600 = vpop.f32.mrb[0].mxu0
        %v1601 = vadd.f32 0.0, %v1600
        %v1602 = vpop.f32.mrb[0].mxu0
        %v1603 = vadd.f32 0.0, %v1602
        %1604 = vmatprep.mubr.bf16.mxu0 0
        %1605 = vmatmul.mubr.bf16.gmra.mrb[0].mxu0 %v1427
        %v1606 = vpop.f32.mrb[0].mxu0
        %v1607 = vadd.f32 0.0, %v1606
        %v1608 = vpop.f32.mrb[0].mxu0
        %v1609 = vadd.f32 0.0, %v1608
        %v1610 = vpop.f32.mrb[0].mxu0
        %v1611 = vadd.f32 0.0, %v1610
        %v1612 = vpop.f32.mrb[0].mxu0
        %v1613 = vadd.f32 0.0, %v1612
        %1614 = vmatprep.mubr.bf16.mxu0 0
        %1615 = vmatmul.mubr.bf16.gmra.mrb[0].mxu0 %v1430
        %v1616 = vpop.f32.mrb[0].mxu0
        %v1617 = vadd.f32 0.0, %v1616
        %v1618 = vpop.f32.mrb[0].mxu0
        %v1619 = vadd.f32 0.0, %v1618
        %v1620 = vpop.f32.mrb[0].mxu0
        %v1621 = vadd.f32 0.0, %v1620
        %v1622 = vpop.f32.mrb[0].mxu0
        %v1623 = vadd.f32 0.0, %v1622
        %1624 = vdwg.mxu0
        %1625 = vxpose.xlu0.c.b16.start [1/8] %v958, 128
        %1626 = vxpose.xlu0.c.b16.cont [2/8] %v1066, 128
        %1627 = vxpose.xlu0.c.b16.cont [3/8] 0, 128
        %1628 = vxpose.xlu0.c.b16.cont [4/8] 0, 128
        %1629 = vxpose.xlu0.c.b16.cont [5/8] 0, 128
        %1630 = vxpose.xlu0.c.b16.cont [6/8] 0, 128
        %1631 = vxpose.xlu0.c.b16.cont [7/8] 0, 128
        %1632 = vxpose.xlu0.c.b16.end [8/8] 0, 128
        %v1633 = vpop.trf.xlu0
        %v1634 = vpop.trf.xlu0
        %v1635 = vpop.trf.xlu0
        %v1636 = vpop.trf.xlu0
        %v1637 = vpop.trf.xlu0
        %v1638 = vpop.trf.xlu0
        %v1639 = vpop.trf.xlu0
        %v1640 = vpop.trf.xlu0
        %1641 = vxpose.xlu0.c.b16.start [1/8] %v959, 128
        %1642 = vxpose.xlu0.c.b16.cont [2/8] %v1067, 128
        %1643 = vxpose.xlu0.c.b16.cont [3/8] 0, 128
        %1644 = vxpose.xlu0.c.b16.cont [4/8] 0, 128
        %1645 = vxpose.xlu0.c.b16.cont [5/8] 0, 128
        %1646 = vxpose.xlu0.c.b16.cont [6/8] 0, 128
        %1647 = vxpose.xlu0.c.b16.cont [7/8] 0, 128
        %1648 = vxpose.xlu0.c.b16.end [8/8] 0, 128
        %v1649 = vpop.trf.xlu0
        %v1650 = vpop.trf.xlu0
        %v1651 = vpop.trf.xlu0
        %v1652 = vpop.trf.xlu0
        %v1653 = vpop.trf.xlu0
        %v1654 = vpop.trf.xlu0
        %v1655 = vpop.trf.xlu0
        %v1656 = vpop.trf.xlu0
        %v1658 = vsel %vm1110, %v1633, 0
        %v1661 = vsel %vm1110, %v1634, 0
        %v1664 = vsel %vm1110, %v1635, 0
        %v1667 = vsel %vm1110, %v1636, 0
        %v1670 = vsel %vm1110, %v1637, 0
        %v1673 = vsel %vm1110, %v1638, 0
        %v1676 = vsel %vm1110, %v1639, 0
        %v1679 = vsel %vm1110, %v1640, 0
        %v1682 = vsel %vm1110, %v1649, 0
        %v1685 = vsel %vm1110, %v1650, 0
        %v1688 = vsel %vm1110, %v1651, 0
        %v1691 = vsel %vm1110, %v1652, 0
        %v1694 = vsel %vm1110, %v1653, 0
        %v1697 = vsel %vm1110, %v1654, 0
        %v1700 = vsel %vm1110, %v1655, 0
        %v1703 = vsel %vm1110, %v1656, 0
        %1705 = vmatprep.subr.bf16.mxu0 %v975
        %1706 = vmatpush1.bf16.msra.mxu0 %v974
        %1707 = vmatprep.subr.bf16.mxu0 %v959
        %1708 = vmatpush1.bf16.msra.mxu0 %v958
        %1709 = vmatprep.subr.bf16.mxu0 0
        %1710 = vmatpush1.bf16.msra.mxu0 0
        %1711 = vmatprep.subr.bf16.mxu0 0
        %1712 = vmatpush1.bf16.msra.mxu0 0
        %1713 = vmatprep.subr.bf16.mxu0 0
        %1714 = vmatpush1.bf16.msra.mxu0 0
        %1715 = vmatprep.subr.bf16.mxu0 0
        %1716 = vmatpush1.bf16.msra.mxu0 0
        %1717 = vmatprep.subr.bf16.mxu0 0
        %1718 = vmatpush1.bf16.msra.mxu0 0
        %1719 = vmatprep.subr.bf16.mxu0 0
        %1720 = vmatpush1.bf16.msra.mxu0 0
        %1721 = vmatprep.subr.bf16.mxu0 0
        %1722 = vmatpush1.bf16.msra.mxu0 0
        %1723 = vmatprep.subr.bf16.mxu0 0
        %1724 = vmatpush1.bf16.msra.mxu0 0
        %1725 = vmatprep.subr.bf16.mxu0 0
        %1726 = vmatpush1.bf16.msra.mxu0 0
        %1727 = vmatprep.subr.bf16.mxu0 0
        %1728 = vmatpush1.bf16.msra.mxu0 0
        %1729 = vmatprep.subr.bf16.mxu0 0
        %1730 = vmatpush1.bf16.msra.mxu0 0
        %1731 = vmatprep.subr.bf16.mxu0 0
        %1732 = vmatpush1.bf16.msra.mxu0 0
        %1733 = vmatprep.subr.bf16.mxu0 0
        %1734 = vmatpush1.bf16.msra.mxu0 0
        %1735 = vmatprep.subr.bf16.mxu0 0
        %1736 = vmatpush1.bf16.msra.mxu0 0
        %1737 = vmatprep.mubr.bf16.mxu0 0
        %1738 = vmatmul.mubr.bf16.gmra.mrb[0].mxu0 %v1658
        %v1739 = vpop.f32.mrb[0].mxu0
        %v1740 = vadd.f32 0.0, %v1739
        %v1741 = vpop.f32.mrb[0].mxu0
        %v1742 = vadd.f32 0.0, %v1741
        %v1743 = vpop.f32.mrb[0].mxu0
        %v1744 = vadd.f32 0.0, %v1743
        %v1745 = vpop.f32.mrb[0].mxu0
        %v1746 = vadd.f32 0.0, %v1745
        %1747 = vmatprep.mubr.bf16.mxu0 0
        %1748 = vmatmul.mubr.bf16.gmra.mrb[0].mxu0 %v1661
        %v1749 = vpop.f32.mrb[0].mxu0
        %v1750 = vadd.f32 0.0, %v1749
        %v1751 = vpop.f32.mrb[0].mxu0
        %v1752 = vadd.f32 0.0, %v1751
        %v1753 = vpop.f32.mrb[0].mxu0
        %v1754 = vadd.f32 0.0, %v1753
        %v1755 = vpop.f32.mrb[0].mxu0
        %v1756 = vadd.f32 0.0, %v1755
        %1757 = vmatprep.mubr.bf16.mxu0 0
        %1758 = vmatmul.mubr.bf16.gmra.mrb[0].mxu0 %v1664
        %v1759 = vpop.f32.mrb[0].mxu0
        %v1760 = vadd.f32 0.0, %v1759
        %v1761 = vpop.f32.mrb[0].mxu0
        %v1762 = vadd.f32 0.0, %v1761
        %v1763 = vpop.f32.mrb[0].mxu0
        %v1764 = vadd.f32 0.0, %v1763
        %v1765 = vpop.f32.mrb[0].mxu0
        %v1766 = vadd.f32 0.0, %v1765
        %1767 = vmatprep.mubr.bf16.mxu0 0
        %1768 = vmatmul.mubr.bf16.gmra.mrb[0].mxu0 %v1667
        %v1769 = vpop.f32.mrb[0].mxu0
        %v1770 = vadd.f32 0.0, %v1769
        %v1771 = vpop.f32.mrb[0].mxu0
        %v1772 = vadd.f32 0.0, %v1771
        %v1773 = vpop.f32.mrb[0].mxu0
        %v1774 = vadd.f32 0.0, %v1773
        %v1775 = vpop.f32.mrb[0].mxu0
        %v1776 = vadd.f32 0.0, %v1775
        %1777 = vmatprep.mubr.bf16.mxu0 0
        %1778 = vmatmul.mubr.bf16.gmra.mrb[0].mxu0 %v1670
        %v1779 = vpop.f32.mrb[0].mxu0
        %v1780 = vadd.f32 0.0, %v1779
        %v1781 = vpop.f32.mrb[0].mxu0
        %v1782 = vadd.f32 0.0, %v1781
        %v1783 = vpop.f32.mrb[0].mxu0
        %v1784 = vadd.f32 0.0, %v1783
        %v1785 = vpop.f32.mrb[0].mxu0
        %v1786 = vadd.f32 0.0, %v1785
        %1787 = vmatprep.mubr.bf16.mxu0 0
        %1788 = vmatmul.mubr.bf16.gmra.mrb[0].mxu0 %v1673
        %v1789 = vpop.f32.mrb[0].mxu0
        %v1790 = vadd.f32 0.0, %v1789
        %v1791 = vpop.f32.mrb[0].mxu0
        %v1792 = vadd.f32 0.0, %v1791
        %v1793 = vpop.f32.mrb[0].mxu0
        %v1794 = vadd.f32 0.0, %v1793
        %v1795 = vpop.f32.mrb[0].mxu0
        %v1796 = vadd.f32 0.0, %v1795
        %1797 = vmatprep.mubr.bf16.mxu0 0
        %1798 = vmatmul.mubr.bf16.gmra.mrb[0].mxu0 %v1676
        %v1799 = vpop.f32.mrb[0].mxu0
        %v1800 = vadd.f32 0.0, %v1799
        %v1801 = vpop.f32.mrb[0].mxu0
        %v1802 = vadd.f32 0.0, %v1801
        %v1803 = vpop.f32.mrb[0].mxu0
        %v1804 = vadd.f32 0.0, %v1803
        %v1805 = vpop.f32.mrb[0].mxu0
        %v1806 = vadd.f32 0.0, %v1805
        %1807 = vmatprep.mubr.bf16.mxu0 0
        %1808 = vmatmul.mubr.bf16.gmra.mrb[0].mxu0 %v1679
        %v1809 = vpop.f32.mrb[0].mxu0
        %v1810 = vadd.f32 0.0, %v1809
        %v1811 = vpop.f32.mrb[0].mxu0
        %v1812 = vadd.f32 0.0, %v1811
        %v1813 = vpop.f32.mrb[0].mxu0
        %v1814 = vadd.f32 0.0, %v1813
        %v1815 = vpop.f32.mrb[0].mxu0
        %v1816 = vadd.f32 0.0, %v1815
        %1817 = vmatprep.mubr.bf16.mxu0 0
        %1818 = vmatmul.mubr.bf16.gmra.mrb[0].mxu0 %v1682
        %v1819 = vpop.f32.mrb[0].mxu0
        %v1820 = vadd.f32 0.0, %v1819
        %v1821 = vpop.f32.mrb[0].mxu0
        %v1822 = vadd.f32 0.0, %v1821
        %v1823 = vpop.f32.mrb[0].mxu0
        %v1824 = vadd.f32 0.0, %v1823
        %v1825 = vpop.f32.mrb[0].mxu0
        %v1826 = vadd.f32 0.0, %v1825
        %1827 = vmatprep.mubr.bf16.mxu0 0
        %1828 = vmatmul.mubr.bf16.gmra.mrb[0].mxu0 %v1685
        %v1829 = vpop.f32.mrb[0].mxu0
        %v1830 = vadd.f32 0.0, %v1829
        %v1831 = vpop.f32.mrb[0].mxu0
        %v1832 = vadd.f32 0.0, %v1831
        %v1833 = vpop.f32.mrb[0].mxu0
        %v1834 = vadd.f32 0.0, %v1833
        %v1835 = vpop.f32.mrb[0].mxu0
        %v1836 = vadd.f32 0.0, %v1835
        %1837 = vmatprep.mubr.bf16.mxu0 0
        %1838 = vmatmul.mubr.bf16.gmra.mrb[0].mxu0 %v1688
        %v1839 = vpop.f32.mrb[0].mxu0
        %v1840 = vadd.f32 0.0, %v1839
        %v1841 = vpop.f32.mrb[0].mxu0
        %v1842 = vadd.f32 0.0, %v1841
        %v1843 = vpop.f32.mrb[0].mxu0
        %v1844 = vadd.f32 0.0, %v1843
        %v1845 = vpop.f32.mrb[0].mxu0
        %v1846 = vadd.f32 0.0, %v1845
        %1847 = vmatprep.mubr.bf16.mxu0 0
        %1848 = vmatmul.mubr.bf16.gmra.mrb[0].mxu0 %v1691
        %v1849 = vpop.f32.mrb[0].mxu0
        %v1850 = vadd.f32 0.0, %v1849
        %v1851 = vpop.f32.mrb[0].mxu0
        %v1852 = vadd.f32 0.0, %v1851
        %v1853 = vpop.f32.mrb[0].mxu0
        %v1854 = vadd.f32 0.0, %v1853
        %v1855 = vpop.f32.mrb[0].mxu0
        %v1856 = vadd.f32 0.0, %v1855
        %1857 = vmatprep.mubr.bf16.mxu0 0
        %1858 = vmatmul.mubr.bf16.gmra.mrb[0].mxu0 %v1694
        %v1859 = vpop.f32.mrb[0].mxu0
        %v1860 = vadd.f32 0.0, %v1859
        %v1861 = vpop.f32.mrb[0].mxu0
        %v1862 = vadd.f32 0.0, %v1861
        %v1863 = vpop.f32.mrb[0].mxu0
        %v1864 = vadd.f32 0.0, %v1863
        %v1865 = vpop.f32.mrb[0].mxu0
        %v1866 = vadd.f32 0.0, %v1865
        %1867 = vmatprep.mubr.bf16.mxu0 0
        %1868 = vmatmul.mubr.bf16.gmra.mrb[0].mxu0 %v1697
        %v1869 = vpop.f32.mrb[0].mxu0
        %v1870 = vadd.f32 0.0, %v1869
        %v1871 = vpop.f32.mrb[0].mxu0
        %v1872 = vadd.f32 0.0, %v1871
        %v1873 = vpop.f32.mrb[0].mxu0
        %v1874 = vadd.f32 0.0, %v1873
        %v1875 = vpop.f32.mrb[0].mxu0
        %v1876 = vadd.f32 0.0, %v1875
        %1877 = vmatprep.mubr.bf16.mxu0 0
        %1878 = vmatmul.mubr.bf16.gmra.mrb[0].mxu0 %v1700
        %v1879 = vpop.f32.mrb[0].mxu0
        %v1880 = vadd.f32 0.0, %v1879
        %v1881 = vpop.f32.mrb[0].mxu0
        %v1882 = vadd.f32 0.0, %v1881
        %v1883 = vpop.f32.mrb[0].mxu0
        %v1884 = vadd.f32 0.0, %v1883
        %v1885 = vpop.f32.mrb[0].mxu0
        %v1886 = vadd.f32 0.0, %v1885
        %1887 = vmatprep.mubr.bf16.mxu0 0
        %1888 = vmatmul.mubr.bf16.gmra.mrb[0].mxu0 %v1703
        %v1889 = vpop.f32.mrb[0].mxu0
        %v1890 = vadd.f32 0.0, %v1889
        %v1891 = vpop.f32.mrb[0].mxu0
        %v1892 = vadd.f32 0.0, %v1891
        %v1893 = vpop.f32.mrb[0].mxu0
        %v1894 = vadd.f32 0.0, %v1893
        %v1895 = vpop.f32.mrb[0].mxu0
        %v1896 = vadd.f32 0.0, %v1895
        %1897 = vdwg.mxu0
        %1898 = vxpose.xlu0.c.b16.start [1/8] %v962, 128
        %1899 = vxpose.xlu0.c.b16.cont [2/8] %v1068, 128
        %1900 = vxpose.xlu0.c.b16.cont [3/8] 0, 128
        %1901 = vxpose.xlu0.c.b16.cont [4/8] 0, 128
        %1902 = vxpose.xlu0.c.b16.cont [5/8] 0, 128
        %1903 = vxpose.xlu0.c.b16.cont [6/8] 0, 128
        %1904 = vxpose.xlu0.c.b16.cont [7/8] 0, 128
        %1905 = vxpose.xlu0.c.b16.end [8/8] 0, 128
        %v1906 = vpop.trf.xlu0
        %v1907 = vpop.trf.xlu0
        %v1908 = vpop.trf.xlu0
        %v1909 = vpop.trf.xlu0
        %v1910 = vpop.trf.xlu0
        %v1911 = vpop.trf.xlu0
        %v1912 = vpop.trf.xlu0
        %v1913 = vpop.trf.xlu0
        %1914 = vxpose.xlu0.c.b16.start [1/8] %v963, 128
        %1915 = vxpose.xlu0.c.b16.cont [2/8] %v1069, 128
        %1916 = vxpose.xlu0.c.b16.cont [3/8] 0, 128
        %1917 = vxpose.xlu0.c.b16.cont [4/8] 0, 128
        %1918 = vxpose.xlu0.c.b16.cont [5/8] 0, 128
        %1919 = vxpose.xlu0.c.b16.cont [6/8] 0, 128
        %1920 = vxpose.xlu0.c.b16.cont [7/8] 0, 128
        %1921 = vxpose.xlu0.c.b16.end [8/8] 0, 128
        %v1922 = vpop.trf.xlu0
        %v1923 = vpop.trf.xlu0
        %v1924 = vpop.trf.xlu0
        %v1925 = vpop.trf.xlu0
        %v1926 = vpop.trf.xlu0
        %v1927 = vpop.trf.xlu0
        %v1928 = vpop.trf.xlu0
        %v1929 = vpop.trf.xlu0
        %v1931 = vsel %vm1110, %v1906, 0
        %v1934 = vsel %vm1110, %v1907, 0
        %v1937 = vsel %vm1110, %v1908, 0
        %v1940 = vsel %vm1110, %v1909, 0
        %v1943 = vsel %vm1110, %v1910, 0
        %v1946 = vsel %vm1110, %v1911, 0
        %v1949 = vsel %vm1110, %v1912, 0
        %v1952 = vsel %vm1110, %v1913, 0
        %v1955 = vsel %vm1110, %v1922, 0
        %v1958 = vsel %vm1110, %v1923, 0
        %v1961 = vsel %vm1110, %v1924, 0
        %v1964 = vsel %vm1110, %v1925, 0
        %v1967 = vsel %vm1110, %v1926, 0
        %v1970 = vsel %vm1110, %v1927, 0
        %v1973 = vsel %vm1110, %v1928, 0
        %v1976 = vsel %vm1110, %v1929, 0
        %1978 = vmatprep.subr.bf16.mxu0 %v979
        %1979 = vmatpush1.bf16.msra.mxu0 %v978
        %1980 = vmatprep.subr.bf16.mxu0 %v963
        %1981 = vmatpush1.bf16.msra.mxu0 %v962
        %1982 = vmatprep.subr.bf16.mxu0 0
        %1983 = vmatpush1.bf16.msra.mxu0 0
        %1984 = vmatprep.subr.bf16.mxu0 0
        %1985 = vmatpush1.bf16.msra.mxu0 0
        %1986 = vmatprep.subr.bf16.mxu0 0
        %1987 = vmatpush1.bf16.msra.mxu0 0
        %1988 = vmatprep.subr.bf16.mxu0 0
        %1989 = vmatpush1.bf16.msra.mxu0 0
        %1990 = vmatprep.subr.bf16.mxu0 0
        %1991 = vmatpush1.bf16.msra.mxu0 0
        %1992 = vmatprep.subr.bf16.mxu0 0
        %1993 = vmatpush1.bf16.msra.mxu0 0
        %1994 = vmatprep.subr.bf16.mxu0 0
        %1995 = vmatpush1.bf16.msra.mxu0 0
        %1996 = vmatprep.subr.bf16.mxu0 0
        %1997 = vmatpush1.bf16.msra.mxu0 0
        %1998 = vmatprep.subr.bf16.mxu0 0
        %1999 = vmatpush1.bf16.msra.mxu0 0
        %2000 = vmatprep.subr.bf16.mxu0 0
        %2001 = vmatpush1.bf16.msra.mxu0 0
        %2002 = vmatprep.subr.bf16.mxu0 0
        %2003 = vmatpush1.bf16.msra.mxu0 0
        %2004 = vmatprep.subr.bf16.mxu0 0
        %2005 = vmatpush1.bf16.msra.mxu0 0
        %2006 = vmatprep.subr.bf16.mxu0 0
        %2007 = vmatpush1.bf16.msra.mxu0 0
        %2008 = vmatprep.subr.bf16.mxu0 0
        %2009 = vmatpush1.bf16.msra.mxu0 0
        %2010 = vmatprep.mubr.bf16.mxu0 0
        %2011 = vmatmul.mubr.bf16.gmra.mrb[0].mxu0 %v1931
        %v2012 = vpop.f32.mrb[0].mxu0
        %v2013 = vadd.f32 0.0, %v2012
        %v2014 = vpop.f32.mrb[0].mxu0
        %v2015 = vadd.f32 0.0, %v2014
        %v2016 = vpop.f32.mrb[0].mxu0
        %v2017 = vadd.f32 0.0, %v2016
        %v2018 = vpop.f32.mrb[0].mxu0
        %v2019 = vadd.f32 0.0, %v2018
        %2020 = vmatprep.mubr.bf16.mxu0 0
        %2021 = vmatmul.mubr.bf16.gmra.mrb[0].mxu0 %v1934
        %v2022 = vpop.f32.mrb[0].mxu0
        %v2023 = vadd.f32 0.0, %v2022
        %v2024 = vpop.f32.mrb[0].mxu0
        %v2025 = vadd.f32 0.0, %v2024
        %v2026 = vpop.f32.mrb[0].mxu0
        %v2027 = vadd.f32 0.0, %v2026
        %v2028 = vpop.f32.mrb[0].mxu0
        %v2029 = vadd.f32 0.0, %v2028
        %2030 = vmatprep.mubr.bf16.mxu0 0
        %2031 = vmatmul.mubr.bf16.gmra.mrb[0].mxu0 %v1937
        %v2032 = vpop.f32.mrb[0].mxu0
        %v2033 = vadd.f32 0.0, %v2032
        %v2034 = vpop.f32.mrb[0].mxu0
        %v2035 = vadd.f32 0.0, %v2034
        %v2036 = vpop.f32.mrb[0].mxu0
        %v2037 = vadd.f32 0.0, %v2036
        %v2038 = vpop.f32.mrb[0].mxu0
        %v2039 = vadd.f32 0.0, %v2038
        %2040 = vmatprep.mubr.bf16.mxu0 0
        %2041 = vmatmul.mubr.bf16.gmra.mrb[0].mxu0 %v1940
        %v2042 = vpop.f32.mrb[0].mxu0
        %v2043 = vadd.f32 0.0, %v2042
        %v2044 = vpop.f32.mrb[0].mxu0
        %v2045 = vadd.f32 0.0, %v2044
        %v2046 = vpop.f32.mrb[0].mxu0
        %v2047 = vadd.f32 0.0, %v2046
        %v2048 = vpop.f32.mrb[0].mxu0
        %v2049 = vadd.f32 0.0, %v2048
        %2050 = vmatprep.mubr.bf16.mxu0 0
        %2051 = vmatmul.mubr.bf16.gmra.mrb[0].mxu0 %v1943
        %v2052 = vpop.f32.mrb[0].mxu0
        %v2053 = vadd.f32 0.0, %v2052
        %v2054 = vpop.f32.mrb[0].mxu0
        %v2055 = vadd.f32 0.0, %v2054
        %v2056 = vpop.f32.mrb[0].mxu0
        %v2057 = vadd.f32 0.0, %v2056
        %v2058 = vpop.f32.mrb[0].mxu0
        %v2059 = vadd.f32 0.0, %v2058
        %2060 = vmatprep.mubr.bf16.mxu0 0
        %2061 = vmatmul.mubr.bf16.gmra.mrb[0].mxu0 %v1946
        %v2062 = vpop.f32.mrb[0].mxu0
        %v2063 = vadd.f32 0.0, %v2062
        %v2064 = vpop.f32.mrb[0].mxu0
        %v2065 = vadd.f32 0.0, %v2064
        %v2066 = vpop.f32.mrb[0].mxu0
        %v2067 = vadd.f32 0.0, %v2066
        %v2068 = vpop.f32.mrb[0].mxu0
        %v2069 = vadd.f32 0.0, %v2068
        %2070 = vmatprep.mubr.bf16.mxu0 0
        %2071 = vmatmul.mubr.bf16.gmra.mrb[0].mxu0 %v1949
        %v2072 = vpop.f32.mrb[0].mxu0
        %v2073 = vadd.f32 0.0, %v2072
        %v2074 = vpop.f32.mrb[0].mxu0
        %v2075 = vadd.f32 0.0, %v2074
        %v2076 = vpop.f32.mrb[0].mxu0
        %v2077 = vadd.f32 0.0, %v2076
        %v2078 = vpop.f32.mrb[0].mxu0
        %v2079 = vadd.f32 0.0, %v2078
        %2080 = vmatprep.mubr.bf16.mxu0 0
        %2081 = vmatmul.mubr.bf16.gmra.mrb[0].mxu0 %v1952
        %v2082 = vpop.f32.mrb[0].mxu0
        %v2083 = vadd.f32 0.0, %v2082
        %v2084 = vpop.f32.mrb[0].mxu0
        %v2085 = vadd.f32 0.0, %v2084
        %v2086 = vpop.f32.mrb[0].mxu0
        %v2087 = vadd.f32 0.0, %v2086
        %v2088 = vpop.f32.mrb[0].mxu0
        %v2089 = vadd.f32 0.0, %v2088
        %2090 = vmatprep.mubr.bf16.mxu0 0
        %2091 = vmatmul.mubr.bf16.gmra.mrb[0].mxu0 %v1955
        %v2092 = vpop.f32.mrb[0].mxu0
        %v2093 = vadd.f32 0.0, %v2092
        %v2094 = vpop.f32.mrb[0].mxu0
        %v2095 = vadd.f32 0.0, %v2094
        %v2096 = vpop.f32.mrb[0].mxu0
        %v2097 = vadd.f32 0.0, %v2096
        %v2098 = vpop.f32.mrb[0].mxu0
        %v2099 = vadd.f32 0.0, %v2098
        %2100 = vmatprep.mubr.bf16.mxu0 0
        %2101 = vmatmul.mubr.bf16.gmra.mrb[0].mxu0 %v1958
        %v2102 = vpop.f32.mrb[0].mxu0
        %v2103 = vadd.f32 0.0, %v2102
        %v2104 = vpop.f32.mrb[0].mxu0
        %v2105 = vadd.f32 0.0, %v2104
        %v2106 = vpop.f32.mrb[0].mxu0
        %v2107 = vadd.f32 0.0, %v2106
        %v2108 = vpop.f32.mrb[0].mxu0
        %v2109 = vadd.f32 0.0, %v2108
        %2110 = vmatprep.mubr.bf16.mxu0 0
        %2111 = vmatmul.mubr.bf16.gmra.mrb[0].mxu0 %v1961
        %v2112 = vpop.f32.mrb[0].mxu0
        %v2113 = vadd.f32 0.0, %v2112
        %v2114 = vpop.f32.mrb[0].mxu0
        %v2115 = vadd.f32 0.0, %v2114
        %v2116 = vpop.f32.mrb[0].mxu0
        %v2117 = vadd.f32 0.0, %v2116
        %v2118 = vpop.f32.mrb[0].mxu0
        %v2119 = vadd.f32 0.0, %v2118
        %2120 = vmatprep.mubr.bf16.mxu0 0
        %2121 = vmatmul.mubr.bf16.gmra.mrb[0].mxu0 %v1964
        %v2122 = vpop.f32.mrb[0].mxu0
        %v2123 = vadd.f32 0.0, %v2122
        %v2124 = vpop.f32.mrb[0].mxu0
        %v2125 = vadd.f32 0.0, %v2124
        %v2126 = vpop.f32.mrb[0].mxu0
        %v2127 = vadd.f32 0.0, %v2126
        %v2128 = vpop.f32.mrb[0].mxu0
        %v2129 = vadd.f32 0.0, %v2128
        %2130 = vmatprep.mubr.bf16.mxu0 0
        %2131 = vmatmul.mubr.bf16.gmra.mrb[0].mxu0 %v1967
        %v2132 = vpop.f32.mrb[0].mxu0
        %v2133 = vadd.f32 0.0, %v2132
        %v2134 = vpop.f32.mrb[0].mxu0
        %v2135 = vadd.f32 0.0, %v2134
        %v2136 = vpop.f32.mrb[0].mxu0
        %v2137 = vadd.f32 0.0, %v2136
        %v2138 = vpop.f32.mrb[0].mxu0
        %v2139 = vadd.f32 0.0, %v2138
        %2140 = vmatprep.mubr.bf16.mxu0 0
        %2141 = vmatmul.mubr.bf16.gmra.mrb[0].mxu0 %v1970
        %v2142 = vpop.f32.mrb[0].mxu0
        %v2143 = vadd.f32 0.0, %v2142
        %v2144 = vpop.f32.mrb[0].mxu0
        %v2145 = vadd.f32 0.0, %v2144
        %v2146 = vpop.f32.mrb[0].mxu0
        %v2147 = vadd.f32 0.0, %v2146
        %v2148 = vpop.f32.mrb[0].mxu0
        %v2149 = vadd.f32 0.0, %v2148
        %2150 = vmatprep.mubr.bf16.mxu0 0
        %2151 = vmatmul.mubr.bf16.gmra.mrb[0].mxu0 %v1973
        %v2152 = vpop.f32.mrb[0].mxu0
        %v2153 = vadd.f32 0.0, %v2152
        %v2154 = vpop.f32.mrb[0].mxu0
        %v2155 = vadd.f32 0.0, %v2154
        %v2156 = vpop.f32.mrb[0].mxu0
        %v2157 = vadd.f32 0.0, %v2156
        %v2158 = vpop.f32.mrb[0].mxu0
        %v2159 = vadd.f32 0.0, %v2158
        %2160 = vmatprep.mubr.bf16.mxu0 0
        %2161 = vmatmul.mubr.bf16.gmra.mrb[0].mxu0 %v1976
        %v2162 = vpop.f32.mrb[0].mxu0
        %v2163 = vadd.f32 0.0, %v2162
        %v2164 = vpop.f32.mrb[0].mxu0
        %v2165 = vadd.f32 0.0, %v2164
        %v2166 = vpop.f32.mrb[0].mxu0
        %v2167 = vadd.f32 0.0, %v2166
        %v2168 = vpop.f32.mrb[0].mxu0
        %v2169 = vadd.f32 0.0, %v2168
        %2170 = vdwg.mxu0
        %v2171 = vmax.f32 %v1194, %v1196
        %2172 = vmax.xlane.f32.xlu0 %v2171
        %v2173 = vpop.xlane.xlu0 %2172
        %v2174 = vmax.f32 %v1198, %v1200
        %2175 = vmax.xlane.f32.xlu0 %v2174
        %v2176 = vpop.xlane.xlu0 %2175
        %v2177 = vmax.f32 %v1204, %v1206
        %2178 = vmax.xlane.f32.xlu0 %v2177
        %v2179 = vpop.xlane.xlu0 %2178
        %v2180 = vmax.f32 %v1208, %v1210
        %2181 = vmax.xlane.f32.xlu0 %v2180
        %v2182 = vpop.xlane.xlu0 %2181
        %v2183 = vmax.f32 %v1214, %v1216
        %2184 = vmax.xlane.f32.xlu0 %v2183
        %v2185 = vpop.xlane.xlu0 %2184
        %v2186 = vmax.f32 %v1218, %v1220
        %2187 = vmax.xlane.f32.xlu0 %v2186
        %v2188 = vpop.xlane.xlu0 %2187
        %v2189 = vmax.f32 %v1224, %v1226
        %2190 = vmax.xlane.f32.xlu0 %v2189
        %v2191 = vpop.xlane.xlu0 %2190
        %v2192 = vmax.f32 %v1228, %v1230
        %2193 = vmax.xlane.f32.xlu0 %v2192
        %v2194 = vpop.xlane.xlu0 %2193
        %v2195 = vmax.f32 %v1234, %v1236
        %2196 = vmax.xlane.f32.xlu0 %v2195
        %v2197 = vpop.xlane.xlu0 %2196
        %v2198 = vmax.f32 %v1238, %v1240
        %2199 = vmax.xlane.f32.xlu0 %v2198
        %v2200 = vpop.xlane.xlu0 %2199
        %v2201 = vmax.f32 %v1244, %v1246
        %2202 = vmax.xlane.f32.xlu0 %v2201
        %v2203 = vpop.xlane.xlu0 %2202
        %v2204 = vmax.f32 %v1248, %v1250
        %2205 = vmax.xlane.f32.xlu0 %v2204
        %v2206 = vpop.xlane.xlu0 %2205
        %v2207 = vmax.f32 %v1254, %v1256
        %2208 = vmax.xlane.f32.xlu0 %v2207
        %v2209 = vpop.xlane.xlu0 %2208
        %v2210 = vmax.f32 %v1258, %v1260
        %2211 = vmax.xlane.f32.xlu0 %v2210
        %v2212 = vpop.xlane.xlu0 %2211
        %v2213 = vmax.f32 %v1264, %v1266
        %2214 = vmax.xlane.f32.xlu0 %v2213
        %v2215 = vpop.xlane.xlu0 %2214
        %v2216 = vmax.f32 %v1268, %v1270
        %2217 = vmax.xlane.f32.xlu0 %v2216
        %v2218 = vpop.xlane.xlu0 %2217
        %v2219 = vmax.f32 %v1274, %v1276
        %2220 = vmax.xlane.f32.xlu0 %v2219
        %v2221 = vpop.xlane.xlu0 %2220
        %v2222 = vmax.f32 %v1278, %v1280
        %2223 = vmax.xlane.f32.xlu0 %v2222
        %v2224 = vpop.xlane.xlu0 %2223
        %v2225 = vmax.f32 %v1284, %v1286
        %2226 = vmax.xlane.f32.xlu0 %v2225
        %v2227 = vpop.xlane.xlu0 %2226
        %v2228 = vmax.f32 %v1288, %v1290
        %2229 = vmax.xlane.f32.xlu0 %v2228
        %v2230 = vpop.xlane.xlu0 %2229
        %v2231 = vmax.f32 %v1294, %v1296
        %2232 = vmax.xlane.f32.xlu0 %v2231
        %v2233 = vpop.xlane.xlu0 %2232
        %v2234 = vmax.f32 %v1298, %v1300
        %2235 = vmax.xlane.f32.xlu0 %v2234
        %v2236 = vpop.xlane.xlu0 %2235
        %v2237 = vmax.f32 %v1304, %v1306
        %2238 = vmax.xlane.f32.xlu0 %v2237
        %v2239 = vpop.xlane.xlu0 %2238
        %v2240 = vmax.f32 %v1308, %v1310
        %2241 = vmax.xlane.f32.xlu0 %v2240
        %v2242 = vpop.xlane.xlu0 %2241
        %v2243 = vmax.f32 %v1314, %v1316
        %2244 = vmax.xlane.f32.xlu0 %v2243
        %v2245 = vpop.xlane.xlu0 %2244
        %v2246 = vmax.f32 %v1318, %v1320
        %2247 = vmax.xlane.f32.xlu0 %v2246
        %v2248 = vpop.xlane.xlu0 %2247
        %v2249 = vmax.f32 %v1324, %v1326
        %2250 = vmax.xlane.f32.xlu0 %v2249
        %v2251 = vpop.xlane.xlu0 %2250
        %v2252 = vmax.f32 %v1328, %v1330
        %2253 = vmax.xlane.f32.xlu0 %v2252
        %v2254 = vpop.xlane.xlu0 %2253
        %v2255 = vmax.f32 %v1334, %v1336
        %2256 = vmax.xlane.f32.xlu0 %v2255
        %v2257 = vpop.xlane.xlu0 %2256
        %v2258 = vmax.f32 %v1338, %v1340
        %2259 = vmax.xlane.f32.xlu0 %v2258
        %v2260 = vpop.xlane.xlu0 %2259
        %v2261 = vmax.f32 %v1344, %v1346
        %2262 = vmax.xlane.f32.xlu0 %v2261
        %v2263 = vpop.xlane.xlu0 %2262
        %v2264 = vmax.f32 %v1348, %v1350
        %2265 = vmax.xlane.f32.xlu0 %v2264
        %v2266 = vpop.xlane.xlu0 %2265
        %v2267 = vmax.f32 %v1467, %v1469
        %2268 = vmax.xlane.f32.xlu0 %v2267
        %v2269 = vpop.xlane.xlu0 %2268
        %v2270 = vmax.f32 %v1471, %v1473
        %2271 = vmax.xlane.f32.xlu0 %v2270
        %v2272 = vpop.xlane.xlu0 %2271
        %v2273 = vmax.f32 %v1477, %v1479
        %2274 = vmax.xlane.f32.xlu0 %v2273
        %v2275 = vpop.xlane.xlu0 %2274
        %v2276 = vmax.f32 %v1481, %v1483
        %2277 = vmax.xlane.f32.xlu0 %v2276
        %v2278 = vpop.xlane.xlu0 %2277
        %v2279 = vmax.f32 %v1487, %v1489
        %2280 = vmax.xlane.f32.xlu0 %v2279
        %v2281 = vpop.xlane.xlu0 %2280
        %v2282 = vmax.f32 %v1491, %v1493
        %2283 = vmax.xlane.f32.xlu0 %v2282
        %v2284 = vpop.xlane.xlu0 %2283
        %v2285 = vmax.f32 %v1497, %v1499
        %2286 = vmax.xlane.f32.xlu0 %v2285
        %v2287 = vpop.xlane.xlu0 %2286
        %v2288 = vmax.f32 %v1501, %v1503
        %2289 = vmax.xlane.f32.xlu0 %v2288
        %v2290 = vpop.xlane.xlu0 %2289
        %v2291 = vmax.f32 %v1507, %v1509
        %2292 = vmax.xlane.f32.xlu0 %v2291
        %v2293 = vpop.xlane.xlu0 %2292
        %v2294 = vmax.f32 %v1511, %v1513
        %2295 = vmax.xlane.f32.xlu0 %v2294
        %v2296 = vpop.xlane.xlu0 %2295
        %v2297 = vmax.f32 %v1517, %v1519
        %2298 = vmax.xlane.f32.xlu0 %v2297
        %v2299 = vpop.xlane.xlu0 %2298
        %v2300 = vmax.f32 %v1521, %v1523
        %2301 = vmax.xlane.f32.xlu0 %v2300
        %v2302 = vpop.xlane.xlu0 %2301
        %v2303 = vmax.f32 %v1527, %v1529
        %2304 = vmax.xlane.f32.xlu0 %v2303
        %v2305 = vpop.xlane.xlu0 %2304
        %v2306 = vmax.f32 %v1531, %v1533
        %2307 = vmax.xlane.f32.xlu0 %v2306
        %v2308 = vpop.xlane.xlu0 %2307
        %v2309 = vmax.f32 %v1537, %v1539
        %2310 = vmax.xlane.f32.xlu0 %v2309
        %v2311 = vpop.xlane.xlu0 %2310
        %v2312 = vmax.f32 %v1541, %v1543
        %2313 = vmax.xlane.f32.xlu0 %v2312
        %v2314 = vpop.xlane.xlu0 %2313
        %v2315 = vmax.f32 %v1547, %v1549
        %2316 = vmax.xlane.f32.xlu0 %v2315
        %v2317 = vpop.xlane.xlu0 %2316
        %v2318 = vmax.f32 %v1551, %v1553
        %2319 = vmax.xlane.f32.xlu0 %v2318
        %v2320 = vpop.xlane.xlu0 %2319
        %v2321 = vmax.f32 %v1557, %v1559
        %2322 = vmax.xlane.f32.xlu0 %v2321
        %v2323 = vpop.xlane.xlu0 %2322
        %v2324 = vmax.f32 %v1561, %v1563
        %2325 = vmax.xlane.f32.xlu0 %v2324
        %v2326 = vpop.xlane.xlu0 %2325
        %v2327 = vmax.f32 %v1567, %v1569
        %2328 = vmax.xlane.f32.xlu0 %v2327
        %v2329 = vpop.xlane.xlu0 %2328
        %v2330 = vmax.f32 %v1571, %v1573
        %2331 = vmax.xlane.f32.xlu0 %v2330
        %v2332 = vpop.xlane.xlu0 %2331
        %v2333 = vmax.f32 %v1577, %v1579
        %2334 = vmax.xlane.f32.xlu0 %v2333
        %v2335 = vpop.xlane.xlu0 %2334
        %v2336 = vmax.f32 %v1581, %v1583
        %2337 = vmax.xlane.f32.xlu0 %v2336
        %v2338 = vpop.xlane.xlu0 %2337
        %v2339 = vmax.f32 %v1587, %v1589
        %2340 = vmax.xlane.f32.xlu0 %v2339
        %v2341 = vpop.xlane.xlu0 %2340
        %v2342 = vmax.f32 %v1591, %v1593
        %2343 = vmax.xlane.f32.xlu0 %v2342
        %v2344 = vpop.xlane.xlu0 %2343
        %v2345 = vmax.f32 %v1597, %v1599
        %2346 = vmax.xlane.f32.xlu0 %v2345
        %v2347 = vpop.xlane.xlu0 %2346
        %v2348 = vmax.f32 %v1601, %v1603
        %2349 = vmax.xlane.f32.xlu0 %v2348
        %v2350 = vpop.xlane.xlu0 %2349
        %v2351 = vmax.f32 %v1607, %v1609
        %2352 = vmax.xlane.f32.xlu0 %v2351
        %v2353 = vpop.xlane.xlu0 %2352
        %v2354 = vmax.f32 %v1611, %v1613
        %2355 = vmax.xlane.f32.xlu0 %v2354
        %v2356 = vpop.xlane.xlu0 %2355
        %v2357 = vmax.f32 %v1617, %v1619
        %2358 = vmax.xlane.f32.xlu0 %v2357
        %v2359 = vpop.xlane.xlu0 %2358
        %v2360 = vmax.f32 %v1621, %v1623
        %2361 = vmax.xlane.f32.xlu0 %v2360
        %v2362 = vpop.xlane.xlu0 %2361
        %v2363 = vmax.f32 %v1740, %v1742
        %2364 = vmax.xlane.f32.xlu0 %v2363
        %v2365 = vpop.xlane.xlu0 %2364
        %v2366 = vmax.f32 %v1744, %v1746
        %2367 = vmax.xlane.f32.xlu0 %v2366
        %v2368 = vpop.xlane.xlu0 %2367
        %v2369 = vmax.f32 %v1750, %v1752
        %2370 = vmax.xlane.f32.xlu0 %v2369
        %v2371 = vpop.xlane.xlu0 %2370
        %v2372 = vmax.f32 %v1754, %v1756
        %2373 = vmax.xlane.f32.xlu0 %v2372
        %v2374 = vpop.xlane.xlu0 %2373
        %v2375 = vmax.f32 %v1760, %v1762
        %2376 = vmax.xlane.f32.xlu0 %v2375
        %v2377 = vpop.xlane.xlu0 %2376
        %v2378 = vmax.f32 %v1764, %v1766
        %2379 = vmax.xlane.f32.xlu0 %v2378
        %v2380 = vpop.xlane.xlu0 %2379
        %v2381 = vmax.f32 %v1770, %v1772
        %2382 = vmax.xlane.f32.xlu0 %v2381
        %v2383 = vpop.xlane.xlu0 %2382
        %v2384 = vmax.f32 %v1774, %v1776
        %2385 = vmax.xlane.f32.xlu0 %v2384
        %v2386 = vpop.xlane.xlu0 %2385
        %v2387 = vmax.f32 %v1780, %v1782
        %2388 = vmax.xlane.f32.xlu0 %v2387
        %v2389 = vpop.xlane.xlu0 %2388
        %v2390 = vmax.f32 %v1784, %v1786
        %2391 = vmax.xlane.f32.xlu0 %v2390
        %v2392 = vpop.xlane.xlu0 %2391
        %v2393 = vmax.f32 %v1790, %v1792
        %2394 = vmax.xlane.f32.xlu0 %v2393
        %v2395 = vpop.xlane.xlu0 %2394
        %v2396 = vmax.f32 %v1794, %v1796
        %2397 = vmax.xlane.f32.xlu0 %v2396
        %v2398 = vpop.xlane.xlu0 %2397
        %v2399 = vmax.f32 %v1800, %v1802
        %2400 = vmax.xlane.f32.xlu0 %v2399
        %v2401 = vpop.xlane.xlu0 %2400
        %v2402 = vmax.f32 %v1804, %v1806
        %2403 = vmax.xlane.f32.xlu0 %v2402
        %v2404 = vpop.xlane.xlu0 %2403
        %v2405 = vmax.f32 %v1810, %v1812
        %2406 = vmax.xlane.f32.xlu0 %v2405
        %v2407 = vpop.xlane.xlu0 %2406
        %v2408 = vmax.f32 %v1814, %v1816
        %2409 = vmax.xlane.f32.xlu0 %v2408
        %v2410 = vpop.xlane.xlu0 %2409
        %v2411 = vmax.f32 %v1820, %v1822
        %2412 = vmax.xlane.f32.xlu0 %v2411
        %v2413 = vpop.xlane.xlu0 %2412
        %v2414 = vmax.f32 %v1824, %v1826
        %2415 = vmax.xlane.f32.xlu0 %v2414
        %v2416 = vpop.xlane.xlu0 %2415
        %v2417 = vmax.f32 %v1830, %v1832
        %2418 = vmax.xlane.f32.xlu0 %v2417
        %v2419 = vpop.xlane.xlu0 %2418
        %v2420 = vmax.f32 %v1834, %v1836
        %2421 = vmax.xlane.f32.xlu0 %v2420
        %v2422 = vpop.xlane.xlu0 %2421
        %v2423 = vmax.f32 %v1840, %v1842
        %2424 = vmax.xlane.f32.xlu0 %v2423
        %v2425 = vpop.xlane.xlu0 %2424
        %v2426 = vmax.f32 %v1844, %v1846
        %2427 = vmax.xlane.f32.xlu0 %v2426
        %v2428 = vpop.xlane.xlu0 %2427
        %v2429 = vmax.f32 %v1850, %v1852
        %2430 = vmax.xlane.f32.xlu0 %v2429
        %v2431 = vpop.xlane.xlu0 %2430
        %v2432 = vmax.f32 %v1854, %v1856
        %2433 = vmax.xlane.f32.xlu0 %v2432
        %v2434 = vpop.xlane.xlu0 %2433
        %v2435 = vmax.f32 %v1860, %v1862
        %2436 = vmax.xlane.f32.xlu0 %v2435
        %v2437 = vpop.xlane.xlu0 %2436
        %v2438 = vmax.f32 %v1864, %v1866
        %2439 = vmax.xlane.f32.xlu0 %v2438
        %v2440 = vpop.xlane.xlu0 %2439
        %v2441 = vmax.f32 %v1870, %v1872
        %2442 = vmax.xlane.f32.xlu0 %v2441
        %v2443 = vpop.xlane.xlu0 %2442
        %v2444 = vmax.f32 %v1874, %v1876
        %2445 = vmax.xlane.f32.xlu0 %v2444
        %v2446 = vpop.xlane.xlu0 %2445
        %v2447 = vmax.f32 %v1880, %v1882
        %2448 = vmax.xlane.f32.xlu0 %v2447
        %v2449 = vpop.xlane.xlu0 %2448
        %v2450 = vmax.f32 %v1884, %v1886
        %2451 = vmax.xlane.f32.xlu0 %v2450
        %v2452 = vpop.xlane.xlu0 %2451
        %v2453 = vmax.f32 %v1890, %v1892
        %2454 = vmax.xlane.f32.xlu0 %v2453
        %v2455 = vpop.xlane.xlu0 %2454
        %v2456 = vmax.f32 %v1894, %v1896
        %2457 = vmax.xlane.f32.xlu0 %v2456
        %v2458 = vpop.xlane.xlu0 %2457
        %v2459 = vmax.f32 %v2013, %v2015
        %2460 = vmax.xlane.f32.xlu0 %v2459
        %v2461 = vpop.xlane.xlu0 %2460
        %v2462 = vmax.f32 %v2017, %v2019
        %2463 = vmax.xlane.f32.xlu0 %v2462
        %v2464 = vpop.xlane.xlu0 %2463
        %v2465 = vmax.f32 %v2023, %v2025
        %2466 = vmax.xlane.f32.xlu0 %v2465
        %v2467 = vpop.xlane.xlu0 %2466
        %v2468 = vmax.f32 %v2027, %v2029
        %2469 = vmax.xlane.f32.xlu0 %v2468
        %v2470 = vpop.xlane.xlu0 %2469
        %v2471 = vmax.f32 %v2033, %v2035
        %2472 = vmax.xlane.f32.xlu0 %v2471
        %v2473 = vpop.xlane.xlu0 %2472
        %v2474 = vmax.f32 %v2037, %v2039
        %2475 = vmax.xlane.f32.xlu0 %v2474
        %v2476 = vpop.xlane.xlu0 %2475
        %v2477 = vmax.f32 %v2043, %v2045
        %2478 = vmax.xlane.f32.xlu0 %v2477
        %v2479 = vpop.xlane.xlu0 %2478
        %v2480 = vmax.f32 %v2047, %v2049
        %2481 = vmax.xlane.f32.xlu0 %v2480
        %v2482 = vpop.xlane.xlu0 %2481
        %v2483 = vmax.f32 %v2053, %v2055
        %2484 = vmax.xlane.f32.xlu0 %v2483
        %v2485 = vpop.xlane.xlu0 %2484
        %v2486 = vmax.f32 %v2057, %v2059
        %2487 = vmax.xlane.f32.xlu0 %v2486
        %v2488 = vpop.xlane.xlu0 %2487
        %v2489 = vmax.f32 %v2063, %v2065
        %2490 = vmax.xlane.f32.xlu0 %v2489
        %v2491 = vpop.xlane.xlu0 %2490
        %v2492 = vmax.f32 %v2067, %v2069
        %2493 = vmax.xlane.f32.xlu0 %v2492
        %v2494 = vpop.xlane.xlu0 %2493
        %v2495 = vmax.f32 %v2073, %v2075
        %2496 = vmax.xlane.f32.xlu0 %v2495
        %v2497 = vpop.xlane.xlu0 %2496
        %v2498 = vmax.f32 %v2077, %v2079
        %2499 = vmax.xlane.f32.xlu0 %v2498
        %v2500 = vpop.xlane.xlu0 %2499
        %v2501 = vmax.f32 %v2083, %v2085
        %2502 = vmax.xlane.f32.xlu0 %v2501
        %v2503 = vpop.xlane.xlu0 %2502
        %v2504 = vmax.f32 %v2087, %v2089
        %2505 = vmax.xlane.f32.xlu0 %v2504
        %v2506 = vpop.xlane.xlu0 %2505
        %v2507 = vmax.f32 %v2093, %v2095
        %2508 = vmax.xlane.f32.xlu0 %v2507
        %v2509 = vpop.xlane.xlu0 %2508
        %v2510 = vmax.f32 %v2097, %v2099
        %2511 = vmax.xlane.f32.xlu0 %v2510
        %v2512 = vpop.xlane.xlu0 %2511
        %v2513 = vmax.f32 %v2103, %v2105
        %2514 = vmax.xlane.f32.xlu0 %v2513
        %v2515 = vpop.xlane.xlu0 %2514
        %v2516 = vmax.f32 %v2107, %v2109
        %2517 = vmax.xlane.f32.xlu0 %v2516
        %v2518 = vpop.xlane.xlu0 %2517
        %v2519 = vmax.f32 %v2113, %v2115
        %2520 = vmax.xlane.f32.xlu0 %v2519
        %v2521 = vpop.xlane.xlu0 %2520
        %v2522 = vmax.f32 %v2117, %v2119
        %2523 = vmax.xlane.f32.xlu0 %v2522
        %v2524 = vpop.xlane.xlu0 %2523
        %v2525 = vmax.f32 %v2123, %v2125
        %2526 = vmax.xlane.f32.xlu0 %v2525
        %v2527 = vpop.xlane.xlu0 %2526
        %v2528 = vmax.f32 %v2127, %v2129
        %2529 = vmax.xlane.f32.xlu0 %v2528
        %v2530 = vpop.xlane.xlu0 %2529
        %v2531 = vmax.f32 %v2133, %v2135
        %2532 = vmax.xlane.f32.xlu0 %v2531
        %v2533 = vpop.xlane.xlu0 %2532
        %v2534 = vmax.f32 %v2137, %v2139
        %2535 = vmax.xlane.f32.xlu0 %v2534
        %v2536 = vpop.xlane.xlu0 %2535
        %v2537 = vmax.f32 %v2143, %v2145
        %2538 = vmax.xlane.f32.xlu0 %v2537
        %v2539 = vpop.xlane.xlu0 %2538
        %v2540 = vmax.f32 %v2147, %v2149
        %2541 = vmax.xlane.f32.xlu0 %v2540
        %v2542 = vpop.xlane.xlu0 %2541
        %v2543 = vmax.f32 %v2153, %v2155
        %2544 = vmax.xlane.f32.xlu0 %v2543
        %v2545 = vpop.xlane.xlu0 %2544
        %v2546 = vmax.f32 %v2157, %v2159
        %2547 = vmax.xlane.f32.xlu0 %v2546
        %v2548 = vpop.xlane.xlu0 %2547
        %v2549 = vmax.f32 %v2163, %v2165
        %2550 = vmax.xlane.f32.xlu0 %v2549
        %v2551 = vpop.xlane.xlu0 %2550
        %v2552 = vmax.f32 %v2167, %v2169
        %2553 = vmax.xlane.f32.xlu0 %v2552
        %v2554 = vpop.xlane.xlu0 %2553
        %v2555 = vsub.f32 %v1194, %v2173
        %v2556 = vsub.f32 %v1196, %v2173
        %v2557 = vsub.f32 %v1198, %v2176
        %v2558 = vsub.f32 %v1200, %v2176
        %v2559 = vsub.f32 %v1204, %v2179
        %v2560 = vsub.f32 %v1206, %v2179
        %v2561 = vsub.f32 %v1208, %v2182
        %v2562 = vsub.f32 %v1210, %v2182
        %v2563 = vsub.f32 %v1214, %v2185
        %v2564 = vsub.f32 %v1216, %v2185
        %v2565 = vsub.f32 %v1218, %v2188
        %v2566 = vsub.f32 %v1220, %v2188
        %v2567 = vsub.f32 %v1224, %v2191
        %v2568 = vsub.f32 %v1226, %v2191
        %v2569 = vsub.f32 %v1228, %v2194
        %v2570 = vsub.f32 %v1230, %v2194
        %v2571 = vsub.f32 %v1234, %v2197
        %v2572 = vsub.f32 %v1236, %v2197
        %v2573 = vsub.f32 %v1238, %v2200
        %v2574 = vsub.f32 %v1240, %v2200
        %v2575 = vsub.f32 %v1244, %v2203
        %v2576 = vsub.f32 %v1246, %v2203
        %v2577 = vsub.f32 %v1248, %v2206
        %v2578 = vsub.f32 %v1250, %v2206
        %v2579 = vsub.f32 %v1254, %v2209
        %v2580 = vsub.f32 %v1256, %v2209
        %v2581 = vsub.f32 %v1258, %v2212
        %v2582 = vsub.f32 %v1260, %v2212
        %v2583 = vsub.f32 %v1264, %v2215
        %v2584 = vsub.f32 %v1266, %v2215
        %v2585 = vsub.f32 %v1268, %v2218
        %v2586 = vsub.f32 %v1270, %v2218
        %v2587 = vsub.f32 %v1274, %v2221
        %v2588 = vsub.f32 %v1276, %v2221
        %v2589 = vsub.f32 %v1278, %v2224
        %v2590 = vsub.f32 %v1280, %v2224
        %v2591 = vsub.f32 %v1284, %v2227
        %v2592 = vsub.f32 %v1286, %v2227
        %v2593 = vsub.f32 %v1288, %v2230
        %v2594 = vsub.f32 %v1290, %v2230
        %v2595 = vsub.f32 %v1294, %v2233
        %v2596 = vsub.f32 %v1296, %v2233
        %v2597 = vsub.f32 %v1298, %v2236
        %v2598 = vsub.f32 %v1300, %v2236
        %v2599 = vsub.f32 %v1304, %v2239
        %v2600 = vsub.f32 %v1306, %v2239
        %v2601 = vsub.f32 %v1308, %v2242
        %v2602 = vsub.f32 %v1310, %v2242
        %v2603 = vsub.f32 %v1314, %v2245
        %v2604 = vsub.f32 %v1316, %v2245
        %v2605 = vsub.f32 %v1318, %v2248
        %v2606 = vsub.f32 %v1320, %v2248
        %v2607 = vsub.f32 %v1324, %v2251
        %v2608 = vsub.f32 %v1326, %v2251
        %v2609 = vsub.f32 %v1328, %v2254
        %v2610 = vsub.f32 %v1330, %v2254
        %v2611 = vsub.f32 %v1334, %v2257
        %v2612 = vsub.f32 %v1336, %v2257
        %v2613 = vsub.f32 %v1338, %v2260
        %v2614 = vsub.f32 %v1340, %v2260
        %v2615 = vsub.f32 %v1344, %v2263
        %v2616 = vsub.f32 %v1346, %v2263
        %v2617 = vsub.f32 %v1348, %v2266
        %v2618 = vsub.f32 %v1350, %v2266
        %v2619 = vsub.f32 %v1467, %v2269
        %v2620 = vsub.f32 %v1469, %v2269
        %v2621 = vsub.f32 %v1471, %v2272
        %v2622 = vsub.f32 %v1473, %v2272
        %v2623 = vsub.f32 %v1477, %v2275
        %v2624 = vsub.f32 %v1479, %v2275
        %v2625 = vsub.f32 %v1481, %v2278
        %v2626 = vsub.f32 %v1483, %v2278
        %v2627 = vsub.f32 %v1487, %v2281
        %v2628 = vsub.f32 %v1489, %v2281
        %v2629 = vsub.f32 %v1491, %v2284
        %v2630 = vsub.f32 %v1493, %v2284
        %v2631 = vsub.f32 %v1497, %v2287
        %v2632 = vsub.f32 %v1499, %v2287
        %v2633 = vsub.f32 %v1501, %v2290
        %v2634 = vsub.f32 %v1503, %v2290
        %v2635 = vsub.f32 %v1507, %v2293
        %v2636 = vsub.f32 %v1509, %v2293
        %v2637 = vsub.f32 %v1511, %v2296
        %v2638 = vsub.f32 %v1513, %v2296
        %v2639 = vsub.f32 %v1517, %v2299
        %v2640 = vsub.f32 %v1519, %v2299
        %v2641 = vsub.f32 %v1521, %v2302
        %v2642 = vsub.f32 %v1523, %v2302
        %v2643 = vsub.f32 %v1527, %v2305
        %v2644 = vsub.f32 %v1529, %v2305
        %v2645 = vsub.f32 %v1531, %v2308
        %v2646 = vsub.f32 %v1533, %v2308
        %v2647 = vsub.f32 %v1537, %v2311
        %v2648 = vsub.f32 %v1539, %v2311
        %v2649 = vsub.f32 %v1541, %v2314
        %v2650 = vsub.f32 %v1543, %v2314
        %v2651 = vsub.f32 %v1547, %v2317
        %v2652 = vsub.f32 %v1549, %v2317
        %v2653 = vsub.f32 %v1551, %v2320
        %v2654 = vsub.f32 %v1553, %v2320
        %v2655 = vsub.f32 %v1557, %v2323
        %v2656 = vsub.f32 %v1559, %v2323
        %v2657 = vsub.f32 %v1561, %v2326
        %v2658 = vsub.f32 %v1563, %v2326
        %v2659 = vsub.f32 %v1567, %v2329
        %v2660 = vsub.f32 %v1569, %v2329
        %v2661 = vsub.f32 %v1571, %v2332
        %v2662 = vsub.f32 %v1573, %v2332
        %v2663 = vsub.f32 %v1577, %v2335
        %v2664 = vsub.f32 %v1579, %v2335
        %v2665 = vsub.f32 %v1581, %v2338
        %v2666 = vsub.f32 %v1583, %v2338
        %v2667 = vsub.f32 %v1587, %v2341
        %v2668 = vsub.f32 %v1589, %v2341
        %v2669 = vsub.f32 %v1591, %v2344
        %v2670 = vsub.f32 %v1593, %v2344
        %v2671 = vsub.f32 %v1597, %v2347
        %v2672 = vsub.f32 %v1599, %v2347
        %v2673 = vsub.f32 %v1601, %v2350
        %v2674 = vsub.f32 %v1603, %v2350
        %v2675 = vsub.f32 %v1607, %v2353
        %v2676 = vsub.f32 %v1609, %v2353
        %v2677 = vsub.f32 %v1611, %v2356
        %v2678 = vsub.f32 %v1613, %v2356
        %v2679 = vsub.f32 %v1617, %v2359
        %v2680 = vsub.f32 %v1619, %v2359
        %v2681 = vsub.f32 %v1621, %v2362
        %v2682 = vsub.f32 %v1623, %v2362
        %v2683 = vsub.f32 %v1740, %v2365
        %v2684 = vsub.f32 %v1742, %v2365
        %v2685 = vsub.f32 %v1744, %v2368
        %v2686 = vsub.f32 %v1746, %v2368
        %v2687 = vsub.f32 %v1750, %v2371
        %v2688 = vsub.f32 %v1752, %v2371
        %v2689 = vsub.f32 %v1754, %v2374
        %v2690 = vsub.f32 %v1756, %v2374
        %v2691 = vsub.f32 %v1760, %v2377
        %v2692 = vsub.f32 %v1762, %v2377
        %v2693 = vsub.f32 %v1764, %v2380
        %v2694 = vsub.f32 %v1766, %v2380
        %v2695 = vsub.f32 %v1770, %v2383
        %v2696 = vsub.f32 %v1772, %v2383
        %v2697 = vsub.f32 %v1774, %v2386
        %v2698 = vsub.f32 %v1776, %v2386
        %v2699 = vsub.f32 %v1780, %v2389
        %v2700 = vsub.f32 %v1782, %v2389
        %v2701 = vsub.f32 %v1784, %v2392
        %v2702 = vsub.f32 %v1786, %v2392
        %v2703 = vsub.f32 %v1790, %v2395
        %v2704 = vsub.f32 %v1792, %v2395
        %v2705 = vsub.f32 %v1794, %v2398
        %v2706 = vsub.f32 %v1796, %v2398
        %v2707 = vsub.f32 %v1800, %v2401
        %v2708 = vsub.f32 %v1802, %v2401
        %v2709 = vsub.f32 %v1804, %v2404
        %v2710 = vsub.f32 %v1806, %v2404
        %v2711 = vsub.f32 %v1810, %v2407
        %v2712 = vsub.f32 %v1812, %v2407
        %v2713 = vsub.f32 %v1814, %v2410
        %v2714 = vsub.f32 %v1816, %v2410
        %v2715 = vsub.f32 %v1820, %v2413
        %v2716 = vsub.f32 %v1822, %v2413
        %v2717 = vsub.f32 %v1824, %v2416
        %v2718 = vsub.f32 %v1826, %v2416
        %v2719 = vsub.f32 %v1830, %v2419
        %v2720 = vsub.f32 %v1832, %v2419
        %v2721 = vsub.f32 %v1834, %v2422
        %v2722 = vsub.f32 %v1836, %v2422
        %v2723 = vsub.f32 %v1840, %v2425
        %v2724 = vsub.f32 %v1842, %v2425
        %v2725 = vsub.f32 %v1844, %v2428
        %v2726 = vsub.f32 %v1846, %v2428
        %v2727 = vsub.f32 %v1850, %v2431
        %v2728 = vsub.f32 %v1852, %v2431
        %v2729 = vsub.f32 %v1854, %v2434
        %v2730 = vsub.f32 %v1856, %v2434
        %v2731 = vsub.f32 %v1860, %v2437
        %v2732 = vsub.f32 %v1862, %v2437
        %v2733 = vsub.f32 %v1864, %v2440
        %v2734 = vsub.f32 %v1866, %v2440
        %v2735 = vsub.f32 %v1870, %v2443
        %v2736 = vsub.f32 %v1872, %v2443
        %v2737 = vsub.f32 %v1874, %v2446
        %v2738 = vsub.f32 %v1876, %v2446
        %v2739 = vsub.f32 %v1880, %v2449
        %v2740 = vsub.f32 %v1882, %v2449
        %v2741 = vsub.f32 %v1884, %v2452
        %v2742 = vsub.f32 %v1886, %v2452
        %v2743 = vsub.f32 %v1890, %v2455
        %v2744 = vsub.f32 %v1892, %v2455
        %v2745 = vsub.f32 %v1894, %v2458
        %v2746 = vsub.f32 %v1896, %v2458
        %v2747 = vsub.f32 %v2013, %v2461
        %v2748 = vsub.f32 %v2015, %v2461
        %v2749 = vsub.f32 %v2017, %v2464
        %v2750 = vsub.f32 %v2019, %v2464
        %v2751 = vsub.f32 %v2023, %v2467
        %v2752 = vsub.f32 %v2025, %v2467
        %v2753 = vsub.f32 %v2027, %v2470
        %v2754 = vsub.f32 %v2029, %v2470
        %v2755 = vsub.f32 %v2033, %v2473
        %v2756 = vsub.f32 %v2035, %v2473
        %v2757 = vsub.f32 %v2037, %v2476
        %v2758 = vsub.f32 %v2039, %v2476
        %v2759 = vsub.f32 %v2043, %v2479
        %v2760 = vsub.f32 %v2045, %v2479
        %v2761 = vsub.f32 %v2047, %v2482
        %v2762 = vsub.f32 %v2049, %v2482
        %v2763 = vsub.f32 %v2053, %v2485
        %v2764 = vsub.f32 %v2055, %v2485
        %v2765 = vsub.f32 %v2057, %v2488
        %v2766 = vsub.f32 %v2059, %v2488
        %v2767 = vsub.f32 %v2063, %v2491
        %v2768 = vsub.f32 %v2065, %v2491
        %v2769 = vsub.f32 %v2067, %v2494
        %v2770 = vsub.f32 %v2069, %v2494
        %v2771 = vsub.f32 %v2073, %v2497
        %v2772 = vsub.f32 %v2075, %v2497
        %v2773 = vsub.f32 %v2077, %v2500
        %v2774 = vsub.f32 %v2079, %v2500
        %v2775 = vsub.f32 %v2083, %v2503
        %v2776 = vsub.f32 %v2085, %v2503
        %v2777 = vsub.f32 %v2087, %v2506
        %v2778 = vsub.f32 %v2089, %v2506
        %v2779 = vsub.f32 %v2093, %v2509
        %v2780 = vsub.f32 %v2095, %v2509
        %v2781 = vsub.f32 %v2097, %v2512
        %v2782 = vsub.f32 %v2099, %v2512
        %v2783 = vsub.f32 %v2103, %v2515
        %v2784 = vsub.f32 %v2105, %v2515
        %v2785 = vsub.f32 %v2107, %v2518
        %v2786 = vsub.f32 %v2109, %v2518
        %v2787 = vsub.f32 %v2113, %v2521
        %v2788 = vsub.f32 %v2115, %v2521
        %v2789 = vsub.f32 %v2117, %v2524
        %v2790 = vsub.f32 %v2119, %v2524
        %v2791 = vsub.f32 %v2123, %v2527
        %v2792 = vsub.f32 %v2125, %v2527
        %v2793 = vsub.f32 %v2127, %v2530
        %v2794 = vsub.f32 %v2129, %v2530
        %v2795 = vsub.f32 %v2133, %v2533
        %v2796 = vsub.f32 %v2135, %v2533
        %v2797 = vsub.f32 %v2137, %v2536
        %v2798 = vsub.f32 %v2139, %v2536
        %v2799 = vsub.f32 %v2143, %v2539
        %v2800 = vsub.f32 %v2145, %v2539
        %v2801 = vsub.f32 %v2147, %v2542
        %v2802 = vsub.f32 %v2149, %v2542
        %v2803 = vsub.f32 %v2153, %v2545
        %v2804 = vsub.f32 %v2155, %v2545
        %v2805 = vsub.f32 %v2157, %v2548
        %v2806 = vsub.f32 %v2159, %v2548
        %v2807 = vsub.f32 %v2163, %v2551
        %v2808 = vsub.f32 %v2165, %v2551
        %v2809 = vsub.f32 %v2167, %v2554
        %v2810 = vsub.f32 %v2169, %v2554
        %v2811 = vmul.f32 %v2555, 1.442695
        %v2812 = vpow.pop %v2811
        %v2813 = vmul.f32 %v2556, 1.442695
        %v2814 = vpow.pop %v2813
        %v2815 = vmul.f32 %v2557, 1.442695
        %v2816 = vpow.pop %v2815
        %v2817 = vmul.f32 %v2558, 1.442695
        %v2818 = vpow.pop %v2817
        %v2819 = vmul.f32 %v2559, 1.442695
        %v2820 = vpow.pop %v2819
        %v2821 = vmul.f32 %v2560, 1.442695
        %v2822 = vpow.pop %v2821
        %v2823 = vmul.f32 %v2561, 1.442695
        %v2824 = vpow.pop %v2823
        %v2825 = vmul.f32 %v2562, 1.442695
        %v2826 = vpow.pop %v2825
        %v2827 = vmul.f32 %v2563, 1.442695
        %v2828 = vpow.pop %v2827
        %v2829 = vmul.f32 %v2564, 1.442695
        %v2830 = vpow.pop %v2829
        %v2831 = vmul.f32 %v2565, 1.442695
        %v2832 = vpow.pop %v2831
        %v2833 = vmul.f32 %v2566, 1.442695
        %v2834 = vpow.pop %v2833
        %v2835 = vmul.f32 %v2567, 1.442695
        %v2836 = vpow.pop %v2835
        %v2837 = vmul.f32 %v2568, 1.442695
        %v2838 = vpow.pop %v2837
        %v2839 = vmul.f32 %v2569, 1.442695
        %v2840 = vpow.pop %v2839
        %v2841 = vmul.f32 %v2570, 1.442695
        %v2842 = vpow.pop %v2841
        %v2843 = vmul.f32 %v2571, 1.442695
        %v2844 = vpow.pop %v2843
        %v2845 = vmul.f32 %v2572, 1.442695
        %v2846 = vpow.pop %v2845
        %v2847 = vmul.f32 %v2573, 1.442695
        %v2848 = vpow.pop %v2847
        %v2849 = vmul.f32 %v2574, 1.442695
        %v2850 = vpow.pop %v2849
        %v2851 = vmul.f32 %v2575, 1.442695
        %v2852 = vpow.pop %v2851
        %v2853 = vmul.f32 %v2576, 1.442695
        %v2854 = vpow.pop %v2853
        %v2855 = vmul.f32 %v2577, 1.442695
        %v2856 = vpow.pop %v2855
        %v2857 = vmul.f32 %v2578, 1.442695
        %v2858 = vpow.pop %v2857
        %v2859 = vmul.f32 %v2579, 1.442695
        %v2860 = vpow.pop %v2859
        %v2861 = vmul.f32 %v2580, 1.442695
        %v2862 = vpow.pop %v2861
        %v2863 = vmul.f32 %v2581, 1.442695
        %v2864 = vpow.pop %v2863
        %v2865 = vmul.f32 %v2582, 1.442695
        %v2866 = vpow.pop %v2865
        %v2867 = vmul.f32 %v2583, 1.442695
        %v2868 = vpow.pop %v2867
        %v2869 = vmul.f32 %v2584, 1.442695
        %v2870 = vpow.pop %v2869
        %v2871 = vmul.f32 %v2585, 1.442695
        %v2872 = vpow.pop %v2871
        %v2873 = vmul.f32 %v2586, 1.442695
        %v2874 = vpow.pop %v2873
        %v2875 = vmul.f32 %v2587, 1.442695
        %v2876 = vpow.pop %v2875
        %v2877 = vmul.f32 %v2588, 1.442695
        %v2878 = vpow.pop %v2877
        %v2879 = vmul.f32 %v2589, 1.442695
        %v2880 = vpow.pop %v2879
        %v2881 = vmul.f32 %v2590, 1.442695
        %v2882 = vpow.pop %v2881
        %v2883 = vmul.f32 %v2591, 1.442695
        %v2884 = vpow.pop %v2883
        %v2885 = vmul.f32 %v2592, 1.442695
        %v2886 = vpow.pop %v2885
        %v2887 = vmul.f32 %v2593, 1.442695
        %v2888 = vpow.pop %v2887
        %v2889 = vmul.f32 %v2594, 1.442695
        %v2890 = vpow.pop %v2889
        %v2891 = vmul.f32 %v2595, 1.442695
        %v2892 = vpow.pop %v2891
        %v2893 = vmul.f32 %v2596, 1.442695
        %v2894 = vpow.pop %v2893
        %v2895 = vmul.f32 %v2597, 1.442695
        %v2896 = vpow.pop %v2895
        %v2897 = vmul.f32 %v2598, 1.442695
        %v2898 = vpow.pop %v2897
        %v2899 = vmul.f32 %v2599, 1.442695
        %v2900 = vpow.pop %v2899
        %v2901 = vmul.f32 %v2600, 1.442695
        %v2902 = vpow.pop %v2901
        %v2903 = vmul.f32 %v2601, 1.442695
        %v2904 = vpow.pop %v2903
        %v2905 = vmul.f32 %v2602, 1.442695
        %v2906 = vpow.pop %v2905
        %v2907 = vmul.f32 %v2603, 1.442695
        %v2908 = vpow.pop %v2907
        %v2909 = vmul.f32 %v2604, 1.442695
        %v2910 = vpow.pop %v2909
        %v2911 = vmul.f32 %v2605, 1.442695
        %v2912 = vpow.pop %v2911
        %v2913 = vmul.f32 %v2606, 1.442695
        %v2914 = vpow.pop %v2913
        %v2915 = vmul.f32 %v2607, 1.442695
        %v2916 = vpow.pop %v2915
        %v2917 = vmul.f32 %v2608, 1.442695
        %v2918 = vpow.pop %v2917
        %v2919 = vmul.f32 %v2609, 1.442695
        %v2920 = vpow.pop %v2919
        %v2921 = vmul.f32 %v2610, 1.442695
        %v2922 = vpow.pop %v2921
        %v2923 = vmul.f32 %v2611, 1.442695
        %v2924 = vpow.pop %v2923
        %v2925 = vmul.f32 %v2612, 1.442695
        %v2926 = vpow.pop %v2925
        %v2927 = vmul.f32 %v2613, 1.442695
        %v2928 = vpow.pop %v2927
        %v2929 = vmul.f32 %v2614, 1.442695
        %v2930 = vpow.pop %v2929
        %v2931 = vmul.f32 %v2615, 1.442695
        %v2932 = vpow.pop %v2931
        %v2933 = vmul.f32 %v2616, 1.442695
        %v2934 = vpow.pop %v2933
        %v2935 = vmul.f32 %v2617, 1.442695
        %v2936 = vpow.pop %v2935
        %v2937 = vmul.f32 %v2618, 1.442695
        %v2938 = vpow.pop %v2937
        %v2939 = vmul.f32 %v2619, 1.442695
        %v2940 = vpow.pop %v2939
        %v2941 = vmul.f32 %v2620, 1.442695
        %v2942 = vpow.pop %v2941
        %v2943 = vmul.f32 %v2621, 1.442695
        %v2944 = vpow.pop %v2943
        %v2945 = vmul.f32 %v2622, 1.442695
        %v2946 = vpow.pop %v2945
        %v2947 = vmul.f32 %v2623, 1.442695
        %v2948 = vpow.pop %v2947
        %v2949 = vmul.f32 %v2624, 1.442695
        %v2950 = vpow.pop %v2949
        %v2951 = vmul.f32 %v2625, 1.442695
        %v2952 = vpow.pop %v2951
        %v2953 = vmul.f32 %v2626, 1.442695
        %v2954 = vpow.pop %v2953
        %v2955 = vmul.f32 %v2627, 1.442695
        %v2956 = vpow.pop %v2955
        %v2957 = vmul.f32 %v2628, 1.442695
        %v2958 = vpow.pop %v2957
        %v2959 = vmul.f32 %v2629, 1.442695
        %v2960 = vpow.pop %v2959
        %v2961 = vmul.f32 %v2630, 1.442695
        %v2962 = vpow.pop %v2961
        %v2963 = vmul.f32 %v2631, 1.442695
        %v2964 = vpow.pop %v2963
        %v2965 = vmul.f32 %v2632, 1.442695
        %v2966 = vpow.pop %v2965
        %v2967 = vmul.f32 %v2633, 1.442695
        %v2968 = vpow.pop %v2967
        %v2969 = vmul.f32 %v2634, 1.442695
        %v2970 = vpow.pop %v2969
        %v2971 = vmul.f32 %v2635, 1.442695
        %v2972 = vpow.pop %v2971
        %v2973 = vmul.f32 %v2636, 1.442695
        %v2974 = vpow.pop %v2973
        %v2975 = vmul.f32 %v2637, 1.442695
        %v2976 = vpow.pop %v2975
        %v2977 = vmul.f32 %v2638, 1.442695
        %v2978 = vpow.pop %v2977
        %v2979 = vmul.f32 %v2639, 1.442695
        %v2980 = vpow.pop %v2979
        %v2981 = vmul.f32 %v2640, 1.442695
        %v2982 = vpow.pop %v2981
        %v2983 = vmul.f32 %v2641, 1.442695
        %v2984 = vpow.pop %v2983
        %v2985 = vmul.f32 %v2642, 1.442695
        %v2986 = vpow.pop %v2985
        %v2987 = vmul.f32 %v2643, 1.442695
        %v2988 = vpow.pop %v2987
        %v2989 = vmul.f32 %v2644, 1.442695
        %v2990 = vpow.pop %v2989
        %v2991 = vmul.f32 %v2645, 1.442695
        %v2992 = vpow.pop %v2991
        %v2993 = vmul.f32 %v2646, 1.442695
        %v2994 = vpow.pop %v2993
        %v2995 = vmul.f32 %v2647, 1.442695
        %v2996 = vpow.pop %v2995
        %v2997 = vmul.f32 %v2648, 1.442695
        %v2998 = vpow.pop %v2997
        %v2999 = vmul.f32 %v2649, 1.442695
        %v3000 = vpow.pop %v2999
        %v3001 = vmul.f32 %v2650, 1.442695
        %v3002 = vpow.pop %v3001
        %v3003 = vmul.f32 %v2651, 1.442695
        %v3004 = vpow.pop %v3003
        %v3005 = vmul.f32 %v2652, 1.442695
        %v3006 = vpow.pop %v3005
        %v3007 = vmul.f32 %v2653, 1.442695
        %v3008 = vpow.pop %v3007
        %v3009 = vmul.f32 %v2654, 1.442695
        %v3010 = vpow.pop %v3009
        %v3011 = vmul.f32 %v2655, 1.442695
        %v3012 = vpow.pop %v3011
        %v3013 = vmul.f32 %v2656, 1.442695
        %v3014 = vpow.pop %v3013
        %v3015 = vmul.f32 %v2657, 1.442695
        %v3016 = vpow.pop %v3015
        %v3017 = vmul.f32 %v2658, 1.442695
        %v3018 = vpow.pop %v3017
        %v3019 = vmul.f32 %v2659, 1.442695
        %v3020 = vpow.pop %v3019
        %v3021 = vmul.f32 %v2660, 1.442695
        %v3022 = vpow.pop %v3021
        %v3023 = vmul.f32 %v2661, 1.442695
        %v3024 = vpow.pop %v3023
        %v3025 = vmul.f32 %v2662, 1.442695
        %v3026 = vpow.pop %v3025
        %v3027 = vmul.f32 %v2663, 1.442695
        %v3028 = vpow.pop %v3027
        %v3029 = vmul.f32 %v2664, 1.442695
        %v3030 = vpow.pop %v3029
        %v3031 = vmul.f32 %v2665, 1.442695
        %v3032 = vpow.pop %v3031
        %v3033 = vmul.f32 %v2666, 1.442695
        %v3034 = vpow.pop %v3033
        %v3035 = vmul.f32 %v2667, 1.442695
        %v3036 = vpow.pop %v3035
        %v3037 = vmul.f32 %v2668, 1.442695
        %v3038 = vpow.pop %v3037
        %v3039 = vmul.f32 %v2669, 1.442695
        %v3040 = vpow.pop %v3039
        %v3041 = vmul.f32 %v2670, 1.442695
        %v3042 = vpow.pop %v3041
        %v3043 = vmul.f32 %v2671, 1.442695
        %v3044 = vpow.pop %v3043
        %v3045 = vmul.f32 %v2672, 1.442695
        %v3046 = vpow.pop %v3045
        %v3047 = vmul.f32 %v2673, 1.442695
        %v3048 = vpow.pop %v3047
        %v3049 = vmul.f32 %v2674, 1.442695
        %v3050 = vpow.pop %v3049
        %v3051 = vmul.f32 %v2675, 1.442695
        %v3052 = vpow.pop %v3051
        %v3053 = vmul.f32 %v2676, 1.442695
        %v3054 = vpow.pop %v3053
        %v3055 = vmul.f32 %v2677, 1.442695
        %v3056 = vpow.pop %v3055
        %v3057 = vmul.f32 %v2678, 1.442695
        %v3058 = vpow.pop %v3057
        %v3059 = vmul.f32 %v2679, 1.442695
        %v3060 = vpow.pop %v3059
        %v3061 = vmul.f32 %v2680, 1.442695
        %v3062 = vpow.pop %v3061
        %v3063 = vmul.f32 %v2681, 1.442695
        %v3064 = vpow.pop %v3063
        %v3065 = vmul.f32 %v2682, 1.442695
        %v3066 = vpow.pop %v3065
        %v3067 = vmul.f32 %v2683, 1.442695
        %v3068 = vpow.pop %v3067
        %v3069 = vmul.f32 %v2684, 1.442695
        %v3070 = vpow.pop %v3069
        %v3071 = vmul.f32 %v2685, 1.442695
        %v3072 = vpow.pop %v3071
        %v3073 = vmul.f32 %v2686, 1.442695
        %v3074 = vpow.pop %v3073
        %v3075 = vmul.f32 %v2687, 1.442695
        %v3076 = vpow.pop %v3075
        %v3077 = vmul.f32 %v2688, 1.442695
        %v3078 = vpow.pop %v3077
        %v3079 = vmul.f32 %v2689, 1.442695
        %v3080 = vpow.pop %v3079
        %v3081 = vmul.f32 %v2690, 1.442695
        %v3082 = vpow.pop %v3081
        %v3083 = vmul.f32 %v2691, 1.442695
        %v3084 = vpow.pop %v3083
        %v3085 = vmul.f32 %v2692, 1.442695
        %v3086 = vpow.pop %v3085
        %v3087 = vmul.f32 %v2693, 1.442695
        %v3088 = vpow.pop %v3087
        %v3089 = vmul.f32 %v2694, 1.442695
        %v3090 = vpow.pop %v3089
        %v3091 = vmul.f32 %v2695, 1.442695
        %v3092 = vpow.pop %v3091
        %v3093 = vmul.f32 %v2696, 1.442695
        %v3094 = vpow.pop %v3093
        %v3095 = vmul.f32 %v2697, 1.442695
        %v3096 = vpow.pop %v3095
        %v3097 = vmul.f32 %v2698, 1.442695
        %v3098 = vpow.pop %v3097
        %v3099 = vmul.f32 %v2699, 1.442695
        %v3100 = vpow.pop %v3099
        %v3101 = vmul.f32 %v2700, 1.442695
        %v3102 = vpow.pop %v3101
        %v3103 = vmul.f32 %v2701, 1.442695
        %v3104 = vpow.pop %v3103
        %v3105 = vmul.f32 %v2702, 1.442695
        %v3106 = vpow.pop %v3105
        %v3107 = vmul.f32 %v2703, 1.442695
        %v3108 = vpow.pop %v3107
        %v3109 = vmul.f32 %v2704, 1.442695
        %v3110 = vpow.pop %v3109
        %v3111 = vmul.f32 %v2705, 1.442695
        %v3112 = vpow.pop %v3111
        %v3113 = vmul.f32 %v2706, 1.442695
        %v3114 = vpow.pop %v3113
        %v3115 = vmul.f32 %v2707, 1.442695
        %v3116 = vpow.pop %v3115
        %v3117 = vmul.f32 %v2708, 1.442695
        %v3118 = vpow.pop %v3117
        %v3119 = vmul.f32 %v2709, 1.442695
        %v3120 = vpow.pop %v3119
        %v3121 = vmul.f32 %v2710, 1.442695
        %v3122 = vpow.pop %v3121
        %v3123 = vmul.f32 %v2711, 1.442695
        %v3124 = vpow.pop %v3123
        %v3125 = vmul.f32 %v2712, 1.442695
        %v3126 = vpow.pop %v3125
        %v3127 = vmul.f32 %v2713, 1.442695
        %v3128 = vpow.pop %v3127
        %v3129 = vmul.f32 %v2714, 1.442695
        %v3130 = vpow.pop %v3129
        %v3131 = vmul.f32 %v2715, 1.442695
        %v3132 = vpow.pop %v3131
        %v3133 = vmul.f32 %v2716, 1.442695
        %v3134 = vpow.pop %v3133
        %v3135 = vmul.f32 %v2717, 1.442695
        %v3136 = vpow.pop %v3135
        %v3137 = vmul.f32 %v2718, 1.442695
        %v3138 = vpow.pop %v3137
        %v3139 = vmul.f32 %v2719, 1.442695
        %v3140 = vpow.pop %v3139
        %v3141 = vmul.f32 %v2720, 1.442695
        %v3142 = vpow.pop %v3141
        %v3143 = vmul.f32 %v2721, 1.442695
        %v3144 = vpow.pop %v3143
        %v3145 = vmul.f32 %v2722, 1.442695
        %v3146 = vpow.pop %v3145
        %v3147 = vmul.f32 %v2723, 1.442695
        %v3148 = vpow.pop %v3147
        %v3149 = vmul.f32 %v2724, 1.442695
        %v3150 = vpow.pop %v3149
        %v3151 = vmul.f32 %v2725, 1.442695
        %v3152 = vpow.pop %v3151
        %v3153 = vmul.f32 %v2726, 1.442695
        %v3154 = vpow.pop %v3153
        %v3155 = vmul.f32 %v2727, 1.442695
        %v3156 = vpow.pop %v3155
        %v3157 = vmul.f32 %v2728, 1.442695
        %v3158 = vpow.pop %v3157
        %v3159 = vmul.f32 %v2729, 1.442695
        %v3160 = vpow.pop %v3159
        %v3161 = vmul.f32 %v2730, 1.442695
        %v3162 = vpow.pop %v3161
        %v3163 = vmul.f32 %v2731, 1.442695
        %v3164 = vpow.pop %v3163
        %v3165 = vmul.f32 %v2732, 1.442695
        %v3166 = vpow.pop %v3165
        %v3167 = vmul.f32 %v2733, 1.442695
        %v3168 = vpow.pop %v3167
        %v3169 = vmul.f32 %v2734, 1.442695
        %v3170 = vpow.pop %v3169
        %v3171 = vmul.f32 %v2735, 1.442695
        %v3172 = vpow.pop %v3171
        %v3173 = vmul.f32 %v2736, 1.442695
        %v3174 = vpow.pop %v3173
        %v3175 = vmul.f32 %v2737, 1.442695
        %v3176 = vpow.pop %v3175
        %v3177 = vmul.f32 %v2738, 1.442695
        %v3178 = vpow.pop %v3177
        %v3179 = vmul.f32 %v2739, 1.442695
        %v3180 = vpow.pop %v3179
        %v3181 = vmul.f32 %v2740, 1.442695
        %v3182 = vpow.pop %v3181
        %v3183 = vmul.f32 %v2741, 1.442695
        %v3184 = vpow.pop %v3183
        %v3185 = vmul.f32 %v2742, 1.442695
        %v3186 = vpow.pop %v3185
        %v3187 = vmul.f32 %v2743, 1.442695
        %v3188 = vpow.pop %v3187
        %v3189 = vmul.f32 %v2744, 1.442695
        %v3190 = vpow.pop %v3189
        %v3191 = vmul.f32 %v2745, 1.442695
        %v3192 = vpow.pop %v3191
        %v3193 = vmul.f32 %v2746, 1.442695
        %v3194 = vpow.pop %v3193
        %v3195 = vmul.f32 %v2747, 1.442695
        %v3196 = vpow.pop %v3195
        %v3197 = vmul.f32 %v2748, 1.442695
        %v3198 = vpow.pop %v3197
        %v3199 = vmul.f32 %v2749, 1.442695
        %v3200 = vpow.pop %v3199
        %v3201 = vmul.f32 %v2750, 1.442695
        %v3202 = vpow.pop %v3201
        %v3203 = vmul.f32 %v2751, 1.442695
        %v3204 = vpow.pop %v3203
        %v3205 = vmul.f32 %v2752, 1.442695
        %v3206 = vpow.pop %v3205
        %v3207 = vmul.f32 %v2753, 1.442695
        %v3208 = vpow.pop %v3207
        %v3209 = vmul.f32 %v2754, 1.442695
        %v3210 = vpow.pop %v3209
        %v3211 = vmul.f32 %v2755, 1.442695
        %v3212 = vpow.pop %v3211
        %v3213 = vmul.f32 %v2756, 1.442695
        %v3214 = vpow.pop %v3213
        %v3215 = vmul.f32 %v2757, 1.442695
        %v3216 = vpow.pop %v3215
        %v3217 = vmul.f32 %v2758, 1.442695
        %v3218 = vpow.pop %v3217
        %v3219 = vmul.f32 %v2759, 1.442695
        %v3220 = vpow.pop %v3219
        %v3221 = vmul.f32 %v2760, 1.442695
        %v3222 = vpow.pop %v3221
        %v3223 = vmul.f32 %v2761, 1.442695
        %v3224 = vpow.pop %v3223
        %v3225 = vmul.f32 %v2762, 1.442695
        %v3226 = vpow.pop %v3225
        %v3227 = vmul.f32 %v2763, 1.442695
        %v3228 = vpow.pop %v3227
        %v3229 = vmul.f32 %v2764, 1.442695
        %v3230 = vpow.pop %v3229
        %v3231 = vmul.f32 %v2765, 1.442695
        %v3232 = vpow.pop %v3231
        %v3233 = vmul.f32 %v2766, 1.442695
        %v3234 = vpow.pop %v3233
        %v3235 = vmul.f32 %v2767, 1.442695
        %v3236 = vpow.pop %v3235
        %v3237 = vmul.f32 %v2768, 1.442695
        %v3238 = vpow.pop %v3237
        %v3239 = vmul.f32 %v2769, 1.442695
        %v3240 = vpow.pop %v3239
        %v3241 = vmul.f32 %v2770, 1.442695
        %v3242 = vpow.pop %v3241
        %v3243 = vmul.f32 %v2771, 1.442695
        %v3244 = vpow.pop %v3243
        %v3245 = vmul.f32 %v2772, 1.442695
        %v3246 = vpow.pop %v3245
        %v3247 = vmul.f32 %v2773, 1.442695
        %v3248 = vpow.pop %v3247
        %v3249 = vmul.f32 %v2774, 1.442695
        %v3250 = vpow.pop %v3249
        %v3251 = vmul.f32 %v2775, 1.442695
        %v3252 = vpow.pop %v3251
        %v3253 = vmul.f32 %v2776, 1.442695
        %v3254 = vpow.pop %v3253
        %v3255 = vmul.f32 %v2777, 1.442695
        %v3256 = vpow.pop %v3255
        %v3257 = vmul.f32 %v2778, 1.442695
        %v3258 = vpow.pop %v3257
        %v3259 = vmul.f32 %v2779, 1.442695
        %v3260 = vpow.pop %v3259
        %v3261 = vmul.f32 %v2780, 1.442695
        %v3262 = vpow.pop %v3261
        %v3263 = vmul.f32 %v2781, 1.442695
        %v3264 = vpow.pop %v3263
        %v3265 = vmul.f32 %v2782, 1.442695
        %v3266 = vpow.pop %v3265
        %v3267 = vmul.f32 %v2783, 1.442695
        %v3268 = vpow.pop %v3267
        %v3269 = vmul.f32 %v2784, 1.442695
        %v3270 = vpow.pop %v3269
        %v3271 = vmul.f32 %v2785, 1.442695
        %v3272 = vpow.pop %v3271
        %v3273 = vmul.f32 %v2786, 1.442695
        %v3274 = vpow.pop %v3273
        %v3275 = vmul.f32 %v2787, 1.442695
        %v3276 = vpow.pop %v3275
        %v3277 = vmul.f32 %v2788, 1.442695
        %v3278 = vpow.pop %v3277
        %v3279 = vmul.f32 %v2789, 1.442695
        %v3280 = vpow.pop %v3279
        %v3281 = vmul.f32 %v2790, 1.442695
        %v3282 = vpow.pop %v3281
        %v3283 = vmul.f32 %v2791, 1.442695
        %v3284 = vpow.pop %v3283
        %v3285 = vmul.f32 %v2792, 1.442695
        %v3286 = vpow.pop %v3285
        %v3287 = vmul.f32 %v2793, 1.442695
        %v3288 = vpow.pop %v3287
        %v3289 = vmul.f32 %v2794, 1.442695
        %v3290 = vpow.pop %v3289
        %v3291 = vmul.f32 %v2795, 1.442695
        %v3292 = vpow.pop %v3291
        %v3293 = vmul.f32 %v2796, 1.442695
        %v3294 = vpow.pop %v3293
        %v3295 = vmul.f32 %v2797, 1.442695
        %v3296 = vpow.pop %v3295
        %v3297 = vmul.f32 %v2798, 1.442695
        %v3298 = vpow.pop %v3297
        %v3299 = vmul.f32 %v2799, 1.442695
        %v3300 = vpow.pop %v3299
        %v3301 = vmul.f32 %v2800, 1.442695
        %v3302 = vpow.pop %v3301
        %v3303 = vmul.f32 %v2801, 1.442695
        %v3304 = vpow.pop %v3303
        %v3305 = vmul.f32 %v2802, 1.442695
        %v3306 = vpow.pop %v3305
        %v3307 = vmul.f32 %v2803, 1.442695
        %v3308 = vpow.pop %v3307
        %v3309 = vmul.f32 %v2804, 1.442695
        %v3310 = vpow.pop %v3309
        %v3311 = vmul.f32 %v2805, 1.442695
        %v3312 = vpow.pop %v3311
        %v3313 = vmul.f32 %v2806, 1.442695
        %v3314 = vpow.pop %v3313
        %v3315 = vmul.f32 %v2807, 1.442695
        %v3316 = vpow.pop %v3315
        %v3317 = vmul.f32 %v2808, 1.442695
        %v3318 = vpow.pop %v3317
        %v3319 = vmul.f32 %v2809, 1.442695
        %v3320 = vpow.pop %v3319
        %v3321 = vmul.f32 %v2810, 1.442695
        %v3322 = vpow.pop %v3321
        %v3323 = vadd.f32 %v2812, %v2814
        %3324 = vadd.xlane.f32.xlu0 %v3323
        %v3325 = vpop.xlane.xlu0 %3324
        %v3326 = vadd.f32 %v2816, %v2818
        %3327 = vadd.xlane.f32.xlu0 %v3326
        %v3328 = vpop.xlane.xlu0 %3327
        %v3329 = vadd.f32 %v2820, %v2822
        %3330 = vadd.xlane.f32.xlu0 %v3329
        %v3331 = vpop.xlane.xlu0 %3330
        %v3332 = vadd.f32 %v2824, %v2826
        %3333 = vadd.xlane.f32.xlu0 %v3332
        %v3334 = vpop.xlane.xlu0 %3333
        %v3335 = vadd.f32 %v2828, %v2830
        %3336 = vadd.xlane.f32.xlu0 %v3335
        %v3337 = vpop.xlane.xlu0 %3336
        %v3338 = vadd.f32 %v2832, %v2834
        %3339 = vadd.xlane.f32.xlu0 %v3338
        %v3340 = vpop.xlane.xlu0 %3339
        %v3341 = vadd.f32 %v2836, %v2838
        %3342 = vadd.xlane.f32.xlu0 %v3341
        %v3343 = vpop.xlane.xlu0 %3342
        %v3344 = vadd.f32 %v2840, %v2842
        %3345 = vadd.xlane.f32.xlu0 %v3344
        %v3346 = vpop.xlane.xlu0 %3345
        %v3347 = vadd.f32 %v2844, %v2846
        %3348 = vadd.xlane.f32.xlu0 %v3347
        %v3349 = vpop.xlane.xlu0 %3348
        %v3350 = vadd.f32 %v2848, %v2850
        %3351 = vadd.xlane.f32.xlu0 %v3350
        %v3352 = vpop.xlane.xlu0 %3351
        %v3353 = vadd.f32 %v2852, %v2854
        %3354 = vadd.xlane.f32.xlu0 %v3353
        %v3355 = vpop.xlane.xlu0 %3354
        %v3356 = vadd.f32 %v2856, %v2858
        %3357 = vadd.xlane.f32.xlu0 %v3356
        %v3358 = vpop.xlane.xlu0 %3357
        %v3359 = vadd.f32 %v2860, %v2862
        %3360 = vadd.xlane.f32.xlu0 %v3359
        %v3361 = vpop.xlane.xlu0 %3360
        %v3362 = vadd.f32 %v2864, %v2866
        %3363 = vadd.xlane.f32.xlu0 %v3362
        %v3364 = vpop.xlane.xlu0 %3363
        %v3365 = vadd.f32 %v2868, %v2870
        %3366 = vadd.xlane.f32.xlu0 %v3365
        %v3367 = vpop.xlane.xlu0 %3366
        %v3368 = vadd.f32 %v2872, %v2874
        %3369 = vadd.xlane.f32.xlu0 %v3368
        %v3370 = vpop.xlane.xlu0 %3369
        %v3371 = vadd.f32 %v2876, %v2878
        %3372 = vadd.xlane.f32.xlu0 %v3371
        %v3373 = vpop.xlane.xlu0 %3372
        %v3374 = vadd.f32 %v2880, %v2882
        %3375 = vadd.xlane.f32.xlu0 %v3374
        %v3376 = vpop.xlane.xlu0 %3375
        %v3377 = vadd.f32 %v2884, %v2886
        %3378 = vadd.xlane.f32.xlu0 %v3377
        %v3379 = vpop.xlane.xlu0 %3378
        %v3380 = vadd.f32 %v2888, %v2890
        %3381 = vadd.xlane.f32.xlu0 %v3380
        %v3382 = vpop.xlane.xlu0 %3381
        %v3383 = vadd.f32 %v2892, %v2894
        %3384 = vadd.xlane.f32.xlu0 %v3383
        %v3385 = vpop.xlane.xlu0 %3384
        %v3386 = vadd.f32 %v2896, %v2898
        %3387 = vadd.xlane.f32.xlu0 %v3386
        %v3388 = vpop.xlane.xlu0 %3387
        %v3389 = vadd.f32 %v2900, %v2902
        %3390 = vadd.xlane.f32.xlu0 %v3389
        %v3391 = vpop.xlane.xlu0 %3390
        %v3392 = vadd.f32 %v2904, %v2906
        %3393 = vadd.xlane.f32.xlu0 %v3392
        %v3394 = vpop.xlane.xlu0 %3393
        %v3395 = vadd.f32 %v2908, %v2910
        %3396 = vadd.xlane.f32.xlu0 %v3395
        %v3397 = vpop.xlane.xlu0 %3396
        %v3398 = vadd.f32 %v2912, %v2914
        %3399 = vadd.xlane.f32.xlu0 %v3398
        %v3400 = vpop.xlane.xlu0 %3399
        %v3401 = vadd.f32 %v2916, %v2918
        %3402 = vadd.xlane.f32.xlu0 %v3401
        %v3403 = vpop.xlane.xlu0 %3402
        %v3404 = vadd.f32 %v2920, %v2922
        %3405 = vadd.xlane.f32.xlu0 %v3404
        %v3406 = vpop.xlane.xlu0 %3405
        %v3407 = vadd.f32 %v2924, %v2926
        %3408 = vadd.xlane.f32.xlu0 %v3407
        %v3409 = vpop.xlane.xlu0 %3408
        %v3410 = vadd.f32 %v2928, %v2930
        %3411 = vadd.xlane.f32.xlu0 %v3410
        %v3412 = vpop.xlane.xlu0 %3411
        %v3413 = vadd.f32 %v2932, %v2934
        %3414 = vadd.xlane.f32.xlu0 %v3413
        %v3415 = vpop.xlane.xlu0 %3414
        %v3416 = vadd.f32 %v2936, %v2938
        %3417 = vadd.xlane.f32.xlu0 %v3416
        %v3418 = vpop.xlane.xlu0 %3417
        %v3419 = vadd.f32 %v2940, %v2942
        %3420 = vadd.xlane.f32.xlu0 %v3419
        %v3421 = vpop.xlane.xlu0 %3420
        %v3422 = vadd.f32 %v2944, %v2946
        %3423 = vadd.xlane.f32.xlu0 %v3422
        %v3424 = vpop.xlane.xlu0 %3423
        %v3425 = vadd.f32 %v2948, %v2950
        %3426 = vadd.xlane.f32.xlu0 %v3425
        %v3427 = vpop.xlane.xlu0 %3426
        %v3428 = vadd.f32 %v2952, %v2954
        %3429 = vadd.xlane.f32.xlu0 %v3428
        %v3430 = vpop.xlane.xlu0 %3429
        %v3431 = vadd.f32 %v2956, %v2958
        %3432 = vadd.xlane.f32.xlu0 %v3431
        %v3433 = vpop.xlane.xlu0 %3432
        %v3434 = vadd.f32 %v2960, %v2962
        %3435 = vadd.xlane.f32.xlu0 %v3434
        %v3436 = vpop.xlane.xlu0 %3435
        %v3437 = vadd.f32 %v2964, %v2966
        %3438 = vadd.xlane.f32.xlu0 %v3437
        %v3439 = vpop.xlane.xlu0 %3438
        %v3440 = vadd.f32 %v2968, %v2970
        %3441 = vadd.xlane.f32.xlu0 %v3440
        %v3442 = vpop.xlane.xlu0 %3441
        %v3443 = vadd.f32 %v2972, %v2974
        %3444 = vadd.xlane.f32.xlu0 %v3443
        %v3445 = vpop.xlane.xlu0 %3444
        %v3446 = vadd.f32 %v2976, %v2978
        %3447 = vadd.xlane.f32.xlu0 %v3446
        %v3448 = vpop.xlane.xlu0 %3447
        %v3449 = vadd.f32 %v2980, %v2982
        %3450 = vadd.xlane.f32.xlu0 %v3449
        %v3451 = vpop.xlane.xlu0 %3450
        %v3452 = vadd.f32 %v2984, %v2986
        %3453 = vadd.xlane.f32.xlu0 %v3452
        %v3454 = vpop.xlane.xlu0 %3453
        %v3455 = vadd.f32 %v2988, %v2990
        %3456 = vadd.xlane.f32.xlu0 %v3455
        %v3457 = vpop.xlane.xlu0 %3456
        %v3458 = vadd.f32 %v2992, %v2994
        %3459 = vadd.xlane.f32.xlu0 %v3458
        %v3460 = vpop.xlane.xlu0 %3459
        %v3461 = vadd.f32 %v2996, %v2998
        %3462 = vadd.xlane.f32.xlu0 %v3461
        %v3463 = vpop.xlane.xlu0 %3462
        %v3464 = vadd.f32 %v3000, %v3002
        %3465 = vadd.xlane.f32.xlu0 %v3464
        %v3466 = vpop.xlane.xlu0 %3465
        %v3467 = vadd.f32 %v3004, %v3006
        %3468 = vadd.xlane.f32.xlu0 %v3467
        %v3469 = vpop.xlane.xlu0 %3468
        %v3470 = vadd.f32 %v3008, %v3010
        %3471 = vadd.xlane.f32.xlu0 %v3470
        %v3472 = vpop.xlane.xlu0 %3471
        %v3473 = vadd.f32 %v3012, %v3014
        %3474 = vadd.xlane.f32.xlu0 %v3473
        %v3475 = vpop.xlane.xlu0 %3474
        %v3476 = vadd.f32 %v3016, %v3018
        %3477 = vadd.xlane.f32.xlu0 %v3476
        %v3478 = vpop.xlane.xlu0 %3477
        %v3479 = vadd.f32 %v3020, %v3022
        %3480 = vadd.xlane.f32.xlu0 %v3479
        %v3481 = vpop.xlane.xlu0 %3480
        %v3482 = vadd.f32 %v3024, %v3026
        %3483 = vadd.xlane.f32.xlu0 %v3482
        %v3484 = vpop.xlane.xlu0 %3483
        %v3485 = vadd.f32 %v3028, %v3030
        %3486 = vadd.xlane.f32.xlu0 %v3485
        %v3487 = vpop.xlane.xlu0 %3486
        %v3488 = vadd.f32 %v3032, %v3034
        %3489 = vadd.xlane.f32.xlu0 %v3488
        %v3490 = vpop.xlane.xlu0 %3489
        %v3491 = vadd.f32 %v3036, %v3038
        %3492 = vadd.xlane.f32.xlu0 %v3491
        %v3493 = vpop.xlane.xlu0 %3492
        %v3494 = vadd.f32 %v3040, %v3042
        %3495 = vadd.xlane.f32.xlu0 %v3494
        %v3496 = vpop.xlane.xlu0 %3495
        %v3497 = vadd.f32 %v3044, %v3046
        %3498 = vadd.xlane.f32.xlu0 %v3497
        %v3499 = vpop.xlane.xlu0 %3498
        %v3500 = vadd.f32 %v3048, %v3050
        %3501 = vadd.xlane.f32.xlu0 %v3500
        %v3502 = vpop.xlane.xlu0 %3501
        %v3503 = vadd.f32 %v3052, %v3054
        %3504 = vadd.xlane.f32.xlu0 %v3503
        %v3505 = vpop.xlane.xlu0 %3504
        %v3506 = vadd.f32 %v3056, %v3058
        %3507 = vadd.xlane.f32.xlu0 %v3506
        %v3508 = vpop.xlane.xlu0 %3507
        %v3509 = vadd.f32 %v3060, %v3062
        %3510 = vadd.xlane.f32.xlu0 %v3509
        %v3511 = vpop.xlane.xlu0 %3510
        %v3512 = vadd.f32 %v3064, %v3066
        %3513 = vadd.xlane.f32.xlu0 %v3512
        %v3514 = vpop.xlane.xlu0 %3513
        %v3515 = vadd.f32 %v3068, %v3070
        %3516 = vadd.xlane.f32.xlu0 %v3515
        %v3517 = vpop.xlane.xlu0 %3516
        %v3518 = vadd.f32 %v3072, %v3074
        %3519 = vadd.xlane.f32.xlu0 %v3518
        %v3520 = vpop.xlane.xlu0 %3519
        %v3521 = vadd.f32 %v3076, %v3078
        %3522 = vadd.xlane.f32.xlu0 %v3521
        %v3523 = vpop.xlane.xlu0 %3522
        %v3524 = vadd.f32 %v3080, %v3082
        %3525 = vadd.xlane.f32.xlu0 %v3524
        %v3526 = vpop.xlane.xlu0 %3525
        %v3527 = vadd.f32 %v3084, %v3086
        %3528 = vadd.xlane.f32.xlu0 %v3527
        %v3529 = vpop.xlane.xlu0 %3528
        %v3530 = vadd.f32 %v3088, %v3090
        %3531 = vadd.xlane.f32.xlu0 %v3530
        %v3532 = vpop.xlane.xlu0 %3531
        %v3533 = vadd.f32 %v3092, %v3094
        %3534 = vadd.xlane.f32.xlu0 %v3533
        %v3535 = vpop.xlane.xlu0 %3534
        %v3536 = vadd.f32 %v3096, %v3098
        %3537 = vadd.xlane.f32.xlu0 %v3536
        %v3538 = vpop.xlane.xlu0 %3537
        %v3539 = vadd.f32 %v3100, %v3102
        %3540 = vadd.xlane.f32.xlu0 %v3539
        %v3541 = vpop.xlane.xlu0 %3540
        %v3542 = vadd.f32 %v3104, %v3106
        %3543 = vadd.xlane.f32.xlu0 %v3542
        %v3544 = vpop.xlane.xlu0 %3543
        %v3545 = vadd.f32 %v3108, %v3110
        %3546 = vadd.xlane.f32.xlu0 %v3545
        %v3547 = vpop.xlane.xlu0 %3546
        %v3548 = vadd.f32 %v3112, %v3114
        %3549 = vadd.xlane.f32.xlu0 %v3548
        %v3550 = vpop.xlane.xlu0 %3549
        %v3551 = vadd.f32 %v3116, %v3118
        %3552 = vadd.xlane.f32.xlu0 %v3551
        %v3553 = vpop.xlane.xlu0 %3552
        %v3554 = vadd.f32 %v3120, %v3122
        %3555 = vadd.xlane.f32.xlu0 %v3554
        %v3556 = vpop.xlane.xlu0 %3555
        %v3557 = vadd.f32 %v3124, %v3126
        %3558 = vadd.xlane.f32.xlu0 %v3557
        %v3559 = vpop.xlane.xlu0 %3558
        %v3560 = vadd.f32 %v3128, %v3130
        %3561 = vadd.xlane.f32.xlu0 %v3560
        %v3562 = vpop.xlane.xlu0 %3561
        %v3563 = vadd.f32 %v3132, %v3134
        %3564 = vadd.xlane.f32.xlu0 %v3563
        %v3565 = vpop.xlane.xlu0 %3564
        %v3566 = vadd.f32 %v3136, %v3138
        %3567 = vadd.xlane.f32.xlu0 %v3566
        %v3568 = vpop.xlane.xlu0 %3567
        %v3569 = vadd.f32 %v3140, %v3142
        %3570 = vadd.xlane.f32.xlu0 %v3569
        %v3571 = vpop.xlane.xlu0 %3570
        %v3572 = vadd.f32 %v3144, %v3146
        %3573 = vadd.xlane.f32.xlu0 %v3572
        %v3574 = vpop.xlane.xlu0 %3573
        %v3575 = vadd.f32 %v3148, %v3150
        %3576 = vadd.xlane.f32.xlu0 %v3575
        %v3577 = vpop.xlane.xlu0 %3576
        %v3578 = vadd.f32 %v3152, %v3154
        %3579 = vadd.xlane.f32.xlu0 %v3578
        %v3580 = vpop.xlane.xlu0 %3579
        %v3581 = vadd.f32 %v3156, %v3158
        %3582 = vadd.xlane.f32.xlu0 %v3581
        %v3583 = vpop.xlane.xlu0 %3582
        %v3584 = vadd.f32 %v3160, %v3162
        %3585 = vadd.xlane.f32.xlu0 %v3584
        %v3586 = vpop.xlane.xlu0 %3585
        %v3587 = vadd.f32 %v3164, %v3166
        %3588 = vadd.xlane.f32.xlu0 %v3587
        %v3589 = vpop.xlane.xlu0 %3588
        %v3590 = vadd.f32 %v3168, %v3170
        %3591 = vadd.xlane.f32.xlu0 %v3590
        %v3592 = vpop.xlane.xlu0 %3591
        %v3593 = vadd.f32 %v3172, %v3174
        %3594 = vadd.xlane.f32.xlu0 %v3593
        %v3595 = vpop.xlane.xlu0 %3594
        %v3596 = vadd.f32 %v3176, %v3178
        %3597 = vadd.xlane.f32.xlu0 %v3596
        %v3598 = vpop.xlane.xlu0 %3597
        %v3599 = vadd.f32 %v3180, %v3182
        %3600 = vadd.xlane.f32.xlu0 %v3599
        %v3601 = vpop.xlane.xlu0 %3600
        %v3602 = vadd.f32 %v3184, %v3186
        %3603 = vadd.xlane.f32.xlu0 %v3602
        %v3604 = vpop.xlane.xlu0 %3603
        %v3605 = vadd.f32 %v3188, %v3190
        %3606 = vadd.xlane.f32.xlu0 %v3605
        %v3607 = vpop.xlane.xlu0 %3606
        %v3608 = vadd.f32 %v3192, %v3194
        %3609 = vadd.xlane.f32.xlu0 %v3608
        %v3610 = vpop.xlane.xlu0 %3609
        %v3611 = vadd.f32 %v3196, %v3198
        %3612 = vadd.xlane.f32.xlu0 %v3611
        %v3613 = vpop.xlane.xlu0 %3612
        %v3614 = vadd.f32 %v3200, %v3202
        %3615 = vadd.xlane.f32.xlu0 %v3614
        %v3616 = vpop.xlane.xlu0 %3615
        %v3617 = vadd.f32 %v3204, %v3206
        %3618 = vadd.xlane.f32.xlu0 %v3617
        %v3619 = vpop.xlane.xlu0 %3618
        %v3620 = vadd.f32 %v3208, %v3210
        %3621 = vadd.xlane.f32.xlu0 %v3620
        %v3622 = vpop.xlane.xlu0 %3621
        %v3623 = vadd.f32 %v3212, %v3214
        %3624 = vadd.xlane.f32.xlu0 %v3623
        %v3625 = vpop.xlane.xlu0 %3624
        %v3626 = vadd.f32 %v3216, %v3218
        %3627 = vadd.xlane.f32.xlu0 %v3626
        %v3628 = vpop.xlane.xlu0 %3627
        %v3629 = vadd.f32 %v3220, %v3222
        %3630 = vadd.xlane.f32.xlu0 %v3629
        %v3631 = vpop.xlane.xlu0 %3630
        %v3632 = vadd.f32 %v3224, %v3226
        %3633 = vadd.xlane.f32.xlu0 %v3632
        %v3634 = vpop.xlane.xlu0 %3633
        %v3635 = vadd.f32 %v3228, %v3230
        %3636 = vadd.xlane.f32.xlu0 %v3635
        %v3637 = vpop.xlane.xlu0 %3636
        %v3638 = vadd.f32 %v3232, %v3234
        %3639 = vadd.xlane.f32.xlu0 %v3638
        %v3640 = vpop.xlane.xlu0 %3639
        %v3641 = vadd.f32 %v3236, %v3238
        %3642 = vadd.xlane.f32.xlu0 %v3641
        %v3643 = vpop.xlane.xlu0 %3642
        %v3644 = vadd.f32 %v3240, %v3242
        %3645 = vadd.xlane.f32.xlu0 %v3644
        %v3646 = vpop.xlane.xlu0 %3645
        %v3647 = vadd.f32 %v3244, %v3246
        %3648 = vadd.xlane.f32.xlu0 %v3647
        %v3649 = vpop.xlane.xlu0 %3648
        %v3650 = vadd.f32 %v3248, %v3250
        %3651 = vadd.xlane.f32.xlu0 %v3650
        %v3652 = vpop.xlane.xlu0 %3651
        %v3653 = vadd.f32 %v3252, %v3254
        %3654 = vadd.xlane.f32.xlu0 %v3653
        %v3655 = vpop.xlane.xlu0 %3654
        %v3656 = vadd.f32 %v3256, %v3258
        %3657 = vadd.xlane.f32.xlu0 %v3656
        %v3658 = vpop.xlane.xlu0 %3657
        %v3659 = vadd.f32 %v3260, %v3262
        %3660 = vadd.xlane.f32.xlu0 %v3659
        %v3661 = vpop.xlane.xlu0 %3660
        %v3662 = vadd.f32 %v3264, %v3266
        %3663 = vadd.xlane.f32.xlu0 %v3662
        %v3664 = vpop.xlane.xlu0 %3663
        %v3665 = vadd.f32 %v3268, %v3270
        %3666 = vadd.xlane.f32.xlu0 %v3665
        %v3667 = vpop.xlane.xlu0 %3666
        %v3668 = vadd.f32 %v3272, %v3274
        %3669 = vadd.xlane.f32.xlu0 %v3668
        %v3670 = vpop.xlane.xlu0 %3669
        %v3671 = vadd.f32 %v3276, %v3278
        %3672 = vadd.xlane.f32.xlu0 %v3671
        %v3673 = vpop.xlane.xlu0 %3672
        %v3674 = vadd.f32 %v3280, %v3282
        %3675 = vadd.xlane.f32.xlu0 %v3674
        %v3676 = vpop.xlane.xlu0 %3675
        %v3677 = vadd.f32 %v3284, %v3286
        %3678 = vadd.xlane.f32.xlu0 %v3677
        %v3679 = vpop.xlane.xlu0 %3678
        %v3680 = vadd.f32 %v3288, %v3290
        %3681 = vadd.xlane.f32.xlu0 %v3680
        %v3682 = vpop.xlane.xlu0 %3681
        %v3683 = vadd.f32 %v3292, %v3294
        %3684 = vadd.xlane.f32.xlu0 %v3683
        %v3685 = vpop.xlane.xlu0 %3684
        %v3686 = vadd.f32 %v3296, %v3298
        %3687 = vadd.xlane.f32.xlu0 %v3686
        %v3688 = vpop.xlane.xlu0 %3687
        %v3689 = vadd.f32 %v3300, %v3302
        %3690 = vadd.xlane.f32.xlu0 %v3689
        %v3691 = vpop.xlane.xlu0 %3690
        %v3692 = vadd.f32 %v3304, %v3306
        %3693 = vadd.xlane.f32.xlu0 %v3692
        %v3694 = vpop.xlane.xlu0 %3693
        %v3695 = vadd.f32 %v3308, %v3310
        %3696 = vadd.xlane.f32.xlu0 %v3695
        %v3697 = vpop.xlane.xlu0 %3696
        %v3698 = vadd.f32 %v3312, %v3314
        %3699 = vadd.xlane.f32.xlu0 %v3698
        %v3700 = vpop.xlane.xlu0 %3699
        %v3701 = vadd.f32 %v3316, %v3318
        %3702 = vadd.xlane.f32.xlu0 %v3701
        %v3703 = vpop.xlane.xlu0 %3702
        %v3704 = vadd.f32 %v3320, %v3322
        %3705 = vadd.xlane.f32.xlu0 %v3704
        %v3706 = vpop.xlane.xlu0 %3705
        %v3707 = vpack.c.bf16 %v2816, %v2812
        %v3708 = vpack.c.bf16 %v2818, %v2814
        %v3709 = vpack.c.bf16 %v2824, %v2820
        %v3710 = vpack.c.bf16 %v2826, %v2822
        %v3711 = vpack.c.bf16 %v2832, %v2828
        %v3712 = vpack.c.bf16 %v2834, %v2830
        %v3713 = vpack.c.bf16 %v2840, %v2836
        %v3714 = vpack.c.bf16 %v2842, %v2838
        %v3715 = vpack.c.bf16 %v2848, %v2844
        %v3716 = vpack.c.bf16 %v2850, %v2846
        %v3717 = vpack.c.bf16 %v2856, %v2852
        %v3718 = vpack.c.bf16 %v2858, %v2854
        %v3719 = vpack.c.bf16 %v2864, %v2860
        %v3720 = vpack.c.bf16 %v2866, %v2862
        %v3721 = vpack.c.bf16 %v2872, %v2868
        %v3722 = vpack.c.bf16 %v2874, %v2870
        %v3723 = vpack.c.bf16 %v2880, %v2876
        %v3724 = vpack.c.bf16 %v2882, %v2878
        %v3725 = vpack.c.bf16 %v2888, %v2884
        %v3726 = vpack.c.bf16 %v2890, %v2886
        %v3727 = vpack.c.bf16 %v2896, %v2892
        %v3728 = vpack.c.bf16 %v2898, %v2894
        %v3729 = vpack.c.bf16 %v2904, %v2900
        %v3730 = vpack.c.bf16 %v2906, %v2902
        %v3731 = vpack.c.bf16 %v2912, %v2908
        %v3732 = vpack.c.bf16 %v2914, %v2910
        %v3733 = vpack.c.bf16 %v2920, %v2916
        %v3734 = vpack.c.bf16 %v2922, %v2918
        %v3735 = vpack.c.bf16 %v2928, %v2924
        %v3736 = vpack.c.bf16 %v2930, %v2926
        %v3737 = vpack.c.bf16 %v2936, %v2932
        %v3738 = vpack.c.bf16 %v2938, %v2934
        %v3739 = vpack.c.bf16 %v2944, %v2940
        %v3740 = vpack.c.bf16 %v2946, %v2942
        %v3741 = vpack.c.bf16 %v2952, %v2948
        %v3742 = vpack.c.bf16 %v2954, %v2950
        %v3743 = vpack.c.bf16 %v2960, %v2956
        %v3744 = vpack.c.bf16 %v2962, %v2958
        %v3745 = vpack.c.bf16 %v2968, %v2964
        %v3746 = vpack.c.bf16 %v2970, %v2966
        %v3747 = vpack.c.bf16 %v2976, %v2972
        %v3748 = vpack.c.bf16 %v2978, %v2974
        %v3749 = vpack.c.bf16 %v2984, %v2980
        %v3750 = vpack.c.bf16 %v2986, %v2982
        %v3751 = vpack.c.bf16 %v2992, %v2988
        %v3752 = vpack.c.bf16 %v2994, %v2990
        %v3753 = vpack.c.bf16 %v3000, %v2996
        %v3754 = vpack.c.bf16 %v3002, %v2998
        %v3755 = vpack.c.bf16 %v3008, %v3004
        %v3756 = vpack.c.bf16 %v3010, %v3006
        %v3757 = vpack.c.bf16 %v3016, %v3012
        %v3758 = vpack.c.bf16 %v3018, %v3014
        %v3759 = vpack.c.bf16 %v3024, %v3020
        %v3760 = vpack.c.bf16 %v3026, %v3022
        %v3761 = vpack.c.bf16 %v3032, %v3028
        %v3762 = vpack.c.bf16 %v3034, %v3030
        %v3763 = vpack.c.bf16 %v3040, %v3036
        %v3764 = vpack.c.bf16 %v3042, %v3038
        %v3765 = vpack.c.bf16 %v3048, %v3044
        %v3766 = vpack.c.bf16 %v3050, %v3046
        %v3767 = vpack.c.bf16 %v3056, %v3052
        %v3768 = vpack.c.bf16 %v3058, %v3054
        %v3769 = vpack.c.bf16 %v3064, %v3060
        %v3770 = vpack.c.bf16 %v3066, %v3062
        %v3771 = vpack.c.bf16 %v3072, %v3068
        %v3772 = vpack.c.bf16 %v3074, %v3070
        %v3773 = vpack.c.bf16 %v3080, %v3076
        %v3774 = vpack.c.bf16 %v3082, %v3078
        %v3775 = vpack.c.bf16 %v3088, %v3084
        %v3776 = vpack.c.bf16 %v3090, %v3086
        %v3777 = vpack.c.bf16 %v3096, %v3092
        %v3778 = vpack.c.bf16 %v3098, %v3094
        %v3779 = vpack.c.bf16 %v3104, %v3100
        %v3780 = vpack.c.bf16 %v3106, %v3102
        %v3781 = vpack.c.bf16 %v3112, %v3108
        %v3782 = vpack.c.bf16 %v3114, %v3110
        %v3783 = vpack.c.bf16 %v3120, %v3116
        %v3784 = vpack.c.bf16 %v3122, %v3118
        %v3785 = vpack.c.bf16 %v3128, %v3124
        %v3786 = vpack.c.bf16 %v3130, %v3126
        %v3787 = vpack.c.bf16 %v3136, %v3132
        %v3788 = vpack.c.bf16 %v3138, %v3134
        %v3789 = vpack.c.bf16 %v3144, %v3140
        %v3790 = vpack.c.bf16 %v3146, %v3142
        %v3791 = vpack.c.bf16 %v3152, %v3148
        %v3792 = vpack.c.bf16 %v3154, %v3150
        %v3793 = vpack.c.bf16 %v3160, %v3156
        %v3794 = vpack.c.bf16 %v3162, %v3158
        %v3795 = vpack.c.bf16 %v3168, %v3164
        %v3796 = vpack.c.bf16 %v3170, %v3166
        %v3797 = vpack.c.bf16 %v3176, %v3172
        %v3798 = vpack.c.bf16 %v3178, %v3174
        %v3799 = vpack.c.bf16 %v3184, %v3180
        %v3800 = vpack.c.bf16 %v3186, %v3182
        %v3801 = vpack.c.bf16 %v3192, %v3188
        %v3802 = vpack.c.bf16 %v3194, %v3190
        %v3803 = vpack.c.bf16 %v3200, %v3196
        %v3804 = vpack.c.bf16 %v3202, %v3198
        %v3805 = vpack.c.bf16 %v3208, %v3204
        %v3806 = vpack.c.bf16 %v3210, %v3206
        %v3807 = vpack.c.bf16 %v3216, %v3212
        %v3808 = vpack.c.bf16 %v3218, %v3214
        %v3809 = vpack.c.bf16 %v3224, %v3220
        %v3810 = vpack.c.bf16 %v3226, %v3222
        %v3811 = vpack.c.bf16 %v3232, %v3228
        %v3812 = vpack.c.bf16 %v3234, %v3230
        %v3813 = vpack.c.bf16 %v3240, %v3236
        %v3814 = vpack.c.bf16 %v3242, %v3238
        %v3815 = vpack.c.bf16 %v3248, %v3244
        %v3816 = vpack.c.bf16 %v3250, %v3246
        %v3817 = vpack.c.bf16 %v3256, %v3252
        %v3818 = vpack.c.bf16 %v3258, %v3254
        %v3819 = vpack.c.bf16 %v3264, %v3260
        %v3820 = vpack.c.bf16 %v3266, %v3262
        %v3821 = vpack.c.bf16 %v3272, %v3268
        %v3822 = vpack.c.bf16 %v3274, %v3270
        %v3823 = vpack.c.bf16 %v3280, %v3276
        %v3824 = vpack.c.bf16 %v3282, %v3278
        %v3825 = vpack.c.bf16 %v3288, %v3284
        %v3826 = vpack.c.bf16 %v3290, %v3286
        %v3827 = vpack.c.bf16 %v3296, %v3292
        %v3828 = vpack.c.bf16 %v3298, %v3294
        %v3829 = vpack.c.bf16 %v3304, %v3300
        %v3830 = vpack.c.bf16 %v3306, %v3302
        %v3831 = vpack.c.bf16 %v3312, %v3308
        %v3832 = vpack.c.bf16 %v3314, %v3310
        %v3833 = vpack.c.bf16 %v3320, %v3316
        %v3834 = vpack.c.bf16 %v3322, %v3318
        %3835 = vmatprep.subr.bf16.mxu0 %v3708
        %3836 = vmatpush1.bf16.xpose.msra.mxu0 %v3707
        %3837 = vmatprep.subr.bf16.mxu0 %v3710
        %3838 = vmatpush1.bf16.xpose.msra.mxu0 %v3709
        %3839 = vmatprep.subr.bf16.mxu0 %v3712
        %3840 = vmatpush1.bf16.xpose.msra.mxu0 %v3711
        %3841 = vmatprep.subr.bf16.mxu0 %v3714
        %3842 = vmatpush1.bf16.xpose.msra.mxu0 %v3713
        %3843 = vmatprep.subr.bf16.mxu0 %v3716
        %3844 = vmatpush1.bf16.xpose.msra.mxu0 %v3715
        %3845 = vmatprep.subr.bf16.mxu0 %v3718
        %3846 = vmatpush1.bf16.xpose.msra.mxu0 %v3717
        %3847 = vmatprep.subr.bf16.mxu0 %v3720
        %3848 = vmatpush1.bf16.xpose.msra.mxu0 %v3719
        %3849 = vmatprep.subr.bf16.mxu0 %v3722
        %3850 = vmatpush1.bf16.xpose.msra.mxu0 %v3721
        %3851 = vmatprep.subr.bf16.mxu0 %v3724
        %3852 = vmatpush1.bf16.xpose.msra.mxu0 %v3723
        %3853 = vmatprep.subr.bf16.mxu0 %v3726
        %3854 = vmatpush1.bf16.xpose.msra.mxu0 %v3725
        %3855 = vmatprep.subr.bf16.mxu0 %v3728
        %3856 = vmatpush1.bf16.xpose.msra.mxu0 %v3727
        %3857 = vmatprep.subr.bf16.mxu0 %v3730
        %3858 = vmatpush1.bf16.xpose.msra.mxu0 %v3729
        %3859 = vmatprep.subr.bf16.mxu0 %v3732
        %3860 = vmatpush1.bf16.xpose.msra.mxu0 %v3731
        %3861 = vmatprep.subr.bf16.mxu0 %v3734
        %3862 = vmatpush1.bf16.xpose.msra.mxu0 %v3733
        %3863 = vmatprep.subr.bf16.mxu0 %v3736
        %3864 = vmatpush1.bf16.xpose.msra.mxu0 %v3735
        %3865 = vmatprep.subr.bf16.mxu0 %v3738
        %3866 = vmatpush1.bf16.xpose.msra.mxu0 %v3737
        %3867 = vmatprep.mubr.bf16.mxu0 %v983
        %3868 = vmatmul.mubr.bf16.gmra.mrb[0].mxu0 %v982
        %v3869 = vpop.f32.mrb[0].mxu0
        %v3870 = vadd.f32 0.0, %v3869
        %v3871 = vpop.f32.mrb[0].mxu0
        %v3872 = vadd.f32 0.0, %v3871
        %v3873 = vpop.f32.mrb[0].mxu0
        %v3874 = vadd.f32 0.0, %v3873
        %v3875 = vpop.f32.mrb[0].mxu0
        %v3876 = vadd.f32 0.0, %v3875
        %3877 = vdwg.mxu0
        %3878 = vmatprep.subr.bf16.mxu0 %v3740
        %3879 = vmatpush1.bf16.xpose.msra.mxu0 %v3739
        %3880 = vmatprep.subr.bf16.mxu0 %v3742
        %3881 = vmatpush1.bf16.xpose.msra.mxu0 %v3741
        %3882 = vmatprep.subr.bf16.mxu0 %v3744
        %3883 = vmatpush1.bf16.xpose.msra.mxu0 %v3743
        %3884 = vmatprep.subr.bf16.mxu0 %v3746
        %3885 = vmatpush1.bf16.xpose.msra.mxu0 %v3745
        %3886 = vmatprep.subr.bf16.mxu0 %v3748
        %3887 = vmatpush1.bf16.xpose.msra.mxu0 %v3747
        %3888 = vmatprep.subr.bf16.mxu0 %v3750
        %3889 = vmatpush1.bf16.xpose.msra.mxu0 %v3749
        %3890 = vmatprep.subr.bf16.mxu0 %v3752
        %3891 = vmatpush1.bf16.xpose.msra.mxu0 %v3751
        %3892 = vmatprep.subr.bf16.mxu0 %v3754
        %3893 = vmatpush1.bf16.xpose.msra.mxu0 %v3753
        %3894 = vmatprep.subr.bf16.mxu0 %v3756
        %3895 = vmatpush1.bf16.xpose.msra.mxu0 %v3755
        %3896 = vmatprep.subr.bf16.mxu0 %v3758
        %3897 = vmatpush1.bf16.xpose.msra.mxu0 %v3757
        %3898 = vmatprep.subr.bf16.mxu0 %v3760
        %3899 = vmatpush1.bf16.xpose.msra.mxu0 %v3759
        %3900 = vmatprep.subr.bf16.mxu0 %v3762
        %3901 = vmatpush1.bf16.xpose.msra.mxu0 %v3761
        %3902 = vmatprep.subr.bf16.mxu0 %v3764
        %3903 = vmatpush1.bf16.xpose.msra.mxu0 %v3763
        %3904 = vmatprep.subr.bf16.mxu0 %v3766
        %3905 = vmatpush1.bf16.xpose.msra.mxu0 %v3765
        %3906 = vmatprep.subr.bf16.mxu0 %v3768
        %3907 = vmatpush1.bf16.xpose.msra.mxu0 %v3767
        %3908 = vmatprep.subr.bf16.mxu0 %v3770
        %3909 = vmatpush1.bf16.xpose.msra.mxu0 %v3769
        %3910 = vmatprep.mubr.bf16.mxu0 %v987
        %3911 = vmatmul.mubr.bf16.gmra.mrb[0].mxu0 %v986
        %v3912 = vpop.f32.mrb[0].mxu0
        %v3913 = vadd.f32 0.0, %v3912
        %v3914 = vpop.f32.mrb[0].mxu0
        %v3915 = vadd.f32 0.0, %v3914
        %v3916 = vpop.f32.mrb[0].mxu0
        %v3917 = vadd.f32 0.0, %v3916
        %v3918 = vpop.f32.mrb[0].mxu0
        %v3919 = vadd.f32 0.0, %v3918
        %3920 = vdwg.mxu0
        %3921 = vmatprep.subr.bf16.mxu0 %v3772
        %3922 = vmatpush1.bf16.xpose.msra.mxu0 %v3771
        %3923 = vmatprep.subr.bf16.mxu0 %v3774
        %3924 = vmatpush1.bf16.xpose.msra.mxu0 %v3773
        %3925 = vmatprep.subr.bf16.mxu0 %v3776
        %3926 = vmatpush1.bf16.xpose.msra.mxu0 %v3775
        %3927 = vmatprep.subr.bf16.mxu0 %v3778
        %3928 = vmatpush1.bf16.xpose.msra.mxu0 %v3777
        %3929 = vmatprep.subr.bf16.mxu0 %v3780
        %3930 = vmatpush1.bf16.xpose.msra.mxu0 %v3779
        %3931 = vmatprep.subr.bf16.mxu0 %v3782
        %3932 = vmatpush1.bf16.xpose.msra.mxu0 %v3781
        %3933 = vmatprep.subr.bf16.mxu0 %v3784
        %3934 = vmatpush1.bf16.xpose.msra.mxu0 %v3783
        %3935 = vmatprep.subr.bf16.mxu0 %v3786
        %3936 = vmatpush1.bf16.xpose.msra.mxu0 %v3785
        %3937 = vmatprep.subr.bf16.mxu0 %v3788
        %3938 = vmatpush1.bf16.xpose.msra.mxu0 %v3787
        %3939 = vmatprep.subr.bf16.mxu0 %v3790
        %3940 = vmatpush1.bf16.xpose.msra.mxu0 %v3789
        %3941 = vmatprep.subr.bf16.mxu0 %v3792
        %3942 = vmatpush1.bf16.xpose.msra.mxu0 %v3791
        %3943 = vmatprep.subr.bf16.mxu0 %v3794
        %3944 = vmatpush1.bf16.xpose.msra.mxu0 %v3793
        %3945 = vmatprep.subr.bf16.mxu0 %v3796
        %3946 = vmatpush1.bf16.xpose.msra.mxu0 %v3795
        %3947 = vmatprep.subr.bf16.mxu0 %v3798
        %3948 = vmatpush1.bf16.xpose.msra.mxu0 %v3797
        %3949 = vmatprep.subr.bf16.mxu0 %v3800
        %3950 = vmatpush1.bf16.xpose.msra.mxu0 %v3799
        %3951 = vmatprep.subr.bf16.mxu0 %v3802
        %3952 = vmatpush1.bf16.xpose.msra.mxu0 %v3801
        %3953 = vmatprep.mubr.bf16.mxu0 %v991
        %3954 = vmatmul.mubr.bf16.gmra.mrb[0].mxu0 %v990
        %v3955 = vpop.f32.mrb[0].mxu0
        %v3956 = vadd.f32 0.0, %v3955
        %v3957 = vpop.f32.mrb[0].mxu0
        %v3958 = vadd.f32 0.0, %v3957
        %v3959 = vpop.f32.mrb[0].mxu0
        %v3960 = vadd.f32 0.0, %v3959
        %v3961 = vpop.f32.mrb[0].mxu0
        %v3962 = vadd.f32 0.0, %v3961
        %3963 = vdwg.mxu0
        %3964 = vmatprep.subr.bf16.mxu0 %v3804
        %3965 = vmatpush1.bf16.xpose.msra.mxu0 %v3803
        %3966 = vmatprep.subr.bf16.mxu0 %v3806
        %3967 = vmatpush1.bf16.xpose.msra.mxu0 %v3805
        %3968 = vmatprep.subr.bf16.mxu0 %v3808
        %3969 = vmatpush1.bf16.xpose.msra.mxu0 %v3807
        %3970 = vmatprep.subr.bf16.mxu0 %v3810
        %3971 = vmatpush1.bf16.xpose.msra.mxu0 %v3809
        %3972 = vmatprep.subr.bf16.mxu0 %v3812
        %3973 = vmatpush1.bf16.xpose.msra.mxu0 %v3811
        %3974 = vmatprep.subr.bf16.mxu0 %v3814
        %3975 = vmatpush1.bf16.xpose.msra.mxu0 %v3813
        %3976 = vmatprep.subr.bf16.mxu0 %v3816
        %3977 = vmatpush1.bf16.xpose.msra.mxu0 %v3815
        %3978 = vmatprep.subr.bf16.mxu0 %v3818
        %3979 = vmatpush1.bf16.xpose.msra.mxu0 %v3817
        %3980 = vmatprep.subr.bf16.mxu0 %v3820
        %3981 = vmatpush1.bf16.xpose.msra.mxu0 %v3819
        %3982 = vmatprep.subr.bf16.mxu0 %v3822
        %3983 = vmatpush1.bf16.xpose.msra.mxu0 %v3821
        %3984 = vmatprep.subr.bf16.mxu0 %v3824
        %3985 = vmatpush1.bf16.xpose.msra.mxu0 %v3823
        %3986 = vmatprep.subr.bf16.mxu0 %v3826
        %3987 = vmatpush1.bf16.xpose.msra.mxu0 %v3825
        %3988 = vmatprep.subr.bf16.mxu0 %v3828
        %3989 = vmatpush1.bf16.xpose.msra.mxu0 %v3827
        %3990 = vmatprep.subr.bf16.mxu0 %v3830
        %3991 = vmatpush1.bf16.xpose.msra.mxu0 %v3829
        %3992 = vmatprep.subr.bf16.mxu0 %v3832
        %3993 = vmatpush1.bf16.xpose.msra.mxu0 %v3831
        %3994 = vmatprep.subr.bf16.mxu0 %v3834
        %3995 = vmatpush1.bf16.xpose.msra.mxu0 %v3833
        %3996 = vmatprep.mubr.bf16.mxu0 %v995
        %3997 = vmatmul.mubr.bf16.gmra.mrb[0].mxu0 %v994
        %v3998 = vpop.f32.mrb[0].mxu0
        %v3999 = vadd.f32 0.0, %v3998
        %v4000 = vpop.f32.mrb[0].mxu0
        %v4001 = vadd.f32 0.0, %v4000
        %v4002 = vpop.f32.mrb[0].mxu0
        %v4003 = vadd.f32 0.0, %v4002
        %v4004 = vpop.f32.mrb[0].mxu0
        %v4005 = vadd.f32 0.0, %v4004
        %4006 = vdwg.mxu0
        %v4007 = vrcp.pop %v3325
        %v4008 = vrcp.pop %v3328
        %v4009 = vrcp.pop %v3331
        %v4010 = vrcp.pop %v3334
        %v4011 = vrcp.pop %v3337
        %v4012 = vrcp.pop %v3340
        %v4013 = vrcp.pop %v3343
        %v4014 = vrcp.pop %v3346
        %v4015 = vrcp.pop %v3349
        %v4016 = vrcp.pop %v3352
        %v4017 = vrcp.pop %v3355
        %v4018 = vrcp.pop %v3358
        %v4019 = vrcp.pop %v3361
        %v4020 = vrcp.pop %v3364
        %v4021 = vrcp.pop %v3367
        %v4022 = vrcp.pop %v3370
        %v4023 = vrcp.pop %v3373
        %v4024 = vrcp.pop %v3376
        %v4025 = vrcp.pop %v3379
        %v4026 = vrcp.pop %v3382
        %v4027 = vrcp.pop %v3385
        %v4028 = vrcp.pop %v3388
        %v4029 = vrcp.pop %v3391
        %v4030 = vrcp.pop %v3394
        %v4031 = vrcp.pop %v3397
        %v4032 = vrcp.pop %v3400
        %v4033 = vrcp.pop %v3403
        %v4034 = vrcp.pop %v3406
        %v4035 = vrcp.pop %v3409
        %v4036 = vrcp.pop %v3412
        %v4037 = vrcp.pop %v3415
        %v4038 = vrcp.pop %v3418
        %v4039 = vrcp.pop %v3421
        %v4040 = vrcp.pop %v3424
        %v4041 = vrcp.pop %v3427
        %v4042 = vrcp.pop %v3430
        %v4043 = vrcp.pop %v3433
        %v4044 = vrcp.pop %v3436
        %v4045 = vrcp.pop %v3439
        %v4046 = vrcp.pop %v3442
        %v4047 = vrcp.pop %v3445
        %v4048 = vrcp.pop %v3448
        %v4049 = vrcp.pop %v3451
        %v4050 = vrcp.pop %v3454
        %v4051 = vrcp.pop %v3457
        %v4052 = vrcp.pop %v3460
        %v4053 = vrcp.pop %v3463
        %v4054 = vrcp.pop %v3466
        %v4055 = vrcp.pop %v3469
        %v4056 = vrcp.pop %v3472
        %v4057 = vrcp.pop %v3475
        %v4058 = vrcp.pop %v3478
        %v4059 = vrcp.pop %v3481
        %v4060 = vrcp.pop %v3484
        %v4061 = vrcp.pop %v3487
        %v4062 = vrcp.pop %v3490
        %v4063 = vrcp.pop %v3493
        %v4064 = vrcp.pop %v3496
        %v4065 = vrcp.pop %v3499
        %v4066 = vrcp.pop %v3502
        %v4067 = vrcp.pop %v3505
        %v4068 = vrcp.pop %v3508
        %v4069 = vrcp.pop %v3511
        %v4070 = vrcp.pop %v3514
        %v4071 = vrcp.pop %v3517
        %v4072 = vrcp.pop %v3520
        %v4073 = vrcp.pop %v3523
        %v4074 = vrcp.pop %v3526
        %v4075 = vrcp.pop %v3529
        %v4076 = vrcp.pop %v3532
        %v4077 = vrcp.pop %v3535
        %v4078 = vrcp.pop %v3538
        %v4079 = vrcp.pop %v3541
        %v4080 = vrcp.pop %v3544
        %v4081 = vrcp.pop %v3547
        %v4082 = vrcp.pop %v3550
        %v4083 = vrcp.pop %v3553
        %v4084 = vrcp.pop %v3556
        %v4085 = vrcp.pop %v3559
        %v4086 = vrcp.pop %v3562
        %v4087 = vrcp.pop %v3565
        %v4088 = vrcp.pop %v3568
        %v4089 = vrcp.pop %v3571
        %v4090 = vrcp.pop %v3574
        %v4091 = vrcp.pop %v3577
        %v4092 = vrcp.pop %v3580
        %v4093 = vrcp.pop %v3583
        %v4094 = vrcp.pop %v3586
        %v4095 = vrcp.pop %v3589
        %v4096 = vrcp.pop %v3592
        %v4097 = vrcp.pop %v3595
        %v4098 = vrcp.pop %v3598
        %v4099 = vrcp.pop %v3601
        %v4100 = vrcp.pop %v3604
        %v4101 = vrcp.pop %v3607
        %v4102 = vrcp.pop %v3610
        %v4103 = vrcp.pop %v3613
        %v4104 = vrcp.pop %v3616
        %v4105 = vrcp.pop %v3619
        %v4106 = vrcp.pop %v3622
        %v4107 = vrcp.pop %v3625
        %v4108 = vrcp.pop %v3628
        %v4109 = vrcp.pop %v3631
        %v4110 = vrcp.pop %v3634
        %v4111 = vrcp.pop %v3637
        %v4112 = vrcp.pop %v3640
        %v4113 = vrcp.pop %v3643
        %v4114 = vrcp.pop %v3646
        %v4115 = vrcp.pop %v3649
        %v4116 = vrcp.pop %v3652
        %v4117 = vrcp.pop %v3655
        %v4118 = vrcp.pop %v3658
        %v4119 = vrcp.pop %v3661
        %v4120 = vrcp.pop %v3664
        %v4121 = vrcp.pop %v3667
        %v4122 = vrcp.pop %v3670
        %v4123 = vrcp.pop %v3673
        %v4124 = vrcp.pop %v3676
        %v4125 = vrcp.pop %v3679
        %v4126 = vrcp.pop %v3682
        %v4127 = vrcp.pop %v3685
        %v4128 = vrcp.pop %v3688
        %v4129 = vrcp.pop %v3691
        %v4130 = vrcp.pop %v3694
        %v4131 = vrcp.pop %v3697
        %v4132 = vrcp.pop %v3700
        %v4133 = vrcp.pop %v3703
        %v4134 = vrcp.pop %v3706
        %v4263 = vlaneseq
        %v4264 = vand.u32 %v4263, 127
        %v4265 = vlaneseq
        %v4266 = vshrl.u32 %v4265, 7
        %v4267 = vsub.s32 %v4264, %v4266
        %v4268 = vrot.slane %v4007, %v4267
        %v4269 = vadd.s32 %v4264, 4294967288
        %v4270 = vlaneseq
        %v4271 = vshrl.u32 %v4270, 7
        %v4272 = vsub.s32 %v4269, %v4271
        %v4273 = vrot.slane %v4008, %v4272
        %vm4274 = vcmask 130112
        %v4275 = vsel %vm4274, %v4273, %v4268
        %v4276 = vadd.s32 %v4264, 4294967280
        %v4277 = vlaneseq
        %v4278 = vshrl.u32 %v4277, 7
        %v4279 = vsub.s32 %v4276, %v4278
        %v4280 = vrot.slane %v4009, %v4279
        %vm4281 = vcmask 195712
        %v4282 = vsel %vm4281, %v4280, %v4275
        %v4283 = vadd.s32 %v4264, 4294967272
        %v4284 = vlaneseq
        %v4285 = vshrl.u32 %v4284, 7
        %v4286 = vsub.s32 %v4283, %v4285
        %v4287 = vrot.slane %v4010, %v4286
        %vm4288 = vcmask 261312
        %v4289 = vsel %vm4288, %v4287, %v4282
        %v4290 = vadd.s32 %v4264, 4294967264
        %v4291 = vlaneseq
        %v4292 = vshrl.u32 %v4291, 7
        %v4293 = vsub.s32 %v4290, %v4292
        %v4294 = vrot.slane %v4011, %v4293
        %vm4295 = vcmask 326912
        %v4296 = vsel %vm4295, %v4294, %v4289
        %v4297 = vadd.s32 %v4264, 4294967256
        %v4298 = vlaneseq
        %v4299 = vshrl.u32 %v4298, 7
        %v4300 = vsub.s32 %v4297, %v4299
        %v4301 = vrot.slane %v4012, %v4300
        %vm4302 = vcmask 392512
        %v4303 = vsel %vm4302, %v4301, %v4296
        %v4304 = vadd.s32 %v4264, 4294967248
        %v4305 = vlaneseq
        %v4306 = vshrl.u32 %v4305, 7
        %v4307 = vsub.s32 %v4304, %v4306
        %v4308 = vrot.slane %v4013, %v4307
        %vm4309 = vcmask 458112
        %v4310 = vsel %vm4309, %v4308, %v4303
        %v4311 = vadd.s32 %v4264, 4294967240
        %v4312 = vlaneseq
        %v4313 = vshrl.u32 %v4312, 7
        %v4314 = vsub.s32 %v4311, %v4313
        %v4315 = vrot.slane %v4014, %v4314
        %vm4316 = vcmask 523712
        %v4317 = vsel %vm4316, %v4315, %v4310
        %v4318 = vadd.s32 %v4264, 4294967232
        %v4319 = vlaneseq
        %v4320 = vshrl.u32 %v4319, 7
        %v4321 = vsub.s32 %v4318, %v4320
        %v4322 = vrot.slane %v4015, %v4321
        %vm4323 = vcmask 589312
        %v4324 = vsel %vm4323, %v4322, %v4317
        %v4325 = vadd.s32 %v4264, 4294967224
        %v4326 = vlaneseq
        %v4327 = vshrl.u32 %v4326, 7
        %v4328 = vsub.s32 %v4325, %v4327
        %v4329 = vrot.slane %v4016, %v4328
        %vm4330 = vcmask 654912
        %v4331 = vsel %vm4330, %v4329, %v4324
        %v4332 = vadd.s32 %v4264, 4294967216
        %v4333 = vlaneseq
        %v4334 = vshrl.u32 %v4333, 7
        %v4335 = vsub.s32 %v4332, %v4334
        %v4336 = vrot.slane %v4017, %v4335
        %vm4337 = vcmask 720512
        %v4338 = vsel %vm4337, %v4336, %v4331
        %v4339 = vadd.s32 %v4264, 4294967208
        %v4340 = vlaneseq
        %v4341 = vshrl.u32 %v4340, 7
        %v4342 = vsub.s32 %v4339, %v4341
        %v4343 = vrot.slane %v4018, %v4342
        %vm4344 = vcmask 786112
        %v4345 = vsel %vm4344, %v4343, %v4338
        %v4346 = vadd.s32 %v4264, 4294967200
        %v4347 = vlaneseq
        %v4348 = vshrl.u32 %v4347, 7
        %v4349 = vsub.s32 %v4346, %v4348
        %v4350 = vrot.slane %v4019, %v4349
        %vm4351 = vcmask 851712
        %v4352 = vsel %vm4351, %v4350, %v4345
        %v4353 = vadd.s32 %v4264, 4294967192
        %v4354 = vlaneseq
        %v4355 = vshrl.u32 %v4354, 7
        %v4356 = vsub.s32 %v4353, %v4355
        %v4357 = vrot.slane %v4020, %v4356
        %vm4358 = vcmask 917312
        %v4359 = vsel %vm4358, %v4357, %v4352
        %v4360 = vadd.s32 %v4264, 4294967184
        %v4361 = vlaneseq
        %v4362 = vshrl.u32 %v4361, 7
        %v4363 = vsub.s32 %v4360, %v4362
        %v4364 = vrot.slane %v4021, %v4363
        %vm4365 = vcmask 982912
        %v4366 = vsel %vm4365, %v4364, %v4359
        %v4367 = vadd.s32 %v4264, 4294967176
        %v4368 = vlaneseq
        %v4369 = vshrl.u32 %v4368, 7
        %v4370 = vsub.s32 %v4367, %v4369
        %v4371 = vrot.slane %v4022, %v4370
        %vm4372 = vcmask 1048512
        %v4373 = vsel %vm4372, %v4371, %v4366
        %v4374 = vlaneseq
        %v4375 = vshrl.u32 %v4374, 7
        %v4376 = vsub.s32 %v4264, %v4375
        %v4377 = vrot.slane %v4023, %v4376
        %v4378 = vlaneseq
        %v4379 = vshrl.u32 %v4378, 7
        %v4380 = vsub.s32 %v4269, %v4379
        %v4381 = vrot.slane %v4024, %v4380
        %v4382 = vsel %vm4274, %v4381, %v4377
        %v4383 = vlaneseq
        %v4384 = vshrl.u32 %v4383, 7
        %v4385 = vsub.s32 %v4276, %v4384
        %v4386 = vrot.slane %v4025, %v4385
        %v4387 = vsel %vm4281, %v4386, %v4382
        %v4388 = vlaneseq
        %v4389 = vshrl.u32 %v4388, 7
        %v4390 = vsub.s32 %v4283, %v4389
        %v4391 = vrot.slane %v4026, %v4390
        %v4392 = vsel %vm4288, %v4391, %v4387
        %v4393 = vlaneseq
        %v4394 = vshrl.u32 %v4393, 7
        %v4395 = vsub.s32 %v4290, %v4394
        %v4396 = vrot.slane %v4027, %v4395
        %v4397 = vsel %vm4295, %v4396, %v4392
        %v4398 = vlaneseq
        %v4399 = vshrl.u32 %v4398, 7
        %v4400 = vsub.s32 %v4297, %v4399
        %v4401 = vrot.slane %v4028, %v4400
        %v4402 = vsel %vm4302, %v4401, %v4397
        %v4403 = vlaneseq
        %v4404 = vshrl.u32 %v4403, 7
        %v4405 = vsub.s32 %v4304, %v4404
        %v4406 = vrot.slane %v4029, %v4405
        %v4407 = vsel %vm4309, %v4406, %v4402
        %v4408 = vlaneseq
        %v4409 = vshrl.u32 %v4408, 7
        %v4410 = vsub.s32 %v4311, %v4409
        %v4411 = vrot.slane %v4030, %v4410
        %v4412 = vsel %vm4316, %v4411, %v4407
        %v4413 = vlaneseq
        %v4414 = vshrl.u32 %v4413, 7
        %v4415 = vsub.s32 %v4318, %v4414
        %v4416 = vrot.slane %v4031, %v4415
        %v4417 = vsel %vm4323, %v4416, %v4412
        %v4418 = vlaneseq
        %v4419 = vshrl.u32 %v4418, 7
        %v4420 = vsub.s32 %v4325, %v4419
        %v4421 = vrot.slane %v4032, %v4420
        %v4422 = vsel %vm4330, %v4421, %v4417
        %v4423 = vlaneseq
        %v4424 = vshrl.u32 %v4423, 7
        %v4425 = vsub.s32 %v4332, %v4424
        %v4426 = vrot.slane %v4033, %v4425
        %v4427 = vsel %vm4337, %v4426, %v4422
        %v4428 = vlaneseq
        %v4429 = vshrl.u32 %v4428, 7
        %v4430 = vsub.s32 %v4339, %v4429
        %v4431 = vrot.slane %v4034, %v4430
        %v4432 = vsel %vm4344, %v4431, %v4427
        %v4433 = vlaneseq
        %v4434 = vshrl.u32 %v4433, 7
        %v4435 = vsub.s32 %v4346, %v4434
        %v4436 = vrot.slane %v4035, %v4435
        %v4437 = vsel %vm4351, %v4436, %v4432
        %v4438 = vlaneseq
        %v4439 = vshrl.u32 %v4438, 7
        %v4440 = vsub.s32 %v4353, %v4439
        %v4441 = vrot.slane %v4036, %v4440
        %v4442 = vsel %vm4358, %v4441, %v4437
        %v4443 = vlaneseq
        %v4444 = vshrl.u32 %v4443, 7
        %v4445 = vsub.s32 %v4360, %v4444
        %v4446 = vrot.slane %v4037, %v4445
        %v4447 = vsel %vm4365, %v4446, %v4442
        %v4448 = vlaneseq
        %v4449 = vshrl.u32 %v4448, 7
        %v4450 = vsub.s32 %v4367, %v4449
        %v4451 = vrot.slane %v4038, %v4450
        %v4452 = vsel %vm4372, %v4451, %v4447
        %v4453 = vlaneseq
        %v4454 = vshrl.u32 %v4453, 7
        %v4455 = vsub.s32 %v4264, %v4454
        %v4456 = vrot.slane %v4039, %v4455
        %v4457 = vlaneseq
        %v4458 = vshrl.u32 %v4457, 7
        %v4459 = vsub.s32 %v4269, %v4458
        %v4460 = vrot.slane %v4040, %v4459
        %v4461 = vsel %vm4274, %v4460, %v4456
        %v4462 = vlaneseq
        %v4463 = vshrl.u32 %v4462, 7
        %v4464 = vsub.s32 %v4276, %v4463
        %v4465 = vrot.slane %v4041, %v4464
        %v4466 = vsel %vm4281, %v4465, %v4461
        %v4467 = vlaneseq
        %v4468 = vshrl.u32 %v4467, 7
        %v4469 = vsub.s32 %v4283, %v4468
        %v4470 = vrot.slane %v4042, %v4469
        %v4471 = vsel %vm4288, %v4470, %v4466
        %v4472 = vlaneseq
        %v4473 = vshrl.u32 %v4472, 7
        %v4474 = vsub.s32 %v4290, %v4473
        %v4475 = vrot.slane %v4043, %v4474
        %v4476 = vsel %vm4295, %v4475, %v4471
        %v4477 = vlaneseq
        %v4478 = vshrl.u32 %v4477, 7
        %v4479 = vsub.s32 %v4297, %v4478
        %v4480 = vrot.slane %v4044, %v4479
        %v4481 = vsel %vm4302, %v4480, %v4476
        %v4482 = vlaneseq
        %v4483 = vshrl.u32 %v4482, 7
        %v4484 = vsub.s32 %v4304, %v4483
        %v4485 = vrot.slane %v4045, %v4484
        %v4486 = vsel %vm4309, %v4485, %v4481
        %v4487 = vlaneseq
        %v4488 = vshrl.u32 %v4487, 7
        %v4489 = vsub.s32 %v4311, %v4488
        %v4490 = vrot.slane %v4046, %v4489
        %v4491 = vsel %vm4316, %v4490, %v4486
        %v4492 = vlaneseq
        %v4493 = vshrl.u32 %v4492, 7
        %v4494 = vsub.s32 %v4318, %v4493
        %v4495 = vrot.slane %v4047, %v4494
        %v4496 = vsel %vm4323, %v4495, %v4491
        %v4497 = vlaneseq
        %v4498 = vshrl.u32 %v4497, 7
        %v4499 = vsub.s32 %v4325, %v4498
        %v4500 = vrot.slane %v4048, %v4499
        %v4501 = vsel %vm4330, %v4500, %v4496
        %v4502 = vlaneseq
        %v4503 = vshrl.u32 %v4502, 7
        %v4504 = vsub.s32 %v4332, %v4503
        %v4505 = vrot.slane %v4049, %v4504
        %v4506 = vsel %vm4337, %v4505, %v4501
        %v4507 = vlaneseq
        %v4508 = vshrl.u32 %v4507, 7
        %v4509 = vsub.s32 %v4339, %v4508
        %v4510 = vrot.slane %v4050, %v4509
        %v4511 = vsel %vm4344, %v4510, %v4506
        %v4512 = vlaneseq
        %v4513 = vshrl.u32 %v4512, 7
        %v4514 = vsub.s32 %v4346, %v4513
        %v4515 = vrot.slane %v4051, %v4514
        %v4516 = vsel %vm4351, %v4515, %v4511
        %v4517 = vlaneseq
        %v4518 = vshrl.u32 %v4517, 7
        %v4519 = vsub.s32 %v4353, %v4518
        %v4520 = vrot.slane %v4052, %v4519
        %v4521 = vsel %vm4358, %v4520, %v4516
        %v4522 = vlaneseq
        %v4523 = vshrl.u32 %v4522, 7
        %v4524 = vsub.s32 %v4360, %v4523
        %v4525 = vrot.slane %v4053, %v4524
        %v4526 = vsel %vm4365, %v4525, %v4521
        %v4527 = vlaneseq
        %v4528 = vshrl.u32 %v4527, 7
        %v4529 = vsub.s32 %v4367, %v4528
        %v4530 = vrot.slane %v4054, %v4529
        %v4531 = vsel %vm4372, %v4530, %v4526
        %v4532 = vlaneseq
        %v4533 = vshrl.u32 %v4532, 7
        %v4534 = vsub.s32 %v4264, %v4533
        %v4535 = vrot.slane %v4055, %v4534
        %v4536 = vlaneseq
        %v4537 = vshrl.u32 %v4536, 7
        %v4538 = vsub.s32 %v4269, %v4537
        %v4539 = vrot.slane %v4056, %v4538
        %v4540 = vsel %vm4274, %v4539, %v4535
        %v4541 = vlaneseq
        %v4542 = vshrl.u32 %v4541, 7
        %v4543 = vsub.s32 %v4276, %v4542
        %v4544 = vrot.slane %v4057, %v4543
        %v4545 = vsel %vm4281, %v4544, %v4540
        %v4546 = vlaneseq
        %v4547 = vshrl.u32 %v4546, 7
        %v4548 = vsub.s32 %v4283, %v4547
        %v4549 = vrot.slane %v4058, %v4548
        %v4550 = vsel %vm4288, %v4549, %v4545
        %v4551 = vlaneseq
        %v4552 = vshrl.u32 %v4551, 7
        %v4553 = vsub.s32 %v4290, %v4552
        %v4554 = vrot.slane %v4059, %v4553
        %v4555 = vsel %vm4295, %v4554, %v4550
        %v4556 = vlaneseq
        %v4557 = vshrl.u32 %v4556, 7
        %v4558 = vsub.s32 %v4297, %v4557
        %v4559 = vrot.slane %v4060, %v4558
        %v4560 = vsel %vm4302, %v4559, %v4555
        %v4561 = vlaneseq
        %v4562 = vshrl.u32 %v4561, 7
        %v4563 = vsub.s32 %v4304, %v4562
        %v4564 = vrot.slane %v4061, %v4563
        %v4565 = vsel %vm4309, %v4564, %v4560
        %v4566 = vlaneseq
        %v4567 = vshrl.u32 %v4566, 7
        %v4568 = vsub.s32 %v4311, %v4567
        %v4569 = vrot.slane %v4062, %v4568
        %v4570 = vsel %vm4316, %v4569, %v4565
        %v4571 = vlaneseq
        %v4572 = vshrl.u32 %v4571, 7
        %v4573 = vsub.s32 %v4318, %v4572
        %v4574 = vrot.slane %v4063, %v4573
        %v4575 = vsel %vm4323, %v4574, %v4570
        %v4576 = vlaneseq
        %v4577 = vshrl.u32 %v4576, 7
        %v4578 = vsub.s32 %v4325, %v4577
        %v4579 = vrot.slane %v4064, %v4578
        %v4580 = vsel %vm4330, %v4579, %v4575
        %v4581 = vlaneseq
        %v4582 = vshrl.u32 %v4581, 7
        %v4583 = vsub.s32 %v4332, %v4582
        %v4584 = vrot.slane %v4065, %v4583
        %v4585 = vsel %vm4337, %v4584, %v4580
        %v4586 = vlaneseq
        %v4587 = vshrl.u32 %v4586, 7
        %v4588 = vsub.s32 %v4339, %v4587
        %v4589 = vrot.slane %v4066, %v4588
        %v4590 = vsel %vm4344, %v4589, %v4585
        %v4591 = vlaneseq
        %v4592 = vshrl.u32 %v4591, 7
        %v4593 = vsub.s32 %v4346, %v4592
        %v4594 = vrot.slane %v4067, %v4593
        %v4595 = vsel %vm4351, %v4594, %v4590
        %v4596 = vlaneseq
        %v4597 = vshrl.u32 %v4596, 7
        %v4598 = vsub.s32 %v4353, %v4597
        %v4599 = vrot.slane %v4068, %v4598
        %v4600 = vsel %vm4358, %v4599, %v4595
        %v4601 = vlaneseq
        %v4602 = vshrl.u32 %v4601, 7
        %v4603 = vsub.s32 %v4360, %v4602
        %v4604 = vrot.slane %v4069, %v4603
        %v4605 = vsel %vm4365, %v4604, %v4600
        %v4606 = vlaneseq
        %v4607 = vshrl.u32 %v4606, 7
        %v4608 = vsub.s32 %v4367, %v4607
        %v4609 = vrot.slane %v4070, %v4608
        %v4610 = vsel %vm4372, %v4609, %v4605
        %v4611 = vlaneseq
        %v4612 = vshrl.u32 %v4611, 7
        %v4613 = vsub.s32 %v4264, %v4612
        %v4614 = vrot.slane %v4071, %v4613
        %v4615 = vlaneseq
        %v4616 = vshrl.u32 %v4615, 7
        %v4617 = vsub.s32 %v4269, %v4616
        %v4618 = vrot.slane %v4072, %v4617
        %v4619 = vsel %vm4274, %v4618, %v4614
        %v4620 = vlaneseq
        %v4621 = vshrl.u32 %v4620, 7
        %v4622 = vsub.s32 %v4276, %v4621
        %v4623 = vrot.slane %v4073, %v4622
        %v4624 = vsel %vm4281, %v4623, %v4619
        %v4625 = vlaneseq
        %v4626 = vshrl.u32 %v4625, 7
        %v4627 = vsub.s32 %v4283, %v4626
        %v4628 = vrot.slane %v4074, %v4627
        %v4629 = vsel %vm4288, %v4628, %v4624
        %v4630 = vlaneseq
        %v4631 = vshrl.u32 %v4630, 7
        %v4632 = vsub.s32 %v4290, %v4631
        %v4633 = vrot.slane %v4075, %v4632
        %v4634 = vsel %vm4295, %v4633, %v4629
        %v4635 = vlaneseq
        %v4636 = vshrl.u32 %v4635, 7
        %v4637 = vsub.s32 %v4297, %v4636
        %v4638 = vrot.slane %v4076, %v4637
        %v4639 = vsel %vm4302, %v4638, %v4634
        %v4640 = vlaneseq
        %v4641 = vshrl.u32 %v4640, 7
        %v4642 = vsub.s32 %v4304, %v4641
        %v4643 = vrot.slane %v4077, %v4642
        %v4644 = vsel %vm4309, %v4643, %v4639
        %v4645 = vlaneseq
        %v4646 = vshrl.u32 %v4645, 7
        %v4647 = vsub.s32 %v4311, %v4646
        %v4648 = vrot.slane %v4078, %v4647
        %v4649 = vsel %vm4316, %v4648, %v4644
        %v4650 = vlaneseq
        %v4651 = vshrl.u32 %v4650, 7
        %v4652 = vsub.s32 %v4318, %v4651
        %v4653 = vrot.slane %v4079, %v4652
        %v4654 = vsel %vm4323, %v4653, %v4649
        %v4655 = vlaneseq
        %v4656 = vshrl.u32 %v4655, 7
        %v4657 = vsub.s32 %v4325, %v4656
        %v4658 = vrot.slane %v4080, %v4657
        %v4659 = vsel %vm4330, %v4658, %v4654
        %v4660 = vlaneseq
        %v4661 = vshrl.u32 %v4660, 7
        %v4662 = vsub.s32 %v4332, %v4661
        %v4663 = vrot.slane %v4081, %v4662
        %v4664 = vsel %vm4337, %v4663, %v4659
        %v4665 = vlaneseq
        %v4666 = vshrl.u32 %v4665, 7
        %v4667 = vsub.s32 %v4339, %v4666
        %v4668 = vrot.slane %v4082, %v4667
        %v4669 = vsel %vm4344, %v4668, %v4664
        %v4670 = vlaneseq
        %v4671 = vshrl.u32 %v4670, 7
        %v4672 = vsub.s32 %v4346, %v4671
        %v4673 = vrot.slane %v4083, %v4672
        %v4674 = vsel %vm4351, %v4673, %v4669
        %v4675 = vlaneseq
        %v4676 = vshrl.u32 %v4675, 7
        %v4677 = vsub.s32 %v4353, %v4676
        %v4678 = vrot.slane %v4084, %v4677
        %v4679 = vsel %vm4358, %v4678, %v4674
        %v4680 = vlaneseq
        %v4681 = vshrl.u32 %v4680, 7
        %v4682 = vsub.s32 %v4360, %v4681
        %v4683 = vrot.slane %v4085, %v4682
        %v4684 = vsel %vm4365, %v4683, %v4679
        %v4685 = vlaneseq
        %v4686 = vshrl.u32 %v4685, 7
        %v4687 = vsub.s32 %v4367, %v4686
        %v4688 = vrot.slane %v4086, %v4687
        %v4689 = vsel %vm4372, %v4688, %v4684
        %v4690 = vlaneseq
        %v4691 = vshrl.u32 %v4690, 7
        %v4692 = vsub.s32 %v4264, %v4691
        %v4693 = vrot.slane %v4087, %v4692
        %v4694 = vlaneseq
        %v4695 = vshrl.u32 %v4694, 7
        %v4696 = vsub.s32 %v4269, %v4695
        %v4697 = vrot.slane %v4088, %v4696
        %v4698 = vsel %vm4274, %v4697, %v4693
        %v4699 = vlaneseq
        %v4700 = vshrl.u32 %v4699, 7
        %v4701 = vsub.s32 %v4276, %v4700
        %v4702 = vrot.slane %v4089, %v4701
        %v4703 = vsel %vm4281, %v4702, %v4698
        %v4704 = vlaneseq
        %v4705 = vshrl.u32 %v4704, 7
        %v4706 = vsub.s32 %v4283, %v4705
        %v4707 = vrot.slane %v4090, %v4706
        %v4708 = vsel %vm4288, %v4707, %v4703
        %v4709 = vlaneseq
        %v4710 = vshrl.u32 %v4709, 7
        %v4711 = vsub.s32 %v4290, %v4710
        %v4712 = vrot.slane %v4091, %v4711
        %v4713 = vsel %vm4295, %v4712, %v4708
        %v4714 = vlaneseq
        %v4715 = vshrl.u32 %v4714, 7
        %v4716 = vsub.s32 %v4297, %v4715
        %v4717 = vrot.slane %v4092, %v4716
        %v4718 = vsel %vm4302, %v4717, %v4713
        %v4719 = vlaneseq
        %v4720 = vshrl.u32 %v4719, 7
        %v4721 = vsub.s32 %v4304, %v4720
        %v4722 = vrot.slane %v4093, %v4721
        %v4723 = vsel %vm4309, %v4722, %v4718
        %v4724 = vlaneseq
        %v4725 = vshrl.u32 %v4724, 7
        %v4726 = vsub.s32 %v4311, %v4725
        %v4727 = vrot.slane %v4094, %v4726
        %v4728 = vsel %vm4316, %v4727, %v4723
        %v4729 = vlaneseq
        %v4730 = vshrl.u32 %v4729, 7
        %v4731 = vsub.s32 %v4318, %v4730
        %v4732 = vrot.slane %v4095, %v4731
        %v4733 = vsel %vm4323, %v4732, %v4728
        %v4734 = vlaneseq
        %v4735 = vshrl.u32 %v4734, 7
        %v4736 = vsub.s32 %v4325, %v4735
        %v4737 = vrot.slane %v4096, %v4736
        %v4738 = vsel %vm4330, %v4737, %v4733
        %v4739 = vlaneseq
        %v4740 = vshrl.u32 %v4739, 7
        %v4741 = vsub.s32 %v4332, %v4740
        %v4742 = vrot.slane %v4097, %v4741
        %v4743 = vsel %vm4337, %v4742, %v4738
        %v4744 = vlaneseq
        %v4745 = vshrl.u32 %v4744, 7
        %v4746 = vsub.s32 %v4339, %v4745
        %v4747 = vrot.slane %v4098, %v4746
        %v4748 = vsel %vm4344, %v4747, %v4743
        %v4749 = vlaneseq
        %v4750 = vshrl.u32 %v4749, 7
        %v4751 = vsub.s32 %v4346, %v4750
        %v4752 = vrot.slane %v4099, %v4751
        %v4753 = vsel %vm4351, %v4752, %v4748
        %v4754 = vlaneseq
        %v4755 = vshrl.u32 %v4754, 7
        %v4756 = vsub.s32 %v4353, %v4755
        %v4757 = vrot.slane %v4100, %v4756
        %v4758 = vsel %vm4358, %v4757, %v4753
        %v4759 = vlaneseq
        %v4760 = vshrl.u32 %v4759, 7
        %v4761 = vsub.s32 %v4360, %v4760
        %v4762 = vrot.slane %v4101, %v4761
        %v4763 = vsel %vm4365, %v4762, %v4758
        %v4764 = vlaneseq
        %v4765 = vshrl.u32 %v4764, 7
        %v4766 = vsub.s32 %v4367, %v4765
        %v4767 = vrot.slane %v4102, %v4766
        %v4768 = vsel %vm4372, %v4767, %v4763
        %v4769 = vlaneseq
        %v4770 = vshrl.u32 %v4769, 7
        %v4771 = vsub.s32 %v4264, %v4770
        %v4772 = vrot.slane %v4103, %v4771
        %v4773 = vlaneseq
        %v4774 = vshrl.u32 %v4773, 7
        %v4775 = vsub.s32 %v4269, %v4774
        %v4776 = vrot.slane %v4104, %v4775
        %v4777 = vsel %vm4274, %v4776, %v4772
        %v4778 = vlaneseq
        %v4779 = vshrl.u32 %v4778, 7
        %v4780 = vsub.s32 %v4276, %v4779
        %v4781 = vrot.slane %v4105, %v4780
        %v4782 = vsel %vm4281, %v4781, %v4777
        %v4783 = vlaneseq
        %v4784 = vshrl.u32 %v4783, 7
        %v4785 = vsub.s32 %v4283, %v4784
        %v4786 = vrot.slane %v4106, %v4785
        %v4787 = vsel %vm4288, %v4786, %v4782
        %v4788 = vlaneseq
        %v4789 = vshrl.u32 %v4788, 7
        %v4790 = vsub.s32 %v4290, %v4789
        %v4791 = vrot.slane %v4107, %v4790
        %v4792 = vsel %vm4295, %v4791, %v4787
        %v4793 = vlaneseq
        %v4794 = vshrl.u32 %v4793, 7
        %v4795 = vsub.s32 %v4297, %v4794
        %v4796 = vrot.slane %v4108, %v4795
        %v4797 = vsel %vm4302, %v4796, %v4792
        %v4798 = vlaneseq
        %v4799 = vshrl.u32 %v4798, 7
        %v4800 = vsub.s32 %v4304, %v4799
        %v4801 = vrot.slane %v4109, %v4800
        %v4802 = vsel %vm4309, %v4801, %v4797
        %v4803 = vlaneseq
        %v4804 = vshrl.u32 %v4803, 7
        %v4805 = vsub.s32 %v4311, %v4804
        %v4806 = vrot.slane %v4110, %v4805
        %v4807 = vsel %vm4316, %v4806, %v4802
        %v4808 = vlaneseq
        %v4809 = vshrl.u32 %v4808, 7
        %v4810 = vsub.s32 %v4318, %v4809
        %v4811 = vrot.slane %v4111, %v4810
        %v4812 = vsel %vm4323, %v4811, %v4807
        %v4813 = vlaneseq
        %v4814 = vshrl.u32 %v4813, 7
        %v4815 = vsub.s32 %v4325, %v4814
        %v4816 = vrot.slane %v4112, %v4815
        %v4817 = vsel %vm4330, %v4816, %v4812
        %v4818 = vlaneseq
        %v4819 = vshrl.u32 %v4818, 7
        %v4820 = vsub.s32 %v4332, %v4819
        %v4821 = vrot.slane %v4113, %v4820
        %v4822 = vsel %vm4337, %v4821, %v4817
        %v4823 = vlaneseq
        %v4824 = vshrl.u32 %v4823, 7
        %v4825 = vsub.s32 %v4339, %v4824
        %v4826 = vrot.slane %v4114, %v4825
        %v4827 = vsel %vm4344, %v4826, %v4822
        %v4828 = vlaneseq
        %v4829 = vshrl.u32 %v4828, 7
        %v4830 = vsub.s32 %v4346, %v4829
        %v4831 = vrot.slane %v4115, %v4830
        %v4832 = vsel %vm4351, %v4831, %v4827
        %v4833 = vlaneseq
        %v4834 = vshrl.u32 %v4833, 7
        %v4835 = vsub.s32 %v4353, %v4834
        %v4836 = vrot.slane %v4116, %v4835
        %v4837 = vsel %vm4358, %v4836, %v4832
        %v4838 = vlaneseq
        %v4839 = vshrl.u32 %v4838, 7
        %v4840 = vsub.s32 %v4360, %v4839
        %v4841 = vrot.slane %v4117, %v4840
        %v4842 = vsel %vm4365, %v4841, %v4837
        %v4843 = vlaneseq
        %v4844 = vshrl.u32 %v4843, 7
        %v4845 = vsub.s32 %v4367, %v4844
        %v4846 = vrot.slane %v4118, %v4845
        %v4847 = vsel %vm4372, %v4846, %v4842
        %v4848 = vlaneseq
        %v4849 = vshrl.u32 %v4848, 7
        %v4850 = vsub.s32 %v4264, %v4849
        %v4851 = vrot.slane %v4119, %v4850
        %v4852 = vlaneseq
        %v4853 = vshrl.u32 %v4852, 7
        %v4854 = vsub.s32 %v4269, %v4853
        %v4855 = vrot.slane %v4120, %v4854
        %v4856 = vsel %vm4274, %v4855, %v4851
        %v4857 = vlaneseq
        %v4858 = vshrl.u32 %v4857, 7
        %v4859 = vsub.s32 %v4276, %v4858
        %v4860 = vrot.slane %v4121, %v4859
        %v4861 = vsel %vm4281, %v4860, %v4856
        %v4862 = vlaneseq
        %v4863 = vshrl.u32 %v4862, 7
        %v4864 = vsub.s32 %v4283, %v4863
        %v4865 = vrot.slane %v4122, %v4864
        %v4866 = vsel %vm4288, %v4865, %v4861
        %v4867 = vlaneseq
        %v4868 = vshrl.u32 %v4867, 7
        %v4869 = vsub.s32 %v4290, %v4868
        %v4870 = vrot.slane %v4123, %v4869
        %v4871 = vsel %vm4295, %v4870, %v4866
        %v4872 = vlaneseq
        %v4873 = vshrl.u32 %v4872, 7
        %v4874 = vsub.s32 %v4297, %v4873
        %v4875 = vrot.slane %v4124, %v4874
        %v4876 = vsel %vm4302, %v4875, %v4871
        %v4877 = vlaneseq
        %v4878 = vshrl.u32 %v4877, 7
        %v4879 = vsub.s32 %v4304, %v4878
        %v4880 = vrot.slane %v4125, %v4879
        %v4881 = vsel %vm4309, %v4880, %v4876
        %v4882 = vlaneseq
        %v4883 = vshrl.u32 %v4882, 7
        %v4884 = vsub.s32 %v4311, %v4883
        %v4885 = vrot.slane %v4126, %v4884
        %v4886 = vsel %vm4316, %v4885, %v4881
        %v4887 = vlaneseq
        %v4888 = vshrl.u32 %v4887, 7
        %v4889 = vsub.s32 %v4318, %v4888
        %v4890 = vrot.slane %v4127, %v4889
        %v4891 = vsel %vm4323, %v4890, %v4886
        %v4892 = vlaneseq
        %v4893 = vshrl.u32 %v4892, 7
        %v4894 = vsub.s32 %v4325, %v4893
        %v4895 = vrot.slane %v4128, %v4894
        %v4896 = vsel %vm4330, %v4895, %v4891
        %v4897 = vlaneseq
        %v4898 = vshrl.u32 %v4897, 7
        %v4899 = vsub.s32 %v4332, %v4898
        %v4900 = vrot.slane %v4129, %v4899
        %v4901 = vsel %vm4337, %v4900, %v4896
        %v4902 = vlaneseq
        %v4903 = vshrl.u32 %v4902, 7
        %v4904 = vsub.s32 %v4339, %v4903
        %v4905 = vrot.slane %v4130, %v4904
        %v4906 = vsel %vm4344, %v4905, %v4901
        %v4907 = vlaneseq
        %v4908 = vshrl.u32 %v4907, 7
        %v4909 = vsub.s32 %v4346, %v4908
        %v4910 = vrot.slane %v4131, %v4909
        %v4911 = vsel %vm4351, %v4910, %v4906
        %v4912 = vlaneseq
        %v4913 = vshrl.u32 %v4912, 7
        %v4914 = vsub.s32 %v4353, %v4913
        %v4915 = vrot.slane %v4132, %v4914
        %v4916 = vsel %vm4358, %v4915, %v4911
        %v4917 = vlaneseq
        %v4918 = vshrl.u32 %v4917, 7
        %v4919 = vsub.s32 %v4360, %v4918
        %v4920 = vrot.slane %v4133, %v4919
        %v4921 = vsel %vm4365, %v4920, %v4916
        %v4922 = vlaneseq
        %v4923 = vshrl.u32 %v4922, 7
        %v4924 = vsub.s32 %v4367, %v4923
        %v4925 = vrot.slane %v4134, %v4924
        %v4926 = vsel %vm4372, %v4925, %v4921
        %vm4927 = vcmask 1042434
        %v4928 = vsel %vm4927, %v4373, %v4373
        %vm4929 = vcmask 1043459
        %v4930 = vsel %vm4929, %v4373, %v4928
        %vm4931 = vcmask 1044484
        %v4932 = vsel %vm4931, %v4373, %v4930
        %vm4933 = vcmask 1045509
        %v4934 = vsel %vm4933, %v4373, %v4932
        %vm4935 = vcmask 1046534
        %v4936 = vsel %vm4935, %v4373, %v4934
        %vm4937 = vcmask 1047559
        %v4938 = vsel %vm4937, %v4373, %v4936
        %v4939 = vsel %vm4927, %v4452, %v4452
        %v4940 = vsel %vm4929, %v4452, %v4939
        %v4941 = vsel %vm4931, %v4452, %v4940
        %v4942 = vsel %vm4933, %v4452, %v4941
        %v4943 = vsel %vm4935, %v4452, %v4942
        %v4944 = vsel %vm4937, %v4452, %v4943
        %v4945 = vsel %vm4927, %v4531, %v4531
        %v4946 = vsel %vm4929, %v4531, %v4945
        %v4947 = vsel %vm4931, %v4531, %v4946
        %v4948 = vsel %vm4933, %v4531, %v4947
        %v4949 = vsel %vm4935, %v4531, %v4948
        %v4950 = vsel %vm4937, %v4531, %v4949
        %v4951 = vsel %vm4927, %v4610, %v4610
        %v4952 = vsel %vm4929, %v4610, %v4951
        %v4953 = vsel %vm4931, %v4610, %v4952
        %v4954 = vsel %vm4933, %v4610, %v4953
        %v4955 = vsel %vm4935, %v4610, %v4954
        %v4956 = vsel %vm4937, %v4610, %v4955
        %v4957 = vsel %vm4927, %v4689, %v4689
        %v4958 = vsel %vm4929, %v4689, %v4957
        %v4959 = vsel %vm4931, %v4689, %v4958
        %v4960 = vsel %vm4933, %v4689, %v4959
        %v4961 = vsel %vm4935, %v4689, %v4960
        %v4962 = vsel %vm4937, %v4689, %v4961
        %v4963 = vsel %vm4927, %v4768, %v4768
        %v4964 = vsel %vm4929, %v4768, %v4963
        %v4965 = vsel %vm4931, %v4768, %v4964
        %v4966 = vsel %vm4933, %v4768, %v4965
        %v4967 = vsel %vm4935, %v4768, %v4966
        %v4968 = vsel %vm4937, %v4768, %v4967
        %v4969 = vsel %vm4927, %v4847, %v4847
        %v4970 = vsel %vm4929, %v4847, %v4969
        %v4971 = vsel %vm4931, %v4847, %v4970
        %v4972 = vsel %vm4933, %v4847, %v4971
        %v4973 = vsel %vm4935, %v4847, %v4972
        %v4974 = vsel %vm4937, %v4847, %v4973
        %v4975 = vsel %vm4927, %v4926, %v4926
        %v4976 = vsel %vm4929, %v4926, %v4975
        %v4977 = vsel %vm4931, %v4926, %v4976
        %v4978 = vsel %vm4933, %v4926, %v4977
        %v4979 = vsel %vm4935, %v4926, %v4978
        %v4980 = vsel %vm4937, %v4926, %v4979
        %v4989 = vmul.f32 %v3870, %v4938
        %v4990 = vmul.f32 %v3872, %v4944
        %v4991 = vmul.f32 %v3874, %v4938
        %v4992 = vmul.f32 %v3876, %v4944
        %v4993 = vmul.f32 %v3913, %v4950
        %v4994 = vmul.f32 %v3915, %v4956
        %v4995 = vmul.f32 %v3917, %v4950
        %v4996 = vmul.f32 %v3919, %v4956
        %v4997 = vmul.f32 %v3956, %v4962
        %v4998 = vmul.f32 %v3958, %v4968
        %v4999 = vmul.f32 %v3960, %v4962
        %v5000 = vmul.f32 %v3962, %v4968
        %v5001 = vmul.f32 %v3999, %v4974
        %v5002 = vmul.f32 %v4001, %v4980
        %v5003 = vmul.f32 %v4003, %v4974
        %v5004 = vmul.f32 %v4005, %v4980
        %v5005 = vadd.f32 %v4989, %v4990
        %v5006 = vadd.f32 %v5005, %v4991
        %v5007 = vadd.f32 %v5006, %v4992
        %v5008 = vadd.f32 %v5007, %v4993
        %v5009 = vadd.f32 %v5008, %v4994
        %v5010 = vadd.f32 %v5009, %v4995
        %v5011 = vadd.f32 %v5010, %v4996
        %v5012 = vadd.f32 %v5011, %v4997
        %v5013 = vadd.f32 %v5012, %v4998
        %v5014 = vadd.f32 %v5013, %v4999
        %v5015 = vadd.f32 %v5014, %v5000
        %v5016 = vadd.f32 %v5015, %v5001
        %v5017 = vadd.f32 %v5016, %v5002
        %v5018 = vadd.f32 %v5017, %v5003
        %v5019 = vadd.f32 %v5018, %v5004
        %5020 = vadd.xlane.f32.xlu0 %v5019
        %v5021 = vpop.xlane.xlu0 %5020
        %v5022 = vrot.slane %v5021, 4
        %v5023 = vadd.f32 %v5021, %v5022
        %v5024 = vrot.slane %v5023, 2
        %v5025 = vadd.f32 %v5023, %v5024
        %v5026 = vrot.slane %v5025, 1
        %v5027 = vadd.f32 %v5025, %v5026
        %s5028 = vtos %v5027
        %v5029 = vmul.f32 %v4989, %v4989
        %v5030 = vmul.f32 %v4990, %v4990
        %v5031 = vmul.f32 %v4991, %v4991
        %v5032 = vmul.f32 %v4992, %v4992
        %v5033 = vmul.f32 %v4993, %v4993
        %v5034 = vmul.f32 %v4994, %v4994
        %v5035 = vmul.f32 %v4995, %v4995
        %v5036 = vmul.f32 %v4996, %v4996
        %v5037 = vmul.f32 %v4997, %v4997
        %v5038 = vmul.f32 %v4998, %v4998
        %v5039 = vmul.f32 %v4999, %v4999
        %v5040 = vmul.f32 %v5000, %v5000
        %v5041 = vmul.f32 %v5001, %v5001
        %v5042 = vmul.f32 %v5002, %v5002
        %v5043 = vmul.f32 %v5003, %v5003
        %v5044 = vmul.f32 %v5004, %v5004
        %v5045 = vadd.f32 %v5029, %v5030
        %v5046 = vadd.f32 %v5045, %v5031
        %v5047 = vadd.f32 %v5046, %v5032
        %v5048 = vadd.f32 %v5047, %v5033
        %v5049 = vadd.f32 %v5048, %v5034
        %v5050 = vadd.f32 %v5049, %v5035
        %v5051 = vadd.f32 %v5050, %v5036
        %v5052 = vadd.f32 %v5051, %v5037
        %v5053 = vadd.f32 %v5052, %v5038
        %v5054 = vadd.f32 %v5053, %v5039
        %v5055 = vadd.f32 %v5054, %v5040
        %v5056 = vadd.f32 %v5055, %v5041
        %v5057 = vadd.f32 %v5056, %v5042
        %v5058 = vadd.f32 %v5057, %v5043
        %v5059 = vadd.f32 %v5058, %v5044
        %5060 = vadd.xlane.f32.xlu0 %v5059
        %v5061 = vpop.xlane.xlu0 %5060
        %v5062 = vrot.slane %v5061, 4
        %v5063 = vadd.f32 %v5061, %v5062
        %v5064 = vrot.slane %v5063, 2
        %v5065 = vadd.f32 %v5063, %v5064
        %v5066 = vrot.slane %v5065, 1
        %v5067 = vadd.f32 %v5065, %v5066
        %s5068 = vtos %v5067
        %s5069 = smul.f32 %s5028, 6.1035156e-05
        %s5070 = smul.f32 %s5068, 6.1035156e-05
        %s5071 = smul.f32 %s5069, %s5069
        %s5072 = ssub.f32 %s5070, %s5071
        %s5073 = sadd.f32 %s5072, 1e-05
        %v5074 = vstv %s5073
        %v5075 = vrsqrt.pop %v5074
        %s5076 = vtos %v5075
        %v5077 = vstv %s5076
        %v5078 = vmul.f32 %v1006, %v5077
        %v5079 = vmul.f32 %v1007, %v5077
        %v5080 = vmul.f32 %v1008, %v5077
        %v5081 = vmul.f32 %v1009, %v5077
        %v5082 = vmul.f32 %v1010, %v5077
        %v5083 = vmul.f32 %v1011, %v5077
        %v5084 = vmul.f32 %v1012, %v5077
        %v5085 = vmul.f32 %v1013, %v5077
        %v5086 = vmul.f32 %v1014, %v5077
        %v5087 = vmul.f32 %v1015, %v5077
        %v5088 = vmul.f32 %v1016, %v5077
        %v5089 = vmul.f32 %v1017, %v5077
        %v5090 = vmul.f32 %v1018, %v5077
        %v5091 = vmul.f32 %v1019, %v5077
        %v5092 = vmul.f32 %v1020, %v5077
        %v5093 = vmul.f32 %v1021, %v5077
        %v5094 = vstv %s5069
        %v5095 = vsub.f32 %v4989, %v5094
        %v5096 = vsub.f32 %v4990, %v5094
        %v5097 = vsub.f32 %v4991, %v5094
        %v5098 = vsub.f32 %v4992, %v5094
        %v5099 = vsub.f32 %v4993, %v5094
        %v5100 = vsub.f32 %v4994, %v5094
        %v5101 = vsub.f32 %v4995, %v5094
        %v5102 = vsub.f32 %v4996, %v5094
        %v5103 = vsub.f32 %v4997, %v5094
        %v5104 = vsub.f32 %v4998, %v5094
        %v5105 = vsub.f32 %v4999, %v5094
        %v5106 = vsub.f32 %v5000, %v5094
        %v5107 = vsub.f32 %v5001, %v5094
        %v5108 = vsub.f32 %v5002, %v5094
        %v5109 = vsub.f32 %v5003, %v5094
        %v5110 = vsub.f32 %v5004, %v5094
        %v5111 = vmul.f32 %v5095, %v5078
        %v5112 = vmul.f32 %v5096, %v5079
        %v5113 = vmul.f32 %v5097, %v5080
        %v5114 = vmul.f32 %v5098, %v5081
        %v5115 = vmul.f32 %v5099, %v5082
        %v5116 = vmul.f32 %v5100, %v5083
        %v5117 = vmul.f32 %v5101, %v5084
        %v5118 = vmul.f32 %v5102, %v5085
        %v5119 = vmul.f32 %v5103, %v5086
        %v5120 = vmul.f32 %v5104, %v5087
        %v5121 = vmul.f32 %v5105, %v5088
        %v5122 = vmul.f32 %v5106, %v5089
        %v5123 = vmul.f32 %v5107, %v5090
        %v5124 = vmul.f32 %v5108, %v5091
        %v5125 = vmul.f32 %v5109, %v5092
        %v5126 = vmul.f32 %v5110, %v5093
        %v5127 = vadd.f32 %v5111, %v1022
        %v5128 = vadd.f32 %v5112, %v1023
        %v5129 = vadd.f32 %v5113, %v1024
        %v5130 = vadd.f32 %v5114, %v1025
        %v5131 = vadd.f32 %v5115, %v1026
        %v5132 = vadd.f32 %v5116, %v1027
        %v5133 = vadd.f32 %v5117, %v1028
        %v5134 = vadd.f32 %v5118, %v1029
        %v5135 = vadd.f32 %v5119, %v1030
        %v5136 = vadd.f32 %v5120, %v1031
        %v5137 = vadd.f32 %v5121, %v1032
        %v5138 = vadd.f32 %v5122, %v1033
        %v5139 = vadd.f32 %v5123, %v1034
        %v5140 = vadd.f32 %v5124, %v1035
        %v5141 = vadd.f32 %v5125, %v1036
        %v5142 = vadd.f32 %v5126, %v1037
        %v5143 = vadd.f32 %v5127, %v331
        %v5144 = vadd.f32 %v5128, %v332
        %v5145 = vadd.f32 %v5129, %v335
        %v5146 = vadd.f32 %v5130, %v336
        %v5147 = vadd.f32 %v5131, %v339
        %v5148 = vadd.f32 %v5132, %v340
        %v5149 = vadd.f32 %v5133, %v343
        %v5150 = vadd.f32 %v5134, %v344
        %v5151 = vadd.f32 %v5135, %v347
        %v5152 = vadd.f32 %v5136, %v348
        %v5153 = vadd.f32 %v5137, %v351
        %v5154 = vadd.f32 %v5138, %v352
        %v5155 = vadd.f32 %v5139, %v355
        %v5156 = vadd.f32 %v5140, %v356
        %v5157 = vadd.f32 %v5141, %v359
        %v5158 = vadd.f32 %v5142, %v360
        %5159 = vst [vmem:[%s327] sm:$0xff] %v5143
        %5160 = vst [vmem:[%s327 + $0x8] sm:$0xff] %v5144
        %5161 = vst [vmem:[%s327 + $0x20] sm:$0xff] %v5145
        %5162 = vst [vmem:[%s327 + $0x28] sm:$0xff] %v5146
        %5163 = vst [vmem:[%s327 + $0x40] sm:$0xff] %v5147
        %5164 = vst [vmem:[%s327 + $0x48] sm:$0xff] %v5148
        %5165 = vst [vmem:[%s327 + $0x60] sm:$0xff] %v5149
        %5166 = vst [vmem:[%s327 + $0x68] sm:$0xff] %v5150
        %5167 = vst [vmem:[%s327 + $0x80] sm:$0xff] %v5151
        %5168 = vst [vmem:[%s327 + $0x88] sm:$0xff] %v5152
        %5169 = vst [vmem:[%s327 + $0xa0] sm:$0xff] %v5153
        %5170 = vst [vmem:[%s327 + $0xa8] sm:$0xff] %v5154
        %5171 = vst [vmem:[%s327 + $0xc0] sm:$0xff] %v5155
        %5172 = vst [vmem:[%s327 + $0xc8] sm:$0xff] %v5156
        %5173 = vst [vmem:[%s327 + $0xe0] sm:$0xff] %v5157
        %5174 = vst [vmem:[%s327 + $0xe8] sm:$0xff] %v5158
        %5175 = vxpose.xlu0.c.b16.start [1/8] %v952, 128
        %5176 = vxpose.xlu0.c.b16.cont [2/8] %v1062, 128
        %5177 = vxpose.xlu0.c.b16.cont [3/8] 0, 128
        %5178 = vxpose.xlu0.c.b16.cont [4/8] 0, 128
        %5179 = vxpose.xlu0.c.b16.cont [5/8] 0, 128
        %5180 = vxpose.xlu0.c.b16.cont [6/8] 0, 128
        %5181 = vxpose.xlu0.c.b16.cont [7/8] 0, 128
        %5182 = vxpose.xlu0.c.b16.end [8/8] 0, 128
        %v5183 = vpop.trf.xlu0
        %v5184 = vpop.trf.xlu0
        %v5185 = vpop.trf.xlu0
        %v5186 = vpop.trf.xlu0
        %v5187 = vpop.trf.xlu0
        %v5188 = vpop.trf.xlu0
        %v5189 = vpop.trf.xlu0
        %v5190 = vpop.trf.xlu0
        %5191 = vxpose.xlu0.c.b16.start [1/8] %v953, 128
        %5192 = vxpose.xlu0.c.b16.cont [2/8] %v1063, 128
        %5193 = vxpose.xlu0.c.b16.cont [3/8] 0, 128
        %5194 = vxpose.xlu0.c.b16.cont [4/8] 0, 128
        %5195 = vxpose.xlu0.c.b16.cont [5/8] 0, 128
        %5196 = vxpose.xlu0.c.b16.cont [6/8] 0, 128
        %5197 = vxpose.xlu0.c.b16.cont [7/8] 0, 128
        %5198 = vxpose.xlu0.c.b16.end [8/8] 0, 128
        %v5199 = vpop.trf.xlu0
        %v5200 = vpop.trf.xlu0
        %v5201 = vpop.trf.xlu0
        %v5202 = vpop.trf.xlu0
        %v5203 = vpop.trf.xlu0
        %v5204 = vpop.trf.xlu0
        %v5205 = vpop.trf.xlu0
        %v5206 = vpop.trf.xlu0
        %v5208 = vsel %vm1110, %v5183, 0
        %v5211 = vsel %vm1110, %v5184, 0
        %v5214 = vsel %vm1110, %v5185, 0
        %v5217 = vsel %vm1110, %v5186, 0
        %v5220 = vsel %vm1110, %v5187, 0
        %v5223 = vsel %vm1110, %v5188, 0
        %v5226 = vsel %vm1110, %v5189, 0
        %v5229 = vsel %vm1110, %v5190, 0
        %v5232 = vsel %vm1110, %v5199, 0
        %v5235 = vsel %vm1110, %v5200, 0
        %v5238 = vsel %vm1110, %v5201, 0
        %v5241 = vsel %vm1110, %v5202, 0
        %v5244 = vsel %vm1110, %v5203, 0
        %v5247 = vsel %vm1110, %v5204, 0
        %v5250 = vsel %vm1110, %v5205, 0
        %v5253 = vsel %vm1110, %v5206, 0
        %5255 = vmatprep.subr.bf16.mxu0 %v969
        %5256 = vmatpush1.bf16.msra.mxu0 %v968
        %5257 = vmatprep.subr.bf16.mxu0 %v953
        %5258 = vmatpush1.bf16.msra.mxu0 %v952
        %5259 = vmatprep.subr.bf16.mxu0 0
        %5260 = vmatpush1.bf16.msra.mxu0 0
        %5261 = vmatprep.subr.bf16.mxu0 0
        %5262 = vmatpush1.bf16.msra.mxu0 0
        %5263 = vmatprep.subr.bf16.mxu0 0
        %5264 = vmatpush1.bf16.msra.mxu0 0
        %5265 = vmatprep.subr.bf16.mxu0 0
        %5266 = vmatpush1.bf16.msra.mxu0 0
        %5267 = vmatprep.subr.bf16.mxu0 0
        %5268 = vmatpush1.bf16.msra.mxu0 0
        %5269 = vmatprep.subr.bf16.mxu0 0
        %5270 = vmatpush1.bf16.msra.mxu0 0
        %5271 = vmatprep.subr.bf16.mxu0 0
        %5272 = vmatpush1.bf16.msra.mxu0 0
        %5273 = vmatprep.subr.bf16.mxu0 0
        %5274 = vmatpush1.bf16.msra.mxu0 0
        %5275 = vmatprep.subr.bf16.mxu0 0
        %5276 = vmatpush1.bf16.msra.mxu0 0
        %5277 = vmatprep.subr.bf16.mxu0 0
        %5278 = vmatpush1.bf16.msra.mxu0 0
        %5279 = vmatprep.subr.bf16.mxu0 0
        %5280 = vmatpush1.bf16.msra.mxu0 0
        %5281 = vmatprep.subr.bf16.mxu0 0
        %5282 = vmatpush1.bf16.msra.mxu0 0
        %5283 = vmatprep.subr.bf16.mxu0 0
        %5284 = vmatpush1.bf16.msra.mxu0 0
        %5285 = vmatprep.subr.bf16.mxu0 0
        %5286 = vmatpush1.bf16.msra.mxu0 0
        %5287 = vmatprep.mubr.bf16.mxu0 0
        %5288 = vmatmul.mubr.bf16.gmra.mrb[0].mxu0 %v5208
        %v5289 = vpop.f32.mrb[0].mxu0
        %v5290 = vadd.f32 0.0, %v5289
        %v5291 = vpop.f32.mrb[0].mxu0
        %v5292 = vadd.f32 0.0, %v5291
        %v5293 = vpop.f32.mrb[0].mxu0
        %v5294 = vadd.f32 0.0, %v5293
        %v5295 = vpop.f32.mrb[0].mxu0
        %v5296 = vadd.f32 0.0, %v5295
        %5297 = vmatprep.mubr.bf16.mxu0 0
        %5298 = vmatmul.mubr.bf16.gmra.mrb[0].mxu0 %v5211
        %v5299 = vpop.f32.mrb[0].mxu0
        %v5300 = vadd.f32 0.0, %v5299
        %v5301 = vpop.f32.mrb[0].mxu0
        %v5302 = vadd.f32 0.0, %v5301
        %v5303 = vpop.f32.mrb[0].mxu0
        %v5304 = vadd.f32 0.0, %v5303
        %v5305 = vpop.f32.mrb[0].mxu0
        %v5306 = vadd.f32 0.0, %v5305
        %5307 = vmatprep.mubr.bf16.mxu0 0
        %5308 = vmatmul.mubr.bf16.gmra.mrb[0].mxu0 %v5214
        %v5309 = vpop.f32.mrb[0].mxu0
        %v5310 = vadd.f32 0.0, %v5309
        %v5311 = vpop.f32.mrb[0].mxu0
        %v5312 = vadd.f32 0.0, %v5311
        %v5313 = vpop.f32.mrb[0].mxu0
        %v5314 = vadd.f32 0.0, %v5313
        %v5315 = vpop.f32.mrb[0].mxu0
        %v5316 = vadd.f32 0.0, %v5315
        %5317 = vmatprep.mubr.bf16.mxu0 0
        %5318 = vmatmul.mubr.bf16.gmra.mrb[0].mxu0 %v5217
        %v5319 = vpop.f32.mrb[0].mxu0
        %v5320 = vadd.f32 0.0, %v5319
        %v5321 = vpop.f32.mrb[0].mxu0
        %v5322 = vadd.f32 0.0, %v5321
        %v5323 = vpop.f32.mrb[0].mxu0
        %v5324 = vadd.f32 0.0, %v5323
        %v5325 = vpop.f32.mrb[0].mxu0
        %v5326 = vadd.f32 0.0, %v5325
        %5327 = vmatprep.mubr.bf16.mxu0 0
        %5328 = vmatmul.mubr.bf16.gmra.mrb[0].mxu0 %v5220
        %v5329 = vpop.f32.mrb[0].mxu0
        %v5330 = vadd.f32 0.0, %v5329
        %v5331 = vpop.f32.mrb[0].mxu0
        %v5332 = vadd.f32 0.0, %v5331
        %v5333 = vpop.f32.mrb[0].mxu0
        %v5334 = vadd.f32 0.0, %v5333
        %v5335 = vpop.f32.mrb[0].mxu0
        %v5336 = vadd.f32 0.0, %v5335
        %5337 = vmatprep.mubr.bf16.mxu0 0
        %5338 = vmatmul.mubr.bf16.gmra.mrb[0].mxu0 %v5223
        %v5339 = vpop.f32.mrb[0].mxu0
        %v5340 = vadd.f32 0.0, %v5339
        %v5341 = vpop.f32.mrb[0].mxu0
        %v5342 = vadd.f32 0.0, %v5341
        %v5343 = vpop.f32.mrb[0].mxu0
        %v5344 = vadd.f32 0.0, %v5343
        %v5345 = vpop.f32.mrb[0].mxu0
        %v5346 = vadd.f32 0.0, %v5345
        %5347 = vmatprep.mubr.bf16.mxu0 0
        %5348 = vmatmul.mubr.bf16.gmra.mrb[0].mxu0 %v5226
        %v5349 = vpop.f32.mrb[0].mxu0
        %v5350 = vadd.f32 0.0, %v5349
        %v5351 = vpop.f32.mrb[0].mxu0
        %v5352 = vadd.f32 0.0, %v5351
        %v5353 = vpop.f32.mrb[0].mxu0
        %v5354 = vadd.f32 0.0, %v5353
        %v5355 = vpop.f32.mrb[0].mxu0
        %v5356 = vadd.f32 0.0, %v5355
        %5357 = vmatprep.mubr.bf16.mxu0 0
        %5358 = vmatmul.mubr.bf16.gmra.mrb[0].mxu0 %v5229
        %v5359 = vpop.f32.mrb[0].mxu0
        %v5360 = vadd.f32 0.0, %v5359
        %v5361 = vpop.f32.mrb[0].mxu0
        %v5362 = vadd.f32 0.0, %v5361
        %v5363 = vpop.f32.mrb[0].mxu0
        %v5364 = vadd.f32 0.0, %v5363
        %v5365 = vpop.f32.mrb[0].mxu0
        %v5366 = vadd.f32 0.0, %v5365
        %5367 = vmatprep.mubr.bf16.mxu0 0
        %5368 = vmatmul.mubr.bf16.gmra.mrb[0].mxu0 %v5232
        %v5369 = vpop.f32.mrb[0].mxu0
        %v5370 = vadd.f32 0.0, %v5369
        %v5371 = vpop.f32.mrb[0].mxu0
        %v5372 = vadd.f32 0.0, %v5371
        %v5373 = vpop.f32.mrb[0].mxu0
        %v5374 = vadd.f32 0.0, %v5373
        %v5375 = vpop.f32.mrb[0].mxu0
        %v5376 = vadd.f32 0.0, %v5375
        %5377 = vmatprep.mubr.bf16.mxu0 0
        %5378 = vmatmul.mubr.bf16.gmra.mrb[0].mxu0 %v5235
        %v5379 = vpop.f32.mrb[0].mxu0
        %v5380 = vadd.f32 0.0, %v5379
        %v5381 = vpop.f32.mrb[0].mxu0
        %v5382 = vadd.f32 0.0, %v5381
        %v5383 = vpop.f32.mrb[0].mxu0
        %v5384 = vadd.f32 0.0, %v5383
        %v5385 = vpop.f32.mrb[0].mxu0
        %v5386 = vadd.f32 0.0, %v5385
        %5387 = vmatprep.mubr.bf16.mxu0 0
        %5388 = vmatmul.mubr.bf16.gmra.mrb[0].mxu0 %v5238
        %v5389 = vpop.f32.mrb[0].mxu0
        %v5390 = vadd.f32 0.0, %v5389
        %v5391 = vpop.f32.mrb[0].mxu0
        %v5392 = vadd.f32 0.0, %v5391
        %v5393 = vpop.f32.mrb[0].mxu0
        %v5394 = vadd.f32 0.0, %v5393
        %v5395 = vpop.f32.mrb[0].mxu0
        %v5396 = vadd.f32 0.0, %v5395
        %5397 = vmatprep.mubr.bf16.mxu0 0
        %5398 = vmatmul.mubr.bf16.gmra.mrb[0].mxu0 %v5241
        %v5399 = vpop.f32.mrb[0].mxu0
        %v5400 = vadd.f32 0.0, %v5399
        %v5401 = vpop.f32.mrb[0].mxu0
        %v5402 = vadd.f32 0.0, %v5401
        %v5403 = vpop.f32.mrb[0].mxu0
        %v5404 = vadd.f32 0.0, %v5403
        %v5405 = vpop.f32.mrb[0].mxu0
        %v5406 = vadd.f32 0.0, %v5405
        %5407 = vmatprep.mubr.bf16.mxu0 0
        %5408 = vmatmul.mubr.bf16.gmra.mrb[0].mxu0 %v5244
        %v5409 = vpop.f32.mrb[0].mxu0
        %v5410 = vadd.f32 0.0, %v5409
        %v5411 = vpop.f32.mrb[0].mxu0
        %v5412 = vadd.f32 0.0, %v5411
        %v5413 = vpop.f32.mrb[0].mxu0
        %v5414 = vadd.f32 0.0, %v5413
        %v5415 = vpop.f32.mrb[0].mxu0
        %v5416 = vadd.f32 0.0, %v5415
        %5417 = vmatprep.mubr.bf16.mxu0 0
        %5418 = vmatmul.mubr.bf16.gmra.mrb[0].mxu0 %v5247
        %v5419 = vpop.f32.mrb[0].mxu0
        %v5420 = vadd.f32 0.0, %v5419
        %v5421 = vpop.f32.mrb[0].mxu0
        %v5422 = vadd.f32 0.0, %v5421
        %v5423 = vpop.f32.mrb[0].mxu0
        %v5424 = vadd.f32 0.0, %v5423
        %v5425 = vpop.f32.mrb[0].mxu0
        %v5426 = vadd.f32 0.0, %v5425
        %5427 = vmatprep.mubr.bf16.mxu0 0
        %5428 = vmatmul.mubr.bf16.gmra.mrb[0].mxu0 %v5250
        %v5429 = vpop.f32.mrb[0].mxu0
        %v5430 = vadd.f32 0.0, %v5429
        %v5431 = vpop.f32.mrb[0].mxu0
        %v5432 = vadd.f32 0.0, %v5431
        %v5433 = vpop.f32.mrb[0].mxu0
        %v5434 = vadd.f32 0.0, %v5433
        %v5435 = vpop.f32.mrb[0].mxu0
        %v5436 = vadd.f32 0.0, %v5435
        %5437 = vmatprep.mubr.bf16.mxu0 0
        %5438 = vmatmul.mubr.bf16.gmra.mrb[0].mxu0 %v5253
        %v5439 = vpop.f32.mrb[0].mxu0
        %v5440 = vadd.f32 0.0, %v5439
        %v5441 = vpop.f32.mrb[0].mxu0
        %v5442 = vadd.f32 0.0, %v5441
        %v5443 = vpop.f32.mrb[0].mxu0
        %v5444 = vadd.f32 0.0, %v5443
        %v5445 = vpop.f32.mrb[0].mxu0
        %v5446 = vadd.f32 0.0, %v5445
        %5447 = vdwg.mxu0
        %5448 = vxpose.xlu0.c.b16.start [1/8] %v956, 128
        %5449 = vxpose.xlu0.c.b16.cont [2/8] %v1064, 128
        %5450 = vxpose.xlu0.c.b16.cont [3/8] 0, 128
        %5451 = vxpose.xlu0.c.b16.cont [4/8] 0, 128
        %5452 = vxpose.xlu0.c.b16.cont [5/8] 0, 128
        %5453 = vxpose.xlu0.c.b16.cont [6/8] 0, 128
        %5454 = vxpose.xlu0.c.b16.cont [7/8] 0, 128
        %5455 = vxpose.xlu0.c.b16.end [8/8] 0, 128
        %v5456 = vpop.trf.xlu0
        %v5457 = vpop.trf.xlu0
        %v5458 = vpop.trf.xlu0
        %v5459 = vpop.trf.xlu0
        %v5460 = vpop.trf.xlu0
        %v5461 = vpop.trf.xlu0
        %v5462 = vpop.trf.xlu0
        %v5463 = vpop.trf.xlu0
        %5464 = vxpose.xlu0.c.b16.start [1/8] %v957, 128
        %5465 = vxpose.xlu0.c.b16.cont [2/8] %v1065, 128
        %5466 = vxpose.xlu0.c.b16.cont [3/8] 0, 128
        %5467 = vxpose.xlu0.c.b16.cont [4/8] 0, 128
        %5468 = vxpose.xlu0.c.b16.cont [5/8] 0, 128
        %5469 = vxpose.xlu0.c.b16.cont [6/8] 0, 128
        %5470 = vxpose.xlu0.c.b16.cont [7/8] 0, 128
        %5471 = vxpose.xlu0.c.b16.end [8/8] 0, 128
        %v5472 = vpop.trf.xlu0
        %v5473 = vpop.trf.xlu0
        %v5474 = vpop.trf.xlu0
        %v5475 = vpop.trf.xlu0
        %v5476 = vpop.trf.xlu0
        %v5477 = vpop.trf.xlu0
        %v5478 = vpop.trf.xlu0
        %v5479 = vpop.trf.xlu0
        %v5481 = vsel %vm1110, %v5456, 0
        %v5484 = vsel %vm1110, %v5457, 0
        %v5487 = vsel %vm1110, %v5458, 0
        %v5490 = vsel %vm1110, %v5459, 0
        %v5493 = vsel %vm1110, %v5460, 0
        %v5496 = vsel %vm1110, %v5461, 0
        %v5499 = vsel %vm1110, %v5462, 0
        %v5502 = vsel %vm1110, %v5463, 0
        %v5505 = vsel %vm1110, %v5472, 0
        %v5508 = vsel %vm1110, %v5473, 0
        %v5511 = vsel %vm1110, %v5474, 0
        %v5514 = vsel %vm1110, %v5475, 0
        %v5517 = vsel %vm1110, %v5476, 0
        %v5520 = vsel %vm1110, %v5477, 0
        %v5523 = vsel %vm1110, %v5478, 0
        %v5526 = vsel %vm1110, %v5479, 0
        %5528 = vmatprep.subr.bf16.mxu0 %v973
        %5529 = vmatpush1.bf16.msra.mxu0 %v972
        %5530 = vmatprep.subr.bf16.mxu0 %v957
        %5531 = vmatpush1.bf16.msra.mxu0 %v956
        %5532 = vmatprep.subr.bf16.mxu0 0
        %5533 = vmatpush1.bf16.msra.mxu0 0
        %5534 = vmatprep.subr.bf16.mxu0 0
        %5535 = vmatpush1.bf16.msra.mxu0 0
        %5536 = vmatprep.subr.bf16.mxu0 0
        %5537 = vmatpush1.bf16.msra.mxu0 0
        %5538 = vmatprep.subr.bf16.mxu0 0
        %5539 = vmatpush1.bf16.msra.mxu0 0
        %5540 = vmatprep.subr.bf16.mxu0 0
        %5541 = vmatpush1.bf16.msra.mxu0 0
        %5542 = vmatprep.subr.bf16.mxu0 0
        %5543 = vmatpush1.bf16.msra.mxu0 0
        %5544 = vmatprep.subr.bf16.mxu0 0
        %5545 = vmatpush1.bf16.msra.mxu0 0
        %5546 = vmatprep.subr.bf16.mxu0 0
        %5547 = vmatpush1.bf16.msra.mxu0 0
        %5548 = vmatprep.subr.bf16.mxu0 0
        %5549 = vmatpush1.bf16.msra.mxu0 0
        %5550 = vmatprep.subr.bf16.mxu0 0
        %5551 = vmatpush1.bf16.msra.mxu0 0
        %5552 = vmatprep.subr.bf16.mxu0 0
        %5553 = vmatpush1.bf16.msra.mxu0 0
        %5554 = vmatprep.subr.bf16.mxu0 0
        %5555 = vmatpush1.bf16.msra.mxu0 0
        %5556 = vmatprep.subr.bf16.mxu0 0
        %5557 = vmatpush1.bf16.msra.mxu0 0
        %5558 = vmatprep.subr.bf16.mxu0 0
        %5559 = vmatpush1.bf16.msra.mxu0 0
        %5560 = vmatprep.mubr.bf16.mxu0 0
        %5561 = vmatmul.mubr.bf16.gmra.mrb[0].mxu0 %v5481
        %v5562 = vpop.f32.mrb[0].mxu0
        %v5563 = vadd.f32 0.0, %v5562
        %v5564 = vpop.f32.mrb[0].mxu0
        %v5565 = vadd.f32 0.0, %v5564
        %v5566 = vpop.f32.mrb[0].mxu0
        %v5567 = vadd.f32 0.0, %v5566
        %v5568 = vpop.f32.mrb[0].mxu0
        %v5569 = vadd.f32 0.0, %v5568
        %5570 = vmatprep.mubr.bf16.mxu0 0
        %5571 = vmatmul.mubr.bf16.gmra.mrb[0].mxu0 %v5484
        %v5572 = vpop.f32.mrb[0].mxu0
        %v5573 = vadd.f32 0.0, %v5572
        %v5574 = vpop.f32.mrb[0].mxu0
        %v5575 = vadd.f32 0.0, %v5574
        %v5576 = vpop.f32.mrb[0].mxu0
        %v5577 = vadd.f32 0.0, %v5576
        %v5578 = vpop.f32.mrb[0].mxu0
        %v5579 = vadd.f32 0.0, %v5578
        %5580 = vmatprep.mubr.bf16.mxu0 0
        %5581 = vmatmul.mubr.bf16.gmra.mrb[0].mxu0 %v5487
        %v5582 = vpop.f32.mrb[0].mxu0
        %v5583 = vadd.f32 0.0, %v5582
        %v5584 = vpop.f32.mrb[0].mxu0
        %v5585 = vadd.f32 0.0, %v5584
        %v5586 = vpop.f32.mrb[0].mxu0
        %v5587 = vadd.f32 0.0, %v5586
        %v5588 = vpop.f32.mrb[0].mxu0
        %v5589 = vadd.f32 0.0, %v5588
        %5590 = vmatprep.mubr.bf16.mxu0 0
        %5591 = vmatmul.mubr.bf16.gmra.mrb[0].mxu0 %v5490
        %v5592 = vpop.f32.mrb[0].mxu0
        %v5593 = vadd.f32 0.0, %v5592
        %v5594 = vpop.f32.mrb[0].mxu0
        %v5595 = vadd.f32 0.0, %v5594
        %v5596 = vpop.f32.mrb[0].mxu0
        %v5597 = vadd.f32 0.0, %v5596
        %v5598 = vpop.f32.mrb[0].mxu0
        %v5599 = vadd.f32 0.0, %v5598
        %5600 = vmatprep.mubr.bf16.mxu0 0
        %5601 = vmatmul.mubr.bf16.gmra.mrb[0].mxu0 %v5493
        %v5602 = vpop.f32.mrb[0].mxu0
        %v5603 = vadd.f32 0.0, %v5602
        %v5604 = vpop.f32.mrb[0].mxu0
        %v5605 = vadd.f32 0.0, %v5604
        %v5606 = vpop.f32.mrb[0].mxu0
        %v5607 = vadd.f32 0.0, %v5606
        %v5608 = vpop.f32.mrb[0].mxu0
        %v5609 = vadd.f32 0.0, %v5608
        %5610 = vmatprep.mubr.bf16.mxu0 0
        %5611 = vmatmul.mubr.bf16.gmra.mrb[0].mxu0 %v5496
        %v5612 = vpop.f32.mrb[0].mxu0
        %v5613 = vadd.f32 0.0, %v5612
        %v5614 = vpop.f32.mrb[0].mxu0
        %v5615 = vadd.f32 0.0, %v5614
        %v5616 = vpop.f32.mrb[0].mxu0
        %v5617 = vadd.f32 0.0, %v5616
        %v5618 = vpop.f32.mrb[0].mxu0
        %v5619 = vadd.f32 0.0, %v5618
        %5620 = vmatprep.mubr.bf16.mxu0 0
        %5621 = vmatmul.mubr.bf16.gmra.mrb[0].mxu0 %v5499
        %v5622 = vpop.f32.mrb[0].mxu0
        %v5623 = vadd.f32 0.0, %v5622
        %v5624 = vpop.f32.mrb[0].mxu0
        %v5625 = vadd.f32 0.0, %v5624
        %v5626 = vpop.f32.mrb[0].mxu0
        %v5627 = vadd.f32 0.0, %v5626
        %v5628 = vpop.f32.mrb[0].mxu0
        %v5629 = vadd.f32 0.0, %v5628
        %5630 = vmatprep.mubr.bf16.mxu0 0
        %5631 = vmatmul.mubr.bf16.gmra.mrb[0].mxu0 %v5502
        %v5632 = vpop.f32.mrb[0].mxu0
        %v5633 = vadd.f32 0.0, %v5632
        %v5634 = vpop.f32.mrb[0].mxu0
        %v5635 = vadd.f32 0.0, %v5634
        %v5636 = vpop.f32.mrb[0].mxu0
        %v5637 = vadd.f32 0.0, %v5636
        %v5638 = vpop.f32.mrb[0].mxu0
        %v5639 = vadd.f32 0.0, %v5638
        %5640 = vmatprep.mubr.bf16.mxu0 0
        %5641 = vmatmul.mubr.bf16.gmra.mrb[0].mxu0 %v5505
        %v5642 = vpop.f32.mrb[0].mxu0
        %v5643 = vadd.f32 0.0, %v5642
        %v5644 = vpop.f32.mrb[0].mxu0
        %v5645 = vadd.f32 0.0, %v5644
        %v5646 = vpop.f32.mrb[0].mxu0
        %v5647 = vadd.f32 0.0, %v5646
        %v5648 = vpop.f32.mrb[0].mxu0
        %v5649 = vadd.f32 0.0, %v5648
        %5650 = vmatprep.mubr.bf16.mxu0 0
        %5651 = vmatmul.mubr.bf16.gmra.mrb[0].mxu0 %v5508
        %v5652 = vpop.f32.mrb[0].mxu0
        %v5653 = vadd.f32 0.0, %v5652
        %v5654 = vpop.f32.mrb[0].mxu0
        %v5655 = vadd.f32 0.0, %v5654
        %v5656 = vpop.f32.mrb[0].mxu0
        %v5657 = vadd.f32 0.0, %v5656
        %v5658 = vpop.f32.mrb[0].mxu0
        %v5659 = vadd.f32 0.0, %v5658
        %5660 = vmatprep.mubr.bf16.mxu0 0
        %5661 = vmatmul.mubr.bf16.gmra.mrb[0].mxu0 %v5511
        %v5662 = vpop.f32.mrb[0].mxu0
        %v5663 = vadd.f32 0.0, %v5662
        %v5664 = vpop.f32.mrb[0].mxu0
        %v5665 = vadd.f32 0.0, %v5664
        %v5666 = vpop.f32.mrb[0].mxu0
        %v5667 = vadd.f32 0.0, %v5666
        %v5668 = vpop.f32.mrb[0].mxu0
        %v5669 = vadd.f32 0.0, %v5668
        %5670 = vmatprep.mubr.bf16.mxu0 0
        %5671 = vmatmul.mubr.bf16.gmra.mrb[0].mxu0 %v5514
        %v5672 = vpop.f32.mrb[0].mxu0
        %v5673 = vadd.f32 0.0, %v5672
        %v5674 = vpop.f32.mrb[0].mxu0
        %v5675 = vadd.f32 0.0, %v5674
        %v5676 = vpop.f32.mrb[0].mxu0
        %v5677 = vadd.f32 0.0, %v5676
        %v5678 = vpop.f32.mrb[0].mxu0
        %v5679 = vadd.f32 0.0, %v5678
        %5680 = vmatprep.mubr.bf16.mxu0 0
        %5681 = vmatmul.mubr.bf16.gmra.mrb[0].mxu0 %v5517
        %v5682 = vpop.f32.mrb[0].mxu0
        %v5683 = vadd.f32 0.0, %v5682
        %v5684 = vpop.f32.mrb[0].mxu0
        %v5685 = vadd.f32 0.0, %v5684
        %v5686 = vpop.f32.mrb[0].mxu0
        %v5687 = vadd.f32 0.0, %v5686
        %v5688 = vpop.f32.mrb[0].mxu0
        %v5689 = vadd.f32 0.0, %v5688
        %5690 = vmatprep.mubr.bf16.mxu0 0
        %5691 = vmatmul.mubr.bf16.gmra.mrb[0].mxu0 %v5520
        %v5692 = vpop.f32.mrb[0].mxu0
        %v5693 = vadd.f32 0.0, %v5692
        %v5694 = vpop.f32.mrb[0].mxu0
        %v5695 = vadd.f32 0.0, %v5694
        %v5696 = vpop.f32.mrb[0].mxu0
        %v5697 = vadd.f32 0.0, %v5696
        %v5698 = vpop.f32.mrb[0].mxu0
        %v5699 = vadd.f32 0.0, %v5698
        %5700 = vmatprep.mubr.bf16.mxu0 0
        %5701 = vmatmul.mubr.bf16.gmra.mrb[0].mxu0 %v5523
        %v5702 = vpop.f32.mrb[0].mxu0
        %v5703 = vadd.f32 0.0, %v5702
        %v5704 = vpop.f32.mrb[0].mxu0
        %v5705 = vadd.f32 0.0, %v5704
        %v5706 = vpop.f32.mrb[0].mxu0
        %v5707 = vadd.f32 0.0, %v5706
        %v5708 = vpop.f32.mrb[0].mxu0
        %v5709 = vadd.f32 0.0, %v5708
        %5710 = vmatprep.mubr.bf16.mxu0 0
        %5711 = vmatmul.mubr.bf16.gmra.mrb[0].mxu0 %v5526
        %v5712 = vpop.f32.mrb[0].mxu0
        %v5713 = vadd.f32 0.0, %v5712
        %v5714 = vpop.f32.mrb[0].mxu0
        %v5715 = vadd.f32 0.0, %v5714
        %v5716 = vpop.f32.mrb[0].mxu0
        %v5717 = vadd.f32 0.0, %v5716
        %v5718 = vpop.f32.mrb[0].mxu0
        %v5719 = vadd.f32 0.0, %v5718
        %5720 = vdwg.mxu0
        %5721 = vxpose.xlu0.c.b16.start [1/8] %v960, 128
        %5722 = vxpose.xlu0.c.b16.cont [2/8] %v1066, 128
        %5723 = vxpose.xlu0.c.b16.cont [3/8] 0, 128
        %5724 = vxpose.xlu0.c.b16.cont [4/8] 0, 128
        %5725 = vxpose.xlu0.c.b16.cont [5/8] 0, 128
        %5726 = vxpose.xlu0.c.b16.cont [6/8] 0, 128
        %5727 = vxpose.xlu0.c.b16.cont [7/8] 0, 128
        %5728 = vxpose.xlu0.c.b16.end [8/8] 0, 128
        %v5729 = vpop.trf.xlu0
        %v5730 = vpop.trf.xlu0
        %v5731 = vpop.trf.xlu0
        %v5732 = vpop.trf.xlu0
        %v5733 = vpop.trf.xlu0
        %v5734 = vpop.trf.xlu0
        %v5735 = vpop.trf.xlu0
        %v5736 = vpop.trf.xlu0
        %5737 = vxpose.xlu0.c.b16.start [1/8] %v961, 128
        %5738 = vxpose.xlu0.c.b16.cont [2/8] %v1067, 128
        %5739 = vxpose.xlu0.c.b16.cont [3/8] 0, 128
        %5740 = vxpose.xlu0.c.b16.cont [4/8] 0, 128
        %5741 = vxpose.xlu0.c.b16.cont [5/8] 0, 128
        %5742 = vxpose.xlu0.c.b16.cont [6/8] 0, 128
        %5743 = vxpose.xlu0.c.b16.cont [7/8] 0, 128
        %5744 = vxpose.xlu0.c.b16.end [8/8] 0, 128
        %v5745 = vpop.trf.xlu0
        %v5746 = vpop.trf.xlu0
        %v5747 = vpop.trf.xlu0
        %v5748 = vpop.trf.xlu0
        %v5749 = vpop.trf.xlu0
        %v5750 = vpop.trf.xlu0
        %v5751 = vpop.trf.xlu0
        %v5752 = vpop.trf.xlu0
        %v5754 = vsel %vm1110, %v5729, 0
        %v5757 = vsel %vm1110, %v5730, 0
        %v5760 = vsel %vm1110, %v5731, 0
        %v5763 = vsel %vm1110, %v5732, 0
        %v5766 = vsel %vm1110, %v5733, 0
        %v5769 = vsel %vm1110, %v5734, 0
        %v5772 = vsel %vm1110, %v5735, 0
        %v5775 = vsel %vm1110, %v5736, 0
        %v5778 = vsel %vm1110, %v5745, 0
        %v5781 = vsel %vm1110, %v5746, 0
        %v5784 = vsel %vm1110, %v5747, 0
        %v5787 = vsel %vm1110, %v5748, 0
        %v5790 = vsel %vm1110, %v5749, 0
        %v5793 = vsel %vm1110, %v5750, 0
        %v5796 = vsel %vm1110, %v5751, 0
        %v5799 = vsel %vm1110, %v5752, 0
        %5801 = vmatprep.subr.bf16.mxu0 %v977
        %5802 = vmatpush1.bf16.msra.mxu0 %v976
        %5803 = vmatprep.subr.bf16.mxu0 %v961
        %5804 = vmatpush1.bf16.msra.mxu0 %v960
        %5805 = vmatprep.subr.bf16.mxu0 0
        %5806 = vmatpush1.bf16.msra.mxu0 0
        %5807 = vmatprep.subr.bf16.mxu0 0
        %5808 = vmatpush1.bf16.msra.mxu0 0
        %5809 = vmatprep.subr.bf16.mxu0 0
        %5810 = vmatpush1.bf16.msra.mxu0 0
        %5811 = vmatprep.subr.bf16.mxu0 0
        %5812 = vmatpush1.bf16.msra.mxu0 0
        %5813 = vmatprep.subr.bf16.mxu0 0
        %5814 = vmatpush1.bf16.msra.mxu0 0
        %5815 = vmatprep.subr.bf16.mxu0 0
        %5816 = vmatpush1.bf16.msra.mxu0 0
        %5817 = vmatprep.subr.bf16.mxu0 0
        %5818 = vmatpush1.bf16.msra.mxu0 0
        %5819 = vmatprep.subr.bf16.mxu0 0
        %5820 = vmatpush1.bf16.msra.mxu0 0
        %5821 = vmatprep.subr.bf16.mxu0 0
        %5822 = vmatpush1.bf16.msra.mxu0 0
        %5823 = vmatprep.subr.bf16.mxu0 0
        %5824 = vmatpush1.bf16.msra.mxu0 0
        %5825 = vmatprep.subr.bf16.mxu0 0
        %5826 = vmatpush1.bf16.msra.mxu0 0
        %5827 = vmatprep.subr.bf16.mxu0 0
        %5828 = vmatpush1.bf16.msra.mxu0 0
        %5829 = vmatprep.subr.bf16.mxu0 0
        %5830 = vmatpush1.bf16.msra.mxu0 0
        %5831 = vmatprep.subr.bf16.mxu0 0
        %5832 = vmatpush1.bf16.msra.mxu0 0
        %5833 = vmatprep.mubr.bf16.mxu0 0
        %5834 = vmatmul.mubr.bf16.gmra.mrb[0].mxu0 %v5754
        %v5835 = vpop.f32.mrb[0].mxu0
        %v5836 = vadd.f32 0.0, %v5835
        %v5837 = vpop.f32.mrb[0].mxu0
        %v5838 = vadd.f32 0.0, %v5837
        %v5839 = vpop.f32.mrb[0].mxu0
        %v5840 = vadd.f32 0.0, %v5839
        %v5841 = vpop.f32.mrb[0].mxu0
        %v5842 = vadd.f32 0.0, %v5841
        %5843 = vmatprep.mubr.bf16.mxu0 0
        %5844 = vmatmul.mubr.bf16.gmra.mrb[0].mxu0 %v5757
        %v5845 = vpop.f32.mrb[0].mxu0
        %v5846 = vadd.f32 0.0, %v5845
        %v5847 = vpop.f32.mrb[0].mxu0
        %v5848 = vadd.f32 0.0, %v5847
        %v5849 = vpop.f32.mrb[0].mxu0
        %v5850 = vadd.f32 0.0, %v5849
        %v5851 = vpop.f32.mrb[0].mxu0
        %v5852 = vadd.f32 0.0, %v5851
        %5853 = vmatprep.mubr.bf16.mxu0 0
        %5854 = vmatmul.mubr.bf16.gmra.mrb[0].mxu0 %v5760
        %v5855 = vpop.f32.mrb[0].mxu0
        %v5856 = vadd.f32 0.0, %v5855
        %v5857 = vpop.f32.mrb[0].mxu0
        %v5858 = vadd.f32 0.0, %v5857
        %v5859 = vpop.f32.mrb[0].mxu0
        %v5860 = vadd.f32 0.0, %v5859
        %v5861 = vpop.f32.mrb[0].mxu0
        %v5862 = vadd.f32 0.0, %v5861
        %5863 = vmatprep.mubr.bf16.mxu0 0
        %5864 = vmatmul.mubr.bf16.gmra.mrb[0].mxu0 %v5763
        %v5865 = vpop.f32.mrb[0].mxu0
        %v5866 = vadd.f32 0.0, %v5865
        %v5867 = vpop.f32.mrb[0].mxu0
        %v5868 = vadd.f32 0.0, %v5867
        %v5869 = vpop.f32.mrb[0].mxu0
        %v5870 = vadd.f32 0.0, %v5869
        %v5871 = vpop.f32.mrb[0].mxu0
        %v5872 = vadd.f32 0.0, %v5871
        %5873 = vmatprep.mubr.bf16.mxu0 0
        %5874 = vmatmul.mubr.bf16.gmra.mrb[0].mxu0 %v5766
        %v5875 = vpop.f32.mrb[0].mxu0
        %v5876 = vadd.f32 0.0, %v5875
        %v5877 = vpop.f32.mrb[0].mxu0
        %v5878 = vadd.f32 0.0, %v5877
        %v5879 = vpop.f32.mrb[0].mxu0
        %v5880 = vadd.f32 0.0, %v5879
        %v5881 = vpop.f32.mrb[0].mxu0
        %v5882 = vadd.f32 0.0, %v5881
        %5883 = vmatprep.mubr.bf16.mxu0 0
        %5884 = vmatmul.mubr.bf16.gmra.mrb[0].mxu0 %v5769
        %v5885 = vpop.f32.mrb[0].mxu0
        %v5886 = vadd.f32 0.0, %v5885
        %v5887 = vpop.f32.mrb[0].mxu0
        %v5888 = vadd.f32 0.0, %v5887
        %v5889 = vpop.f32.mrb[0].mxu0
        %v5890 = vadd.f32 0.0, %v5889
        %v5891 = vpop.f32.mrb[0].mxu0
        %v5892 = vadd.f32 0.0, %v5891
        %5893 = vmatprep.mubr.bf16.mxu0 0
        %5894 = vmatmul.mubr.bf16.gmra.mrb[0].mxu0 %v5772
        %v5895 = vpop.f32.mrb[0].mxu0
        %v5896 = vadd.f32 0.0, %v5895
        %v5897 = vpop.f32.mrb[0].mxu0
        %v5898 = vadd.f32 0.0, %v5897
        %v5899 = vpop.f32.mrb[0].mxu0
        %v5900 = vadd.f32 0.0, %v5899
        %v5901 = vpop.f32.mrb[0].mxu0
        %v5902 = vadd.f32 0.0, %v5901
        %5903 = vmatprep.mubr.bf16.mxu0 0
        %5904 = vmatmul.mubr.bf16.gmra.mrb[0].mxu0 %v5775
        %v5905 = vpop.f32.mrb[0].mxu0
        %v5906 = vadd.f32 0.0, %v5905
        %v5907 = vpop.f32.mrb[0].mxu0
        %v5908 = vadd.f32 0.0, %v5907
        %v5909 = vpop.f32.mrb[0].mxu0
        %v5910 = vadd.f32 0.0, %v5909
        %v5911 = vpop.f32.mrb[0].mxu0
        %v5912 = vadd.f32 0.0, %v5911
        %5913 = vmatprep.mubr.bf16.mxu0 0
        %5914 = vmatmul.mubr.bf16.gmra.mrb[0].mxu0 %v5778
        %v5915 = vpop.f32.mrb[0].mxu0
        %v5916 = vadd.f32 0.0, %v5915
        %v5917 = vpop.f32.mrb[0].mxu0
        %v5918 = vadd.f32 0.0, %v5917
        %v5919 = vpop.f32.mrb[0].mxu0
        %v5920 = vadd.f32 0.0, %v5919
        %v5921 = vpop.f32.mrb[0].mxu0
        %v5922 = vadd.f32 0.0, %v5921
        %5923 = vmatprep.mubr.bf16.mxu0 0
        %5924 = vmatmul.mubr.bf16.gmra.mrb[0].mxu0 %v5781
        %v5925 = vpop.f32.mrb[0].mxu0
        %v5926 = vadd.f32 0.0, %v5925
        %v5927 = vpop.f32.mrb[0].mxu0
        %v5928 = vadd.f32 0.0, %v5927
        %v5929 = vpop.f32.mrb[0].mxu0
        %v5930 = vadd.f32 0.0, %v5929
        %v5931 = vpop.f32.mrb[0].mxu0
        %v5932 = vadd.f32 0.0, %v5931
        %5933 = vmatprep.mubr.bf16.mxu0 0
        %5934 = vmatmul.mubr.bf16.gmra.mrb[0].mxu0 %v5784
        %v5935 = vpop.f32.mrb[0].mxu0
        %v5936 = vadd.f32 0.0, %v5935
        %v5937 = vpop.f32.mrb[0].mxu0
        %v5938 = vadd.f32 0.0, %v5937
        %v5939 = vpop.f32.mrb[0].mxu0
        %v5940 = vadd.f32 0.0, %v5939
        %v5941 = vpop.f32.mrb[0].mxu0
        %v5942 = vadd.f32 0.0, %v5941
        %5943 = vmatprep.mubr.bf16.mxu0 0
        %5944 = vmatmul.mubr.bf16.gmra.mrb[0].mxu0 %v5787
        %v5945 = vpop.f32.mrb[0].mxu0
        %v5946 = vadd.f32 0.0, %v5945
        %v5947 = vpop.f32.mrb[0].mxu0
        %v5948 = vadd.f32 0.0, %v5947
        %v5949 = vpop.f32.mrb[0].mxu0
        %v5950 = vadd.f32 0.0, %v5949
        %v5951 = vpop.f32.mrb[0].mxu0
        %v5952 = vadd.f32 0.0, %v5951
        %5953 = vmatprep.mubr.bf16.mxu0 0
        %5954 = vmatmul.mubr.bf16.gmra.mrb[0].mxu0 %v5790
        %v5955 = vpop.f32.mrb[0].mxu0
        %v5956 = vadd.f32 0.0, %v5955
        %v5957 = vpop.f32.mrb[0].mxu0
        %v5958 = vadd.f32 0.0, %v5957
        %v5959 = vpop.f32.mrb[0].mxu0
        %v5960 = vadd.f32 0.0, %v5959
        %v5961 = vpop.f32.mrb[0].mxu0
        %v5962 = vadd.f32 0.0, %v5961
        %5963 = vmatprep.mubr.bf16.mxu0 0
        %5964 = vmatmul.mubr.bf16.gmra.mrb[0].mxu0 %v5793
        %v5965 = vpop.f32.mrb[0].mxu0
        %v5966 = vadd.f32 0.0, %v5965
        %v5967 = vpop.f32.mrb[0].mxu0
        %v5968 = vadd.f32 0.0, %v5967
        %v5969 = vpop.f32.mrb[0].mxu0
        %v5970 = vadd.f32 0.0, %v5969
        %v5971 = vpop.f32.mrb[0].mxu0
        %v5972 = vadd.f32 0.0, %v5971
        %5973 = vmatprep.mubr.bf16.mxu0 0
        %5974 = vmatmul.mubr.bf16.gmra.mrb[0].mxu0 %v5796
        %v5975 = vpop.f32.mrb[0].mxu0
        %v5976 = vadd.f32 0.0, %v5975
        %v5977 = vpop.f32.mrb[0].mxu0
        %v5978 = vadd.f32 0.0, %v5977
        %v5979 = vpop.f32.mrb[0].mxu0
        %v5980 = vadd.f32 0.0, %v5979
        %v5981 = vpop.f32.mrb[0].mxu0
        %v5982 = vadd.f32 0.0, %v5981
        %5983 = vmatprep.mubr.bf16.mxu0 0
        %5984 = vmatmul.mubr.bf16.gmra.mrb[0].mxu0 %v5799
        %v5985 = vpop.f32.mrb[0].mxu0
        %v5986 = vadd.f32 0.0, %v5985
        %v5987 = vpop.f32.mrb[0].mxu0
        %v5988 = vadd.f32 0.0, %v5987
        %v5989 = vpop.f32.mrb[0].mxu0
        %v5990 = vadd.f32 0.0, %v5989
        %v5991 = vpop.f32.mrb[0].mxu0
        %v5992 = vadd.f32 0.0, %v5991
        %5993 = vdwg.mxu0
        %5994 = vxpose.xlu0.c.b16.start [1/8] %v964, 128
        %5995 = vxpose.xlu0.c.b16.cont [2/8] %v1068, 128
        %5996 = vxpose.xlu0.c.b16.cont [3/8] 0, 128
        %5997 = vxpose.xlu0.c.b16.cont [4/8] 0, 128
        %5998 = vxpose.xlu0.c.b16.cont [5/8] 0, 128
        %5999 = vxpose.xlu0.c.b16.cont [6/8] 0, 128
        %6000 = vxpose.xlu0.c.b16.cont [7/8] 0, 128
        %6001 = vxpose.xlu0.c.b16.end [8/8] 0, 128
        %v6002 = vpop.trf.xlu0
        %v6003 = vpop.trf.xlu0
        %v6004 = vpop.trf.xlu0
        %v6005 = vpop.trf.xlu0
        %v6006 = vpop.trf.xlu0
        %v6007 = vpop.trf.xlu0
        %v6008 = vpop.trf.xlu0
        %v6009 = vpop.trf.xlu0
        %6010 = vxpose.xlu0.c.b16.start [1/8] %v965, 128
        %6011 = vxpose.xlu0.c.b16.cont [2/8] %v1069, 128
        %6012 = vxpose.xlu0.c.b16.cont [3/8] 0, 128
        %6013 = vxpose.xlu0.c.b16.cont [4/8] 0, 128
        %6014 = vxpose.xlu0.c.b16.cont [5/8] 0, 128
        %6015 = vxpose.xlu0.c.b16.cont [6/8] 0, 128
        %6016 = vxpose.xlu0.c.b16.cont [7/8] 0, 128
        %6017 = vxpose.xlu0.c.b16.end [8/8] 0, 128
        %v6018 = vpop.trf.xlu0
        %v6019 = vpop.trf.xlu0
        %v6020 = vpop.trf.xlu0
        %v6021 = vpop.trf.xlu0
        %v6022 = vpop.trf.xlu0
        %v6023 = vpop.trf.xlu0
        %v6024 = vpop.trf.xlu0
        %v6025 = vpop.trf.xlu0
        %v6027 = vsel %vm1110, %v6002, 0
        %v6030 = vsel %vm1110, %v6003, 0
        %v6033 = vsel %vm1110, %v6004, 0
        %v6036 = vsel %vm1110, %v6005, 0
        %v6039 = vsel %vm1110, %v6006, 0
        %v6042 = vsel %vm1110, %v6007, 0
        %v6045 = vsel %vm1110, %v6008, 0
        %v6048 = vsel %vm1110, %v6009, 0
        %v6051 = vsel %vm1110, %v6018, 0
        %v6054 = vsel %vm1110, %v6019, 0
        %v6057 = vsel %vm1110, %v6020, 0
        %v6060 = vsel %vm1110, %v6021, 0
        %v6063 = vsel %vm1110, %v6022, 0
        %v6066 = vsel %vm1110, %v6023, 0
        %v6069 = vsel %vm1110, %v6024, 0
        %v6072 = vsel %vm1110, %v6025, 0
        %6074 = vmatprep.subr.bf16.mxu0 %v981
        %6075 = vmatpush1.bf16.msra.mxu0 %v980
        %6076 = vmatprep.subr.bf16.mxu0 %v965
        %6077 = vmatpush1.bf16.msra.mxu0 %v964
        %6078 = vmatprep.subr.bf16.mxu0 0
        %6079 = vmatpush1.bf16.msra.mxu0 0
        %6080 = vmatprep.subr.bf16.mxu0 0
        %6081 = vmatpush1.bf16.msra.mxu0 0
        %6082 = vmatprep.subr.bf16.mxu0 0
        %6083 = vmatpush1.bf16.msra.mxu0 0
        %6084 = vmatprep.subr.bf16.mxu0 0
        %6085 = vmatpush1.bf16.msra.mxu0 0
        %6086 = vmatprep.subr.bf16.mxu0 0
        %6087 = vmatpush1.bf16.msra.mxu0 0
        %6088 = vmatprep.subr.bf16.mxu0 0
        %6089 = vmatpush1.bf16.msra.mxu0 0
        %6090 = vmatprep.subr.bf16.mxu0 0
        %6091 = vmatpush1.bf16.msra.mxu0 0
        %6092 = vmatprep.subr.bf16.mxu0 0
        %6093 = vmatpush1.bf16.msra.mxu0 0
        %6094 = vmatprep.subr.bf16.mxu0 0
        %6095 = vmatpush1.bf16.msra.mxu0 0
        %6096 = vmatprep.subr.bf16.mxu0 0
        %6097 = vmatpush1.bf16.msra.mxu0 0
        %6098 = vmatprep.subr.bf16.mxu0 0
        %6099 = vmatpush1.bf16.msra.mxu0 0
        %6100 = vmatprep.subr.bf16.mxu0 0
        %6101 = vmatpush1.bf16.msra.mxu0 0
        %6102 = vmatprep.subr.bf16.mxu0 0
        %6103 = vmatpush1.bf16.msra.mxu0 0
        %6104 = vmatprep.subr.bf16.mxu0 0
        %6105 = vmatpush1.bf16.msra.mxu0 0
        %6106 = vmatprep.mubr.bf16.mxu0 0
        %6107 = vmatmul.mubr.bf16.gmra.mrb[0].mxu0 %v6027
        %v6108 = vpop.f32.mrb[0].mxu0
        %v6109 = vadd.f32 0.0, %v6108
        %v6110 = vpop.f32.mrb[0].mxu0
        %v6111 = vadd.f32 0.0, %v6110
        %v6112 = vpop.f32.mrb[0].mxu0
        %v6113 = vadd.f32 0.0, %v6112
        %v6114 = vpop.f32.mrb[0].mxu0
        %v6115 = vadd.f32 0.0, %v6114
        %6116 = vmatprep.mubr.bf16.mxu0 0
        %6117 = vmatmul.mubr.bf16.gmra.mrb[0].mxu0 %v6030
        %v6118 = vpop.f32.mrb[0].mxu0
        %v6119 = vadd.f32 0.0, %v6118
        %v6120 = vpop.f32.mrb[0].mxu0
        %v6121 = vadd.f32 0.0, %v6120
        %v6122 = vpop.f32.mrb[0].mxu0
        %v6123 = vadd.f32 0.0, %v6122
        %v6124 = vpop.f32.mrb[0].mxu0
        %v6125 = vadd.f32 0.0, %v6124
        %6126 = vmatprep.mubr.bf16.mxu0 0
        %6127 = vmatmul.mubr.bf16.gmra.mrb[0].mxu0 %v6033
        %v6128 = vpop.f32.mrb[0].mxu0
        %v6129 = vadd.f32 0.0, %v6128
        %v6130 = vpop.f32.mrb[0].mxu0
        %v6131 = vadd.f32 0.0, %v6130
        %v6132 = vpop.f32.mrb[0].mxu0
        %v6133 = vadd.f32 0.0, %v6132
        %v6134 = vpop.f32.mrb[0].mxu0
        %v6135 = vadd.f32 0.0, %v6134
        %6136 = vmatprep.mubr.bf16.mxu0 0
        %6137 = vmatmul.mubr.bf16.gmra.mrb[0].mxu0 %v6036
        %v6138 = vpop.f32.mrb[0].mxu0
        %v6139 = vadd.f32 0.0, %v6138
        %v6140 = vpop.f32.mrb[0].mxu0
        %v6141 = vadd.f32 0.0, %v6140
        %v6142 = vpop.f32.mrb[0].mxu0
        %v6143 = vadd.f32 0.0, %v6142
        %v6144 = vpop.f32.mrb[0].mxu0
        %v6145 = vadd.f32 0.0, %v6144
        %6146 = vmatprep.mubr.bf16.mxu0 0
        %6147 = vmatmul.mubr.bf16.gmra.mrb[0].mxu0 %v6039
        %v6148 = vpop.f32.mrb[0].mxu0
        %v6149 = vadd.f32 0.0, %v6148
        %v6150 = vpop.f32.mrb[0].mxu0
        %v6151 = vadd.f32 0.0, %v6150
        %v6152 = vpop.f32.mrb[0].mxu0
        %v6153 = vadd.f32 0.0, %v6152
        %v6154 = vpop.f32.mrb[0].mxu0
        %v6155 = vadd.f32 0.0, %v6154
        %6156 = vmatprep.mubr.bf16.mxu0 0
        %6157 = vmatmul.mubr.bf16.gmra.mrb[0].mxu0 %v6042
        %v6158 = vpop.f32.mrb[0].mxu0
        %v6159 = vadd.f32 0.0, %v6158
        %v6160 = vpop.f32.mrb[0].mxu0
        %v6161 = vadd.f32 0.0, %v6160
        %v6162 = vpop.f32.mrb[0].mxu0
        %v6163 = vadd.f32 0.0, %v6162
        %v6164 = vpop.f32.mrb[0].mxu0
        %v6165 = vadd.f32 0.0, %v6164
        %6166 = vmatprep.mubr.bf16.mxu0 0
        %6167 = vmatmul.mubr.bf16.gmra.mrb[0].mxu0 %v6045
        %v6168 = vpop.f32.mrb[0].mxu0
        %v6169 = vadd.f32 0.0, %v6168
        %v6170 = vpop.f32.mrb[0].mxu0
        %v6171 = vadd.f32 0.0, %v6170
        %v6172 = vpop.f32.mrb[0].mxu0
        %v6173 = vadd.f32 0.0, %v6172
        %v6174 = vpop.f32.mrb[0].mxu0
        %v6175 = vadd.f32 0.0, %v6174
        %6176 = vmatprep.mubr.bf16.mxu0 0
        %6177 = vmatmul.mubr.bf16.gmra.mrb[0].mxu0 %v6048
        %v6178 = vpop.f32.mrb[0].mxu0
        %v6179 = vadd.f32 0.0, %v6178
        %v6180 = vpop.f32.mrb[0].mxu0
        %v6181 = vadd.f32 0.0, %v6180
        %v6182 = vpop.f32.mrb[0].mxu0
        %v6183 = vadd.f32 0.0, %v6182
        %v6184 = vpop.f32.mrb[0].mxu0
        %v6185 = vadd.f32 0.0, %v6184
        %6186 = vmatprep.mubr.bf16.mxu0 0
        %6187 = vmatmul.mubr.bf16.gmra.mrb[0].mxu0 %v6051
        %v6188 = vpop.f32.mrb[0].mxu0
        %v6189 = vadd.f32 0.0, %v6188
        %v6190 = vpop.f32.mrb[0].mxu0
        %v6191 = vadd.f32 0.0, %v6190
        %v6192 = vpop.f32.mrb[0].mxu0
        %v6193 = vadd.f32 0.0, %v6192
        %v6194 = vpop.f32.mrb[0].mxu0
        %v6195 = vadd.f32 0.0, %v6194
        %6196 = vmatprep.mubr.bf16.mxu0 0
        %6197 = vmatmul.mubr.bf16.gmra.mrb[0].mxu0 %v6054
        %v6198 = vpop.f32.mrb[0].mxu0
        %v6199 = vadd.f32 0.0, %v6198
        %v6200 = vpop.f32.mrb[0].mxu0
        %v6201 = vadd.f32 0.0, %v6200
        %v6202 = vpop.f32.mrb[0].mxu0
        %v6203 = vadd.f32 0.0, %v6202
        %v6204 = vpop.f32.mrb[0].mxu0
        %v6205 = vadd.f32 0.0, %v6204
        %6206 = vmatprep.mubr.bf16.mxu0 0
        %6207 = vmatmul.mubr.bf16.gmra.mrb[0].mxu0 %v6057
        %v6208 = vpop.f32.mrb[0].mxu0
        %v6209 = vadd.f32 0.0, %v6208
        %v6210 = vpop.f32.mrb[0].mxu0
        %v6211 = vadd.f32 0.0, %v6210
        %v6212 = vpop.f32.mrb[0].mxu0
        %v6213 = vadd.f32 0.0, %v6212
        %v6214 = vpop.f32.mrb[0].mxu0
        %v6215 = vadd.f32 0.0, %v6214
        %6216 = vmatprep.mubr.bf16.mxu0 0
        %6217 = vmatmul.mubr.bf16.gmra.mrb[0].mxu0 %v6060
        %v6218 = vpop.f32.mrb[0].mxu0
        %v6219 = vadd.f32 0.0, %v6218
        %v6220 = vpop.f32.mrb[0].mxu0
        %v6221 = vadd.f32 0.0, %v6220
        %v6222 = vpop.f32.mrb[0].mxu0
        %v6223 = vadd.f32 0.0, %v6222
        %v6224 = vpop.f32.mrb[0].mxu0
        %v6225 = vadd.f32 0.0, %v6224
        %6226 = vmatprep.mubr.bf16.mxu0 0
        %6227 = vmatmul.mubr.bf16.gmra.mrb[0].mxu0 %v6063
        %v6228 = vpop.f32.mrb[0].mxu0
        %v6229 = vadd.f32 0.0, %v6228
        %v6230 = vpop.f32.mrb[0].mxu0
        %v6231 = vadd.f32 0.0, %v6230
        %v6232 = vpop.f32.mrb[0].mxu0
        %v6233 = vadd.f32 0.0, %v6232
        %v6234 = vpop.f32.mrb[0].mxu0
        %v6235 = vadd.f32 0.0, %v6234
        %6236 = vmatprep.mubr.bf16.mxu0 0
        %6237 = vmatmul.mubr.bf16.gmra.mrb[0].mxu0 %v6066
        %v6238 = vpop.f32.mrb[0].mxu0
        %v6239 = vadd.f32 0.0, %v6238
        %v6240 = vpop.f32.mrb[0].mxu0
        %v6241 = vadd.f32 0.0, %v6240
        %v6242 = vpop.f32.mrb[0].mxu0
        %v6243 = vadd.f32 0.0, %v6242
        %v6244 = vpop.f32.mrb[0].mxu0
        %v6245 = vadd.f32 0.0, %v6244
        %6246 = vmatprep.mubr.bf16.mxu0 0
        %6247 = vmatmul.mubr.bf16.gmra.mrb[0].mxu0 %v6069
        %v6248 = vpop.f32.mrb[0].mxu0
        %v6249 = vadd.f32 0.0, %v6248
        %v6250 = vpop.f32.mrb[0].mxu0
        %v6251 = vadd.f32 0.0, %v6250
        %v6252 = vpop.f32.mrb[0].mxu0
        %v6253 = vadd.f32 0.0, %v6252
        %v6254 = vpop.f32.mrb[0].mxu0
        %v6255 = vadd.f32 0.0, %v6254
        %6256 = vmatprep.mubr.bf16.mxu0 0
        %6257 = vmatmul.mubr.bf16.gmra.mrb[0].mxu0 %v6072
        %v6258 = vpop.f32.mrb[0].mxu0
        %v6259 = vadd.f32 0.0, %v6258
        %v6260 = vpop.f32.mrb[0].mxu0
        %v6261 = vadd.f32 0.0, %v6260
        %v6262 = vpop.f32.mrb[0].mxu0
        %v6263 = vadd.f32 0.0, %v6262
        %v6264 = vpop.f32.mrb[0].mxu0
        %v6265 = vadd.f32 0.0, %v6264
        %6266 = vdwg.mxu0
        %v6267 = vmax.f32 %v5290, %v5292
        %6268 = vmax.xlane.f32.xlu0 %v6267
        %v6269 = vpop.xlane.xlu0 %6268
        %v6270 = vmax.f32 %v5294, %v5296
        %6271 = vmax.xlane.f32.xlu0 %v6270
        %v6272 = vpop.xlane.xlu0 %6271
        %v6273 = vmax.f32 %v5300, %v5302
        %6274 = vmax.xlane.f32.xlu0 %v6273
        %v6275 = vpop.xlane.xlu0 %6274
        %v6276 = vmax.f32 %v5304, %v5306
        %6277 = vmax.xlane.f32.xlu0 %v6276
        %v6278 = vpop.xlane.xlu0 %6277
        %v6279 = vmax.f32 %v5310, %v5312
        %6280 = vmax.xlane.f32.xlu0 %v6279
        %v6281 = vpop.xlane.xlu0 %6280
        %v6282 = vmax.f32 %v5314, %v5316
        %6283 = vmax.xlane.f32.xlu0 %v6282
        %v6284 = vpop.xlane.xlu0 %6283
        %v6285 = vmax.f32 %v5320, %v5322
        %6286 = vmax.xlane.f32.xlu0 %v6285
        %v6287 = vpop.xlane.xlu0 %6286
        %v6288 = vmax.f32 %v5324, %v5326
        %6289 = vmax.xlane.f32.xlu0 %v6288
        %v6290 = vpop.xlane.xlu0 %6289
        %v6291 = vmax.f32 %v5330, %v5332
        %6292 = vmax.xlane.f32.xlu0 %v6291
        %v6293 = vpop.xlane.xlu0 %6292
        %v6294 = vmax.f32 %v5334, %v5336
        %6295 = vmax.xlane.f32.xlu0 %v6294
        %v6296 = vpop.xlane.xlu0 %6295
        %v6297 = vmax.f32 %v5340, %v5342
        %6298 = vmax.xlane.f32.xlu0 %v6297
        %v6299 = vpop.xlane.xlu0 %6298
        %v6300 = vmax.f32 %v5344, %v5346
        %6301 = vmax.xlane.f32.xlu0 %v6300
        %v6302 = vpop.xlane.xlu0 %6301
        %v6303 = vmax.f32 %v5350, %v5352
        %6304 = vmax.xlane.f32.xlu0 %v6303
        %v6305 = vpop.xlane.xlu0 %6304
        %v6306 = vmax.f32 %v5354, %v5356
        %6307 = vmax.xlane.f32.xlu0 %v6306
        %v6308 = vpop.xlane.xlu0 %6307
        %v6309 = vmax.f32 %v5360, %v5362
        %6310 = vmax.xlane.f32.xlu0 %v6309
        %v6311 = vpop.xlane.xlu0 %6310
        %v6312 = vmax.f32 %v5364, %v5366
        %6313 = vmax.xlane.f32.xlu0 %v6312
        %v6314 = vpop.xlane.xlu0 %6313
        %v6315 = vmax.f32 %v5370, %v5372
        %6316 = vmax.xlane.f32.xlu0 %v6315
        %v6317 = vpop.xlane.xlu0 %6316
        %v6318 = vmax.f32 %v5374, %v5376
        %6319 = vmax.xlane.f32.xlu0 %v6318
        %v6320 = vpop.xlane.xlu0 %6319
        %v6321 = vmax.f32 %v5380, %v5382
        %6322 = vmax.xlane.f32.xlu0 %v6321
        %v6323 = vpop.xlane.xlu0 %6322
        %v6324 = vmax.f32 %v5384, %v5386
        %6325 = vmax.xlane.f32.xlu0 %v6324
        %v6326 = vpop.xlane.xlu0 %6325
        %v6327 = vmax.f32 %v5390, %v5392
        %6328 = vmax.xlane.f32.xlu0 %v6327
        %v6329 = vpop.xlane.xlu0 %6328
        %v6330 = vmax.f32 %v5394, %v5396
        %6331 = vmax.xlane.f32.xlu0 %v6330
        %v6332 = vpop.xlane.xlu0 %6331
        %v6333 = vmax.f32 %v5400, %v5402
        %6334 = vmax.xlane.f32.xlu0 %v6333
        %v6335 = vpop.xlane.xlu0 %6334
        %v6336 = vmax.f32 %v5404, %v5406
        %6337 = vmax.xlane.f32.xlu0 %v6336
        %v6338 = vpop.xlane.xlu0 %6337
        %v6339 = vmax.f32 %v5410, %v5412
        %6340 = vmax.xlane.f32.xlu0 %v6339
        %v6341 = vpop.xlane.xlu0 %6340
        %v6342 = vmax.f32 %v5414, %v5416
        %6343 = vmax.xlane.f32.xlu0 %v6342
        %v6344 = vpop.xlane.xlu0 %6343
        %v6345 = vmax.f32 %v5420, %v5422
        %6346 = vmax.xlane.f32.xlu0 %v6345
        %v6347 = vpop.xlane.xlu0 %6346
        %v6348 = vmax.f32 %v5424, %v5426
        %6349 = vmax.xlane.f32.xlu0 %v6348
        %v6350 = vpop.xlane.xlu0 %6349
        %v6351 = vmax.f32 %v5430, %v5432
        %6352 = vmax.xlane.f32.xlu0 %v6351
        %v6353 = vpop.xlane.xlu0 %6352
        %v6354 = vmax.f32 %v5434, %v5436
        %6355 = vmax.xlane.f32.xlu0 %v6354
        %v6356 = vpop.xlane.xlu0 %6355
        %v6357 = vmax.f32 %v5440, %v5442
        %6358 = vmax.xlane.f32.xlu0 %v6357
        %v6359 = vpop.xlane.xlu0 %6358
        %v6360 = vmax.f32 %v5444, %v5446
        %6361 = vmax.xlane.f32.xlu0 %v6360
        %v6362 = vpop.xlane.xlu0 %6361
        %v6363 = vmax.f32 %v5563, %v5565
        %6364 = vmax.xlane.f32.xlu0 %v6363
        %v6365 = vpop.xlane.xlu0 %6364
        %v6366 = vmax.f32 %v5567, %v5569
        %6367 = vmax.xlane.f32.xlu0 %v6366
        %v6368 = vpop.xlane.xlu0 %6367
        %v6369 = vmax.f32 %v5573, %v5575
        %6370 = vmax.xlane.f32.xlu0 %v6369
        %v6371 = vpop.xlane.xlu0 %6370
        %v6372 = vmax.f32 %v5577, %v5579
        %6373 = vmax.xlane.f32.xlu0 %v6372
        %v6374 = vpop.xlane.xlu0 %6373
        %v6375 = vmax.f32 %v5583, %v5585
        %6376 = vmax.xlane.f32.xlu0 %v6375
        %v6377 = vpop.xlane.xlu0 %6376
        %v6378 = vmax.f32 %v5587, %v5589
        %6379 = vmax.xlane.f32.xlu0 %v6378
        %v6380 = vpop.xlane.xlu0 %6379
        %v6381 = vmax.f32 %v5593, %v5595
        %6382 = vmax.xlane.f32.xlu0 %v6381
        %v6383 = vpop.xlane.xlu0 %6382
        %v6384 = vmax.f32 %v5597, %v5599
        %6385 = vmax.xlane.f32.xlu0 %v6384
        %v6386 = vpop.xlane.xlu0 %6385
        %v6387 = vmax.f32 %v5603, %v5605
        %6388 = vmax.xlane.f32.xlu0 %v6387
        %v6389 = vpop.xlane.xlu0 %6388
        %v6390 = vmax.f32 %v5607, %v5609
        %6391 = vmax.xlane.f32.xlu0 %v6390
        %v6392 = vpop.xlane.xlu0 %6391
        %v6393 = vmax.f32 %v5613, %v5615
        %6394 = vmax.xlane.f32.xlu0 %v6393
        %v6395 = vpop.xlane.xlu0 %6394
        %v6396 = vmax.f32 %v5617, %v5619
        %6397 = vmax.xlane.f32.xlu0 %v6396
        %v6398 = vpop.xlane.xlu0 %6397
        %v6399 = vmax.f32 %v5623, %v5625
        %6400 = vmax.xlane.f32.xlu0 %v6399
        %v6401 = vpop.xlane.xlu0 %6400
        %v6402 = vmax.f32 %v5627, %v5629
        %6403 = vmax.xlane.f32.xlu0 %v6402
        %v6404 = vpop.xlane.xlu0 %6403
        %v6405 = vmax.f32 %v5633, %v5635
        %6406 = vmax.xlane.f32.xlu0 %v6405
        %v6407 = vpop.xlane.xlu0 %6406
        %v6408 = vmax.f32 %v5637, %v5639
        %6409 = vmax.xlane.f32.xlu0 %v6408
        %v6410 = vpop.xlane.xlu0 %6409
        %v6411 = vmax.f32 %v5643, %v5645
        %6412 = vmax.xlane.f32.xlu0 %v6411
        %v6413 = vpop.xlane.xlu0 %6412
        %v6414 = vmax.f32 %v5647, %v5649
        %6415 = vmax.xlane.f32.xlu0 %v6414
        %v6416 = vpop.xlane.xlu0 %6415
        %v6417 = vmax.f32 %v5653, %v5655
        %6418 = vmax.xlane.f32.xlu0 %v6417
        %v6419 = vpop.xlane.xlu0 %6418
        %v6420 = vmax.f32 %v5657, %v5659
        %6421 = vmax.xlane.f32.xlu0 %v6420
        %v6422 = vpop.xlane.xlu0 %6421
        %v6423 = vmax.f32 %v5663, %v5665
        %6424 = vmax.xlane.f32.xlu0 %v6423
        %v6425 = vpop.xlane.xlu0 %6424
        %v6426 = vmax.f32 %v5667, %v5669
        %6427 = vmax.xlane.f32.xlu0 %v6426
        %v6428 = vpop.xlane.xlu0 %6427
        %v6429 = vmax.f32 %v5673, %v5675
        %6430 = vmax.xlane.f32.xlu0 %v6429
        %v6431 = vpop.xlane.xlu0 %6430
        %v6432 = vmax.f32 %v5677, %v5679
        %6433 = vmax.xlane.f32.xlu0 %v6432
        %v6434 = vpop.xlane.xlu0 %6433
        %v6435 = vmax.f32 %v5683, %v5685
        %6436 = vmax.xlane.f32.xlu0 %v6435
        %v6437 = vpop.xlane.xlu0 %6436
        %v6438 = vmax.f32 %v5687, %v5689
        %6439 = vmax.xlane.f32.xlu0 %v6438
        %v6440 = vpop.xlane.xlu0 %6439
        %v6441 = vmax.f32 %v5693, %v5695
        %6442 = vmax.xlane.f32.xlu0 %v6441
        %v6443 = vpop.xlane.xlu0 %6442
        %v6444 = vmax.f32 %v5697, %v5699
        %6445 = vmax.xlane.f32.xlu0 %v6444
        %v6446 = vpop.xlane.xlu0 %6445
        %v6447 = vmax.f32 %v5703, %v5705
        %6448 = vmax.xlane.f32.xlu0 %v6447
        %v6449 = vpop.xlane.xlu0 %6448
        %v6450 = vmax.f32 %v5707, %v5709
        %6451 = vmax.xlane.f32.xlu0 %v6450
        %v6452 = vpop.xlane.xlu0 %6451
        %v6453 = vmax.f32 %v5713, %v5715
        %6454 = vmax.xlane.f32.xlu0 %v6453
        %v6455 = vpop.xlane.xlu0 %6454
        %v6456 = vmax.f32 %v5717, %v5719
        %6457 = vmax.xlane.f32.xlu0 %v6456
        %v6458 = vpop.xlane.xlu0 %6457
        %v6459 = vmax.f32 %v5836, %v5838
        %6460 = vmax.xlane.f32.xlu0 %v6459
        %v6461 = vpop.xlane.xlu0 %6460
        %v6462 = vmax.f32 %v5840, %v5842
        %6463 = vmax.xlane.f32.xlu0 %v6462
        %v6464 = vpop.xlane.xlu0 %6463
        %v6465 = vmax.f32 %v5846, %v5848
        %6466 = vmax.xlane.f32.xlu0 %v6465
        %v6467 = vpop.xlane.xlu0 %6466
        %v6468 = vmax.f32 %v5850, %v5852
        %6469 = vmax.xlane.f32.xlu0 %v6468
        %v6470 = vpop.xlane.xlu0 %6469
        %v6471 = vmax.f32 %v5856, %v5858
        %6472 = vmax.xlane.f32.xlu0 %v6471
        %v6473 = vpop.xlane.xlu0 %6472
        %v6474 = vmax.f32 %v5860, %v5862
        %6475 = vmax.xlane.f32.xlu0 %v6474
        %v6476 = vpop.xlane.xlu0 %6475
        %v6477 = vmax.f32 %v5866, %v5868
        %6478 = vmax.xlane.f32.xlu0 %v6477
        %v6479 = vpop.xlane.xlu0 %6478
        %v6480 = vmax.f32 %v5870, %v5872
        %6481 = vmax.xlane.f32.xlu0 %v6480
        %v6482 = vpop.xlane.xlu0 %6481
        %v6483 = vmax.f32 %v5876, %v5878
        %6484 = vmax.xlane.f32.xlu0 %v6483
        %v6485 = vpop.xlane.xlu0 %6484
        %v6486 = vmax.f32 %v5880, %v5882
        %6487 = vmax.xlane.f32.xlu0 %v6486
        %v6488 = vpop.xlane.xlu0 %6487
        %v6489 = vmax.f32 %v5886, %v5888
        %6490 = vmax.xlane.f32.xlu0 %v6489
        %v6491 = vpop.xlane.xlu0 %6490
        %v6492 = vmax.f32 %v5890, %v5892
        %6493 = vmax.xlane.f32.xlu0 %v6492
        %v6494 = vpop.xlane.xlu0 %6493
        %v6495 = vmax.f32 %v5896, %v5898
        %6496 = vmax.xlane.f32.xlu0 %v6495
        %v6497 = vpop.xlane.xlu0 %6496
        %v6498 = vmax.f32 %v5900, %v5902
        %6499 = vmax.xlane.f32.xlu0 %v6498
        %v6500 = vpop.xlane.xlu0 %6499
        %v6501 = vmax.f32 %v5906, %v5908
        %6502 = vmax.xlane.f32.xlu0 %v6501
        %v6503 = vpop.xlane.xlu0 %6502
        %v6504 = vmax.f32 %v5910, %v5912
        %6505 = vmax.xlane.f32.xlu0 %v6504
        %v6506 = vpop.xlane.xlu0 %6505
        %v6507 = vmax.f32 %v5916, %v5918
        %6508 = vmax.xlane.f32.xlu0 %v6507
        %v6509 = vpop.xlane.xlu0 %6508
        %v6510 = vmax.f32 %v5920, %v5922
        %6511 = vmax.xlane.f32.xlu0 %v6510
        %v6512 = vpop.xlane.xlu0 %6511
        %v6513 = vmax.f32 %v5926, %v5928
        %6514 = vmax.xlane.f32.xlu0 %v6513
        %v6515 = vpop.xlane.xlu0 %6514
        %v6516 = vmax.f32 %v5930, %v5932
        %6517 = vmax.xlane.f32.xlu0 %v6516
        %v6518 = vpop.xlane.xlu0 %6517
        %v6519 = vmax.f32 %v5936, %v5938
        %6520 = vmax.xlane.f32.xlu0 %v6519
        %v6521 = vpop.xlane.xlu0 %6520
        %v6522 = vmax.f32 %v5940, %v5942
        %6523 = vmax.xlane.f32.xlu0 %v6522
        %v6524 = vpop.xlane.xlu0 %6523
        %v6525 = vmax.f32 %v5946, %v5948
        %6526 = vmax.xlane.f32.xlu0 %v6525
        %v6527 = vpop.xlane.xlu0 %6526
        %v6528 = vmax.f32 %v5950, %v5952
        %6529 = vmax.xlane.f32.xlu0 %v6528
        %v6530 = vpop.xlane.xlu0 %6529
        %v6531 = vmax.f32 %v5956, %v5958
        %6532 = vmax.xlane.f32.xlu0 %v6531
        %v6533 = vpop.xlane.xlu0 %6532
        %v6534 = vmax.f32 %v5960, %v5962
        %6535 = vmax.xlane.f32.xlu0 %v6534
        %v6536 = vpop.xlane.xlu0 %6535
        %v6537 = vmax.f32 %v5966, %v5968
        %6538 = vmax.xlane.f32.xlu0 %v6537
        %v6539 = vpop.xlane.xlu0 %6538
        %v6540 = vmax.f32 %v5970, %v5972
        %6541 = vmax.xlane.f32.xlu0 %v6540
        %v6542 = vpop.xlane.xlu0 %6541
        %v6543 = vmax.f32 %v5976, %v5978
        %6544 = vmax.xlane.f32.xlu0 %v6543
        %v6545 = vpop.xlane.xlu0 %6544
        %v6546 = vmax.f32 %v5980, %v5982
        %6547 = vmax.xlane.f32.xlu0 %v6546
        %v6548 = vpop.xlane.xlu0 %6547
        %v6549 = vmax.f32 %v5986, %v5988
        %6550 = vmax.xlane.f32.xlu0 %v6549
        %v6551 = vpop.xlane.xlu0 %6550
        %v6552 = vmax.f32 %v5990, %v5992
        %6553 = vmax.xlane.f32.xlu0 %v6552
        %v6554 = vpop.xlane.xlu0 %6553
        %v6555 = vmax.f32 %v6109, %v6111
        %6556 = vmax.xlane.f32.xlu0 %v6555
        %v6557 = vpop.xlane.xlu0 %6556
        %v6558 = vmax.f32 %v6113, %v6115
        %6559 = vmax.xlane.f32.xlu0 %v6558
        %v6560 = vpop.xlane.xlu0 %6559
        %v6561 = vmax.f32 %v6119, %v6121
        %6562 = vmax.xlane.f32.xlu0 %v6561
        %v6563 = vpop.xlane.xlu0 %6562
        %v6564 = vmax.f32 %v6123, %v6125
        %6565 = vmax.xlane.f32.xlu0 %v6564
        %v6566 = vpop.xlane.xlu0 %6565
        %v6567 = vmax.f32 %v6129, %v6131
        %6568 = vmax.xlane.f32.xlu0 %v6567
        %v6569 = vpop.xlane.xlu0 %6568
        %v6570 = vmax.f32 %v6133, %v6135
        %6571 = vmax.xlane.f32.xlu0 %v6570
        %v6572 = vpop.xlane.xlu0 %6571
        %v6573 = vmax.f32 %v6139, %v6141
        %6574 = vmax.xlane.f32.xlu0 %v6573
        %v6575 = vpop.xlane.xlu0 %6574
        %v6576 = vmax.f32 %v6143, %v6145
        %6577 = vmax.xlane.f32.xlu0 %v6576
        %v6578 = vpop.xlane.xlu0 %6577
        %v6579 = vmax.f32 %v6149, %v6151
        %6580 = vmax.xlane.f32.xlu0 %v6579
        %v6581 = vpop.xlane.xlu0 %6580
        %v6582 = vmax.f32 %v6153, %v6155
        %6583 = vmax.xlane.f32.xlu0 %v6582
        %v6584 = vpop.xlane.xlu0 %6583
        %v6585 = vmax.f32 %v6159, %v6161
        %6586 = vmax.xlane.f32.xlu0 %v6585
        %v6587 = vpop.xlane.xlu0 %6586
        %v6588 = vmax.f32 %v6163, %v6165
        %6589 = vmax.xlane.f32.xlu0 %v6588
        %v6590 = vpop.xlane.xlu0 %6589
        %v6591 = vmax.f32 %v6169, %v6171
        %6592 = vmax.xlane.f32.xlu0 %v6591
        %v6593 = vpop.xlane.xlu0 %6592
        %v6594 = vmax.f32 %v6173, %v6175
        %6595 = vmax.xlane.f32.xlu0 %v6594
        %v6596 = vpop.xlane.xlu0 %6595
        %v6597 = vmax.f32 %v6179, %v6181
        %6598 = vmax.xlane.f32.xlu0 %v6597
        %v6599 = vpop.xlane.xlu0 %6598
        %v6600 = vmax.f32 %v6183, %v6185
        %6601 = vmax.xlane.f32.xlu0 %v6600
        %v6602 = vpop.xlane.xlu0 %6601
        %v6603 = vmax.f32 %v6189, %v6191
        %6604 = vmax.xlane.f32.xlu0 %v6603
        %v6605 = vpop.xlane.xlu0 %6604
        %v6606 = vmax.f32 %v6193, %v6195
        %6607 = vmax.xlane.f32.xlu0 %v6606
        %v6608 = vpop.xlane.xlu0 %6607
        %v6609 = vmax.f32 %v6199, %v6201
        %6610 = vmax.xlane.f32.xlu0 %v6609
        %v6611 = vpop.xlane.xlu0 %6610
        %v6612 = vmax.f32 %v6203, %v6205
        %6613 = vmax.xlane.f32.xlu0 %v6612
        %v6614 = vpop.xlane.xlu0 %6613
        %v6615 = vmax.f32 %v6209, %v6211
        %6616 = vmax.xlane.f32.xlu0 %v6615
        %v6617 = vpop.xlane.xlu0 %6616
        %v6618 = vmax.f32 %v6213, %v6215
        %6619 = vmax.xlane.f32.xlu0 %v6618
        %v6620 = vpop.xlane.xlu0 %6619
        %v6621 = vmax.f32 %v6219, %v6221
        %6622 = vmax.xlane.f32.xlu0 %v6621
        %v6623 = vpop.xlane.xlu0 %6622
        %v6624 = vmax.f32 %v6223, %v6225
        %6625 = vmax.xlane.f32.xlu0 %v6624
        %v6626 = vpop.xlane.xlu0 %6625
        %v6627 = vmax.f32 %v6229, %v6231
        %6628 = vmax.xlane.f32.xlu0 %v6627
        %v6629 = vpop.xlane.xlu0 %6628
        %v6630 = vmax.f32 %v6233, %v6235
        %6631 = vmax.xlane.f32.xlu0 %v6630
        %v6632 = vpop.xlane.xlu0 %6631
        %v6633 = vmax.f32 %v6239, %v6241
        %6634 = vmax.xlane.f32.xlu0 %v6633
        %v6635 = vpop.xlane.xlu0 %6634
        %v6636 = vmax.f32 %v6243, %v6245
        %6637 = vmax.xlane.f32.xlu0 %v6636
        %v6638 = vpop.xlane.xlu0 %6637
        %v6639 = vmax.f32 %v6249, %v6251
        %6640 = vmax.xlane.f32.xlu0 %v6639
        %v6641 = vpop.xlane.xlu0 %6640
        %v6642 = vmax.f32 %v6253, %v6255
        %6643 = vmax.xlane.f32.xlu0 %v6642
        %v6644 = vpop.xlane.xlu0 %6643
        %v6645 = vmax.f32 %v6259, %v6261
        %6646 = vmax.xlane.f32.xlu0 %v6645
        %v6647 = vpop.xlane.xlu0 %6646
        %v6648 = vmax.f32 %v6263, %v6265
        %6649 = vmax.xlane.f32.xlu0 %v6648
        %v6650 = vpop.xlane.xlu0 %6649
        %v6651 = vsub.f32 %v5290, %v6269
        %v6652 = vsub.f32 %v5292, %v6269
        %v6653 = vsub.f32 %v5294, %v6272
        %v6654 = vsub.f32 %v5296, %v6272
        %v6655 = vsub.f32 %v5300, %v6275
        %v6656 = vsub.f32 %v5302, %v6275
        %v6657 = vsub.f32 %v5304, %v6278
        %v6658 = vsub.f32 %v5306, %v6278
        %v6659 = vsub.f32 %v5310, %v6281
        %v6660 = vsub.f32 %v5312, %v6281
        %v6661 = vsub.f32 %v5314, %v6284
        %v6662 = vsub.f32 %v5316, %v6284
        %v6663 = vsub.f32 %v5320, %v6287
        %v6664 = vsub.f32 %v5322, %v6287
        %v6665 = vsub.f32 %v5324, %v6290
        %v6666 = vsub.f32 %v5326, %v6290
        %v6667 = vsub.f32 %v5330, %v6293
        %v6668 = vsub.f32 %v5332, %v6293
        %v6669 = vsub.f32 %v5334, %v6296
        %v6670 = vsub.f32 %v5336, %v6296
        %v6671 = vsub.f32 %v5340, %v6299
        %v6672 = vsub.f32 %v5342, %v6299
        %v6673 = vsub.f32 %v5344, %v6302
        %v6674 = vsub.f32 %v5346, %v6302
        %v6675 = vsub.f32 %v5350, %v6305
        %v6676 = vsub.f32 %v5352, %v6305
        %v6677 = vsub.f32 %v5354, %v6308
        %v6678 = vsub.f32 %v5356, %v6308
        %v6679 = vsub.f32 %v5360, %v6311
        %v6680 = vsub.f32 %v5362, %v6311
        %v6681 = vsub.f32 %v5364, %v6314
        %v6682 = vsub.f32 %v5366, %v6314
        %v6683 = vsub.f32 %v5370, %v6317
        %v6684 = vsub.f32 %v5372, %v6317
        %v6685 = vsub.f32 %v5374, %v6320
        %v6686 = vsub.f32 %v5376, %v6320
        %v6687 = vsub.f32 %v5380, %v6323
        %v6688 = vsub.f32 %v5382, %v6323
        %v6689 = vsub.f32 %v5384, %v6326
        %v6690 = vsub.f32 %v5386, %v6326
        %v6691 = vsub.f32 %v5390, %v6329
        %v6692 = vsub.f32 %v5392, %v6329
        %v6693 = vsub.f32 %v5394, %v6332
        %v6694 = vsub.f32 %v5396, %v6332
        %v6695 = vsub.f32 %v5400, %v6335
        %v6696 = vsub.f32 %v5402, %v6335
        %v6697 = vsub.f32 %v5404, %v6338
        %v6698 = vsub.f32 %v5406, %v6338
        %v6699 = vsub.f32 %v5410, %v6341
        %v6700 = vsub.f32 %v5412, %v6341
        %v6701 = vsub.f32 %v5414, %v6344
        %v6702 = vsub.f32 %v5416, %v6344
        %v6703 = vsub.f32 %v5420, %v6347
        %v6704 = vsub.f32 %v5422, %v6347
        %v6705 = vsub.f32 %v5424, %v6350
        %v6706 = vsub.f32 %v5426, %v6350
        %v6707 = vsub.f32 %v5430, %v6353
        %v6708 = vsub.f32 %v5432, %v6353
        %v6709 = vsub.f32 %v5434, %v6356
        %v6710 = vsub.f32 %v5436, %v6356
        %v6711 = vsub.f32 %v5440, %v6359
        %v6712 = vsub.f32 %v5442, %v6359
        %v6713 = vsub.f32 %v5444, %v6362
        %v6714 = vsub.f32 %v5446, %v6362
        %v6715 = vsub.f32 %v5563, %v6365
        %v6716 = vsub.f32 %v5565, %v6365
        %v6717 = vsub.f32 %v5567, %v6368
        %v6718 = vsub.f32 %v5569, %v6368
        %v6719 = vsub.f32 %v5573, %v6371
        %v6720 = vsub.f32 %v5575, %v6371
        %v6721 = vsub.f32 %v5577, %v6374
        %v6722 = vsub.f32 %v5579, %v6374
        %v6723 = vsub.f32 %v5583, %v6377
        %v6724 = vsub.f32 %v5585, %v6377
        %v6725 = vsub.f32 %v5587, %v6380
        %v6726 = vsub.f32 %v5589, %v6380
        %v6727 = vsub.f32 %v5593, %v6383
        %v6728 = vsub.f32 %v5595, %v6383
        %v6729 = vsub.f32 %v5597, %v6386
        %v6730 = vsub.f32 %v5599, %v6386
        %v6731 = vsub.f32 %v5603, %v6389
        %v6732 = vsub.f32 %v5605, %v6389
        %v6733 = vsub.f32 %v5607, %v6392
        %v6734 = vsub.f32 %v5609, %v6392
        %v6735 = vsub.f32 %v5613, %v6395
        %v6736 = vsub.f32 %v5615, %v6395
        %v6737 = vsub.f32 %v5617, %v6398
        %v6738 = vsub.f32 %v5619, %v6398
        %v6739 = vsub.f32 %v5623, %v6401
        %v6740 = vsub.f32 %v5625, %v6401
        %v6741 = vsub.f32 %v5627, %v6404
        %v6742 = vsub.f32 %v5629, %v6404
        %v6743 = vsub.f32 %v5633, %v6407
        %v6744 = vsub.f32 %v5635, %v6407
        %v6745 = vsub.f32 %v5637, %v6410
        %v6746 = vsub.f32 %v5639, %v6410
        %v6747 = vsub.f32 %v5643, %v6413
        %v6748 = vsub.f32 %v5645, %v6413
        %v6749 = vsub.f32 %v5647, %v6416
        %v6750 = vsub.f32 %v5649, %v6416
        %v6751 = vsub.f32 %v5653, %v6419
        %v6752 = vsub.f32 %v5655, %v6419
        %v6753 = vsub.f32 %v5657, %v6422
        %v6754 = vsub.f32 %v5659, %v6422
        %v6755 = vsub.f32 %v5663, %v6425
        %v6756 = vsub.f32 %v5665, %v6425
        %v6757 = vsub.f32 %v5667, %v6428
        %v6758 = vsub.f32 %v5669, %v6428
        %v6759 = vsub.f32 %v5673, %v6431
        %v6760 = vsub.f32 %v5675, %v6431
        %v6761 = vsub.f32 %v5677, %v6434
        %v6762 = vsub.f32 %v5679, %v6434
        %v6763 = vsub.f32 %v5683, %v6437
        %v6764 = vsub.f32 %v5685, %v6437
        %v6765 = vsub.f32 %v5687, %v6440
        %v6766 = vsub.f32 %v5689, %v6440
        %v6767 = vsub.f32 %v5693, %v6443
        %v6768 = vsub.f32 %v5695, %v6443
        %v6769 = vsub.f32 %v5697, %v6446
        %v6770 = vsub.f32 %v5699, %v6446
        %v6771 = vsub.f32 %v5703, %v6449
        %v6772 = vsub.f32 %v5705, %v6449
        %v6773 = vsub.f32 %v5707, %v6452
        %v6774 = vsub.f32 %v5709, %v6452
        %v6775 = vsub.f32 %v5713, %v6455
        %v6776 = vsub.f32 %v5715, %v6455
        %v6777 = vsub.f32 %v5717, %v6458
        %v6778 = vsub.f32 %v5719, %v6458
        %v6779 = vsub.f32 %v5836, %v6461
        %v6780 = vsub.f32 %v5838, %v6461
        %v6781 = vsub.f32 %v5840, %v6464
        %v6782 = vsub.f32 %v5842, %v6464
        %v6783 = vsub.f32 %v5846, %v6467
        %v6784 = vsub.f32 %v5848, %v6467
        %v6785 = vsub.f32 %v5850, %v6470
        %v6786 = vsub.f32 %v5852, %v6470
        %v6787 = vsub.f32 %v5856, %v6473
        %v6788 = vsub.f32 %v5858, %v6473
        %v6789 = vsub.f32 %v5860, %v6476
        %v6790 = vsub.f32 %v5862, %v6476
        %v6791 = vsub.f32 %v5866, %v6479
        %v6792 = vsub.f32 %v5868, %v6479
        %v6793 = vsub.f32 %v5870, %v6482
        %v6794 = vsub.f32 %v5872, %v6482
        %v6795 = vsub.f32 %v5876, %v6485
        %v6796 = vsub.f32 %v5878, %v6485
        %v6797 = vsub.f32 %v5880, %v6488
        %v6798 = vsub.f32 %v5882, %v6488
        %v6799 = vsub.f32 %v5886, %v6491
        %v6800 = vsub.f32 %v5888, %v6491
        %v6801 = vsub.f32 %v5890, %v6494
        %v6802 = vsub.f32 %v5892, %v6494
        %v6803 = vsub.f32 %v5896, %v6497
        %v6804 = vsub.f32 %v5898, %v6497
        %v6805 = vsub.f32 %v5900, %v6500
        %v6806 = vsub.f32 %v5902, %v6500
        %v6807 = vsub.f32 %v5906, %v6503
        %v6808 = vsub.f32 %v5908, %v6503
        %v6809 = vsub.f32 %v5910, %v6506
        %v6810 = vsub.f32 %v5912, %v6506
        %v6811 = vsub.f32 %v5916, %v6509
        %v6812 = vsub.f32 %v5918, %v6509
        %v6813 = vsub.f32 %v5920, %v6512
        %v6814 = vsub.f32 %v5922, %v6512
        %v6815 = vsub.f32 %v5926, %v6515
        %v6816 = vsub.f32 %v5928, %v6515
        %v6817 = vsub.f32 %v5930, %v6518
        %v6818 = vsub.f32 %v5932, %v6518
        %v6819 = vsub.f32 %v5936, %v6521
        %v6820 = vsub.f32 %v5938, %v6521
        %v6821 = vsub.f32 %v5940, %v6524
        %v6822 = vsub.f32 %v5942, %v6524
        %v6823 = vsub.f32 %v5946, %v6527
        %v6824 = vsub.f32 %v5948, %v6527
        %v6825 = vsub.f32 %v5950, %v6530
        %v6826 = vsub.f32 %v5952, %v6530
        %v6827 = vsub.f32 %v5956, %v6533
        %v6828 = vsub.f32 %v5958, %v6533
        %v6829 = vsub.f32 %v5960, %v6536
        %v6830 = vsub.f32 %v5962, %v6536
        %v6831 = vsub.f32 %v5966, %v6539
        %v6832 = vsub.f32 %v5968, %v6539
        %v6833 = vsub.f32 %v5970, %v6542
        %v6834 = vsub.f32 %v5972, %v6542
        %v6835 = vsub.f32 %v5976, %v6545
        %v6836 = vsub.f32 %v5978, %v6545
        %v6837 = vsub.f32 %v5980, %v6548
        %v6838 = vsub.f32 %v5982, %v6548
        %v6839 = vsub.f32 %v5986, %v6551
        %v6840 = vsub.f32 %v5988, %v6551
        %v6841 = vsub.f32 %v5990, %v6554
        %v6842 = vsub.f32 %v5992, %v6554
        %v6843 = vsub.f32 %v6109, %v6557
        %v6844 = vsub.f32 %v6111, %v6557
        %v6845 = vsub.f32 %v6113, %v6560
        %v6846 = vsub.f32 %v6115, %v6560
        %v6847 = vsub.f32 %v6119, %v6563
        %v6848 = vsub.f32 %v6121, %v6563
        %v6849 = vsub.f32 %v6123, %v6566
        %v6850 = vsub.f32 %v6125, %v6566
        %v6851 = vsub.f32 %v6129, %v6569
        %v6852 = vsub.f32 %v6131, %v6569
        %v6853 = vsub.f32 %v6133, %v6572
        %v6854 = vsub.f32 %v6135, %v6572
        %v6855 = vsub.f32 %v6139, %v6575
        %v6856 = vsub.f32 %v6141, %v6575
        %v6857 = vsub.f32 %v6143, %v6578
        %v6858 = vsub.f32 %v6145, %v6578
        %v6859 = vsub.f32 %v6149, %v6581
        %v6860 = vsub.f32 %v6151, %v6581
        %v6861 = vsub.f32 %v6153, %v6584
        %v6862 = vsub.f32 %v6155, %v6584
        %v6863 = vsub.f32 %v6159, %v6587
        %v6864 = vsub.f32 %v6161, %v6587
        %v6865 = vsub.f32 %v6163, %v6590
        %v6866 = vsub.f32 %v6165, %v6590
        %v6867 = vsub.f32 %v6169, %v6593
        %v6868 = vsub.f32 %v6171, %v6593
        %v6869 = vsub.f32 %v6173, %v6596
        %v6870 = vsub.f32 %v6175, %v6596
        %v6871 = vsub.f32 %v6179, %v6599
        %v6872 = vsub.f32 %v6181, %v6599
        %v6873 = vsub.f32 %v6183, %v6602
        %v6874 = vsub.f32 %v6185, %v6602
        %v6875 = vsub.f32 %v6189, %v6605
        %v6876 = vsub.f32 %v6191, %v6605
        %v6877 = vsub.f32 %v6193, %v6608
        %v6878 = vsub.f32 %v6195, %v6608
        %v6879 = vsub.f32 %v6199, %v6611
        %v6880 = vsub.f32 %v6201, %v6611
        %v6881 = vsub.f32 %v6203, %v6614
        %v6882 = vsub.f32 %v6205, %v6614
        %v6883 = vsub.f32 %v6209, %v6617
        %v6884 = vsub.f32 %v6211, %v6617
        %v6885 = vsub.f32 %v6213, %v6620
        %v6886 = vsub.f32 %v6215, %v6620
        %v6887 = vsub.f32 %v6219, %v6623
        %v6888 = vsub.f32 %v6221, %v6623
        %v6889 = vsub.f32 %v6223, %v6626
        %v6890 = vsub.f32 %v6225, %v6626
        %v6891 = vsub.f32 %v6229, %v6629
        %v6892 = vsub.f32 %v6231, %v6629
        %v6893 = vsub.f32 %v6233, %v6632
        %v6894 = vsub.f32 %v6235, %v6632
        %v6895 = vsub.f32 %v6239, %v6635
        %v6896 = vsub.f32 %v6241, %v6635
        %v6897 = vsub.f32 %v6243, %v6638
        %v6898 = vsub.f32 %v6245, %v6638
        %v6899 = vsub.f32 %v6249, %v6641
        %v6900 = vsub.f32 %v6251, %v6641
        %v6901 = vsub.f32 %v6253, %v6644
        %v6902 = vsub.f32 %v6255, %v6644
        %v6903 = vsub.f32 %v6259, %v6647
        %v6904 = vsub.f32 %v6261, %v6647
        %v6905 = vsub.f32 %v6263, %v6650
        %v6906 = vsub.f32 %v6265, %v6650
        %v6907 = vmul.f32 %v6651, 1.442695
        %v6908 = vpow.pop %v6907
        %v6909 = vmul.f32 %v6652, 1.442695
        %v6910 = vpow.pop %v6909
        %v6911 = vmul.f32 %v6653, 1.442695
        %v6912 = vpow.pop %v6911
        %v6913 = vmul.f32 %v6654, 1.442695
        %v6914 = vpow.pop %v6913
        %v6915 = vmul.f32 %v6655, 1.442695
        %v6916 = vpow.pop %v6915
        %v6917 = vmul.f32 %v6656, 1.442695
        %v6918 = vpow.pop %v6917
        %v6919 = vmul.f32 %v6657, 1.442695
        %v6920 = vpow.pop %v6919
        %v6921 = vmul.f32 %v6658, 1.442695
        %v6922 = vpow.pop %v6921
        %v6923 = vmul.f32 %v6659, 1.442695
        %v6924 = vpow.pop %v6923
        %v6925 = vmul.f32 %v6660, 1.442695
        %v6926 = vpow.pop %v6925
        %v6927 = vmul.f32 %v6661, 1.442695
        %v6928 = vpow.pop %v6927
        %v6929 = vmul.f32 %v6662, 1.442695
        %v6930 = vpow.pop %v6929
        %v6931 = vmul.f32 %v6663, 1.442695
        %v6932 = vpow.pop %v6931
        %v6933 = vmul.f32 %v6664, 1.442695
        %v6934 = vpow.pop %v6933
        %v6935 = vmul.f32 %v6665, 1.442695
        %v6936 = vpow.pop %v6935
        %v6937 = vmul.f32 %v6666, 1.442695
        %v6938 = vpow.pop %v6937
        %v6939 = vmul.f32 %v6667, 1.442695
        %v6940 = vpow.pop %v6939
        %v6941 = vmul.f32 %v6668, 1.442695
        %v6942 = vpow.pop %v6941
        %v6943 = vmul.f32 %v6669, 1.442695
        %v6944 = vpow.pop %v6943
        %v6945 = vmul.f32 %v6670, 1.442695
        %v6946 = vpow.pop %v6945
        %v6947 = vmul.f32 %v6671, 1.442695
        %v6948 = vpow.pop %v6947
        %v6949 = vmul.f32 %v6672, 1.442695
        %v6950 = vpow.pop %v6949
        %v6951 = vmul.f32 %v6673, 1.442695
        %v6952 = vpow.pop %v6951
        %v6953 = vmul.f32 %v6674, 1.442695
        %v6954 = vpow.pop %v6953
        %v6955 = vmul.f32 %v6675, 1.442695
        %v6956 = vpow.pop %v6955
        %v6957 = vmul.f32 %v6676, 1.442695
        %v6958 = vpow.pop %v6957
        %v6959 = vmul.f32 %v6677, 1.442695
        %v6960 = vpow.pop %v6959
        %v6961 = vmul.f32 %v6678, 1.442695
        %v6962 = vpow.pop %v6961
        %v6963 = vmul.f32 %v6679, 1.442695
        %v6964 = vpow.pop %v6963
        %v6965 = vmul.f32 %v6680, 1.442695
        %v6966 = vpow.pop %v6965
        %v6967 = vmul.f32 %v6681, 1.442695
        %v6968 = vpow.pop %v6967
        %v6969 = vmul.f32 %v6682, 1.442695
        %v6970 = vpow.pop %v6969
        %v6971 = vmul.f32 %v6683, 1.442695
        %v6972 = vpow.pop %v6971
        %v6973 = vmul.f32 %v6684, 1.442695
        %v6974 = vpow.pop %v6973
        %v6975 = vmul.f32 %v6685, 1.442695
        %v6976 = vpow.pop %v6975
        %v6977 = vmul.f32 %v6686, 1.442695
        %v6978 = vpow.pop %v6977
        %v6979 = vmul.f32 %v6687, 1.442695
        %v6980 = vpow.pop %v6979
        %v6981 = vmul.f32 %v6688, 1.442695
        %v6982 = vpow.pop %v6981
        %v6983 = vmul.f32 %v6689, 1.442695
        %v6984 = vpow.pop %v6983
        %v6985 = vmul.f32 %v6690, 1.442695
        %v6986 = vpow.pop %v6985
        %v6987 = vmul.f32 %v6691, 1.442695
        %v6988 = vpow.pop %v6987
        %v6989 = vmul.f32 %v6692, 1.442695
        %v6990 = vpow.pop %v6989
        %v6991 = vmul.f32 %v6693, 1.442695
        %v6992 = vpow.pop %v6991
        %v6993 = vmul.f32 %v6694, 1.442695
        %v6994 = vpow.pop %v6993
        %v6995 = vmul.f32 %v6695, 1.442695
        %v6996 = vpow.pop %v6995
        %v6997 = vmul.f32 %v6696, 1.442695
        %v6998 = vpow.pop %v6997
        %v6999 = vmul.f32 %v6697, 1.442695
        %v7000 = vpow.pop %v6999
        %v7001 = vmul.f32 %v6698, 1.442695
        %v7002 = vpow.pop %v7001
        %v7003 = vmul.f32 %v6699, 1.442695
        %v7004 = vpow.pop %v7003
        %v7005 = vmul.f32 %v6700, 1.442695
        %v7006 = vpow.pop %v7005
        %v7007 = vmul.f32 %v6701, 1.442695
        %v7008 = vpow.pop %v7007
        %v7009 = vmul.f32 %v6702, 1.442695
        %v7010 = vpow.pop %v7009
        %v7011 = vmul.f32 %v6703, 1.442695
        %v7012 = vpow.pop %v7011
        %v7013 = vmul.f32 %v6704, 1.442695
        %v7014 = vpow.pop %v7013
        %v7015 = vmul.f32 %v6705, 1.442695
        %v7016 = vpow.pop %v7015
        %v7017 = vmul.f32 %v6706, 1.442695
        %v7018 = vpow.pop %v7017
        %v7019 = vmul.f32 %v6707, 1.442695
        %v7020 = vpow.pop %v7019
        %v7021 = vmul.f32 %v6708, 1.442695
        %v7022 = vpow.pop %v7021
        %v7023 = vmul.f32 %v6709, 1.442695
        %v7024 = vpow.pop %v7023
        %v7025 = vmul.f32 %v6710, 1.442695
        %v7026 = vpow.pop %v7025
        %v7027 = vmul.f32 %v6711, 1.442695
        %v7028 = vpow.pop %v7027
        %v7029 = vmul.f32 %v6712, 1.442695
        %v7030 = vpow.pop %v7029
        %v7031 = vmul.f32 %v6713, 1.442695
        %v7032 = vpow.pop %v7031
        %v7033 = vmul.f32 %v6714, 1.442695
        %v7034 = vpow.pop %v7033
        %v7035 = vmul.f32 %v6715, 1.442695
        %v7036 = vpow.pop %v7035
        %v7037 = vmul.f32 %v6716, 1.442695
        %v7038 = vpow.pop %v7037
        %v7039 = vmul.f32 %v6717, 1.442695
        %v7040 = vpow.pop %v7039
        %v7041 = vmul.f32 %v6718, 1.442695
        %v7042 = vpow.pop %v7041
        %v7043 = vmul.f32 %v6719, 1.442695
        %v7044 = vpow.pop %v7043
        %v7045 = vmul.f32 %v6720, 1.442695
        %v7046 = vpow.pop %v7045
        %v7047 = vmul.f32 %v6721, 1.442695
        %v7048 = vpow.pop %v7047
        %v7049 = vmul.f32 %v6722, 1.442695
        %v7050 = vpow.pop %v7049
        %v7051 = vmul.f32 %v6723, 1.442695
        %v7052 = vpow.pop %v7051
        %v7053 = vmul.f32 %v6724, 1.442695
        %v7054 = vpow.pop %v7053
        %v7055 = vmul.f32 %v6725, 1.442695
        %v7056 = vpow.pop %v7055
        %v7057 = vmul.f32 %v6726, 1.442695
        %v7058 = vpow.pop %v7057
        %v7059 = vmul.f32 %v6727, 1.442695
        %v7060 = vpow.pop %v7059
        %v7061 = vmul.f32 %v6728, 1.442695
        %v7062 = vpow.pop %v7061
        %v7063 = vmul.f32 %v6729, 1.442695
        %v7064 = vpow.pop %v7063
        %v7065 = vmul.f32 %v6730, 1.442695
        %v7066 = vpow.pop %v7065
        %v7067 = vmul.f32 %v6731, 1.442695
        %v7068 = vpow.pop %v7067
        %v7069 = vmul.f32 %v6732, 1.442695
        %v7070 = vpow.pop %v7069
        %v7071 = vmul.f32 %v6733, 1.442695
        %v7072 = vpow.pop %v7071
        %v7073 = vmul.f32 %v6734, 1.442695
        %v7074 = vpow.pop %v7073
        %v7075 = vmul.f32 %v6735, 1.442695
        %v7076 = vpow.pop %v7075
        %v7077 = vmul.f32 %v6736, 1.442695
        %v7078 = vpow.pop %v7077
        %v7079 = vmul.f32 %v6737, 1.442695
        %v7080 = vpow.pop %v7079
        %v7081 = vmul.f32 %v6738, 1.442695
        %v7082 = vpow.pop %v7081
        %v7083 = vmul.f32 %v6739, 1.442695
        %v7084 = vpow.pop %v7083
        %v7085 = vmul.f32 %v6740, 1.442695
        %v7086 = vpow.pop %v7085
        %v7087 = vmul.f32 %v6741, 1.442695
        %v7088 = vpow.pop %v7087
        %v7089 = vmul.f32 %v6742, 1.442695
        %v7090 = vpow.pop %v7089
        %v7091 = vmul.f32 %v6743, 1.442695
        %v7092 = vpow.pop %v7091
        %v7093 = vmul.f32 %v6744, 1.442695
        %v7094 = vpow.pop %v7093
        %v7095 = vmul.f32 %v6745, 1.442695
        %v7096 = vpow.pop %v7095
        %v7097 = vmul.f32 %v6746, 1.442695
        %v7098 = vpow.pop %v7097
        %v7099 = vmul.f32 %v6747, 1.442695
        %v7100 = vpow.pop %v7099
        %v7101 = vmul.f32 %v6748, 1.442695
        %v7102 = vpow.pop %v7101
        %v7103 = vmul.f32 %v6749, 1.442695
        %v7104 = vpow.pop %v7103
        %v7105 = vmul.f32 %v6750, 1.442695
        %v7106 = vpow.pop %v7105
        %v7107 = vmul.f32 %v6751, 1.442695
        %v7108 = vpow.pop %v7107
        %v7109 = vmul.f32 %v6752, 1.442695
        %v7110 = vpow.pop %v7109
        %v7111 = vmul.f32 %v6753, 1.442695
        %v7112 = vpow.pop %v7111
        %v7113 = vmul.f32 %v6754, 1.442695
        %v7114 = vpow.pop %v7113
        %v7115 = vmul.f32 %v6755, 1.442695
        %v7116 = vpow.pop %v7115
        %v7117 = vmul.f32 %v6756, 1.442695
        %v7118 = vpow.pop %v7117
        %v7119 = vmul.f32 %v6757, 1.442695
        %v7120 = vpow.pop %v7119
        %v7121 = vmul.f32 %v6758, 1.442695
        %v7122 = vpow.pop %v7121
        %v7123 = vmul.f32 %v6759, 1.442695
        %v7124 = vpow.pop %v7123
        %v7125 = vmul.f32 %v6760, 1.442695
        %v7126 = vpow.pop %v7125
        %v7127 = vmul.f32 %v6761, 1.442695
        %v7128 = vpow.pop %v7127
        %v7129 = vmul.f32 %v6762, 1.442695
        %v7130 = vpow.pop %v7129
        %v7131 = vmul.f32 %v6763, 1.442695
        %v7132 = vpow.pop %v7131
        %v7133 = vmul.f32 %v6764, 1.442695
        %v7134 = vpow.pop %v7133
        %v7135 = vmul.f32 %v6765, 1.442695
        %v7136 = vpow.pop %v7135
        %v7137 = vmul.f32 %v6766, 1.442695
        %v7138 = vpow.pop %v7137
        %v7139 = vmul.f32 %v6767, 1.442695
        %v7140 = vpow.pop %v7139
        %v7141 = vmul.f32 %v6768, 1.442695
        %v7142 = vpow.pop %v7141
        %v7143 = vmul.f32 %v6769, 1.442695
        %v7144 = vpow.pop %v7143
        %v7145 = vmul.f32 %v6770, 1.442695
        %v7146 = vpow.pop %v7145
        %v7147 = vmul.f32 %v6771, 1.442695
        %v7148 = vpow.pop %v7147
        %v7149 = vmul.f32 %v6772, 1.442695
        %v7150 = vpow.pop %v7149
        %v7151 = vmul.f32 %v6773, 1.442695
        %v7152 = vpow.pop %v7151
        %v7153 = vmul.f32 %v6774, 1.442695
        %v7154 = vpow.pop %v7153
        %v7155 = vmul.f32 %v6775, 1.442695
        %v7156 = vpow.pop %v7155
        %v7157 = vmul.f32 %v6776, 1.442695
        %v7158 = vpow.pop %v7157
        %v7159 = vmul.f32 %v6777, 1.442695
        %v7160 = vpow.pop %v7159
        %v7161 = vmul.f32 %v6778, 1.442695
        %v7162 = vpow.pop %v7161
        %v7163 = vmul.f32 %v6779, 1.442695
        %v7164 = vpow.pop %v7163
        %v7165 = vmul.f32 %v6780, 1.442695
        %v7166 = vpow.pop %v7165
        %v7167 = vmul.f32 %v6781, 1.442695
        %v7168 = vpow.pop %v7167
        %v7169 = vmul.f32 %v6782, 1.442695
        %v7170 = vpow.pop %v7169
        %v7171 = vmul.f32 %v6783, 1.442695
        %v7172 = vpow.pop %v7171
        %v7173 = vmul.f32 %v6784, 1.442695
        %v7174 = vpow.pop %v7173
        %v7175 = vmul.f32 %v6785, 1.442695
        %v7176 = vpow.pop %v7175
        %v7177 = vmul.f32 %v6786, 1.442695
        %v7178 = vpow.pop %v7177
        %v7179 = vmul.f32 %v6787, 1.442695
        %v7180 = vpow.pop %v7179
        %v7181 = vmul.f32 %v6788, 1.442695
        %v7182 = vpow.pop %v7181
        %v7183 = vmul.f32 %v6789, 1.442695
        %v7184 = vpow.pop %v7183
        %v7185 = vmul.f32 %v6790, 1.442695
        %v7186 = vpow.pop %v7185
        %v7187 = vmul.f32 %v6791, 1.442695
        %v7188 = vpow.pop %v7187
        %v7189 = vmul.f32 %v6792, 1.442695
        %v7190 = vpow.pop %v7189
        %v7191 = vmul.f32 %v6793, 1.442695
        %v7192 = vpow.pop %v7191
        %v7193 = vmul.f32 %v6794, 1.442695
        %v7194 = vpow.pop %v7193
        %v7195 = vmul.f32 %v6795, 1.442695
        %v7196 = vpow.pop %v7195
        %v7197 = vmul.f32 %v6796, 1.442695
        %v7198 = vpow.pop %v7197
        %v7199 = vmul.f32 %v6797, 1.442695
        %v7200 = vpow.pop %v7199
        %v7201 = vmul.f32 %v6798, 1.442695
        %v7202 = vpow.pop %v7201
        %v7203 = vmul.f32 %v6799, 1.442695
        %v7204 = vpow.pop %v7203
        %v7205 = vmul.f32 %v6800, 1.442695
        %v7206 = vpow.pop %v7205
        %v7207 = vmul.f32 %v6801, 1.442695
        %v7208 = vpow.pop %v7207
        %v7209 = vmul.f32 %v6802, 1.442695
        %v7210 = vpow.pop %v7209
        %v7211 = vmul.f32 %v6803, 1.442695
        %v7212 = vpow.pop %v7211
        %v7213 = vmul.f32 %v6804, 1.442695
        %v7214 = vpow.pop %v7213
        %v7215 = vmul.f32 %v6805, 1.442695
        %v7216 = vpow.pop %v7215
        %v7217 = vmul.f32 %v6806, 1.442695
        %v7218 = vpow.pop %v7217
        %v7219 = vmul.f32 %v6807, 1.442695
        %v7220 = vpow.pop %v7219
        %v7221 = vmul.f32 %v6808, 1.442695
        %v7222 = vpow.pop %v7221
        %v7223 = vmul.f32 %v6809, 1.442695
        %v7224 = vpow.pop %v7223
        %v7225 = vmul.f32 %v6810, 1.442695
        %v7226 = vpow.pop %v7225
        %v7227 = vmul.f32 %v6811, 1.442695
        %v7228 = vpow.pop %v7227
        %v7229 = vmul.f32 %v6812, 1.442695
        %v7230 = vpow.pop %v7229
        %v7231 = vmul.f32 %v6813, 1.442695
        %v7232 = vpow.pop %v7231
        %v7233 = vmul.f32 %v6814, 1.442695
        %v7234 = vpow.pop %v7233
        %v7235 = vmul.f32 %v6815, 1.442695
        %v7236 = vpow.pop %v7235
        %v7237 = vmul.f32 %v6816, 1.442695
        %v7238 = vpow.pop %v7237
        %v7239 = vmul.f32 %v6817, 1.442695
        %v7240 = vpow.pop %v7239
        %v7241 = vmul.f32 %v6818, 1.442695
        %v7242 = vpow.pop %v7241
        %v7243 = vmul.f32 %v6819, 1.442695
        %v7244 = vpow.pop %v7243
        %v7245 = vmul.f32 %v6820, 1.442695
        %v7246 = vpow.pop %v7245
        %v7247 = vmul.f32 %v6821, 1.442695
        %v7248 = vpow.pop %v7247
        %v7249 = vmul.f32 %v6822, 1.442695
        %v7250 = vpow.pop %v7249
        %v7251 = vmul.f32 %v6823, 1.442695
        %v7252 = vpow.pop %v7251
        %v7253 = vmul.f32 %v6824, 1.442695
        %v7254 = vpow.pop %v7253
        %v7255 = vmul.f32 %v6825, 1.442695
        %v7256 = vpow.pop %v7255
        %v7257 = vmul.f32 %v6826, 1.442695
        %v7258 = vpow.pop %v7257
        %v7259 = vmul.f32 %v6827, 1.442695
        %v7260 = vpow.pop %v7259
        %v7261 = vmul.f32 %v6828, 1.442695
        %v7262 = vpow.pop %v7261
        %v7263 = vmul.f32 %v6829, 1.442695
        %v7264 = vpow.pop %v7263
        %v7265 = vmul.f32 %v6830, 1.442695
        %v7266 = vpow.pop %v7265
        %v7267 = vmul.f32 %v6831, 1.442695
        %v7268 = vpow.pop %v7267
        %v7269 = vmul.f32 %v6832, 1.442695
        %v7270 = vpow.pop %v7269
        %v7271 = vmul.f32 %v6833, 1.442695
        %v7272 = vpow.pop %v7271
        %v7273 = vmul.f32 %v6834, 1.442695
        %v7274 = vpow.pop %v7273
        %v7275 = vmul.f32 %v6835, 1.442695
        %v7276 = vpow.pop %v7275
        %v7277 = vmul.f32 %v6836, 1.442695
        %v7278 = vpow.pop %v7277
        %v7279 = vmul.f32 %v6837, 1.442695
        %v7280 = vpow.pop %v7279
        %v7281 = vmul.f32 %v6838, 1.442695
        %v7282 = vpow.pop %v7281
        %v7283 = vmul.f32 %v6839, 1.442695
        %v7284 = vpow.pop %v7283
        %v7285 = vmul.f32 %v6840, 1.442695
        %v7286 = vpow.pop %v7285
        %v7287 = vmul.f32 %v6841, 1.442695
        %v7288 = vpow.pop %v7287
        %v7289 = vmul.f32 %v6842, 1.442695
        %v7290 = vpow.pop %v7289
        %v7291 = vmul.f32 %v6843, 1.442695
        %v7292 = vpow.pop %v7291
        %v7293 = vmul.f32 %v6844, 1.442695
        %v7294 = vpow.pop %v7293
        %v7295 = vmul.f32 %v6845, 1.442695
        %v7296 = vpow.pop %v7295
        %v7297 = vmul.f32 %v6846, 1.442695
        %v7298 = vpow.pop %v7297
        %v7299 = vmul.f32 %v6847, 1.442695
        %v7300 = vpow.pop %v7299
        %v7301 = vmul.f32 %v6848, 1.442695
        %v7302 = vpow.pop %v7301
        %v7303 = vmul.f32 %v6849, 1.442695
        %v7304 = vpow.pop %v7303
        %v7305 = vmul.f32 %v6850, 1.442695
        %v7306 = vpow.pop %v7305
        %v7307 = vmul.f32 %v6851, 1.442695
        %v7308 = vpow.pop %v7307
        %v7309 = vmul.f32 %v6852, 1.442695
        %v7310 = vpow.pop %v7309
        %v7311 = vmul.f32 %v6853, 1.442695
        %v7312 = vpow.pop %v7311
        %v7313 = vmul.f32 %v6854, 1.442695
        %v7314 = vpow.pop %v7313
        %v7315 = vmul.f32 %v6855, 1.442695
        %v7316 = vpow.pop %v7315
        %v7317 = vmul.f32 %v6856, 1.442695
        %v7318 = vpow.pop %v7317
        %v7319 = vmul.f32 %v6857, 1.442695
        %v7320 = vpow.pop %v7319
        %v7321 = vmul.f32 %v6858, 1.442695
        %v7322 = vpow.pop %v7321
        %v7323 = vmul.f32 %v6859, 1.442695
        %v7324 = vpow.pop %v7323
        %v7325 = vmul.f32 %v6860, 1.442695
        %v7326 = vpow.pop %v7325
        %v7327 = vmul.f32 %v6861, 1.442695
        %v7328 = vpow.pop %v7327
        %v7329 = vmul.f32 %v6862, 1.442695
        %v7330 = vpow.pop %v7329
        %v7331 = vmul.f32 %v6863, 1.442695
        %v7332 = vpow.pop %v7331
        %v7333 = vmul.f32 %v6864, 1.442695
        %v7334 = vpow.pop %v7333
        %v7335 = vmul.f32 %v6865, 1.442695
        %v7336 = vpow.pop %v7335
        %v7337 = vmul.f32 %v6866, 1.442695
        %v7338 = vpow.pop %v7337
        %v7339 = vmul.f32 %v6867, 1.442695
        %v7340 = vpow.pop %v7339
        %v7341 = vmul.f32 %v6868, 1.442695
        %v7342 = vpow.pop %v7341
        %v7343 = vmul.f32 %v6869, 1.442695
        %v7344 = vpow.pop %v7343
        %v7345 = vmul.f32 %v6870, 1.442695
        %v7346 = vpow.pop %v7345
        %v7347 = vmul.f32 %v6871, 1.442695
        %v7348 = vpow.pop %v7347
        %v7349 = vmul.f32 %v6872, 1.442695
        %v7350 = vpow.pop %v7349
        %v7351 = vmul.f32 %v6873, 1.442695
        %v7352 = vpow.pop %v7351
        %v7353 = vmul.f32 %v6874, 1.442695
        %v7354 = vpow.pop %v7353
        %v7355 = vmul.f32 %v6875, 1.442695
        %v7356 = vpow.pop %v7355
        %v7357 = vmul.f32 %v6876, 1.442695
        %v7358 = vpow.pop %v7357
        %v7359 = vmul.f32 %v6877, 1.442695
        %v7360 = vpow.pop %v7359
        %v7361 = vmul.f32 %v6878, 1.442695
        %v7362 = vpow.pop %v7361
        %v7363 = vmul.f32 %v6879, 1.442695
        %v7364 = vpow.pop %v7363
        %v7365 = vmul.f32 %v6880, 1.442695
        %v7366 = vpow.pop %v7365
        %v7367 = vmul.f32 %v6881, 1.442695
        %v7368 = vpow.pop %v7367
        %v7369 = vmul.f32 %v6882, 1.442695
        %v7370 = vpow.pop %v7369
        %v7371 = vmul.f32 %v6883, 1.442695
        %v7372 = vpow.pop %v7371
        %v7373 = vmul.f32 %v6884, 1.442695
        %v7374 = vpow.pop %v7373
        %v7375 = vmul.f32 %v6885, 1.442695
        %v7376 = vpow.pop %v7375
        %v7377 = vmul.f32 %v6886, 1.442695
        %v7378 = vpow.pop %v7377
        %v7379 = vmul.f32 %v6887, 1.442695
        %v7380 = vpow.pop %v7379
        %v7381 = vmul.f32 %v6888, 1.442695
        %v7382 = vpow.pop %v7381
        %v7383 = vmul.f32 %v6889, 1.442695
        %v7384 = vpow.pop %v7383
        %v7385 = vmul.f32 %v6890, 1.442695
        %v7386 = vpow.pop %v7385
        %v7387 = vmul.f32 %v6891, 1.442695
        %v7388 = vpow.pop %v7387
        %v7389 = vmul.f32 %v6892, 1.442695
        %v7390 = vpow.pop %v7389
        %v7391 = vmul.f32 %v6893, 1.442695
        %v7392 = vpow.pop %v7391
        %v7393 = vmul.f32 %v6894, 1.442695
        %v7394 = vpow.pop %v7393
        %v7395 = vmul.f32 %v6895, 1.442695
        %v7396 = vpow.pop %v7395
        %v7397 = vmul.f32 %v6896, 1.442695
        %v7398 = vpow.pop %v7397
        %v7399 = vmul.f32 %v6897, 1.442695
        %v7400 = vpow.pop %v7399
        %v7401 = vmul.f32 %v6898, 1.442695
        %v7402 = vpow.pop %v7401
        %v7403 = vmul.f32 %v6899, 1.442695
        %v7404 = vpow.pop %v7403
        %v7405 = vmul.f32 %v6900, 1.442695
        %v7406 = vpow.pop %v7405
        %v7407 = vmul.f32 %v6901, 1.442695
        %v7408 = vpow.pop %v7407
        %v7409 = vmul.f32 %v6902, 1.442695
        %v7410 = vpow.pop %v7409
        %v7411 = vmul.f32 %v6903, 1.442695
        %v7412 = vpow.pop %v7411
        %v7413 = vmul.f32 %v6904, 1.442695
        %v7414 = vpow.pop %v7413
        %v7415 = vmul.f32 %v6905, 1.442695
        %v7416 = vpow.pop %v7415
        %v7417 = vmul.f32 %v6906, 1.442695
        %v7418 = vpow.pop %v7417
        %v7419 = vadd.f32 %v6908, %v6910
        %7420 = vadd.xlane.f32.xlu0 %v7419
        %v7421 = vpop.xlane.xlu0 %7420
        %v7422 = vadd.f32 %v6912, %v6914
        %7423 = vadd.xlane.f32.xlu0 %v7422
        %v7424 = vpop.xlane.xlu0 %7423
        %v7425 = vadd.f32 %v6916, %v6918
        %7426 = vadd.xlane.f32.xlu0 %v7425
        %v7427 = vpop.xlane.xlu0 %7426
        %v7428 = vadd.f32 %v6920, %v6922
        %7429 = vadd.xlane.f32.xlu0 %v7428
        %v7430 = vpop.xlane.xlu0 %7429
        %v7431 = vadd.f32 %v6924, %v6926
        %7432 = vadd.xlane.f32.xlu0 %v7431
        %v7433 = vpop.xlane.xlu0 %7432
        %v7434 = vadd.f32 %v6928, %v6930
        %7435 = vadd.xlane.f32.xlu0 %v7434
        %v7436 = vpop.xlane.xlu0 %7435
        %v7437 = vadd.f32 %v6932, %v6934
        %7438 = vadd.xlane.f32.xlu0 %v7437
        %v7439 = vpop.xlane.xlu0 %7438
        %v7440 = vadd.f32 %v6936, %v6938
        %7441 = vadd.xlane.f32.xlu0 %v7440
        %v7442 = vpop.xlane.xlu0 %7441
        %v7443 = vadd.f32 %v6940, %v6942
        %7444 = vadd.xlane.f32.xlu0 %v7443
        %v7445 = vpop.xlane.xlu0 %7444
        %v7446 = vadd.f32 %v6944, %v6946
        %7447 = vadd.xlane.f32.xlu0 %v7446
        %v7448 = vpop.xlane.xlu0 %7447
        %v7449 = vadd.f32 %v6948, %v6950
        %7450 = vadd.xlane.f32.xlu0 %v7449
        %v7451 = vpop.xlane.xlu0 %7450
        %v7452 = vadd.f32 %v6952, %v6954
        %7453 = vadd.xlane.f32.xlu0 %v7452
        %v7454 = vpop.xlane.xlu0 %7453
        %v7455 = vadd.f32 %v6956, %v6958
        %7456 = vadd.xlane.f32.xlu0 %v7455
        %v7457 = vpop.xlane.xlu0 %7456
        %v7458 = vadd.f32 %v6960, %v6962
        %7459 = vadd.xlane.f32.xlu0 %v7458
        %v7460 = vpop.xlane.xlu0 %7459
        %v7461 = vadd.f32 %v6964, %v6966
        %7462 = vadd.xlane.f32.xlu0 %v7461
        %v7463 = vpop.xlane.xlu0 %7462
        %v7464 = vadd.f32 %v6968, %v6970
        %7465 = vadd.xlane.f32.xlu0 %v7464
        %v7466 = vpop.xlane.xlu0 %7465
        %v7467 = vadd.f32 %v6972, %v6974
        %7468 = vadd.xlane.f32.xlu0 %v7467
        %v7469 = vpop.xlane.xlu0 %7468
        %v7470 = vadd.f32 %v6976, %v6978
        %7471 = vadd.xlane.f32.xlu0 %v7470
        %v7472 = vpop.xlane.xlu0 %7471
        %v7473 = vadd.f32 %v6980, %v6982
        %7474 = vadd.xlane.f32.xlu0 %v7473
        %v7475 = vpop.xlane.xlu0 %7474
        %v7476 = vadd.f32 %v6984, %v6986
        %7477 = vadd.xlane.f32.xlu0 %v7476
        %v7478 = vpop.xlane.xlu0 %7477
        %v7479 = vadd.f32 %v6988, %v6990
        %7480 = vadd.xlane.f32.xlu0 %v7479
        %v7481 = vpop.xlane.xlu0 %7480
        %v7482 = vadd.f32 %v6992, %v6994
        %7483 = vadd.xlane.f32.xlu0 %v7482
        %v7484 = vpop.xlane.xlu0 %7483
        %v7485 = vadd.f32 %v6996, %v6998
        %7486 = vadd.xlane.f32.xlu0 %v7485
        %v7487 = vpop.xlane.xlu0 %7486
        %v7488 = vadd.f32 %v7000, %v7002
        %7489 = vadd.xlane.f32.xlu0 %v7488
        %v7490 = vpop.xlane.xlu0 %7489
        %v7491 = vadd.f32 %v7004, %v7006
        %7492 = vadd.xlane.f32.xlu0 %v7491
        %v7493 = vpop.xlane.xlu0 %7492
        %v7494 = vadd.f32 %v7008, %v7010
        %7495 = vadd.xlane.f32.xlu0 %v7494
        %v7496 = vpop.xlane.xlu0 %7495
        %v7497 = vadd.f32 %v7012, %v7014
        %7498 = vadd.xlane.f32.xlu0 %v7497
        %v7499 = vpop.xlane.xlu0 %7498
        %v7500 = vadd.f32 %v7016, %v7018
        %7501 = vadd.xlane.f32.xlu0 %v7500
        %v7502 = vpop.xlane.xlu0 %7501
        %v7503 = vadd.f32 %v7020, %v7022
        %7504 = vadd.xlane.f32.xlu0 %v7503
        %v7505 = vpop.xlane.xlu0 %7504
        %v7506 = vadd.f32 %v7024, %v7026
        %7507 = vadd.xlane.f32.xlu0 %v7506
        %v7508 = vpop.xlane.xlu0 %7507
        %v7509 = vadd.f32 %v7028, %v7030
        %7510 = vadd.xlane.f32.xlu0 %v7509
        %v7511 = vpop.xlane.xlu0 %7510
        %v7512 = vadd.f32 %v7032, %v7034
        %7513 = vadd.xlane.f32.xlu0 %v7512
        %v7514 = vpop.xlane.xlu0 %7513
        %v7515 = vadd.f32 %v7036, %v7038
        %7516 = vadd.xlane.f32.xlu0 %v7515
        %v7517 = vpop.xlane.xlu0 %7516
        %v7518 = vadd.f32 %v7040, %v7042
        %7519 = vadd.xlane.f32.xlu0 %v7518
        %v7520 = vpop.xlane.xlu0 %7519
        %v7521 = vadd.f32 %v7044, %v7046
        %7522 = vadd.xlane.f32.xlu0 %v7521
        %v7523 = vpop.xlane.xlu0 %7522
        %v7524 = vadd.f32 %v7048, %v7050
        %7525 = vadd.xlane.f32.xlu0 %v7524
        %v7526 = vpop.xlane.xlu0 %7525
        %v7527 = vadd.f32 %v7052, %v7054
        %7528 = vadd.xlane.f32.xlu0 %v7527
        %v7529 = vpop.xlane.xlu0 %7528
        %v7530 = vadd.f32 %v7056, %v7058
        %7531 = vadd.xlane.f32.xlu0 %v7530
        %v7532 = vpop.xlane.xlu0 %7531
        %v7533 = vadd.f32 %v7060, %v7062
        %7534 = vadd.xlane.f32.xlu0 %v7533
        %v7535 = vpop.xlane.xlu0 %7534
        %v7536 = vadd.f32 %v7064, %v7066
        %7537 = vadd.xlane.f32.xlu0 %v7536
        %v7538 = vpop.xlane.xlu0 %7537
        %v7539 = vadd.f32 %v7068, %v7070
        %7540 = vadd.xlane.f32.xlu0 %v7539
        %v7541 = vpop.xlane.xlu0 %7540
        %v7542 = vadd.f32 %v7072, %v7074
        %7543 = vadd.xlane.f32.xlu0 %v7542
        %v7544 = vpop.xlane.xlu0 %7543
        %v7545 = vadd.f32 %v7076, %v7078
        %7546 = vadd.xlane.f32.xlu0 %v7545
        %v7547 = vpop.xlane.xlu0 %7546
        %v7548 = vadd.f32 %v7080, %v7082
        %7549 = vadd.xlane.f32.xlu0 %v7548
        %v7550 = vpop.xlane.xlu0 %7549
        %v7551 = vadd.f32 %v7084, %v7086
        %7552 = vadd.xlane.f32.xlu0 %v7551
        %v7553 = vpop.xlane.xlu0 %7552
        %v7554 = vadd.f32 %v7088, %v7090
        %7555 = vadd.xlane.f32.xlu0 %v7554
        %v7556 = vpop.xlane.xlu0 %7555
        %v7557 = vadd.f32 %v7092, %v7094
        %7558 = vadd.xlane.f32.xlu0 %v7557
        %v7559 = vpop.xlane.xlu0 %7558
        %v7560 = vadd.f32 %v7096, %v7098
        %7561 = vadd.xlane.f32.xlu0 %v7560
        %v7562 = vpop.xlane.xlu0 %7561
        %v7563 = vadd.f32 %v7100, %v7102
        %7564 = vadd.xlane.f32.xlu0 %v7563
        %v7565 = vpop.xlane.xlu0 %7564
        %v7566 = vadd.f32 %v7104, %v7106
        %7567 = vadd.xlane.f32.xlu0 %v7566
        %v7568 = vpop.xlane.xlu0 %7567
        %v7569 = vadd.f32 %v7108, %v7110
        %7570 = vadd.xlane.f32.xlu0 %v7569
        %v7571 = vpop.xlane.xlu0 %7570
        %v7572 = vadd.f32 %v7112, %v7114
        %7573 = vadd.xlane.f32.xlu0 %v7572
        %v7574 = vpop.xlane.xlu0 %7573
        %v7575 = vadd.f32 %v7116, %v7118
        %7576 = vadd.xlane.f32.xlu0 %v7575
        %v7577 = vpop.xlane.xlu0 %7576
        %v7578 = vadd.f32 %v7120, %v7122
        %7579 = vadd.xlane.f32.xlu0 %v7578
        %v7580 = vpop.xlane.xlu0 %7579
        %v7581 = vadd.f32 %v7124, %v7126
        %7582 = vadd.xlane.f32.xlu0 %v7581
        %v7583 = vpop.xlane.xlu0 %7582
        %v7584 = vadd.f32 %v7128, %v7130
        %7585 = vadd.xlane.f32.xlu0 %v7584
        %v7586 = vpop.xlane.xlu0 %7585
        %v7587 = vadd.f32 %v7132, %v7134
        %7588 = vadd.xlane.f32.xlu0 %v7587
        %v7589 = vpop.xlane.xlu0 %7588
        %v7590 = vadd.f32 %v7136, %v7138
        %7591 = vadd.xlane.f32.xlu0 %v7590
        %v7592 = vpop.xlane.xlu0 %7591
        %v7593 = vadd.f32 %v7140, %v7142
        %7594 = vadd.xlane.f32.xlu0 %v7593
        %v7595 = vpop.xlane.xlu0 %7594
        %v7596 = vadd.f32 %v7144, %v7146
        %7597 = vadd.xlane.f32.xlu0 %v7596
        %v7598 = vpop.xlane.xlu0 %7597
        %v7599 = vadd.f32 %v7148, %v7150
        %7600 = vadd.xlane.f32.xlu0 %v7599
        %v7601 = vpop.xlane.xlu0 %7600
        %v7602 = vadd.f32 %v7152, %v7154
        %7603 = vadd.xlane.f32.xlu0 %v7602
        %v7604 = vpop.xlane.xlu0 %7603
        %v7605 = vadd.f32 %v7156, %v7158
        %7606 = vadd.xlane.f32.xlu0 %v7605
        %v7607 = vpop.xlane.xlu0 %7606
        %v7608 = vadd.f32 %v7160, %v7162
        %7609 = vadd.xlane.f32.xlu0 %v7608
        %v7610 = vpop.xlane.xlu0 %7609
        %v7611 = vadd.f32 %v7164, %v7166
        %7612 = vadd.xlane.f32.xlu0 %v7611
        %v7613 = vpop.xlane.xlu0 %7612
        %v7614 = vadd.f32 %v7168, %v7170
        %7615 = vadd.xlane.f32.xlu0 %v7614
        %v7616 = vpop.xlane.xlu0 %7615
        %v7617 = vadd.f32 %v7172, %v7174
        %7618 = vadd.xlane.f32.xlu0 %v7617
        %v7619 = vpop.xlane.xlu0 %7618
        %v7620 = vadd.f32 %v7176, %v7178
        %7621 = vadd.xlane.f32.xlu0 %v7620
        %v7622 = vpop.xlane.xlu0 %7621
        %v7623 = vadd.f32 %v7180, %v7182
        %7624 = vadd.xlane.f32.xlu0 %v7623
        %v7625 = vpop.xlane.xlu0 %7624
        %v7626 = vadd.f32 %v7184, %v7186
        %7627 = vadd.xlane.f32.xlu0 %v7626
        %v7628 = vpop.xlane.xlu0 %7627
        %v7629 = vadd.f32 %v7188, %v7190
        %7630 = vadd.xlane.f32.xlu0 %v7629
        %v7631 = vpop.xlane.xlu0 %7630
        %v7632 = vadd.f32 %v7192, %v7194
        %7633 = vadd.xlane.f32.xlu0 %v7632
        %v7634 = vpop.xlane.xlu0 %7633
        %v7635 = vadd.f32 %v7196, %v7198
        %7636 = vadd.xlane.f32.xlu0 %v7635
        %v7637 = vpop.xlane.xlu0 %7636
        %v7638 = vadd.f32 %v7200, %v7202
        %7639 = vadd.xlane.f32.xlu0 %v7638
        %v7640 = vpop.xlane.xlu0 %7639
        %v7641 = vadd.f32 %v7204, %v7206
        %7642 = vadd.xlane.f32.xlu0 %v7641
        %v7643 = vpop.xlane.xlu0 %7642
        %v7644 = vadd.f32 %v7208, %v7210
        %7645 = vadd.xlane.f32.xlu0 %v7644
        %v7646 = vpop.xlane.xlu0 %7645
        %v7647 = vadd.f32 %v7212, %v7214
        %7648 = vadd.xlane.f32.xlu0 %v7647
        %v7649 = vpop.xlane.xlu0 %7648
        %v7650 = vadd.f32 %v7216, %v7218
        %7651 = vadd.xlane.f32.xlu0 %v7650
        %v7652 = vpop.xlane.xlu0 %7651
        %v7653 = vadd.f32 %v7220, %v7222
        %7654 = vadd.xlane.f32.xlu0 %v7653
        %v7655 = vpop.xlane.xlu0 %7654
        %v7656 = vadd.f32 %v7224, %v7226
        %7657 = vadd.xlane.f32.xlu0 %v7656
        %v7658 = vpop.xlane.xlu0 %7657
        %v7659 = vadd.f32 %v7228, %v7230
        %7660 = vadd.xlane.f32.xlu0 %v7659
        %v7661 = vpop.xlane.xlu0 %7660
        %v7662 = vadd.f32 %v7232, %v7234
        %7663 = vadd.xlane.f32.xlu0 %v7662
        %v7664 = vpop.xlane.xlu0 %7663
        %v7665 = vadd.f32 %v7236, %v7238
        %7666 = vadd.xlane.f32.xlu0 %v7665
        %v7667 = vpop.xlane.xlu0 %7666
        %v7668 = vadd.f32 %v7240, %v7242
        %7669 = vadd.xlane.f32.xlu0 %v7668
        %v7670 = vpop.xlane.xlu0 %7669
        %v7671 = vadd.f32 %v7244, %v7246
        %7672 = vadd.xlane.f32.xlu0 %v7671
        %v7673 = vpop.xlane.xlu0 %7672
        %v7674 = vadd.f32 %v7248, %v7250
        %7675 = vadd.xlane.f32.xlu0 %v7674
        %v7676 = vpop.xlane.xlu0 %7675
        %v7677 = vadd.f32 %v7252, %v7254
        %7678 = vadd.xlane.f32.xlu0 %v7677
        %v7679 = vpop.xlane.xlu0 %7678
        %v7680 = vadd.f32 %v7256, %v7258
        %7681 = vadd.xlane.f32.xlu0 %v7680
        %v7682 = vpop.xlane.xlu0 %7681
        %v7683 = vadd.f32 %v7260, %v7262
        %7684 = vadd.xlane.f32.xlu0 %v7683
        %v7685 = vpop.xlane.xlu0 %7684
        %v7686 = vadd.f32 %v7264, %v7266
        %7687 = vadd.xlane.f32.xlu0 %v7686
        %v7688 = vpop.xlane.xlu0 %7687
        %v7689 = vadd.f32 %v7268, %v7270
        %7690 = vadd.xlane.f32.xlu0 %v7689
        %v7691 = vpop.xlane.xlu0 %7690
        %v7692 = vadd.f32 %v7272, %v7274
        %7693 = vadd.xlane.f32.xlu0 %v7692
        %v7694 = vpop.xlane.xlu0 %7693
        %v7695 = vadd.f32 %v7276, %v7278
        %7696 = vadd.xlane.f32.xlu0 %v7695
        %v7697 = vpop.xlane.xlu0 %7696
        %v7698 = vadd.f32 %v7280, %v7282
        %7699 = vadd.xlane.f32.xlu0 %v7698
        %v7700 = vpop.xlane.xlu0 %7699
        %v7701 = vadd.f32 %v7284, %v7286
        %7702 = vadd.xlane.f32.xlu0 %v7701
        %v7703 = vpop.xlane.xlu0 %7702
        %v7704 = vadd.f32 %v7288, %v7290
        %7705 = vadd.xlane.f32.xlu0 %v7704
        %v7706 = vpop.xlane.xlu0 %7705
        %v7707 = vadd.f32 %v7292, %v7294
        %7708 = vadd.xlane.f32.xlu0 %v7707
        %v7709 = vpop.xlane.xlu0 %7708
        %v7710 = vadd.f32 %v7296, %v7298
        %7711 = vadd.xlane.f32.xlu0 %v7710
        %v7712 = vpop.xlane.xlu0 %7711
        %v7713 = vadd.f32 %v7300, %v7302
        %7714 = vadd.xlane.f32.xlu0 %v7713
        %v7715 = vpop.xlane.xlu0 %7714
        %v7716 = vadd.f32 %v7304, %v7306
        %7717 = vadd.xlane.f32.xlu0 %v7716
        %v7718 = vpop.xlane.xlu0 %7717
        %v7719 = vadd.f32 %v7308, %v7310
        %7720 = vadd.xlane.f32.xlu0 %v7719
        %v7721 = vpop.xlane.xlu0 %7720
        %v7722 = vadd.f32 %v7312, %v7314
        %7723 = vadd.xlane.f32.xlu0 %v7722
        %v7724 = vpop.xlane.xlu0 %7723
        %v7725 = vadd.f32 %v7316, %v7318
        %7726 = vadd.xlane.f32.xlu0 %v7725
        %v7727 = vpop.xlane.xlu0 %7726
        %v7728 = vadd.f32 %v7320, %v7322
        %7729 = vadd.xlane.f32.xlu0 %v7728
        %v7730 = vpop.xlane.xlu0 %7729
        %v7731 = vadd.f32 %v7324, %v7326
        %7732 = vadd.xlane.f32.xlu0 %v7731
        %v7733 = vpop.xlane.xlu0 %7732
        %v7734 = vadd.f32 %v7328, %v7330
        %7735 = vadd.xlane.f32.xlu0 %v7734
        %v7736 = vpop.xlane.xlu0 %7735
        %v7737 = vadd.f32 %v7332, %v7334
        %7738 = vadd.xlane.f32.xlu0 %v7737
        %v7739 = vpop.xlane.xlu0 %7738
        %v7740 = vadd.f32 %v7336, %v7338
        %7741 = vadd.xlane.f32.xlu0 %v7740
        %v7742 = vpop.xlane.xlu0 %7741
        %v7743 = vadd.f32 %v7340, %v7342
        %7744 = vadd.xlane.f32.xlu0 %v7743
        %v7745 = vpop.xlane.xlu0 %7744
        %v7746 = vadd.f32 %v7344, %v7346
        %7747 = vadd.xlane.f32.xlu0 %v7746
        %v7748 = vpop.xlane.xlu0 %7747
        %v7749 = vadd.f32 %v7348, %v7350
        %7750 = vadd.xlane.f32.xlu0 %v7749
        %v7751 = vpop.xlane.xlu0 %7750
        %v7752 = vadd.f32 %v7352, %v7354
        %7753 = vadd.xlane.f32.xlu0 %v7752
        %v7754 = vpop.xlane.xlu0 %7753
        %v7755 = vadd.f32 %v7356, %v7358
        %7756 = vadd.xlane.f32.xlu0 %v7755
        %v7757 = vpop.xlane.xlu0 %7756
        %v7758 = vadd.f32 %v7360, %v7362
        %7759 = vadd.xlane.f32.xlu0 %v7758
        %v7760 = vpop.xlane.xlu0 %7759
        %v7761 = vadd.f32 %v7364, %v7366
        %7762 = vadd.xlane.f32.xlu0 %v7761
        %v7763 = vpop.xlane.xlu0 %7762
        %v7764 = vadd.f32 %v7368, %v7370
        %7765 = vadd.xlane.f32.xlu0 %v7764
        %v7766 = vpop.xlane.xlu0 %7765
        %v7767 = vadd.f32 %v7372, %v7374
        %7768 = vadd.xlane.f32.xlu0 %v7767
        %v7769 = vpop.xlane.xlu0 %7768
        %v7770 = vadd.f32 %v7376, %v7378
        %7771 = vadd.xlane.f32.xlu0 %v7770
        %v7772 = vpop.xlane.xlu0 %7771
        %v7773 = vadd.f32 %v7380, %v7382
        %7774 = vadd.xlane.f32.xlu0 %v7773
        %v7775 = vpop.xlane.xlu0 %7774
        %v7776 = vadd.f32 %v7384, %v7386
        %7777 = vadd.xlane.f32.xlu0 %v7776
        %v7778 = vpop.xlane.xlu0 %7777
        %v7779 = vadd.f32 %v7388, %v7390
        %7780 = vadd.xlane.f32.xlu0 %v7779
        %v7781 = vpop.xlane.xlu0 %7780
        %v7782 = vadd.f32 %v7392, %v7394
        %7783 = vadd.xlane.f32.xlu0 %v7782
        %v7784 = vpop.xlane.xlu0 %7783
        %v7785 = vadd.f32 %v7396, %v7398
        %7786 = vadd.xlane.f32.xlu0 %v7785
        %v7787 = vpop.xlane.xlu0 %7786
        %v7788 = vadd.f32 %v7400, %v7402
        %7789 = vadd.xlane.f32.xlu0 %v7788
        %v7790 = vpop.xlane.xlu0 %7789
        %v7791 = vadd.f32 %v7404, %v7406
        %7792 = vadd.xlane.f32.xlu0 %v7791
        %v7793 = vpop.xlane.xlu0 %7792
        %v7794 = vadd.f32 %v7408, %v7410
        %7795 = vadd.xlane.f32.xlu0 %v7794
        %v7796 = vpop.xlane.xlu0 %7795
        %v7797 = vadd.f32 %v7412, %v7414
        %7798 = vadd.xlane.f32.xlu0 %v7797
        %v7799 = vpop.xlane.xlu0 %7798
        %v7800 = vadd.f32 %v7416, %v7418
        %7801 = vadd.xlane.f32.xlu0 %v7800
        %v7802 = vpop.xlane.xlu0 %7801
        %v7803 = vpack.c.bf16 %v6912, %v6908
        %v7804 = vpack.c.bf16 %v6914, %v6910
        %v7805 = vpack.c.bf16 %v6920, %v6916
        %v7806 = vpack.c.bf16 %v6922, %v6918
        %v7807 = vpack.c.bf16 %v6928, %v6924
        %v7808 = vpack.c.bf16 %v6930, %v6926
        %v7809 = vpack.c.bf16 %v6936, %v6932
        %v7810 = vpack.c.bf16 %v6938, %v6934
        %v7811 = vpack.c.bf16 %v6944, %v6940
        %v7812 = vpack.c.bf16 %v6946, %v6942
        %v7813 = vpack.c.bf16 %v6952, %v6948
        %v7814 = vpack.c.bf16 %v6954, %v6950
        %v7815 = vpack.c.bf16 %v6960, %v6956
        %v7816 = vpack.c.bf16 %v6962, %v6958
        %v7817 = vpack.c.bf16 %v6968, %v6964
        %v7818 = vpack.c.bf16 %v6970, %v6966
        %v7819 = vpack.c.bf16 %v6976, %v6972
        %v7820 = vpack.c.bf16 %v6978, %v6974
        %v7821 = vpack.c.bf16 %v6984, %v6980
        %v7822 = vpack.c.bf16 %v6986, %v6982
        %v7823 = vpack.c.bf16 %v6992, %v6988
        %v7824 = vpack.c.bf16 %v6994, %v6990
        %v7825 = vpack.c.bf16 %v7000, %v6996
        %v7826 = vpack.c.bf16 %v7002, %v6998
        %v7827 = vpack.c.bf16 %v7008, %v7004
        %v7828 = vpack.c.bf16 %v7010, %v7006
        %v7829 = vpack.c.bf16 %v7016, %v7012
        %v7830 = vpack.c.bf16 %v7018, %v7014
        %v7831 = vpack.c.bf16 %v7024, %v7020
        %v7832 = vpack.c.bf16 %v7026, %v7022
        %v7833 = vpack.c.bf16 %v7032, %v7028
        %v7834 = vpack.c.bf16 %v7034, %v7030
        %v7835 = vpack.c.bf16 %v7040, %v7036
        %v7836 = vpack.c.bf16 %v7042, %v7038
        %v7837 = vpack.c.bf16 %v7048, %v7044
        %v7838 = vpack.c.bf16 %v7050, %v7046
        %v7839 = vpack.c.bf16 %v7056, %v7052
        %v7840 = vpack.c.bf16 %v7058, %v7054
        %v7841 = vpack.c.bf16 %v7064, %v7060
        %v7842 = vpack.c.bf16 %v7066, %v7062
        %v7843 = vpack.c.bf16 %v7072, %v7068
        %v7844 = vpack.c.bf16 %v7074, %v7070
        %v7845 = vpack.c.bf16 %v7080, %v7076
        %v7846 = vpack.c.bf16 %v7082, %v7078
        %v7847 = vpack.c.bf16 %v7088, %v7084
        %v7848 = vpack.c.bf16 %v7090, %v7086
        %v7849 = vpack.c.bf16 %v7096, %v7092
        %v7850 = vpack.c.bf16 %v7098, %v7094
        %v7851 = vpack.c.bf16 %v7104, %v7100
        %v7852 = vpack.c.bf16 %v7106, %v7102
        %v7853 = vpack.c.bf16 %v7112, %v7108
        %v7854 = vpack.c.bf16 %v7114, %v7110
        %v7855 = vpack.c.bf16 %v7120, %v7116
        %v7856 = vpack.c.bf16 %v7122, %v7118
        %v7857 = vpack.c.bf16 %v7128, %v7124
        %v7858 = vpack.c.bf16 %v7130, %v7126
        %v7859 = vpack.c.bf16 %v7136, %v7132
        %v7860 = vpack.c.bf16 %v7138, %v7134
        %v7861 = vpack.c.bf16 %v7144, %v7140
        %v7862 = vpack.c.bf16 %v7146, %v7142
        %v7863 = vpack.c.bf16 %v7152, %v7148
        %v7864 = vpack.c.bf16 %v7154, %v7150
        %v7865 = vpack.c.bf16 %v7160, %v7156
        %v7866 = vpack.c.bf16 %v7162, %v7158
        %v7867 = vpack.c.bf16 %v7168, %v7164
        %v7868 = vpack.c.bf16 %v7170, %v7166
        %v7869 = vpack.c.bf16 %v7176, %v7172
        %v7870 = vpack.c.bf16 %v7178, %v7174
        %v7871 = vpack.c.bf16 %v7184, %v7180
        %v7872 = vpack.c.bf16 %v7186, %v7182
        %v7873 = vpack.c.bf16 %v7192, %v7188
        %v7874 = vpack.c.bf16 %v7194, %v7190
        %v7875 = vpack.c.bf16 %v7200, %v7196
        %v7876 = vpack.c.bf16 %v7202, %v7198
        %v7877 = vpack.c.bf16 %v7208, %v7204
        %v7878 = vpack.c.bf16 %v7210, %v7206
        %v7879 = vpack.c.bf16 %v7216, %v7212
        %v7880 = vpack.c.bf16 %v7218, %v7214
        %v7881 = vpack.c.bf16 %v7224, %v7220
        %v7882 = vpack.c.bf16 %v7226, %v7222
        %v7883 = vpack.c.bf16 %v7232, %v7228
        %v7884 = vpack.c.bf16 %v7234, %v7230
        %v7885 = vpack.c.bf16 %v7240, %v7236
        %v7886 = vpack.c.bf16 %v7242, %v7238
        %v7887 = vpack.c.bf16 %v7248, %v7244
        %v7888 = vpack.c.bf16 %v7250, %v7246
        %v7889 = vpack.c.bf16 %v7256, %v7252
        %v7890 = vpack.c.bf16 %v7258, %v7254
        %v7891 = vpack.c.bf16 %v7264, %v7260
        %v7892 = vpack.c.bf16 %v7266, %v7262
        %v7893 = vpack.c.bf16 %v7272, %v7268
        %v7894 = vpack.c.bf16 %v7274, %v7270
        %v7895 = vpack.c.bf16 %v7280, %v7276
        %v7896 = vpack.c.bf16 %v7282, %v7278
        %v7897 = vpack.c.bf16 %v7288, %v7284
        %v7898 = vpack.c.bf16 %v7290, %v7286
        %v7899 = vpack.c.bf16 %v7296, %v7292
        %v7900 = vpack.c.bf16 %v7298, %v7294
        %v7901 = vpack.c.bf16 %v7304, %v7300
        %v7902 = vpack.c.bf16 %v7306, %v7302
        %v7903 = vpack.c.bf16 %v7312, %v7308
        %v7904 = vpack.c.bf16 %v7314, %v7310
        %v7905 = vpack.c.bf16 %v7320, %v7316
        %v7906 = vpack.c.bf16 %v7322, %v7318
        %v7907 = vpack.c.bf16 %v7328, %v7324
        %v7908 = vpack.c.bf16 %v7330, %v7326
        %v7909 = vpack.c.bf16 %v7336, %v7332
        %v7910 = vpack.c.bf16 %v7338, %v7334
        %v7911 = vpack.c.bf16 %v7344, %v7340
        %v7912 = vpack.c.bf16 %v7346, %v7342
        %v7913 = vpack.c.bf16 %v7352, %v7348
        %v7914 = vpack.c.bf16 %v7354, %v7350
        %v7915 = vpack.c.bf16 %v7360, %v7356
        %v7916 = vpack.c.bf16 %v7362, %v7358
        %v7917 = vpack.c.bf16 %v7368, %v7364
        %v7918 = vpack.c.bf16 %v7370, %v7366
        %v7919 = vpack.c.bf16 %v7376, %v7372
        %v7920 = vpack.c.bf16 %v7378, %v7374
        %v7921 = vpack.c.bf16 %v7384, %v7380
        %v7922 = vpack.c.bf16 %v7386, %v7382
        %v7923 = vpack.c.bf16 %v7392, %v7388
        %v7924 = vpack.c.bf16 %v7394, %v7390
        %v7925 = vpack.c.bf16 %v7400, %v7396
        %v7926 = vpack.c.bf16 %v7402, %v7398
        %v7927 = vpack.c.bf16 %v7408, %v7404
        %v7928 = vpack.c.bf16 %v7410, %v7406
        %v7929 = vpack.c.bf16 %v7416, %v7412
        %v7930 = vpack.c.bf16 %v7418, %v7414
        %7931 = vmatprep.subr.bf16.mxu0 %v7804
        %7932 = vmatpush1.bf16.xpose.msra.mxu0 %v7803
        %7933 = vmatprep.subr.bf16.mxu0 %v7806
        %7934 = vmatpush1.bf16.xpose.msra.mxu0 %v7805
        %7935 = vmatprep.subr.bf16.mxu0 %v7808
        %7936 = vmatpush1.bf16.xpose.msra.mxu0 %v7807
        %7937 = vmatprep.subr.bf16.mxu0 %v7810
        %7938 = vmatpush1.bf16.xpose.msra.mxu0 %v7809
        %7939 = vmatprep.subr.bf16.mxu0 %v7812
        %7940 = vmatpush1.bf16.xpose.msra.mxu0 %v7811
        %7941 = vmatprep.subr.bf16.mxu0 %v7814
        %7942 = vmatpush1.bf16.xpose.msra.mxu0 %v7813
        %7943 = vmatprep.subr.bf16.mxu0 %v7816
        %7944 = vmatpush1.bf16.xpose.msra.mxu0 %v7815
        %7945 = vmatprep.subr.bf16.mxu0 %v7818
        %7946 = vmatpush1.bf16.xpose.msra.mxu0 %v7817
        %7947 = vmatprep.subr.bf16.mxu0 %v7820
        %7948 = vmatpush1.bf16.xpose.msra.mxu0 %v7819
        %7949 = vmatprep.subr.bf16.mxu0 %v7822
        %7950 = vmatpush1.bf16.xpose.msra.mxu0 %v7821
        %7951 = vmatprep.subr.bf16.mxu0 %v7824
        %7952 = vmatpush1.bf16.xpose.msra.mxu0 %v7823
        %7953 = vmatprep.subr.bf16.mxu0 %v7826
        %7954 = vmatpush1.bf16.xpose.msra.mxu0 %v7825
        %7955 = vmatprep.subr.bf16.mxu0 %v7828
        %7956 = vmatpush1.bf16.xpose.msra.mxu0 %v7827
        %7957 = vmatprep.subr.bf16.mxu0 %v7830
        %7958 = vmatpush1.bf16.xpose.msra.mxu0 %v7829
        %7959 = vmatprep.subr.bf16.mxu0 %v7832
        %7960 = vmatpush1.bf16.xpose.msra.mxu0 %v7831
        %7961 = vmatprep.subr.bf16.mxu0 %v7834
        %7962 = vmatpush1.bf16.xpose.msra.mxu0 %v7833
        %7963 = vmatprep.mubr.bf16.mxu0 %v985
        %7964 = vmatmul.mubr.bf16.gmra.mrb[0].mxu0 %v984
        %v7965 = vpop.f32.mrb[0].mxu0
        %v7966 = vadd.f32 0.0, %v7965
        %v7967 = vpop.f32.mrb[0].mxu0
        %v7968 = vadd.f32 0.0, %v7967
        %v7969 = vpop.f32.mrb[0].mxu0
        %v7970 = vadd.f32 0.0, %v7969
        %v7971 = vpop.f32.mrb[0].mxu0
        %v7972 = vadd.f32 0.0, %v7971
        %7973 = vdwg.mxu0
        %7974 = vmatprep.subr.bf16.mxu0 %v7836
        %7975 = vmatpush1.bf16.xpose.msra.mxu0 %v7835
        %7976 = vmatprep.subr.bf16.mxu0 %v7838
        %7977 = vmatpush1.bf16.xpose.msra.mxu0 %v7837
        %7978 = vmatprep.subr.bf16.mxu0 %v7840
        %7979 = vmatpush1.bf16.xpose.msra.mxu0 %v7839
        %7980 = vmatprep.subr.bf16.mxu0 %v7842
        %7981 = vmatpush1.bf16.xpose.msra.mxu0 %v7841
        %7982 = vmatprep.subr.bf16.mxu0 %v7844
        %7983 = vmatpush1.bf16.xpose.msra.mxu0 %v7843
        %7984 = vmatprep.subr.bf16.mxu0 %v7846
        %7985 = vmatpush1.bf16.xpose.msra.mxu0 %v7845
        %7986 = vmatprep.subr.bf16.mxu0 %v7848
        %7987 = vmatpush1.bf16.xpose.msra.mxu0 %v7847
        %7988 = vmatprep.subr.bf16.mxu0 %v7850
        %7989 = vmatpush1.bf16.xpose.msra.mxu0 %v7849
        %7990 = vmatprep.subr.bf16.mxu0 %v7852
        %7991 = vmatpush1.bf16.xpose.msra.mxu0 %v7851
        %7992 = vmatprep.subr.bf16.mxu0 %v7854
        %7993 = vmatpush1.bf16.xpose.msra.mxu0 %v7853
        %7994 = vmatprep.subr.bf16.mxu0 %v7856
        %7995 = vmatpush1.bf16.xpose.msra.mxu0 %v7855
        %7996 = vmatprep.subr.bf16.mxu0 %v7858
        %7997 = vmatpush1.bf16.xpose.msra.mxu0 %v7857
        %7998 = vmatprep.subr.bf16.mxu0 %v7860
        %7999 = vmatpush1.bf16.xpose.msra.mxu0 %v7859
        %8000 = vmatprep.subr.bf16.mxu0 %v7862
        %8001 = vmatpush1.bf16.xpose.msra.mxu0 %v7861
        %8002 = vmatprep.subr.bf16.mxu0 %v7864
        %8003 = vmatpush1.bf16.xpose.msra.mxu0 %v7863
        %8004 = vmatprep.subr.bf16.mxu0 %v7866
        %8005 = vmatpush1.bf16.xpose.msra.mxu0 %v7865
        %8006 = vmatprep.mubr.bf16.mxu0 %v989
        %8007 = vmatmul.mubr.bf16.gmra.mrb[0].mxu0 %v988
        %v8008 = vpop.f32.mrb[0].mxu0
        %v8009 = vadd.f32 0.0, %v8008
        %v8010 = vpop.f32.mrb[0].mxu0
        %v8011 = vadd.f32 0.0, %v8010
        %v8012 = vpop.f32.mrb[0].mxu0
        %v8013 = vadd.f32 0.0, %v8012
        %v8014 = vpop.f32.mrb[0].mxu0
        %v8015 = vadd.f32 0.0, %v8014
        %8016 = vdwg.mxu0
        %8017 = vmatprep.subr.bf16.mxu0 %v7868
        %8018 = vmatpush1.bf16.xpose.msra.mxu0 %v7867
        %8019 = vmatprep.subr.bf16.mxu0 %v7870
        %8020 = vmatpush1.bf16.xpose.msra.mxu0 %v7869
        %8021 = vmatprep.subr.bf16.mxu0 %v7872
        %8022 = vmatpush1.bf16.xpose.msra.mxu0 %v7871
        %8023 = vmatprep.subr.bf16.mxu0 %v7874
        %8024 = vmatpush1.bf16.xpose.msra.mxu0 %v7873
        %8025 = vmatprep.subr.bf16.mxu0 %v7876
        %8026 = vmatpush1.bf16.xpose.msra.mxu0 %v7875
        %8027 = vmatprep.subr.bf16.mxu0 %v7878
        %8028 = vmatpush1.bf16.xpose.msra.mxu0 %v7877
        %8029 = vmatprep.subr.bf16.mxu0 %v7880
        %8030 = vmatpush1.bf16.xpose.msra.mxu0 %v7879
        %8031 = vmatprep.subr.bf16.mxu0 %v7882
        %8032 = vmatpush1.bf16.xpose.msra.mxu0 %v7881
        %8033 = vmatprep.subr.bf16.mxu0 %v7884
        %8034 = vmatpush1.bf16.xpose.msra.mxu0 %v7883
        %8035 = vmatprep.subr.bf16.mxu0 %v7886
        %8036 = vmatpush1.bf16.xpose.msra.mxu0 %v7885
        %8037 = vmatprep.subr.bf16.mxu0 %v7888
        %8038 = vmatpush1.bf16.xpose.msra.mxu0 %v7887
        %8039 = vmatprep.subr.bf16.mxu0 %v7890
        %8040 = vmatpush1.bf16.xpose.msra.mxu0 %v7889
        %8041 = vmatprep.subr.bf16.mxu0 %v7892
        %8042 = vmatpush1.bf16.xpose.msra.mxu0 %v7891
        %8043 = vmatprep.subr.bf16.mxu0 %v7894
        %8044 = vmatpush1.bf16.xpose.msra.mxu0 %v7893
        %8045 = vmatprep.subr.bf16.mxu0 %v7896
        %8046 = vmatpush1.bf16.xpose.msra.mxu0 %v7895
        %8047 = vmatprep.subr.bf16.mxu0 %v7898
        %8048 = vmatpush1.bf16.xpose.msra.mxu0 %v7897
        %8049 = vmatprep.mubr.bf16.mxu0 %v993
        %8050 = vmatmul.mubr.bf16.gmra.mrb[0].mxu0 %v992
        %v8051 = vpop.f32.mrb[0].mxu0
        %v8052 = vadd.f32 0.0, %v8051
        %v8053 = vpop.f32.mrb[0].mxu0
        %v8054 = vadd.f32 0.0, %v8053
        %v8055 = vpop.f32.mrb[0].mxu0
        %v8056 = vadd.f32 0.0, %v8055
        %v8057 = vpop.f32.mrb[0].mxu0
        %v8058 = vadd.f32 0.0, %v8057
        %8059 = vdwg.mxu0
        %8060 = vmatprep.subr.bf16.mxu0 %v7900
        %8061 = vmatpush1.bf16.xpose.msra.mxu0 %v7899
        %8062 = vmatprep.subr.bf16.mxu0 %v7902
        %8063 = vmatpush1.bf16.xpose.msra.mxu0 %v7901
        %8064 = vmatprep.subr.bf16.mxu0 %v7904
        %8065 = vmatpush1.bf16.xpose.msra.mxu0 %v7903
        %8066 = vmatprep.subr.bf16.mxu0 %v7906
        %8067 = vmatpush1.bf16.xpose.msra.mxu0 %v7905
        %8068 = vmatprep.subr.bf16.mxu0 %v7908
        %8069 = vmatpush1.bf16.xpose.msra.mxu0 %v7907
        %8070 = vmatprep.subr.bf16.mxu0 %v7910
        %8071 = vmatpush1.bf16.xpose.msra.mxu0 %v7909
        %8072 = vmatprep.subr.bf16.mxu0 %v7912
        %8073 = vmatpush1.bf16.xpose.msra.mxu0 %v7911
        %8074 = vmatprep.subr.bf16.mxu0 %v7914
        %8075 = vmatpush1.bf16.xpose.msra.mxu0 %v7913
        %8076 = vmatprep.subr.bf16.mxu0 %v7916
        %8077 = vmatpush1.bf16.xpose.msra.mxu0 %v7915
        %8078 = vmatprep.subr.bf16.mxu0 %v7918
        %8079 = vmatpush1.bf16.xpose.msra.mxu0 %v7917
        %8080 = vmatprep.subr.bf16.mxu0 %v7920
        %8081 = vmatpush1.bf16.xpose.msra.mxu0 %v7919
        %8082 = vmatprep.subr.bf16.mxu0 %v7922
        %8083 = vmatpush1.bf16.xpose.msra.mxu0 %v7921
        %8084 = vmatprep.subr.bf16.mxu0 %v7924
        %8085 = vmatpush1.bf16.xpose.msra.mxu0 %v7923
        %8086 = vmatprep.subr.bf16.mxu0 %v7926
        %8087 = vmatpush1.bf16.xpose.msra.mxu0 %v7925
        %8088 = vmatprep.subr.bf16.mxu0 %v7928
        %8089 = vmatpush1.bf16.xpose.msra.mxu0 %v7927
        %8090 = vmatprep.subr.bf16.mxu0 %v7930
        %8091 = vmatpush1.bf16.xpose.msra.mxu0 %v7929
        %8092 = vmatprep.mubr.bf16.mxu0 %v997
        %8093 = vmatmul.mubr.bf16.gmra.mrb[0].mxu0 %v996
        %v8094 = vpop.f32.mrb[0].mxu0
        %v8095 = vadd.f32 0.0, %v8094
        %v8096 = vpop.f32.mrb[0].mxu0
        %v8097 = vadd.f32 0.0, %v8096
        %v8098 = vpop.f32.mrb[0].mxu0
        %v8099 = vadd.f32 0.0, %v8098
        %v8100 = vpop.f32.mrb[0].mxu0
        %v8101 = vadd.f32 0.0, %v8100
        %8102 = vdwg.mxu0
        %v8103 = vrcp.pop %v7421
        %v8104 = vrcp.pop %v7424
        %v8105 = vrcp.pop %v7427
        %v8106 = vrcp.pop %v7430
        %v8107 = vrcp.pop %v7433
        %v8108 = vrcp.pop %v7436
        %v8109 = vrcp.pop %v7439
        %v8110 = vrcp.pop %v7442
        %v8111 = vrcp.pop %v7445
        %v8112 = vrcp.pop %v7448
        %v8113 = vrcp.pop %v7451
        %v8114 = vrcp.pop %v7454
        %v8115 = vrcp.pop %v7457
        %v8116 = vrcp.pop %v7460
        %v8117 = vrcp.pop %v7463
        %v8118 = vrcp.pop %v7466
        %v8119 = vrcp.pop %v7469
        %v8120 = vrcp.pop %v7472
        %v8121 = vrcp.pop %v7475
        %v8122 = vrcp.pop %v7478
        %v8123 = vrcp.pop %v7481
        %v8124 = vrcp.pop %v7484
        %v8125 = vrcp.pop %v7487
        %v8126 = vrcp.pop %v7490
        %v8127 = vrcp.pop %v7493
        %v8128 = vrcp.pop %v7496
        %v8129 = vrcp.pop %v7499
        %v8130 = vrcp.pop %v7502
        %v8131 = vrcp.pop %v7505
        %v8132 = vrcp.pop %v7508
        %v8133 = vrcp.pop %v7511
        %v8134 = vrcp.pop %v7514
        %v8135 = vrcp.pop %v7517
        %v8136 = vrcp.pop %v7520
        %v8137 = vrcp.pop %v7523
        %v8138 = vrcp.pop %v7526
        %v8139 = vrcp.pop %v7529
        %v8140 = vrcp.pop %v7532
        %v8141 = vrcp.pop %v7535
        %v8142 = vrcp.pop %v7538
        %v8143 = vrcp.pop %v7541
        %v8144 = vrcp.pop %v7544
        %v8145 = vrcp.pop %v7547
        %v8146 = vrcp.pop %v7550
        %v8147 = vrcp.pop %v7553
        %v8148 = vrcp.pop %v7556
        %v8149 = vrcp.pop %v7559
        %v8150 = vrcp.pop %v7562
        %v8151 = vrcp.pop %v7565
        %v8152 = vrcp.pop %v7568
        %v8153 = vrcp.pop %v7571
        %v8154 = vrcp.pop %v7574
        %v8155 = vrcp.pop %v7577
        %v8156 = vrcp.pop %v7580
        %v8157 = vrcp.pop %v7583
        %v8158 = vrcp.pop %v7586
        %v8159 = vrcp.pop %v7589
        %v8160 = vrcp.pop %v7592
        %v8161 = vrcp.pop %v7595
        %v8162 = vrcp.pop %v7598
        %v8163 = vrcp.pop %v7601
        %v8164 = vrcp.pop %v7604
        %v8165 = vrcp.pop %v7607
        %v8166 = vrcp.pop %v7610
        %v8167 = vrcp.pop %v7613
        %v8168 = vrcp.pop %v7616
        %v8169 = vrcp.pop %v7619
        %v8170 = vrcp.pop %v7622
        %v8171 = vrcp.pop %v7625
        %v8172 = vrcp.pop %v7628
        %v8173 = vrcp.pop %v7631
        %v8174 = vrcp.pop %v7634
        %v8175 = vrcp.pop %v7637
        %v8176 = vrcp.pop %v7640
        %v8177 = vrcp.pop %v7643
        %v8178 = vrcp.pop %v7646
        %v8179 = vrcp.pop %v7649
        %v8180 = vrcp.pop %v7652
        %v8181 = vrcp.pop %v7655
        %v8182 = vrcp.pop %v7658
        %v8183 = vrcp.pop %v7661
        %v8184 = vrcp.pop %v7664
        %v8185 = vrcp.pop %v7667
        %v8186 = vrcp.pop %v7670
        %v8187 = vrcp.pop %v7673
        %v8188 = vrcp.pop %v7676
        %v8189 = vrcp.pop %v7679
        %v8190 = vrcp.pop %v7682
        %v8191 = vrcp.pop %v7685
        %v8192 = vrcp.pop %v7688
        %v8193 = vrcp.pop %v7691
        %v8194 = vrcp.pop %v7694
        %v8195 = vrcp.pop %v7697
        %v8196 = vrcp.pop %v7700
        %v8197 = vrcp.pop %v7703
        %v8198 = vrcp.pop %v7706
        %v8199 = vrcp.pop %v7709
        %v8200 = vrcp.pop %v7712
        %v8201 = vrcp.pop %v7715
        %v8202 = vrcp.pop %v7718
        %v8203 = vrcp.pop %v7721
        %v8204 = vrcp.pop %v7724
        %v8205 = vrcp.pop %v7727
        %v8206 = vrcp.pop %v7730
        %v8207 = vrcp.pop %v7733
        %v8208 = vrcp.pop %v7736
        %v8209 = vrcp.pop %v7739
        %v8210 = vrcp.pop %v7742
        %v8211 = vrcp.pop %v7745
        %v8212 = vrcp.pop %v7748
        %v8213 = vrcp.pop %v7751
        %v8214 = vrcp.pop %v7754
        %v8215 = vrcp.pop %v7757
        %v8216 = vrcp.pop %v7760
        %v8217 = vrcp.pop %v7763
        %v8218 = vrcp.pop %v7766
        %v8219 = vrcp.pop %v7769
        %v8220 = vrcp.pop %v7772
        %v8221 = vrcp.pop %v7775
        %v8222 = vrcp.pop %v7778
        %v8223 = vrcp.pop %v7781
        %v8224 = vrcp.pop %v7784
        %v8225 = vrcp.pop %v7787
        %v8226 = vrcp.pop %v7790
        %v8227 = vrcp.pop %v7793
        %v8228 = vrcp.pop %v7796
        %v8229 = vrcp.pop %v7799
        %v8230 = vrcp.pop %v7802
        %v8359 = vlaneseq
        %v8360 = vshrl.u32 %v8359, 7
        %v8361 = vsub.s32 %v4264, %v8360
        %v8362 = vrot.slane %v8103, %v8361
        %v8363 = vlaneseq
        %v8364 = vshrl.u32 %v8363, 7
        %v8365 = vsub.s32 %v4269, %v8364
        %v8366 = vrot.slane %v8104, %v8365
        %v8367 = vsel %vm4274, %v8366, %v8362
        %v8368 = vlaneseq
        %v8369 = vshrl.u32 %v8368, 7
        %v8370 = vsub.s32 %v4276, %v8369
        %v8371 = vrot.slane %v8105, %v8370
        %v8372 = vsel %vm4281, %v8371, %v8367
        %v8373 = vlaneseq
        %v8374 = vshrl.u32 %v8373, 7
        %v8375 = vsub.s32 %v4283, %v8374
        %v8376 = vrot.slane %v8106, %v8375
        %v8377 = vsel %vm4288, %v8376, %v8372
        %v8378 = vlaneseq
        %v8379 = vshrl.u32 %v8378, 7
        %v8380 = vsub.s32 %v4290, %v8379
        %v8381 = vrot.slane %v8107, %v8380
        %v8382 = vsel %vm4295, %v8381, %v8377
        %v8383 = vlaneseq
        %v8384 = vshrl.u32 %v8383, 7
        %v8385 = vsub.s32 %v4297, %v8384
        %v8386 = vrot.slane %v8108, %v8385
        %v8387 = vsel %vm4302, %v8386, %v8382
        %v8388 = vlaneseq
        %v8389 = vshrl.u32 %v8388, 7
        %v8390 = vsub.s32 %v4304, %v8389
        %v8391 = vrot.slane %v8109, %v8390
        %v8392 = vsel %vm4309, %v8391, %v8387
        %v8393 = vlaneseq
        %v8394 = vshrl.u32 %v8393, 7
        %v8395 = vsub.s32 %v4311, %v8394
        %v8396 = vrot.slane %v8110, %v8395
        %v8397 = vsel %vm4316, %v8396, %v8392
        %v8398 = vlaneseq
        %v8399 = vshrl.u32 %v8398, 7
        %v8400 = vsub.s32 %v4318, %v8399
        %v8401 = vrot.slane %v8111, %v8400
        %v8402 = vsel %vm4323, %v8401, %v8397
        %v8403 = vlaneseq
        %v8404 = vshrl.u32 %v8403, 7
        %v8405 = vsub.s32 %v4325, %v8404
        %v8406 = vrot.slane %v8112, %v8405
        %v8407 = vsel %vm4330, %v8406, %v8402
        %v8408 = vlaneseq
        %v8409 = vshrl.u32 %v8408, 7
        %v8410 = vsub.s32 %v4332, %v8409
        %v8411 = vrot.slane %v8113, %v8410
        %v8412 = vsel %vm4337, %v8411, %v8407
        %v8413 = vlaneseq
        %v8414 = vshrl.u32 %v8413, 7
        %v8415 = vsub.s32 %v4339, %v8414
        %v8416 = vrot.slane %v8114, %v8415
        %v8417 = vsel %vm4344, %v8416, %v8412
        %v8418 = vlaneseq
        %v8419 = vshrl.u32 %v8418, 7
        %v8420 = vsub.s32 %v4346, %v8419
        %v8421 = vrot.slane %v8115, %v8420
        %v8422 = vsel %vm4351, %v8421, %v8417
        %v8423 = vlaneseq
        %v8424 = vshrl.u32 %v8423, 7
        %v8425 = vsub.s32 %v4353, %v8424
        %v8426 = vrot.slane %v8116, %v8425
        %v8427 = vsel %vm4358, %v8426, %v8422
        %v8428 = vlaneseq
        %v8429 = vshrl.u32 %v8428, 7
        %v8430 = vsub.s32 %v4360, %v8429
        %v8431 = vrot.slane %v8117, %v8430
        %v8432 = vsel %vm4365, %v8431, %v8427
        %v8433 = vlaneseq
        %v8434 = vshrl.u32 %v8433, 7
        %v8435 = vsub.s32 %v4367, %v8434
        %v8436 = vrot.slane %v8118, %v8435
        %v8437 = vsel %vm4372, %v8436, %v8432
        %v8438 = vlaneseq
        %v8439 = vshrl.u32 %v8438, 7
        %v8440 = vsub.s32 %v4264, %v8439
        %v8441 = vrot.slane %v8119, %v8440
        %v8442 = vlaneseq
        %v8443 = vshrl.u32 %v8442, 7
        %v8444 = vsub.s32 %v4269, %v8443
        %v8445 = vrot.slane %v8120, %v8444
        %v8446 = vsel %vm4274, %v8445, %v8441
        %v8447 = vlaneseq
        %v8448 = vshrl.u32 %v8447, 7
        %v8449 = vsub.s32 %v4276, %v8448
        %v8450 = vrot.slane %v8121, %v8449
        %v8451 = vsel %vm4281, %v8450, %v8446
        %v8452 = vlaneseq
        %v8453 = vshrl.u32 %v8452, 7
        %v8454 = vsub.s32 %v4283, %v8453
        %v8455 = vrot.slane %v8122, %v8454
        %v8456 = vsel %vm4288, %v8455, %v8451
        %v8457 = vlaneseq
        %v8458 = vshrl.u32 %v8457, 7
        %v8459 = vsub.s32 %v4290, %v8458
        %v8460 = vrot.slane %v8123, %v8459
        %v8461 = vsel %vm4295, %v8460, %v8456
        %v8462 = vlaneseq
        %v8463 = vshrl.u32 %v8462, 7
        %v8464 = vsub.s32 %v4297, %v8463
        %v8465 = vrot.slane %v8124, %v8464
        %v8466 = vsel %vm4302, %v8465, %v8461
        %v8467 = vlaneseq
        %v8468 = vshrl.u32 %v8467, 7
        %v8469 = vsub.s32 %v4304, %v8468
        %v8470 = vrot.slane %v8125, %v8469
        %v8471 = vsel %vm4309, %v8470, %v8466
        %v8472 = vlaneseq
        %v8473 = vshrl.u32 %v8472, 7
        %v8474 = vsub.s32 %v4311, %v8473
        %v8475 = vrot.slane %v8126, %v8474
        %v8476 = vsel %vm4316, %v8475, %v8471
        %v8477 = vlaneseq
        %v8478 = vshrl.u32 %v8477, 7
        %v8479 = vsub.s32 %v4318, %v8478
        %v8480 = vrot.slane %v8127, %v8479
        %v8481 = vsel %vm4323, %v8480, %v8476
        %v8482 = vlaneseq
        %v8483 = vshrl.u32 %v8482, 7
        %v8484 = vsub.s32 %v4325, %v8483
        %v8485 = vrot.slane %v8128, %v8484
        %v8486 = vsel %vm4330, %v8485, %v8481
        %v8487 = vlaneseq
        %v8488 = vshrl.u32 %v8487, 7
        %v8489 = vsub.s32 %v4332, %v8488
        %v8490 = vrot.slane %v8129, %v8489
        %v8491 = vsel %vm4337, %v8490, %v8486
        %v8492 = vlaneseq
        %v8493 = vshrl.u32 %v8492, 7
        %v8494 = vsub.s32 %v4339, %v8493
        %v8495 = vrot.slane %v8130, %v8494
        %v8496 = vsel %vm4344, %v8495, %v8491
        %v8497 = vlaneseq
        %v8498 = vshrl.u32 %v8497, 7
        %v8499 = vsub.s32 %v4346, %v8498
        %v8500 = vrot.slane %v8131, %v8499
        %v8501 = vsel %vm4351, %v8500, %v8496
        %v8502 = vlaneseq
        %v8503 = vshrl.u32 %v8502, 7
        %v8504 = vsub.s32 %v4353, %v8503
        %v8505 = vrot.slane %v8132, %v8504
        %v8506 = vsel %vm4358, %v8505, %v8501
        %v8507 = vlaneseq
        %v8508 = vshrl.u32 %v8507, 7
        %v8509 = vsub.s32 %v4360, %v8508
        %v8510 = vrot.slane %v8133, %v8509
        %v8511 = vsel %vm4365, %v8510, %v8506
        %v8512 = vlaneseq
        %v8513 = vshrl.u32 %v8512, 7
        %v8514 = vsub.s32 %v4367, %v8513
        %v8515 = vrot.slane %v8134, %v8514
        %v8516 = vsel %vm4372, %v8515, %v8511
        %v8517 = vlaneseq
        %v8518 = vshrl.u32 %v8517, 7
        %v8519 = vsub.s32 %v4264, %v8518
        %v8520 = vrot.slane %v8135, %v8519
        %v8521 = vlaneseq
        %v8522 = vshrl.u32 %v8521, 7
        %v8523 = vsub.s32 %v4269, %v8522
        %v8524 = vrot.slane %v8136, %v8523
        %v8525 = vsel %vm4274, %v8524, %v8520
        %v8526 = vlaneseq
        %v8527 = vshrl.u32 %v8526, 7
        %v8528 = vsub.s32 %v4276, %v8527
        %v8529 = vrot.slane %v8137, %v8528
        %v8530 = vsel %vm4281, %v8529, %v8525
        %v8531 = vlaneseq
        %v8532 = vshrl.u32 %v8531, 7
        %v8533 = vsub.s32 %v4283, %v8532
        %v8534 = vrot.slane %v8138, %v8533
        %v8535 = vsel %vm4288, %v8534, %v8530
        %v8536 = vlaneseq
        %v8537 = vshrl.u32 %v8536, 7
        %v8538 = vsub.s32 %v4290, %v8537
        %v8539 = vrot.slane %v8139, %v8538
        %v8540 = vsel %vm4295, %v8539, %v8535
        %v8541 = vlaneseq
        %v8542 = vshrl.u32 %v8541, 7
        %v8543 = vsub.s32 %v4297, %v8542
        %v8544 = vrot.slane %v8140, %v8543
        %v8545 = vsel %vm4302, %v8544, %v8540
        %v8546 = vlaneseq
        %v8547 = vshrl.u32 %v8546, 7
        %v8548 = vsub.s32 %v4304, %v8547
        %v8549 = vrot.slane %v8141, %v8548
        %v8550 = vsel %vm4309, %v8549, %v8545
        %v8551 = vlaneseq
        %v8552 = vshrl.u32 %v8551, 7
        %v8553 = vsub.s32 %v4311, %v8552
        %v8554 = vrot.slane %v8142, %v8553
        %v8555 = vsel %vm4316, %v8554, %v8550
        %v8556 = vlaneseq
        %v8557 = vshrl.u32 %v8556, 7
        %v8558 = vsub.s32 %v4318, %v8557
        %v8559 = vrot.slane %v8143, %v8558
        %v8560 = vsel %vm4323, %v8559, %v8555
        %v8561 = vlaneseq
        %v8562 = vshrl.u32 %v8561, 7
        %v8563 = vsub.s32 %v4325, %v8562
        %v8564 = vrot.slane %v8144, %v8563
        %v8565 = vsel %vm4330, %v8564, %v8560
        %v8566 = vlaneseq
        %v8567 = vshrl.u32 %v8566, 7
        %v8568 = vsub.s32 %v4332, %v8567
        %v8569 = vrot.slane %v8145, %v8568
        %v8570 = vsel %vm4337, %v8569, %v8565
        %v8571 = vlaneseq
        %v8572 = vshrl.u32 %v8571, 7
        %v8573 = vsub.s32 %v4339, %v8572
        %v8574 = vrot.slane %v8146, %v8573
        %v8575 = vsel %vm4344, %v8574, %v8570
        %v8576 = vlaneseq
        %v8577 = vshrl.u32 %v8576, 7
        %v8578 = vsub.s32 %v4346, %v8577
        %v8579 = vrot.slane %v8147, %v8578
        %v8580 = vsel %vm4351, %v8579, %v8575
        %v8581 = vlaneseq
        %v8582 = vshrl.u32 %v8581, 7
        %v8583 = vsub.s32 %v4353, %v8582
        %v8584 = vrot.slane %v8148, %v8583
        %v8585 = vsel %vm4358, %v8584, %v8580
        %v8586 = vlaneseq
        %v8587 = vshrl.u32 %v8586, 7
        %v8588 = vsub.s32 %v4360, %v8587
        %v8589 = vrot.slane %v8149, %v8588
        %v8590 = vsel %vm4365, %v8589, %v8585
        %v8591 = vlaneseq
        %v8592 = vshrl.u32 %v8591, 7
        %v8593 = vsub.s32 %v4367, %v8592
        %v8594 = vrot.slane %v8150, %v8593
        %v8595 = vsel %vm4372, %v8594, %v8590
        %v8596 = vlaneseq
        %v8597 = vshrl.u32 %v8596, 7
        %v8598 = vsub.s32 %v4264, %v8597
        %v8599 = vrot.slane %v8151, %v8598
        %v8600 = vlaneseq
        %v8601 = vshrl.u32 %v8600, 7
        %v8602 = vsub.s32 %v4269, %v8601
        %v8603 = vrot.slane %v8152, %v8602
        %v8604 = vsel %vm4274, %v8603, %v8599
        %v8605 = vlaneseq
        %v8606 = vshrl.u32 %v8605, 7
        %v8607 = vsub.s32 %v4276, %v8606
        %v8608 = vrot.slane %v8153, %v8607
        %v8609 = vsel %vm4281, %v8608, %v8604
        %v8610 = vlaneseq
        %v8611 = vshrl.u32 %v8610, 7
        %v8612 = vsub.s32 %v4283, %v8611
        %v8613 = vrot.slane %v8154, %v8612
        %v8614 = vsel %vm4288, %v8613, %v8609
        %v8615 = vlaneseq
        %v8616 = vshrl.u32 %v8615, 7
        %v8617 = vsub.s32 %v4290, %v8616
        %v8618 = vrot.slane %v8155, %v8617
        %v8619 = vsel %vm4295, %v8618, %v8614
        %v8620 = vlaneseq
        %v8621 = vshrl.u32 %v8620, 7
        %v8622 = vsub.s32 %v4297, %v8621
        %v8623 = vrot.slane %v8156, %v8622
        %v8624 = vsel %vm4302, %v8623, %v8619
        %v8625 = vlaneseq
        %v8626 = vshrl.u32 %v8625, 7
        %v8627 = vsub.s32 %v4304, %v8626
        %v8628 = vrot.slane %v8157, %v8627
        %v8629 = vsel %vm4309, %v8628, %v8624
        %v8630 = vlaneseq
        %v8631 = vshrl.u32 %v8630, 7
        %v8632 = vsub.s32 %v4311, %v8631
        %v8633 = vrot.slane %v8158, %v8632
        %v8634 = vsel %vm4316, %v8633, %v8629
        %v8635 = vlaneseq
        %v8636 = vshrl.u32 %v8635, 7
        %v8637 = vsub.s32 %v4318, %v8636
        %v8638 = vrot.slane %v8159, %v8637
        %v8639 = vsel %vm4323, %v8638, %v8634
        %v8640 = vlaneseq
        %v8641 = vshrl.u32 %v8640, 7
        %v8642 = vsub.s32 %v4325, %v8641
        %v8643 = vrot.slane %v8160, %v8642
        %v8644 = vsel %vm4330, %v8643, %v8639
        %v8645 = vlaneseq
        %v8646 = vshrl.u32 %v8645, 7
        %v8647 = vsub.s32 %v4332, %v8646
        %v8648 = vrot.slane %v8161, %v8647
        %v8649 = vsel %vm4337, %v8648, %v8644
        %v8650 = vlaneseq
        %v8651 = vshrl.u32 %v8650, 7
        %v8652 = vsub.s32 %v4339, %v8651
        %v8653 = vrot.slane %v8162, %v8652
        %v8654 = vsel %vm4344, %v8653, %v8649
        %v8655 = vlaneseq
        %v8656 = vshrl.u32 %v8655, 7
        %v8657 = vsub.s32 %v4346, %v8656
        %v8658 = vrot.slane %v8163, %v8657
        %v8659 = vsel %vm4351, %v8658, %v8654
        %v8660 = vlaneseq
        %v8661 = vshrl.u32 %v8660, 7
        %v8662 = vsub.s32 %v4353, %v8661
        %v8663 = vrot.slane %v8164, %v8662
        %v8664 = vsel %vm4358, %v8663, %v8659
        %v8665 = vlaneseq
        %v8666 = vshrl.u32 %v8665, 7
        %v8667 = vsub.s32 %v4360, %v8666
        %v8668 = vrot.slane %v8165, %v8667
        %v8669 = vsel %vm4365, %v8668, %v8664
        %v8670 = vlaneseq
        %v8671 = vshrl.u32 %v8670, 7
        %v8672 = vsub.s32 %v4367, %v8671
        %v8673 = vrot.slane %v8166, %v8672
        %v8674 = vsel %vm4372, %v8673, %v8669
        %v8675 = vlaneseq
        %v8676 = vshrl.u32 %v8675, 7
        %v8677 = vsub.s32 %v4264, %v8676
        %v8678 = vrot.slane %v8167, %v8677
        %v8679 = vlaneseq
        %v8680 = vshrl.u32 %v8679, 7
        %v8681 = vsub.s32 %v4269, %v8680
        %v8682 = vrot.slane %v8168, %v8681
        %v8683 = vsel %vm4274, %v8682, %v8678
        %v8684 = vlaneseq
        %v8685 = vshrl.u32 %v8684, 7
        %v8686 = vsub.s32 %v4276, %v8685
        %v8687 = vrot.slane %v8169, %v8686
        %v8688 = vsel %vm4281, %v8687, %v8683
        %v8689 = vlaneseq
        %v8690 = vshrl.u32 %v8689, 7
        %v8691 = vsub.s32 %v4283, %v8690
        %v8692 = vrot.slane %v8170, %v8691
        %v8693 = vsel %vm4288, %v8692, %v8688
        %v8694 = vlaneseq
        %v8695 = vshrl.u32 %v8694, 7
        %v8696 = vsub.s32 %v4290, %v8695
        %v8697 = vrot.slane %v8171, %v8696
        %v8698 = vsel %vm4295, %v8697, %v8693
        %v8699 = vlaneseq
        %v8700 = vshrl.u32 %v8699, 7
        %v8701 = vsub.s32 %v4297, %v8700
        %v8702 = vrot.slane %v8172, %v8701
        %v8703 = vsel %vm4302, %v8702, %v8698
        %v8704 = vlaneseq
        %v8705 = vshrl.u32 %v8704, 7
        %v8706 = vsub.s32 %v4304, %v8705
        %v8707 = vrot.slane %v8173, %v8706
        %v8708 = vsel %vm4309, %v8707, %v8703
        %v8709 = vlaneseq
        %v8710 = vshrl.u32 %v8709, 7
        %v8711 = vsub.s32 %v4311, %v8710
        %v8712 = vrot.slane %v8174, %v8711
        %v8713 = vsel %vm4316, %v8712, %v8708
        %v8714 = vlaneseq
        %v8715 = vshrl.u32 %v8714, 7
        %v8716 = vsub.s32 %v4318, %v8715
        %v8717 = vrot.slane %v8175, %v8716
        %v8718 = vsel %vm4323, %v8717, %v8713
        %v8719 = vlaneseq
        %v8720 = vshrl.u32 %v8719, 7
        %v8721 = vsub.s32 %v4325, %v8720
        %v8722 = vrot.slane %v8176, %v8721
        %v8723 = vsel %vm4330, %v8722, %v8718
        %v8724 = vlaneseq
        %v8725 = vshrl.u32 %v8724, 7
        %v8726 = vsub.s32 %v4332, %v8725
        %v8727 = vrot.slane %v8177, %v8726
        %v8728 = vsel %vm4337, %v8727, %v8723
        %v8729 = vlaneseq
        %v8730 = vshrl.u32 %v8729, 7
        %v8731 = vsub.s32 %v4339, %v8730
        %v8732 = vrot.slane %v8178, %v8731
        %v8733 = vsel %vm4344, %v8732, %v8728
        %v8734 = vlaneseq
        %v8735 = vshrl.u32 %v8734, 7
        %v8736 = vsub.s32 %v4346, %v8735
        %v8737 = vrot.slane %v8179, %v8736
        %v8738 = vsel %vm4351, %v8737, %v8733
        %v8739 = vlaneseq
        %v8740 = vshrl.u32 %v8739, 7
        %v8741 = vsub.s32 %v4353, %v8740
        %v8742 = vrot.slane %v8180, %v8741
        %v8743 = vsel %vm4358, %v8742, %v8738
        %v8744 = vlaneseq
        %v8745 = vshrl.u32 %v8744, 7
        %v8746 = vsub.s32 %v4360, %v8745
        %v8747 = vrot.slane %v8181, %v8746
        %v8748 = vsel %vm4365, %v8747, %v8743
        %v8749 = vlaneseq
        %v8750 = vshrl.u32 %v8749, 7
        %v8751 = vsub.s32 %v4367, %v8750
        %v8752 = vrot.slane %v8182, %v8751
        %v8753 = vsel %vm4372, %v8752, %v8748
        %v8754 = vlaneseq
        %v8755 = vshrl.u32 %v8754, 7
        %v8756 = vsub.s32 %v4264, %v8755
        %v8757 = vrot.slane %v8183, %v8756
        %v8758 = vlaneseq
        %v8759 = vshrl.u32 %v8758, 7
        %v8760 = vsub.s32 %v4269, %v8759
        %v8761 = vrot.slane %v8184, %v8760
        %v8762 = vsel %vm4274, %v8761, %v8757
        %v8763 = vlaneseq
        %v8764 = vshrl.u32 %v8763, 7
        %v8765 = vsub.s32 %v4276, %v8764
        %v8766 = vrot.slane %v8185, %v8765
        %v8767 = vsel %vm4281, %v8766, %v8762
        %v8768 = vlaneseq
        %v8769 = vshrl.u32 %v8768, 7
        %v8770 = vsub.s32 %v4283, %v8769
        %v8771 = vrot.slane %v8186, %v8770
        %v8772 = vsel %vm4288, %v8771, %v8767
        %v8773 = vlaneseq
        %v8774 = vshrl.u32 %v8773, 7
        %v8775 = vsub.s32 %v4290, %v8774
        %v8776 = vrot.slane %v8187, %v8775
        %v8777 = vsel %vm4295, %v8776, %v8772
        %v8778 = vlaneseq
        %v8779 = vshrl.u32 %v8778, 7
        %v8780 = vsub.s32 %v4297, %v8779
        %v8781 = vrot.slane %v8188, %v8780
        %v8782 = vsel %vm4302, %v8781, %v8777
        %v8783 = vlaneseq
        %v8784 = vshrl.u32 %v8783, 7
        %v8785 = vsub.s32 %v4304, %v8784
        %v8786 = vrot.slane %v8189, %v8785
        %v8787 = vsel %vm4309, %v8786, %v8782
        %v8788 = vlaneseq
        %v8789 = vshrl.u32 %v8788, 7
        %v8790 = vsub.s32 %v4311, %v8789
        %v8791 = vrot.slane %v8190, %v8790
        %v8792 = vsel %vm4316, %v8791, %v8787
        %v8793 = vlaneseq
        %v8794 = vshrl.u32 %v8793, 7
        %v8795 = vsub.s32 %v4318, %v8794
        %v8796 = vrot.slane %v8191, %v8795
        %v8797 = vsel %vm4323, %v8796, %v8792
        %v8798 = vlaneseq
        %v8799 = vshrl.u32 %v8798, 7
        %v8800 = vsub.s32 %v4325, %v8799
        %v8801 = vrot.slane %v8192, %v8800
        %v8802 = vsel %vm4330, %v8801, %v8797
        %v8803 = vlaneseq
        %v8804 = vshrl.u32 %v8803, 7
        %v8805 = vsub.s32 %v4332, %v8804
        %v8806 = vrot.slane %v8193, %v8805
        %v8807 = vsel %vm4337, %v8806, %v8802
        %v8808 = vlaneseq
        %v8809 = vshrl.u32 %v8808, 7
        %v8810 = vsub.s32 %v4339, %v8809
        %v8811 = vrot.slane %v8194, %v8810
        %v8812 = vsel %vm4344, %v8811, %v8807
        %v8813 = vlaneseq
        %v8814 = vshrl.u32 %v8813, 7
        %v8815 = vsub.s32 %v4346, %v8814
        %v8816 = vrot.slane %v8195, %v8815
        %v8817 = vsel %vm4351, %v8816, %v8812
        %v8818 = vlaneseq
        %v8819 = vshrl.u32 %v8818, 7
        %v8820 = vsub.s32 %v4353, %v8819
        %v8821 = vrot.slane %v8196, %v8820
        %v8822 = vsel %vm4358, %v8821, %v8817
        %v8823 = vlaneseq
        %v8824 = vshrl.u32 %v8823, 7
        %v8825 = vsub.s32 %v4360, %v8824
        %v8826 = vrot.slane %v8197, %v8825
        %v8827 = vsel %vm4365, %v8826, %v8822
        %v8828 = vlaneseq
        %v8829 = vshrl.u32 %v8828, 7
        %v8830 = vsub.s32 %v4367, %v8829
        %v8831 = vrot.slane %v8198, %v8830
        %v8832 = vsel %vm4372, %v8831, %v8827
        %v8833 = vlaneseq
        %v8834 = vshrl.u32 %v8833, 7
        %v8835 = vsub.s32 %v4264, %v8834
        %v8836 = vrot.slane %v8199, %v8835
        %v8837 = vlaneseq
        %v8838 = vshrl.u32 %v8837, 7
        %v8839 = vsub.s32 %v4269, %v8838
        %v8840 = vrot.slane %v8200, %v8839
        %v8841 = vsel %vm4274, %v8840, %v8836
        %v8842 = vlaneseq
        %v8843 = vshrl.u32 %v8842, 7
        %v8844 = vsub.s32 %v4276, %v8843
        %v8845 = vrot.slane %v8201, %v8844
        %v8846 = vsel %vm4281, %v8845, %v8841
        %v8847 = vlaneseq
        %v8848 = vshrl.u32 %v8847, 7
        %v8849 = vsub.s32 %v4283, %v8848
        %v8850 = vrot.slane %v8202, %v8849
        %v8851 = vsel %vm4288, %v8850, %v8846
        %v8852 = vlaneseq
        %v8853 = vshrl.u32 %v8852, 7
        %v8854 = vsub.s32 %v4290, %v8853
        %v8855 = vrot.slane %v8203, %v8854
        %v8856 = vsel %vm4295, %v8855, %v8851
        %v8857 = vlaneseq
        %v8858 = vshrl.u32 %v8857, 7
        %v8859 = vsub.s32 %v4297, %v8858
        %v8860 = vrot.slane %v8204, %v8859
        %v8861 = vsel %vm4302, %v8860, %v8856
        %v8862 = vlaneseq
        %v8863 = vshrl.u32 %v8862, 7
        %v8864 = vsub.s32 %v4304, %v8863
        %v8865 = vrot.slane %v8205, %v8864
        %v8866 = vsel %vm4309, %v8865, %v8861
        %v8867 = vlaneseq
        %v8868 = vshrl.u32 %v8867, 7
        %v8869 = vsub.s32 %v4311, %v8868
        %v8870 = vrot.slane %v8206, %v8869
        %v8871 = vsel %vm4316, %v8870, %v8866
        %v8872 = vlaneseq
        %v8873 = vshrl.u32 %v8872, 7
        %v8874 = vsub.s32 %v4318, %v8873
        %v8875 = vrot.slane %v8207, %v8874
        %v8876 = vsel %vm4323, %v8875, %v8871
        %v8877 = vlaneseq
        %v8878 = vshrl.u32 %v8877, 7
        %v8879 = vsub.s32 %v4325, %v8878
        %v8880 = vrot.slane %v8208, %v8879
        %v8881 = vsel %vm4330, %v8880, %v8876
        %v8882 = vlaneseq
        %v8883 = vshrl.u32 %v8882, 7
        %v8884 = vsub.s32 %v4332, %v8883
        %v8885 = vrot.slane %v8209, %v8884
        %v8886 = vsel %vm4337, %v8885, %v8881
        %v8887 = vlaneseq
        %v8888 = vshrl.u32 %v8887, 7
        %v8889 = vsub.s32 %v4339, %v8888
        %v8890 = vrot.slane %v8210, %v8889
        %v8891 = vsel %vm4344, %v8890, %v8886
        %v8892 = vlaneseq
        %v8893 = vshrl.u32 %v8892, 7
        %v8894 = vsub.s32 %v4346, %v8893
        %v8895 = vrot.slane %v8211, %v8894
        %v8896 = vsel %vm4351, %v8895, %v8891
        %v8897 = vlaneseq
        %v8898 = vshrl.u32 %v8897, 7
        %v8899 = vsub.s32 %v4353, %v8898
        %v8900 = vrot.slane %v8212, %v8899
        %v8901 = vsel %vm4358, %v8900, %v8896
        %v8902 = vlaneseq
        %v8903 = vshrl.u32 %v8902, 7
        %v8904 = vsub.s32 %v4360, %v8903
        %v8905 = vrot.slane %v8213, %v8904
        %v8906 = vsel %vm4365, %v8905, %v8901
        %v8907 = vlaneseq
        %v8908 = vshrl.u32 %v8907, 7
        %v8909 = vsub.s32 %v4367, %v8908
        %v8910 = vrot.slane %v8214, %v8909
        %v8911 = vsel %vm4372, %v8910, %v8906
        %v8912 = vlaneseq
        %v8913 = vshrl.u32 %v8912, 7
        %v8914 = vsub.s32 %v4264, %v8913
        %v8915 = vrot.slane %v8215, %v8914
        %v8916 = vlaneseq
        %v8917 = vshrl.u32 %v8916, 7
        %v8918 = vsub.s32 %v4269, %v8917
        %v8919 = vrot.slane %v8216, %v8918
        %v8920 = vsel %vm4274, %v8919, %v8915
        %v8921 = vlaneseq
        %v8922 = vshrl.u32 %v8921, 7
        %v8923 = vsub.s32 %v4276, %v8922
        %v8924 = vrot.slane %v8217, %v8923
        %v8925 = vsel %vm4281, %v8924, %v8920
        %v8926 = vlaneseq
        %v8927 = vshrl.u32 %v8926, 7
        %v8928 = vsub.s32 %v4283, %v8927
        %v8929 = vrot.slane %v8218, %v8928
        %v8930 = vsel %vm4288, %v8929, %v8925
        %v8931 = vlaneseq
        %v8932 = vshrl.u32 %v8931, 7
        %v8933 = vsub.s32 %v4290, %v8932
        %v8934 = vrot.slane %v8219, %v8933
        %v8935 = vsel %vm4295, %v8934, %v8930
        %v8936 = vlaneseq
        %v8937 = vshrl.u32 %v8936, 7
        %v8938 = vsub.s32 %v4297, %v8937
        %v8939 = vrot.slane %v8220, %v8938
        %v8940 = vsel %vm4302, %v8939, %v8935
        %v8941 = vlaneseq
        %v8942 = vshrl.u32 %v8941, 7
        %v8943 = vsub.s32 %v4304, %v8942
        %v8944 = vrot.slane %v8221, %v8943
        %v8945 = vsel %vm4309, %v8944, %v8940
        %v8946 = vlaneseq
        %v8947 = vshrl.u32 %v8946, 7
        %v8948 = vsub.s32 %v4311, %v8947
        %v8949 = vrot.slane %v8222, %v8948
        %v8950 = vsel %vm4316, %v8949, %v8945
        %v8951 = vlaneseq
        %v8952 = vshrl.u32 %v8951, 7
        %v8953 = vsub.s32 %v4318, %v8952
        %v8954 = vrot.slane %v8223, %v8953
        %v8955 = vsel %vm4323, %v8954, %v8950
        %v8956 = vlaneseq
        %v8957 = vshrl.u32 %v8956, 7
        %v8958 = vsub.s32 %v4325, %v8957
        %v8959 = vrot.slane %v8224, %v8958
        %v8960 = vsel %vm4330, %v8959, %v8955
        %v8961 = vlaneseq
        %v8962 = vshrl.u32 %v8961, 7
        %v8963 = vsub.s32 %v4332, %v8962
        %v8964 = vrot.slane %v8225, %v8963
        %v8965 = vsel %vm4337, %v8964, %v8960
        %v8966 = vlaneseq
        %v8967 = vshrl.u32 %v8966, 7
        %v8968 = vsub.s32 %v4339, %v8967
        %v8969 = vrot.slane %v8226, %v8968
        %v8970 = vsel %vm4344, %v8969, %v8965
        %v8971 = vlaneseq
        %v8972 = vshrl.u32 %v8971, 7
        %v8973 = vsub.s32 %v4346, %v8972
        %v8974 = vrot.slane %v8227, %v8973
        %v8975 = vsel %vm4351, %v8974, %v8970
        %v8976 = vlaneseq
        %v8977 = vshrl.u32 %v8976, 7
        %v8978 = vsub.s32 %v4353, %v8977
        %v8979 = vrot.slane %v8228, %v8978
        %v8980 = vsel %vm4358, %v8979, %v8975
        %v8981 = vlaneseq
        %v8982 = vshrl.u32 %v8981, 7
        %v8983 = vsub.s32 %v4360, %v8982
        %v8984 = vrot.slane %v8229, %v8983
        %v8985 = vsel %vm4365, %v8984, %v8980
        %v8986 = vlaneseq
        %v8987 = vshrl.u32 %v8986, 7
        %v8988 = vsub.s32 %v4367, %v8987
        %v8989 = vrot.slane %v8230, %v8988
        %v8990 = vsel %vm4372, %v8989, %v8985
        %v8991 = vsel %vm4927, %v8437, %v8437
        %v8992 = vsel %vm4929, %v8437, %v8991
        %v8993 = vsel %vm4931, %v8437, %v8992
        %v8994 = vsel %vm4933, %v8437, %v8993
        %v8995 = vsel %vm4935, %v8437, %v8994
        %v8996 = vsel %vm4937, %v8437, %v8995
        %v8997 = vsel %vm4927, %v8516, %v8516
        %v8998 = vsel %vm4929, %v8516, %v8997
        %v8999 = vsel %vm4931, %v8516, %v8998
        %v9000 = vsel %vm4933, %v8516, %v8999
        %v9001 = vsel %vm4935, %v8516, %v9000
        %v9002 = vsel %vm4937, %v8516, %v9001
        %v9003 = vsel %vm4927, %v8595, %v8595
        %v9004 = vsel %vm4929, %v8595, %v9003
        %v9005 = vsel %vm4931, %v8595, %v9004
        %v9006 = vsel %vm4933, %v8595, %v9005
        %v9007 = vsel %vm4935, %v8595, %v9006
        %v9008 = vsel %vm4937, %v8595, %v9007
        %v9009 = vsel %vm4927, %v8674, %v8674
        %v9010 = vsel %vm4929, %v8674, %v9009
        %v9011 = vsel %vm4931, %v8674, %v9010
        %v9012 = vsel %vm4933, %v8674, %v9011
        %v9013 = vsel %vm4935, %v8674, %v9012
        %v9014 = vsel %vm4937, %v8674, %v9013
        %v9015 = vsel %vm4927, %v8753, %v8753
        %v9016 = vsel %vm4929, %v8753, %v9015
        %v9017 = vsel %vm4931, %v8753, %v9016
        %v9018 = vsel %vm4933, %v8753, %v9017
        %v9019 = vsel %vm4935, %v8753, %v9018
        %v9020 = vsel %vm4937, %v8753, %v9019
        %v9021 = vsel %vm4927, %v8832, %v8832
        %v9022 = vsel %vm4929, %v8832, %v9021
        %v9023 = vsel %vm4931, %v8832, %v9022
        %v9024 = vsel %vm4933, %v8832, %v9023
        %v9025 = vsel %vm4935, %v8832, %v9024
        %v9026 = vsel %vm4937, %v8832, %v9025
        %v9027 = vsel %vm4927, %v8911, %v8911
        %v9028 = vsel %vm4929, %v8911, %v9027
        %v9029 = vsel %vm4931, %v8911, %v9028
        %v9030 = vsel %vm4933, %v8911, %v9029
        %v9031 = vsel %vm4935, %v8911, %v9030
        %v9032 = vsel %vm4937, %v8911, %v9031
        %v9033 = vsel %vm4927, %v8990, %v8990
        %v9034 = vsel %vm4929, %v8990, %v9033
        %v9035 = vsel %vm4931, %v8990, %v9034
        %v9036 = vsel %vm4933, %v8990, %v9035
        %v9037 = vsel %vm4935, %v8990, %v9036
        %v9038 = vsel %vm4937, %v8990, %v9037
        %v9047 = vmul.f32 %v7966, %v8996
        %v9048 = vmul.f32 %v7968, %v9002
        %v9049 = vmul.f32 %v7970, %v8996
        %v9050 = vmul.f32 %v7972, %v9002
        %v9051 = vmul.f32 %v8009, %v9008
        %v9052 = vmul.f32 %v8011, %v9014
        %v9053 = vmul.f32 %v8013, %v9008
        %v9054 = vmul.f32 %v8015, %v9014
        %v9055 = vmul.f32 %v8052, %v9020
        %v9056 = vmul.f32 %v8054, %v9026
        %v9057 = vmul.f32 %v8056, %v9020
        %v9058 = vmul.f32 %v8058, %v9026
        %v9059 = vmul.f32 %v8095, %v9032
        %v9060 = vmul.f32 %v8097, %v9038
        %v9061 = vmul.f32 %v8099, %v9032
        %v9062 = vmul.f32 %v8101, %v9038
        %v9063 = vadd.f32 %v9047, %v9048
        %v9064 = vadd.f32 %v9063, %v9049
        %v9065 = vadd.f32 %v9064, %v9050
        %v9066 = vadd.f32 %v9065, %v9051
        %v9067 = vadd.f32 %v9066, %v9052
        %v9068 = vadd.f32 %v9067, %v9053
        %v9069 = vadd.f32 %v9068, %v9054
        %v9070 = vadd.f32 %v9069, %v9055
        %v9071 = vadd.f32 %v9070, %v9056
        %v9072 = vadd.f32 %v9071, %v9057
        %v9073 = vadd.f32 %v9072, %v9058
        %v9074 = vadd.f32 %v9073, %v9059
        %v9075 = vadd.f32 %v9074, %v9060
        %v9076 = vadd.f32 %v9075, %v9061
        %v9077 = vadd.f32 %v9076, %v9062
        %9078 = vadd.xlane.f32.xlu0 %v9077
        %v9079 = vpop.xlane.xlu0 %9078
        %v9080 = vrot.slane %v9079, 4
        %v9081 = vadd.f32 %v9079, %v9080
        %v9082 = vrot.slane %v9081, 2
        %v9083 = vadd.f32 %v9081, %v9082
        %v9084 = vrot.slane %v9083, 1
        %v9085 = vadd.f32 %v9083, %v9084
        %s9086 = vtos %v9085
        %v9087 = vmul.f32 %v9047, %v9047
        %v9088 = vmul.f32 %v9048, %v9048
        %v9089 = vmul.f32 %v9049, %v9049
        %v9090 = vmul.f32 %v9050, %v9050
        %v9091 = vmul.f32 %v9051, %v9051
        %v9092 = vmul.f32 %v9052, %v9052
        %v9093 = vmul.f32 %v9053, %v9053
        %v9094 = vmul.f32 %v9054, %v9054
        %v9095 = vmul.f32 %v9055, %v9055
        %v9096 = vmul.f32 %v9056, %v9056
        %v9097 = vmul.f32 %v9057, %v9057
        %v9098 = vmul.f32 %v9058, %v9058
        %v9099 = vmul.f32 %v9059, %v9059
        %v9100 = vmul.f32 %v9060, %v9060
        %v9101 = vmul.f32 %v9061, %v9061
        %v9102 = vmul.f32 %v9062, %v9062
        %v9103 = vadd.f32 %v9087, %v9088
        %v9104 = vadd.f32 %v9103, %v9089
        %v9105 = vadd.f32 %v9104, %v9090
        %v9106 = vadd.f32 %v9105, %v9091
        %v9107 = vadd.f32 %v9106, %v9092
        %v9108 = vadd.f32 %v9107, %v9093
        %v9109 = vadd.f32 %v9108, %v9094
        %v9110 = vadd.f32 %v9109, %v9095
        %v9111 = vadd.f32 %v9110, %v9096
        %v9112 = vadd.f32 %v9111, %v9097
        %v9113 = vadd.f32 %v9112, %v9098
        %v9114 = vadd.f32 %v9113, %v9099
        %v9115 = vadd.f32 %v9114, %v9100
        %v9116 = vadd.f32 %v9115, %v9101
        %v9117 = vadd.f32 %v9116, %v9102
        %9118 = vadd.xlane.f32.xlu0 %v9117
        %v9119 = vpop.xlane.xlu0 %9118
        %v9120 = vrot.slane %v9119, 4
        %v9121 = vadd.f32 %v9119, %v9120
        %v9122 = vrot.slane %v9121, 2
        %v9123 = vadd.f32 %v9121, %v9122
        %v9124 = vrot.slane %v9123, 1
        %v9125 = vadd.f32 %v9123, %v9124
        %s9126 = vtos %v9125
        %s9127 = smul.f32 %s9086, 6.1035156e-05
        %s9128 = smul.f32 %s9126, 6.1035156e-05
        %s9129 = smul.f32 %s9127, %s9127
        %s9130 = ssub.f32 %s9128, %s9129
        %s9131 = sadd.f32 %s9130, 1e-05
        %v9132 = vstv %s9131
        %v9133 = vrsqrt.pop %v9132
        %s9134 = vtos %v9133
        %v9135 = vstv %s9134
        %v9136 = vmul.f32 %v1006, %v9135
        %v9137 = vmul.f32 %v1007, %v9135
        %v9138 = vmul.f32 %v1008, %v9135
        %v9139 = vmul.f32 %v1009, %v9135
        %v9140 = vmul.f32 %v1010, %v9135
        %v9141 = vmul.f32 %v1011, %v9135
        %v9142 = vmul.f32 %v1012, %v9135
        %v9143 = vmul.f32 %v1013, %v9135
        %v9144 = vmul.f32 %v1014, %v9135
        %v9145 = vmul.f32 %v1015, %v9135
        %v9146 = vmul.f32 %v1016, %v9135
        %v9147 = vmul.f32 %v1017, %v9135
        %v9148 = vmul.f32 %v1018, %v9135
        %v9149 = vmul.f32 %v1019, %v9135
        %v9150 = vmul.f32 %v1020, %v9135
        %v9151 = vmul.f32 %v1021, %v9135
        %v9152 = vstv %s9127
        %v9153 = vsub.f32 %v9047, %v9152
        %v9154 = vsub.f32 %v9048, %v9152
        %v9155 = vsub.f32 %v9049, %v9152
        %v9156 = vsub.f32 %v9050, %v9152
        %v9157 = vsub.f32 %v9051, %v9152
        %v9158 = vsub.f32 %v9052, %v9152
        %v9159 = vsub.f32 %v9053, %v9152
        %v9160 = vsub.f32 %v9054, %v9152
        %v9161 = vsub.f32 %v9055, %v9152
        %v9162 = vsub.f32 %v9056, %v9152
        %v9163 = vsub.f32 %v9057, %v9152
        %v9164 = vsub.f32 %v9058, %v9152
        %v9165 = vsub.f32 %v9059, %v9152
        %v9166 = vsub.f32 %v9060, %v9152
        %v9167 = vsub.f32 %v9061, %v9152
        %v9168 = vsub.f32 %v9062, %v9152
        %v9169 = vmul.f32 %v9153, %v9136
        %v9170 = vmul.f32 %v9154, %v9137
        %v9171 = vmul.f32 %v9155, %v9138
        %v9172 = vmul.f32 %v9156, %v9139
        %v9173 = vmul.f32 %v9157, %v9140
        %v9174 = vmul.f32 %v9158, %v9141
        %v9175 = vmul.f32 %v9159, %v9142
        %v9176 = vmul.f32 %v9160, %v9143
        %v9177 = vmul.f32 %v9161, %v9144
        %v9178 = vmul.f32 %v9162, %v9145
        %v9179 = vmul.f32 %v9163, %v9146
        %v9180 = vmul.f32 %v9164, %v9147
        %v9181 = vmul.f32 %v9165, %v9148
        %v9182 = vmul.f32 %v9166, %v9149
        %v9183 = vmul.f32 %v9167, %v9150
        %v9184 = vmul.f32 %v9168, %v9151
        %v9185 = vadd.f32 %v9169, %v1022
        %v9186 = vadd.f32 %v9170, %v1023
        %v9187 = vadd.f32 %v9171, %v1024
        %v9188 = vadd.f32 %v9172, %v1025
        %v9189 = vadd.f32 %v9173, %v1026
        %v9190 = vadd.f32 %v9174, %v1027
        %v9191 = vadd.f32 %v9175, %v1028
        %v9192 = vadd.f32 %v9176, %v1029
        %v9193 = vadd.f32 %v9177, %v1030
        %v9194 = vadd.f32 %v9178, %v1031
        %v9195 = vadd.f32 %v9179, %v1032
        %v9196 = vadd.f32 %v9180, %v1033
        %v9197 = vadd.f32 %v9181, %v1034
        %v9198 = vadd.f32 %v9182, %v1035
        %v9199 = vadd.f32 %v9183, %v1036
        %v9200 = vadd.f32 %v9184, %v1037
        %v9201 = vadd.f32 %v9185, %v333
        %v9202 = vadd.f32 %v9186, %v334
        %v9203 = vadd.f32 %v9187, %v337
        %v9204 = vadd.f32 %v9188, %v338
        %v9205 = vadd.f32 %v9189, %v341
        %v9206 = vadd.f32 %v9190, %v342
        %v9207 = vadd.f32 %v9191, %v345
        %v9208 = vadd.f32 %v9192, %v346
        %v9209 = vadd.f32 %v9193, %v349
        %v9210 = vadd.f32 %v9194, %v350
        %v9211 = vadd.f32 %v9195, %v353
        %v9212 = vadd.f32 %v9196, %v354
        %v9213 = vadd.f32 %v9197, %v357
        %v9214 = vadd.f32 %v9198, %v358
        %v9215 = vadd.f32 %v9199, %v361
        %v9216 = vadd.f32 %v9200, %v362
        %9217 = vst [vmem:[%s327 + $0x10] sm:$0xff] %v9201
        %9218 = vst [vmem:[%s327 + $0x18] sm:$0xff] %v9202
        %9219 = vst [vmem:[%s327 + $0x30] sm:$0xff] %v9203
        %9220 = vst [vmem:[%s327 + $0x38] sm:$0xff] %v9204
        %9221 = vst [vmem:[%s327 + $0x50] sm:$0xff] %v9205
        %9222 = vst [vmem:[%s327 + $0x58] sm:$0xff] %v9206
        %9223 = vst [vmem:[%s327 + $0x70] sm:$0xff] %v9207
        %9224 = vst [vmem:[%s327 + $0x78] sm:$0xff] %v9208
        %9225 = vst [vmem:[%s327 + $0x90] sm:$0xff] %v9209
        %9226 = vst [vmem:[%s327 + $0x98] sm:$0xff] %v9210
        %9227 = vst [vmem:[%s327 + $0xb0] sm:$0xff] %v9211
        %9228 = vst [vmem:[%s327 + $0xb8] sm:$0xff] %v9212
        %9229 = vst [vmem:[%s327 + $0xd0] sm:$0xff] %v9213
        %9230 = vst [vmem:[%s327 + $0xd8] sm:$0xff] %v9214
        %9231 = vst [vmem:[%s327 + $0xf0] sm:$0xff] %v9215
        %9232 = vst [vmem:[%s327 + $0xf8] sm:$0xff] %v9216
        %s9233 = sand.u32 %s156, 1
        %s9234 = sand.u32 %s156, 1
        %s9235 = smul.addr %s9234, 256
        %s9236 = scalar_lea.vmem [#allocation3], %s9235
        // Predicated region
        $region68: #{mhsa_forward.1} parent=62 // pred_check
          %p9237 = pneg %p166
        $region69: #{mhsa_forward.1} parent=62 // pred_check_branch
          %9239 = sbr.rel (%p9237) target = $region71
        $region70: #{mhsa_forward.1} parent=62 // pred_region
          %s9240 = smul.u32 4, %s17
          %s9241 = smul.addr %s9240, 8
          %s9242 = scalar_lea.vmem %s6, %s9241
          // Predicated region
          $region72: #{mhsa_forward.1} parent=70 // pred_check
            _
          $region73: #{mhsa_forward.1} parent=70 // pred_check_branch
            %9244 = sbr.rel (0) target = $region75
          $region74: #{mhsa_forward.1} parent=70 // pred_region
            // Predicated region
            $region76: #{mhsa_forward.1} parent=74 // pred_check
              _
            $region77: #{mhsa_forward.1} parent=74 // pred_check_branch
              %9246 = sbr.rel (0) target = $region79
            $region78: #{mhsa_forward.1} parent=74 // pred_region
              loop: start=0, step=1, limit=1
              $region80: #{mhsa_forward.1} parent=78 // loop_pre_header
                _
              $region81: #{mhsa_forward.1} parent=78 // loop_header
                %s9248 = sphi 0, %s9252
                %p9249 = scmp.ge.s32.totalorder %s9248, 1
                %s9253 = sphi %s9236, %s9236
                %s9254 = sphi %s9242, %s9242
              $region82: #{mhsa_forward.1} parent=78 // loop_header_branch
                %9251 = sbr.rel (%p9249) target = $region86
              $region83: #{mhsa_forward.1} parent=78 // loop_body
                %v9255 = vld [vmem:[%s9253] sm:$0xff]
                %9256 = vst [vmem:[%s9254] sm:$0xff] %v9255
                %v9257 = vld [vmem:[%s9253 + $0x8] sm:$0xff]
                %9258 = vst [vmem:[%s9254 + $0x8] sm:$0xff] %v9257
                %v9259 = vld [vmem:[%s9253 + $0x10] sm:$0xff]
                %9260 = vst [vmem:[%s9254 + $0x10] sm:$0xff] %v9259
                %v9261 = vld [vmem:[%s9253 + $0x18] sm:$0xff]
                %9262 = vst [vmem:[%s9254 + $0x18] sm:$0xff] %v9261
                %v9263 = vld [vmem:[%s9253 + $0x20] sm:$0xff]
                %9264 = vst [vmem:[%s9254 + $0x40] sm:$0xff] %v9263
                %v9265 = vld [vmem:[%s9253 + $0x28] sm:$0xff]
                %9266 = vst [vmem:[%s9254 + $0x48] sm:$0xff] %v9265
                %v9267 = vld [vmem:[%s9253 + $0x30] sm:$0xff]
                %9268 = vst [vmem:[%s9254 + $0x50] sm:$0xff] %v9267
                %v9269 = vld [vmem:[%s9253 + $0x38] sm:$0xff]
                %9270 = vst [vmem:[%s9254 + $0x58] sm:$0xff] %v9269
                %v9271 = vld [vmem:[%s9253 + $0x40] sm:$0xff]
                %9272 = vst [vmem:[%s9254 + $0x80] sm:$0xff] %v9271
                %v9273 = vld [vmem:[%s9253 + $0x48] sm:$0xff]
                %9274 = vst [vmem:[%s9254 + $0x88] sm:$0xff] %v9273
                %v9275 = vld [vmem:[%s9253 + $0x50] sm:$0xff]
                %9276 = vst [vmem:[%s9254 + $0x90] sm:$0xff] %v9275
                %v9277 = vld [vmem:[%s9253 + $0x58] sm:$0xff]
                %9278 = vst [vmem:[%s9254 + $0x98] sm:$0xff] %v9277
                %v9279 = vld [vmem:[%s9253 + $0x60] sm:$0xff]
                %9280 = vst [vmem:[%s9254 + $0xc0] sm:$0xff] %v9279
                %v9281 = vld [vmem:[%s9253 + $0x68] sm:$0xff]
                %9282 = vst [vmem:[%s9254 + $0xc8] sm:$0xff] %v9281
                %v9283 = vld [vmem:[%s9253 + $0x70] sm:$0xff]
                %9284 = vst [vmem:[%s9254 + $0xd0] sm:$0xff] %v9283
                %v9285 = vld [vmem:[%s9253 + $0x78] sm:$0xff]
                %9286 = vst [vmem:[%s9254 + $0xd8] sm:$0xff] %v9285
                %v9287 = vld [vmem:[%s9253 + $0x80] sm:$0xff]
                %9288 = vst [vmem:[%s9254 + $0x100] sm:$0xff] %v9287
                %v9289 = vld [vmem:[%s9253 + $0x88] sm:$0xff]
                %9290 = vst [vmem:[%s9254 + $0x108] sm:$0xff] %v9289
                %v9291 = vld [vmem:[%s9253 + $0x90] sm:$0xff]
                %9292 = vst [vmem:[%s9254 + $0x110] sm:$0xff] %v9291
                %v9293 = vld [vmem:[%s9253 + $0x98] sm:$0xff]
                %9294 = vst [vmem:[%s9254 + $0x118] sm:$0xff] %v9293
                %v9295 = vld [vmem:[%s9253 + $0xa0] sm:$0xff]
                %9296 = vst [vmem:[%s9254 + $0x140] sm:$0xff] %v9295
                %v9297 = vld [vmem:[%s9253 + $0xa8] sm:$0xff]
                %9298 = vst [vmem:[%s9254 + $0x148] sm:$0xff] %v9297
                %v9299 = vld [vmem:[%s9253 + $0xb0] sm:$0xff]
                %9300 = vst [vmem:[%s9254 + $0x150] sm:$0xff] %v9299
                %v9301 = vld [vmem:[%s9253 + $0xb8] sm:$0xff]
                %9302 = vst [vmem:[%s9254 + $0x158] sm:$0xff] %v9301
                %v9303 = vld [vmem:[%s9253 + $0xc0] sm:$0xff]
                %9304 = vst [vmem:[%s9254 + $0x180] sm:$0xff] %v9303
                %v9305 = vld [vmem:[%s9253 + $0xc8] sm:$0xff]
                %9306 = vst [vmem:[%s9254 + $0x188] sm:$0xff] %v9305
                %v9307 = vld [vmem:[%s9253 + $0xd0] sm:$0xff]
                %9308 = vst [vmem:[%s9254 + $0x190] sm:$0xff] %v9307
                %v9309 = vld [vmem:[%s9253 + $0xd8] sm:$0xff]
                %9310 = vst [vmem:[%s9254 + $0x198] sm:$0xff] %v9309
                %v9311 = vld [vmem:[%s9253 + $0xe0] sm:$0xff]
                %9312 = vst [vmem:[%s9254 + $0x1c0] sm:$0xff] %v9311
                %v9313 = vld [vmem:[%s9253 + $0xe8] sm:$0xff]
                %9314 = vst [vmem:[%s9254 + $0x1c8] sm:$0xff] %v9313
                %v9315 = vld [vmem:[%s9253 + $0xf0] sm:$0xff]
                %9316 = vst [vmem:[%s9254 + $0x1d0] sm:$0xff] %v9315
                %v9317 = vld [vmem:[%s9253 + $0xf8] sm:$0xff]
                %9318 = vst [vmem:[%s9254 + $0x1d8] sm:$0xff] %v9317
              $region84: #{mhsa_forward.1} parent=78 // loop_footer
                %s9252 = sadd.s32 1, %s9248
              $region85: #{mhsa_forward.1} parent=78 // loop_footer_branch
                %9247 = sbr.rel target = $region81
              $region86: #{mhsa_forward.1} parent=78 // loop_exit
                _
            $region79: #{mhsa_forward.1} parent=74 // pred_fallthru
              _
            // Predicated region
            $region87: #{mhsa_forward.1} parent=74 // pred_check
              _
            $region88: #{mhsa_forward.1} parent=74 // pred_check_branch
              %9320 = sbr.rel target = $region90
            $region89: #{mhsa_forward.1} parent=74 // pred_region
              _
            $region90: #{mhsa_forward.1} parent=74 // pred_fallthru
              _
          $region75: #{mhsa_forward.1} parent=70 // pred_fallthru
            _
          %9321 = vnop
        $region71: #{mhsa_forward.1} parent=62 // pred_fallthru
          _
      $region63: #{mhsa_forward.1} parent=5 // pred_fallthru
        _
      %p9322 = scmp.le.s32.totalorder 2, %s12
      // Predicated region
      $region91: #{mhsa_forward.1} parent=5 // pred_check
        %p9323 = pneg %p9322
      $region92: #{mhsa_forward.1} parent=5 // pred_check_branch
        %9325 = sbr.rel (%p9323) target = $region94
      $region93: #{mhsa_forward.1} parent=5 // pred_region
        %s9326 = ssub.s32 %s12, 2
        // Predicated region
        $region95: #{mhsa_forward.1} parent=93 // pred_check
          %p9327 = pneg %p172
        $region96: #{mhsa_forward.1} parent=93 // pred_check_branch
          %9329 = sbr.rel (%p9327) target = $region98
        $region97: #{mhsa_forward.1} parent=93 // pred_region
          %s9330 = sand.u32 %s157, 1
          %s9331 = sand.u32 %s157, 1
          %s9332 = smul.addr %s9331, 256
          %s9333 = scalar_lea.vmem [#allocation3], %s9332
        $region98: #{mhsa_forward.1} parent=93 // pred_fallthru
          _
      $region94: #{mhsa_forward.1} parent=5 // pred_fallthru
        _
    $region6: #{mhsa_forward.1} parent=1 // loop_footer
      %s16 = sadd.s32 1, %s12
    $region7: #{mhsa_forward.1} parent=1 // loop_footer_branch
      %11 = sbr.rel target = $region3
    $region8: #{mhsa_forward.1} parent=1 // loop_exit
      _

</llo_original>
